<compile_context>
chip_gen: v6e
topology: v6e:2x2x1
jax: 0.10.0
libtpu: 0.0.40
codegen_flags: <defaults>
</compile_context>

<pallas_src>
import jax
import jax.numpy as jnp
from jax.experimental import pallas as pl
from jax.experimental.pallas import tpu as pltpu


def _gnn_layer_kernel(ep_ref, sp_ref, hc_ref, dt_ref, wbd_ref, wah_ref,
                      o_ref, acc_ref):
    """One (dst-tile, src-tile) step of the fused GNN layer."""
    j = pl.program_id(1)                       # src (reduction) axis, innermost

    @pl.when(j == 0)
    def _():
        acc_ref[...] = jnp.zeros_like(acc_ref)

    td, tg, kp = ep_ref.shape                  # (tile_dst, tile_src//P, P*edims)
    pd = sp_ref.shape[-1]                      # P * ndim_out
    d_out = acc_ref.shape[-1]                  # ndim_out
    p = pd // d_out

    # Per-edge message pre-activation, all sources of the tile in one
    # lane-dense K=128 MXU matmul against the block-diagonal edge weight:
    #   me[v, g, k*D:(k+1)*D] = (adj * e)[v, P*g + k, :] @ W_msg_edge
    me = jnp.dot(ep_ref[...].reshape(td * tg, kp), wbd_ref[...],
                 preferred_element_type=jnp.float32)
    # + hoisted src term s[u] (packed the same way), then relu.
    # (reshape only splits the leading dim: tg % 8 == 0, so it is layout-free)
    r = jnp.maximum(me.reshape(td, tg, pd) + sp_ref[...][None, :, :], 0.0)

    # Sum over the sources of this tile: over the packed groups (sublane axis),
    # then over the P lane blocks via static, vreg-aligned 128-lane slices.
    rg = jnp.sum(r, axis=1)                    # (td, P*D)
    part = rg[:, :d_out]
    for k in range(1, p):
        part = part + rg[:, k * d_out:(k + 1) * d_out]
    acc_ref[...] += part

    @pl.when(j == pl.num_programs(1) - 1)
    def _():
        # h_neigh = acc + hcorr, where hcorr = adj @ relu(s) - sum_u relu(s)
        # restores the masking of the src term (see header).  Adding it before
        # the apply matmul keeps the operand at its true (small) magnitude.
        h_neigh = acc_ref[...] + hc_ref[...]
        out = dt_ref[...] + jnp.dot(h_neigh, wah_ref[...],
                                    preferred_element_type=jnp.float32)
        o_ref[...] = jnp.maximum(out, 0.0).astype(o_ref.dtype)


def gnn_layer(nfeats, efeats, adj, w_msg, b_msg, w_apply, b_apply,
              *, tile_dst=64, tile_src=128):
    """Fused GNN_Layer forward.

    nfeats:  [N, ndim_in]                node features (f32)
    efeats:  [N, N, edims]               dense edge features (dst, src, edims)
    adj:     [N, N] int8                 adj[v,u]=1 iff edge u->v
    w_msg:   [ndim_in + edims, ndim_out] (input-major), b_msg: [ndim_out]
    w_apply: [ndim_in + ndim_out, ndim_out], b_apply: [ndim_out]
    returns  [N, ndim_out] f32
    """
    N, ndim_in = nfeats.shape
    edims = efeats.shape[-1]
    d_out = w_msg.shape[1]
    assert w_msg.shape[0] == ndim_in + edims
    assert w_apply.shape[0] == ndim_in + d_out
    assert 128 % edims == 0, "edge features are packed lane-dense to 128"
    p = 128 // edims
    assert d_out % 128 == 0, "lane-dense output / lane-block summation"
    assert tile_dst % 8 == 0 and tile_src % 128 == 0
    assert N % tile_dst == 0 and N % tile_src == 0
    tg = tile_src // p

    # ----------------- wrapper-side prep (small / streaming XLA ops) --------
    adj_f = adj.astype(jnp.float32)

    # (2) adjacency-masked, bf16, lane-dense packed edge features: the dominant
    #     HBM stream of the kernel.  Masking here is exact (0 * w == 0).
    e_packed = (efeats * adj_f[:, :, None]).astype(jnp.bfloat16)
    e_packed = e_packed.reshape(N, N // p, p * edims)

    # block-diagonal edge weight for the packed K=128 contraction.
    w_bd = jnp.kron(jnp.eye(p, dtype=jnp.float32),
                    w_msg[ndim_in:]).astype(jnp.bfloat16)        # (P*edims, P*D)

    # (3) hoisted per-src message term, packed to match e_packed's grouping.
    s = nfeats @ w_msg[:ndim_in] + b_msg                         # (N, D) f32
    s_packed = s.reshape(N // p, p * d_out)
    relu_s = jax.nn.relu(s)

    # (4) mask-correction term (see header) + hoisted per-dst apply term.
    hcorr = adj_f @ relu_s - jnp.sum(relu_s, axis=0, keepdims=True)   # (N, D)
    dst_term = nfeats @ w_apply[:ndim_in] + b_apply                   # (N, D)
    w_ah = w_apply[ndim_in:]                                          # (D, D) f32

    grid = (N // tile_dst, N // tile_src)

    return pl.pallas_call(
        _gnn_layer_kernel,
        out_shape=jax.ShapeDtypeStruct((N, d_out), jnp.float32),
        grid_spec=pltpu.PrefetchScalarGridSpec(
            num_scalar_prefetch=0,
            grid=grid,
            in_specs=[
                # packed masked edge features for this (dst, src) tile
                pl.BlockSpec((tile_dst, tg, p * edims), lambda i, j: (i, j, 0)),
                # packed hoisted src term for the current src tile
                pl.BlockSpec((tg, p * d_out), lambda i, j: (j, 0)),
                # per-dst mask correction and apply node term (used at last j)
                pl.BlockSpec((tile_dst, d_out), lambda i, j: (i, 0)),
                pl.BlockSpec((tile_dst, d_out), lambda i, j: (i, 0)),
                # weights (replicated; small, default double-buffering is fine)
                pl.BlockSpec((p * edims, p * d_out), lambda i, j: (0, 0)),
                pl.BlockSpec((d_out, d_out), lambda i, j: (0, 0)),
            ],
            # lane-dense output block; constant over the src (reduction) axis
            out_specs=pl.BlockSpec((tile_dst, d_out), lambda i, j: (i, 0)),
            scratch_shapes=[pltpu.VMEM((tile_dst, d_out), jnp.float32)],
        ),
        compiler_params=pltpu.CompilerParams(
            dimension_semantics=("parallel", "arbitrary"),
            vmem_limit_bytes=32 * 1024 * 1024,
        ),
    )(e_packed, s_packed, hcorr, dst_term, w_bd, w_ah)


# ----------------------- pure-JAX reference (for checking) ------------------
def _gnn_layer_ref(nfeats, efeats, adj, w_msg, b_msg, w_apply, b_apply):
    ndim_in = nfeats.shape[-1]
    src_term = nfeats @ w_msg[:ndim_in] + b_msg                   # (N, D)
    edge_term = jnp.einsum('vue,ed->vud', efeats, w_msg[ndim_in:])
    m = jax.nn.relu(src_term[None, :, :] + edge_term)             # (N, N, D)
    h_neigh = jnp.sum(m * adj.astype(jnp.float32)[:, :, None], axis=1)
    z = jnp.concatenate([nfeats, h_neigh], axis=-1) @ w_apply + b_apply
    return jax.nn.relu(z)


if __name__ == "__main__":
    # Small shapes consistent with the module (ndim_out lane-dense on TPU).
    N, ndim_in, edims, ndim_out = 256, 32, 16, 128

    key = jax.random.PRNGKey(0)
    k = jax.random.split(key, 7)

    nfeats = jax.random.normal(k[0], (N, ndim_in), dtype=jnp.float32)
    # Deterministic random directed graph (~10% density); int8 mask (dst, src).
    adj = (jax.random.uniform(k[1], (N, N)) < 0.1).astype(jnp.int8)
    # Dense edge features; entries on non-edges are ignored (masked).
    efeats = jax.random.normal(k[2], (N, N, edims), dtype=jnp.float32)

    w_msg = jax.random.normal(k[3], (ndim_in + edims, ndim_out),
                              dtype=jnp.float32) / jnp.sqrt(ndim_in + edims)
    b_msg = 0.1 * jax.random.normal(k[4], (ndim_out,), dtype=jnp.float32)
    w_apply = jax.random.normal(k[5], (ndim_in + ndim_out, ndim_out),
                                dtype=jnp.float32) / jnp.sqrt(ndim_in + ndim_out)
    b_apply = 0.1 * jax.random.normal(k[6], (ndim_out,), dtype=jnp.float32)

    out = jax.jit(gnn_layer)(nfeats, efeats, adj,
                             w_msg, b_msg, w_apply, b_apply)
    out = jax.block_until_ready(out)

    ref = _gnn_layer_ref(nfeats, efeats, adj, w_msg, b_msg, w_apply, b_apply)
    assert out.shape == (N, ndim_out), out.shape

    # Tolerances account for bf16 edge-matmul operands plus TPU-default matmul
    # precision on both the kernel path and the pure-JAX reference; outputs
    # are O(10), so this is a ~2-5% acceptance band plus a tight global check.
    max_abs = float(jnp.max(jnp.abs(out - ref)))
    rel_fro = float(jnp.linalg.norm(out - ref) / jnp.linalg.norm(ref))
    assert jnp.allclose(out, ref, atol=5e-1, rtol=5e-2), (max_abs, rel_fro)
    assert rel_fro < 2e-2, (max_abs, rel_fro)

    print("KERNEL_OK")
</pallas_src>

<mosaic_0001>
module attributes {stable_mosaic.version = 11 : i64} {
  func.func @_gnn_layer_kernel(%arg0: i32, %arg1: i32, %arg2: memref<64x16x128xbf16, #tpu.memory_space<vmem>>, %arg3: memref<16x1024xf32, #tpu.memory_space<vmem>>, %arg4: memref<64x128xf32, #tpu.memory_space<vmem>>, %arg5: memref<64x128xf32, #tpu.memory_space<vmem>>, %arg6: memref<128x1024xbf16, #tpu.memory_space<vmem>>, %arg7: memref<128x128xf32, #tpu.memory_space<vmem>>, %arg8: memref<64x128xf32, #tpu.memory_space<vmem>>, %arg9: memref<64x128xf32, #tpu.memory_space<vmem>>) attributes {dimension_semantics = [#tpu.dimension_semantics<parallel>, #tpu.dimension_semantics<arbitrary>], iteration_bounds = array<i64: 4, 2>, scalar_prefetch = 0 : i64, scratch_operands = 1 : i64, tpu.core_type = #tpu.core_type<tc>, window_params = [{transform_indices = @transform_0, window_bounds = array<i64: 64, 16, 128>}, {transform_indices = @transform_1, window_bounds = array<i64: 16, 1024>}, {transform_indices = @transform_2, window_bounds = array<i64: 64, 128>}, {transform_indices = @transform_3, window_bounds = array<i64: 64, 128>}, {pipeline_mode = #tpu.pipeline_mode<synchronous>, transform_indices = @transform_4, window_bounds = array<i64: 128, 1024>}, {pipeline_mode = #tpu.pipeline_mode<synchronous>, transform_indices = @transform_5, window_bounds = array<i64: 128, 128>}, {transform_indices = @transform_6, window_bounds = array<i64: 64, 128>}]} {
    %c0_i32 = arith.constant 0 : i32
    %0 = arith.cmpi eq, %arg1, %c0_i32 : i32
    %1 = arith.extui %0 : i1 to i32
    %c0_i32_0 = arith.constant 0 : i32
    %2 = arith.cmpi ne, %1, %c0_i32_0 : i32
    scf.if %2 {
      %cst_14 = arith.constant 0.000000e+00 : f32
      %36 = vector.broadcast %cst_14 : f32 to vector<64x128xf32>
      %c0_15 = arith.constant 0 : index
      %c0_16 = arith.constant 0 : index
      %37 = vector.load %arg9[%c0_15, %c0_16] : memref<64x128xf32, #tpu.memory_space<vmem>>, vector<64x128xf32>
      tpu.vector_store %arg9[%c0_15, %c0_16], %36 {strides = array<i32>} : memref<64x128xf32, #tpu.memory_space<vmem>>, vector<64x128xf32>,
    } else {
    }
    %c0 = arith.constant 0 : index
    %c0_1 = arith.constant 0 : index
    %c0_2 = arith.constant 0 : index
    %3 = vector.load %arg2[%c0, %c0_1, %c0_2] : memref<64x16x128xbf16, #tpu.memory_space<vmem>>, vector<64x16x128xbf16>
    %4 = vector.shape_cast %3 : vector<64x16x128xbf16> to vector<1024x128xbf16>
    %c0_3 = arith.constant 0 : index
    %c0_4 = arith.constant 0 : index
    %5 = vector.load %arg6[%c0_3, %c0_4] : memref<128x1024xbf16, #tpu.memory_space<vmem>>, vector<128x1024xbf16>
    %cst = arith.constant dense<0.000000e+00> : vector<1024x1024xf32>
    %6 = tpu.matmul %4, %5, %cst {dimension_numbers = #tpu.dot_dimension_numbers<[1], [0], [0], [1], [0, 0, 1, 1], [], []>} : vector<1024x128xbf16>, vector<128x1024xbf16>, vector<1024x1024xf32> -> vector<1024x1024xf32>
    %7 = vector.shape_cast %6 : vector<1024x1024xf32> to vector<64x16x1024xf32>
    %c0_5 = arith.constant 0 : index
    %c0_6 = arith.constant 0 : index
    %8 = vector.load %arg3[%c0_5, %c0_6] : memref<16x1024xf32, #tpu.memory_space<vmem>>, vector<16x1024xf32>
    %9 = vector.shape_cast %8 : vector<16x1024xf32> to vector<1x16x1024xf32>
    %10 = vector.broadcast %9 : vector<1x16x1024xf32> to vector<64x16x1024xf32>
    %11 = arith.addf %7, %10 : vector<64x16x1024xf32>
    %cst_7 = arith.constant 0.000000e+00 : f32
    %12 = vector.broadcast %cst_7 : f32 to vector<64x16x1024xf32>
    %13 = arith.maximumf %11, %12 : vector<64x16x1024xf32>
    %cst_8 = arith.constant dense<0.000000e+00> : vector<64x1024xf32>
    %14 = vector.multi_reduction <add>, %13, %cst_8 [1] : vector<64x16x1024xf32> to vector<64x1024xf32>
    %15 = vector.extract_strided_slice %14 {offsets = [0, 0], sizes = [64, 128], strides = [1, 1]} : vector<64x1024xf32> to vector<64x128xf32>
    %16 = vector.extract_strided_slice %14 {offsets = [0, 128], sizes = [64, 128], strides = [1, 1]} : vector<64x1024xf32> to vector<64x128xf32>
    %17 = arith.addf %15, %16 : vector<64x128xf32>
    %18 = vector.extract_strided_slice %14 {offsets = [0, 256], sizes = [64, 128], strides = [1, 1]} : vector<64x1024xf32> to vector<64x128xf32>
    %19 = arith.addf %17, %18 : vector<64x128xf32>
    %20 = vector.extract_strided_slice %14 {offsets = [0, 384], sizes = [64, 128], strides = [1, 1]} : vector<64x1024xf32> to vector<64x128xf32>
    %21 = arith.addf %19, %20 : vector<64x128xf32>
    %22 = vector.extract_strided_slice %14 {offsets = [0, 512], sizes = [64, 128], strides = [1, 1]} : vector<64x1024xf32> to vector<64x128xf32>
    %23 = arith.addf %21, %22 : vector<64x128xf32>
    %24 = vector.extract_strided_slice %14 {offsets = [0, 640], sizes = [64, 128], strides = [1, 1]} : vector<64x1024xf32> to vector<64x128xf32>
    %25 = arith.addf %23, %24 : vector<64x128xf32>
    %26 = vector.extract_strided_slice %14 {offsets = [0, 768], sizes = [64, 128], strides = [1, 1]} : vector<64x1024xf32> to vector<64x128xf32>
    %27 = arith.addf %25, %26 : vector<64x128xf32>
    %28 = vector.extract_strided_slice %14 {offsets = [0, 896], sizes = [64, 128], strides = [1, 1]} : vector<64x1024xf32> to vector<64x128xf32>
    %29 = arith.addf %27, %28 : vector<64x128xf32>
    %c0_9 = arith.constant 0 : index
    %c0_10 = arith.constant 0 : index
    %30 = vector.load %arg9[%c0_9, %c0_10] : memref<64x128xf32, #tpu.memory_space<vmem>>, vector<64x128xf32>
    %31 = arith.addf %30, %29 : vector<64x128xf32>
    %c0_11 = arith.constant 0 : index
    %c0_12 = arith.constant 0 : index
    %32 = vector.load %arg9[%c0_11, %c0_12] : memref<64x128xf32, #tpu.memory_space<vmem>>, vector<64x128xf32>
    tpu.vector_store %arg9[%c0_11, %c0_12], %31 {strides = array<i32>} : memref<64x128xf32, #tpu.memory_space<vmem>>, vector<64x128xf32>,
    %c1_i32 = arith.constant 1 : i32
    %33 = arith.cmpi eq, %arg1, %c1_i32 : i32
    %34 = arith.extui %33 : i1 to i32
    %c0_i32_13 = arith.constant 0 : i32
    %35 = arith.cmpi ne, %34, %c0_i32_13 : i32
    scf.if %35 {
      %c0_14 = arith.constant 0 : index
      %c0_15 = arith.constant 0 : index
      %36 = vector.load %arg9[%c0_14, %c0_15] : memref<64x128xf32, #tpu.memory_space<vmem>>, vector<64x128xf32>
      %c0_16 = arith.constant 0 : index
      %c0_17 = arith.constant 0 : index
      %37 = vector.load %arg4[%c0_16, %c0_17] : memref<64x128xf32, #tpu.memory_space<vmem>>, vector<64x128xf32>
      %38 = arith.addf %36, %37 : vector<64x128xf32>
      %c0_18 = arith.constant 0 : index
      %c0_19 = arith.constant 0 : index
      %39 = vector.load %arg5[%c0_18, %c0_19] : memref<64x128xf32, #tpu.memory_space<vmem>>, vector<64x128xf32>
      %c0_20 = arith.constant 0 : index
      %c0_21 = arith.constant 0 : index
      %40 = vector.load %arg7[%c0_20, %c0_21] : memref<128x128xf32, #tpu.memory_space<vmem>>, vector<128x128xf32>
      %cst_22 = arith.constant dense<0.000000e+00> : vector<64x128xf32>
      %41 = tpu.matmul %38, %40, %cst_22 {dimension_numbers = #tpu.dot_dimension_numbers<[1], [0], [0], [1], [0, 0, 1, 1], [], []>} : vector<64x128xf32>, vector<128x128xf32>, vector<64x128xf32> -> vector<64x128xf32>
      %42 = arith.addf %39, %41 : vector<64x128xf32>
      %cst_23 = arith.constant 0.000000e+00 : f32
      %43 = vector.broadcast %cst_23 : f32 to vector<64x128xf32>
      %44 = arith.maximumf %42, %43 : vector<64x128xf32>
      %c0_24 = arith.constant 0 : index
      %c0_25 = arith.constant 0 : index
      %45 = vector.load %arg8[%c0_24, %c0_25] : memref<64x128xf32, #tpu.memory_space<vmem>>, vector<64x128xf32>
      tpu.vector_store %arg8[%c0_24, %c0_25], %44 {strides = array<i32>} : memref<64x128xf32, #tpu.memory_space<vmem>>, vector<64x128xf32>,
    } else {
    }
    return
  }
  func.func @transform_0(%arg0: i32, %arg1: i32) -> (i32, i32, i32) {
    %c0_i32 = arith.constant 0 : i32
    %c0_i32_0 = arith.constant 0 : i32
    return %arg0, %arg1, %c0_i32 : i32, i32, i32
  }
  func.func @transform_1(%arg0: i32, %arg1: i32) -> (i32, i32) {
    %c0_i32 = arith.constant 0 : i32
    %c0_i32_0 = arith.constant 0 : i32
    return %arg1, %c0_i32 : i32, i32
  }
  func.func @transform_2(%arg0: i32, %arg1: i32) -> (i32, i32) {
    %c0_i32 = arith.constant 0 : i32
    %c0_i32_0 = arith.constant 0 : i32
    return %arg0, %c0_i32 : i32, i32
  }
  func.func @transform_3(%arg0: i32, %arg1: i32) -> (i32, i32) {
    %c0_i32 = arith.constant 0 : i32
    %c0_i32_0 = arith.constant 0 : i32
    return %arg0, %c0_i32 : i32, i32
  }
  func.func @transform_4(%arg0: i32, %arg1: i32) -> (i32, i32) {
    %c0_i32 = arith.constant 0 : i32
    %c0_i32_0 = arith.constant 0 : i32
    %c0_i32_1 = arith.constant 0 : i32
    return %c0_i32, %c0_i32_0 : i32, i32
  }
  func.func @transform_5(%arg0: i32, %arg1: i32) -> (i32, i32) {
    %c0_i32 = arith.constant 0 : i32
    %c0_i32_0 = arith.constant 0 : i32
    %c0_i32_1 = arith.constant 0 : i32
    return %c0_i32, %c0_i32_0 : i32, i32
  }
  func.func @transform_6(%arg0: i32, %arg1: i32) -> (i32, i32) {
    %c0_i32 = arith.constant 0 : i32
    %c0_i32_0 = arith.constant 0 : i32
    return %arg0, %c0_i32 : i32, i32
  }
}

</mosaic_0001>

<llo_original>
// kernel: gnn_layer.1
$region0: #{gnn_layer.1}
  #allocation0 [shape = 'u32[]', space=smem, size = 0x4, offset = 0x4, fixed_abs, tag = 'smem constant byte address 0x4 - core index']
  #allocation1 [shape = 'u32[144,128]{1,0:T(1,128)}', space=vmem, size = 0x12000, scoped, tag = 'internal scratch']
  #allocation2 [shape = 'f32[64,128]{1,0:T(8,128)}', space=vmem, size = 0x8000, scoped, tag = 'scratch operand']
  %s0 = inlined_call_operand.vmem [shape: bf16[256,32,128], index: 0, kind: input, shape index: {}]
  %s1 = inlined_call_operand.vmem [shape: f32[32,1024], index: 1, kind: input, shape index: {}]
  %s2 = inlined_call_operand.vmem [shape: f32[256,128], index: 2, kind: input, shape index: {}]
  %s3 = inlined_call_operand.vmem [shape: f32[256,128], index: 3, kind: input, shape index: {}]
  %s4 = inlined_call_operand.vmem [shape: bf16[128,1024], index: 4, kind: input, shape index: {}]
  %s5 = inlined_call_operand.vmem [shape: f32[128,128], index: 5, kind: input, shape index: {}]
  %s6 = inlined_call_operand.hbm [shape: f32[256,128], index: 6, kind: output, shape index: {}]
  %s7 = sld [smem:[#allocation0]]
  $region106: #{gnn_layer.1} parent=0
    _
  %s9 = ssub.s32 1, %s7
  %s10 = scalar_select 0, %s9, %s7
  $region1: #{gnn_layer.1} parent=0
    #allocation3 [shape = 'u8[524288]{0}', space=vmem, size = 0x80000, scoped, tag = 'input window, operand 0']
    #allocation4 [shape = 'u8[65536]{0}', space=vmem, size = 0x10000, scoped, tag = 'output window, operand 0']
    #allocation5 [shape = 's32[2]{0}', space=sflag, size = 0x8, scoped, tag = 'scoped memory for gnn_layer.1']
    %11 = vsyncpa [#allocation5], 0
    %s12 = scalar_lea.sflag [#allocation5], 1
    %13 = vsyncpa %s12, 0
    loop: start=0, step=1, limit=10
    $region2: #{gnn_layer.1} parent=1 // loop_pre_header
      _
    $region3: #{gnn_layer.1} parent=1 // loop_header
      %s15 = sphi 0, %s19
      %p16 = scmp.ge.s32.totalorder %s15, 10
      %s22 = sphi 0, %s34
      %s23 = sphi 0, %s30
      %s24 = sphi 0, %s22
      %s25 = sphi 0, %s23
      %s26 = sphi 0, %s24
      %s27 = sphi 0, %s25
      %s39 = sphi 0, %s41
      %s42 = sphi 0, %s39
      %s43 = sphi 0, %s42
      %s59 = sphi 0, %s43
      %s65 = sphi 0, %s67
      %s68 = sphi 0, %s65
      %s69 = sphi 0, %s68
      %s85 = sphi 0, %s69
      %s91 = sphi 0, %s93
      %s94 = sphi 0, %s91
      %s95 = sphi 0, %s94
      %s111 = sphi 0, %s95
      %s117 = sphi 0, %s119
      %s120 = sphi 0, %s117
      %s121 = sphi 0, %s120
      %s137 = sphi 0, %s121
      %s141 = sphi 0, %s141
      %s143 = sphi 0, %s141
      %s144 = sphi 0, %s143
      %s158 = sphi 0, %s144
      %s162 = sphi 0, %s162
      %s164 = sphi 0, %s162
      %s165 = sphi 0, %s164
      %s179 = sphi 0, %s165
      %s185 = sphi 0, %s187
      %s188 = sphi 0, %s185
      %s189 = sphi 0, %s188
      %s205 = sphi 0, %s189
    $region4: #{gnn_layer.1} parent=1 // loop_header_branch
      %18 = sbr.rel (%p16) target = $region8
    $region5: #{gnn_layer.1} parent=1 // loop_body
      %s20 = ssub.s32 %s15, 1
      %s21 = ssub.s32 %s15, 2
      %s28 = sadd.s32 1, %s23
      %p29 = scmp.ge.s32.totalorder %s28, 2
      %s30 = scalar_select %p29, 0, %s28
      %s31 = sadd.s32 1, %s22
      %s32 = scalar_select %p29, %s31, %s22
      %p33 = scmp.ge.s32.totalorder %s32, 4
      %s34 = scalar_select %p33, 0, %s32
      %s35 = ssub.s32 %s22, %s34
      %s36 = ssub.s32 %s23, %s30
      %s37 = sor.u32 %s35, %s36
      %p38 = scmp.eq.s32.totalorder %s37, 0
      %s40 = sadd.s32 %s39, 1
      %s41 = scalar_select %p38, %s39, %s40
      %p44 = pneg %p38
      %p45 = scmp.eq.s32.totalorder %s15, 7
      %p46 = por %p44, %p45
      %p47 = scmp.ne.s32.totalorder %s39, %s42
      %p48 = scmp.eq.s32.totalorder %s15, 0
      %p49 = por %p47, %p48
      %p50 = scmp.ne.s32.totalorder %s39, %s42
      %p51 = scmp.eq.s32.totalorder %s20, 7
      %p52 = por %p50, %p51
      %p53 = scmp.ne.s32.totalorder %s42, %s43
      %p54 = scmp.eq.s32.totalorder %s20, 0
      %p55 = por %p53, %p54
      %p56 = scmp.ne.s32.totalorder %s42, %s43
      %p57 = scmp.eq.s32.totalorder %s21, 7
      %p58 = por %p56, %p57
      %p60 = scmp.ne.s32.totalorder %s43, %s59
      %p61 = scmp.eq.s32.totalorder %s21, 0
      %p62 = por %p60, %p61
      %s63 = ssub.s32 %s23, %s30
      %p64 = scmp.eq.s32.totalorder %s63, 0
      %s66 = sadd.s32 %s65, 1
      %s67 = scalar_select %p64, %s65, %s66
      %p70 = pneg %p64
      %p71 = scmp.eq.s32.totalorder %s15, 7
      %p72 = por %p70, %p71
      %p73 = scmp.ne.s32.totalorder %s65, %s68
      %p74 = scmp.eq.s32.totalorder %s15, 0
      %p75 = por %p73, %p74
      %p76 = scmp.ne.s32.totalorder %s65, %s68
      %p77 = scmp.eq.s32.totalorder %s20, 7
      %p78 = por %p76, %p77
      %p79 = scmp.ne.s32.totalorder %s68, %s69
      %p80 = scmp.eq.s32.totalorder %s20, 0
      %p81 = por %p79, %p80
      %p82 = scmp.ne.s32.totalorder %s68, %s69
      %p83 = scmp.eq.s32.totalorder %s21, 7
      %p84 = por %p82, %p83
      %p86 = scmp.ne.s32.totalorder %s69, %s85
      %p87 = scmp.eq.s32.totalorder %s21, 0
      %p88 = por %p86, %p87
      %s89 = ssub.s32 %s22, %s34
      %p90 = scmp.eq.s32.totalorder %s89, 0
      %s92 = sadd.s32 %s91, 1
      %s93 = scalar_select %p90, %s91, %s92
      %p96 = pneg %p90
      %p97 = scmp.eq.s32.totalorder %s15, 7
      %p98 = por %p96, %p97
      %p99 = scmp.ne.s32.totalorder %s91, %s94
      %p100 = scmp.eq.s32.totalorder %s15, 0
      %p101 = por %p99, %p100
      %p102 = scmp.ne.s32.totalorder %s91, %s94
      %p103 = scmp.eq.s32.totalorder %s20, 7
      %p104 = por %p102, %p103
      %p105 = scmp.ne.s32.totalorder %s94, %s95
      %p106 = scmp.eq.s32.totalorder %s20, 0
      %p107 = por %p105, %p106
      %p108 = scmp.ne.s32.totalorder %s94, %s95
      %p109 = scmp.eq.s32.totalorder %s21, 7
      %p110 = por %p108, %p109
      %p112 = scmp.ne.s32.totalorder %s95, %s111
      %p113 = scmp.eq.s32.totalorder %s21, 0
      %p114 = por %p112, %p113
      %s115 = ssub.s32 %s22, %s34
      %p116 = scmp.eq.s32.totalorder %s115, 0
      %s118 = sadd.s32 %s117, 1
      %s119 = scalar_select %p116, %s117, %s118
      %p122 = pneg %p116
      %p123 = scmp.eq.s32.totalorder %s15, 7
      %p124 = por %p122, %p123
      %p125 = scmp.ne.s32.totalorder %s117, %s120
      %p126 = scmp.eq.s32.totalorder %s15, 0
      %p127 = por %p125, %p126
      %p128 = scmp.ne.s32.totalorder %s117, %s120
      %p129 = scmp.eq.s32.totalorder %s20, 7
      %p130 = por %p128, %p129
      %p131 = scmp.ne.s32.totalorder %s120, %s121
      %p132 = scmp.eq.s32.totalorder %s20, 0
      %p133 = por %p131, %p132
      %p134 = scmp.ne.s32.totalorder %s120, %s121
      %p135 = scmp.eq.s32.totalorder %s21, 7
      %p136 = por %p134, %p135
      %p138 = scmp.ne.s32.totalorder %s121, %s137
      %p139 = scmp.eq.s32.totalorder %s21, 0
      %p140 = por %p138, %p139
      %s142 = sadd.s32 %s141, 1
      %p145 = scmp.eq.s32.totalorder %s15, 7
      %p146 = scmp.ne.s32.totalorder %s141, %s143
      %p147 = scmp.eq.s32.totalorder %s15, 0
      %p148 = por %p146, %p147
      %p149 = scmp.ne.s32.totalorder %s141, %s143
      %p150 = scmp.eq.s32.totalorder %s20, 7
      %p151 = por %p149, %p150
      %p152 = scmp.ne.s32.totalorder %s143, %s144
      %p153 = scmp.eq.s32.totalorder %s20, 0
      %p154 = por %p152, %p153
      %p155 = scmp.ne.s32.totalorder %s143, %s144
      %p156 = scmp.eq.s32.totalorder %s21, 7
      %p157 = por %p155, %p156
      %p159 = scmp.ne.s32.totalorder %s144, %s158
      %p160 = scmp.eq.s32.totalorder %s21, 0
      %p161 = por %p159, %p160
      %s163 = sadd.s32 %s162, 1
      %p166 = scmp.eq.s32.totalorder %s15, 7
      %p167 = scmp.ne.s32.totalorder %s162, %s164
      %p168 = scmp.eq.s32.totalorder %s15, 0
      %p169 = por %p167, %p168
      %p170 = scmp.ne.s32.totalorder %s162, %s164
      %p171 = scmp.eq.s32.totalorder %s20, 7
      %p172 = por %p170, %p171
      %p173 = scmp.ne.s32.totalorder %s164, %s165
      %p174 = scmp.eq.s32.totalorder %s20, 0
      %p175 = por %p173, %p174
      %p176 = scmp.ne.s32.totalorder %s164, %s165
      %p177 = scmp.eq.s32.totalorder %s21, 7
      %p178 = por %p176, %p177
      %p180 = scmp.ne.s32.totalorder %s165, %s179
      %p181 = scmp.eq.s32.totalorder %s21, 0
      %p182 = por %p180, %p181
      %s183 = ssub.s32 %s22, %s34
      %p184 = scmp.eq.s32.totalorder %s183, 0
      %s186 = sadd.s32 %s185, 1
      %s187 = scalar_select %p184, %s185, %s186
      %p190 = pneg %p184
      %p191 = scmp.eq.s32.totalorder %s15, 7
      %p192 = por %p190, %p191
      %p193 = scmp.ne.s32.totalorder %s185, %s188
      %p194 = scmp.eq.s32.totalorder %s15, 0
      %p195 = por %p193, %p194
      %p196 = scmp.ne.s32.totalorder %s185, %s188
      %p197 = scmp.eq.s32.totalorder %s20, 7
      %p198 = por %p196, %p197
      %p199 = scmp.ne.s32.totalorder %s188, %s189
      %p200 = scmp.eq.s32.totalorder %s20, 0
      %p201 = por %p199, %p200
      %p202 = scmp.ne.s32.totalorder %s188, %s189
      %p203 = scmp.eq.s32.totalorder %s21, 7
      %p204 = por %p202, %p203
      %p206 = scmp.ne.s32.totalorder %s189, %s205
      %p207 = scmp.eq.s32.totalorder %s21, 0
      %p208 = por %p206, %p207
      %p209 = scmp.le.s32.totalorder 1, %s15
      %p210 = scmp.lt.s32.totalorder %s15, 9
      %p211 = pnand %p209, %p210
      %p212 = pneg %p211
      // Predicated region
      $region9: #{gnn_layer.1} parent=5 // pred_check
        _
      $region10: #{gnn_layer.1} parent=5 // pred_check_branch
        %214 = sbr.rel (%p211) target = $region12
      $region11: #{gnn_layer.1} parent=5 // pred_region
        %s215 = ssub.s32 %s15, 1
        // Predicated region
        $region13: #{gnn_layer.1} parent=11 // pred_check
          %p216 = pneg %p154
        $region14: #{gnn_layer.1} parent=11 // pred_check_branch
          %218 = sbr.rel (%p216) target = $region16
        $region15: #{gnn_layer.1} parent=11 // pred_region
          _
        $region16: #{gnn_layer.1} parent=11 // pred_fallthru
          _
        // Predicated region
        $region17: #{gnn_layer.1} parent=11 // pred_check
          %p219 = pneg %p175
        $region18: #{gnn_layer.1} parent=11 // pred_check_branch
          %221 = sbr.rel (%p219) target = $region20
        $region19: #{gnn_layer.1} parent=11 // pred_region
          _
        $region20: #{gnn_layer.1} parent=11 // pred_fallthru
          _
      $region12: #{gnn_layer.1} parent=5 // pred_fallthru
        _
      %p222 = scmp.lt.s32.totalorder %s15, 8
      // Predicated region
      $region21: #{gnn_layer.1} parent=5 // pred_check
        %p223 = pneg %p222
      $region22: #{gnn_layer.1} parent=5 // pred_check_branch
        %225 = sbr.rel (%p223) target = $region24
      $region23: #{gnn_layer.1} parent=5 // pred_region
        // Predicated region
        $region25: #{gnn_layer.1} parent=23 // pred_check
          %p226 = pneg %p49
        $region26: #{gnn_layer.1} parent=23 // pred_check_branch
          %228 = sbr.rel (%p226) target = $region28
        $region27: #{gnn_layer.1} parent=23 // pred_region
          %s229 = sand.u32 %s39, 1
          %s230 = sand.u32 %s39, 1
          %s231 = smul.addr %s230, 512
          %s232 = scalar_lea.vmem [#allocation3], %s231
          %s233 = smul.u32 64, %s22
          %s234 = smul.u32 2, %s23
          %s235 = smul.addr %s233, 4
          %s236 = sadd.s32 %s234, %s235
          %s237 = smul.addr %s236, 4
          %s238 = scalar_lea.vmem %s0, %s237
          // Predicated region
          $region29: #{gnn_layer.1} parent=27 // pred_check
            _
          $region30: #{gnn_layer.1} parent=27 // pred_check_branch
            %240 = sbr.rel (0) target = $region32
          $region31: #{gnn_layer.1} parent=27 // pred_region
            // Predicated region
            $region33: #{gnn_layer.1} parent=31 // pred_check
              _
            $region34: #{gnn_layer.1} parent=31 // pred_check_branch
              %242 = sbr.rel target = $region36
            $region35: #{gnn_layer.1} parent=31 // pred_region
              // Predicated region
              $region48: #{gnn_layer.1} parent=35 // pred_check
                _
              $region49: #{gnn_layer.1} parent=35 // pred_check_branch
                %512 = sbr.rel (0) target = $region51
              $region50: #{gnn_layer.1} parent=35 // pred_region
                loop: start=0, step=1, limit=1
                $region52: #{gnn_layer.1} parent=50 // loop_pre_header
                  _
                $region53: #{gnn_layer.1} parent=50 // loop_header
                  %s514 = sphi 0, %s518
                  %p515 = scmp.ge.s32.totalorder %s514, 1
                  %s519 = sphi %s238, %s238
                  %s520 = sphi %s232, %s232
                $region54: #{gnn_layer.1} parent=50 // loop_header_branch
                  %517 = sbr.rel (%p515) target = $region58
                $region55: #{gnn_layer.1} parent=50 // loop_body
                  _
                $region56: #{gnn_layer.1} parent=50 // loop_footer
                  %s518 = sadd.s32 1, %s514
                $region57: #{gnn_layer.1} parent=50 // loop_footer_branch
                  %513 = sbr.rel target = $region53
                $region58: #{gnn_layer.1} parent=50 // loop_exit
                  _
                %s522 = ssub.s32 16, 1
                loop: start=0, step=1, limit=1
                $region59: #{gnn_layer.1} parent=50 // loop_pre_header
                  _
                $region60: #{gnn_layer.1} parent=50 // loop_header
                  %s524 = sphi 0, %s528
                  %p525 = scmp.ge.s32.totalorder %s524, 1
                  %s529 = sphi %s238, %s238
                  %s530 = sphi %s232, %s232
                $region61: #{gnn_layer.1} parent=50 // loop_header_branch
                  %527 = sbr.rel (%p525) target = $region65
                $region62: #{gnn_layer.1} parent=50 // loop_body
                  %v531 = vld [vmem:[%s529] sm:%s522]
                  %532 = vst [vmem:[%s530] sm:%s522] %v531
                  %v533 = vld [vmem:[%s529 + $0x4] sm:%s522]
                  %534 = vst [vmem:[%s530 + $0x4] sm:%s522] %v533
                  %v535 = vld [vmem:[%s529 + $0x10] sm:%s522]
                  %536 = vst [vmem:[%s530 + $0x8] sm:%s522] %v535
                  %v537 = vld [vmem:[%s529 + $0x14] sm:%s522]
                  %538 = vst [vmem:[%s530 + $0xc] sm:%s522] %v537
                  %v539 = vld [vmem:[%s529 + $0x20] sm:%s522]
                  %540 = vst [vmem:[%s530 + $0x10] sm:%s522] %v539
                  %v541 = vld [vmem:[%s529 + $0x24] sm:%s522]
                  %542 = vst [vmem:[%s530 + $0x14] sm:%s522] %v541
                  %v543 = vld [vmem:[%s529 + $0x30] sm:%s522]
                  %544 = vst [vmem:[%s530 + $0x18] sm:%s522] %v543
                  %v545 = vld [vmem:[%s529 + $0x34] sm:%s522]
                  %546 = vst [vmem:[%s530 + $0x1c] sm:%s522] %v545
                  %v547 = vld [vmem:[%s529 + $0x40] sm:%s522]
                  %548 = vst [vmem:[%s530 + $0x20] sm:%s522] %v547
                  %v549 = vld [vmem:[%s529 + $0x44] sm:%s522]
                  %550 = vst [vmem:[%s530 + $0x24] sm:%s522] %v549
                  %v551 = vld [vmem:[%s529 + $0x50] sm:%s522]
                  %552 = vst [vmem:[%s530 + $0x28] sm:%s522] %v551
                  %v553 = vld [vmem:[%s529 + $0x54] sm:%s522]
                  %554 = vst [vmem:[%s530 + $0x2c] sm:%s522] %v553
                  %v555 = vld [vmem:[%s529 + $0x60] sm:%s522]
                  %556 = vst [vmem:[%s530 + $0x30] sm:%s522] %v555
                  %v557 = vld [vmem:[%s529 + $0x64] sm:%s522]
                  %558 = vst [vmem:[%s530 + $0x34] sm:%s522] %v557
                  %v559 = vld [vmem:[%s529 + $0x70] sm:%s522]
                  %560 = vst [vmem:[%s530 + $0x38] sm:%s522] %v559
                  %v561 = vld [vmem:[%s529 + $0x74] sm:%s522]
                  %562 = vst [vmem:[%s530 + $0x3c] sm:%s522] %v561
                  %v563 = vld [vmem:[%s529 + $0x80] sm:%s522]
                  %564 = vst [vmem:[%s530 + $0x40] sm:%s522] %v563
                  %v565 = vld [vmem:[%s529 + $0x84] sm:%s522]
                  %566 = vst [vmem:[%s530 + $0x44] sm:%s522] %v565
                  %v567 = vld [vmem:[%s529 + $0x90] sm:%s522]
                  %568 = vst [vmem:[%s530 + $0x48] sm:%s522] %v567
                  %v569 = vld [vmem:[%s529 + $0x94] sm:%s522]
                  %570 = vst [vmem:[%s530 + $0x4c] sm:%s522] %v569
                  %v571 = vld [vmem:[%s529 + $0xa0] sm:%s522]
                  %572 = vst [vmem:[%s530 + $0x50] sm:%s522] %v571
                  %v573 = vld [vmem:[%s529 + $0xa4] sm:%s522]
                  %574 = vst [vmem:[%s530 + $0x54] sm:%s522] %v573
                  %v575 = vld [vmem:[%s529 + $0xb0] sm:%s522]
                  %576 = vst [vmem:[%s530 + $0x58] sm:%s522] %v575
                  %v577 = vld [vmem:[%s529 + $0xb4] sm:%s522]
                  %578 = vst [vmem:[%s530 + $0x5c] sm:%s522] %v577
                  %v579 = vld [vmem:[%s529 + $0xc0] sm:%s522]
                  %580 = vst [vmem:[%s530 + $0x60] sm:%s522] %v579
                  %v581 = vld [vmem:[%s529 + $0xc4] sm:%s522]
                  %582 = vst [vmem:[%s530 + $0x64] sm:%s522] %v581
                  %v583 = vld [vmem:[%s529 + $0xd0] sm:%s522]
                  %584 = vst [vmem:[%s530 + $0x68] sm:%s522] %v583
                  %v585 = vld [vmem:[%s529 + $0xd4] sm:%s522]
                  %586 = vst [vmem:[%s530 + $0x6c] sm:%s522] %v585
                  %v587 = vld [vmem:[%s529 + $0xe0] sm:%s522]
                  %588 = vst [vmem:[%s530 + $0x70] sm:%s522] %v587
                  %v589 = vld [vmem:[%s529 + $0xe4] sm:%s522]
                  %590 = vst [vmem:[%s530 + $0x74] sm:%s522] %v589
                  %v591 = vld [vmem:[%s529 + $0xf0] sm:%s522]
                  %592 = vst [vmem:[%s530 + $0x78] sm:%s522] %v591
                  %v593 = vld [vmem:[%s529 + $0xf4] sm:%s522]
                  %594 = vst [vmem:[%s530 + $0x7c] sm:%s522] %v593
                  %v595 = vld [vmem:[%s529 + $0x100] sm:%s522]
                  %596 = vst [vmem:[%s530 + $0x80] sm:%s522] %v595
                  %v597 = vld [vmem:[%s529 + $0x104] sm:%s522]
                  %598 = vst [vmem:[%s530 + $0x84] sm:%s522] %v597
                  %v599 = vld [vmem:[%s529 + $0x110] sm:%s522]
                  %600 = vst [vmem:[%s530 + $0x88] sm:%s522] %v599
                  %v601 = vld [vmem:[%s529 + $0x114] sm:%s522]
                  %602 = vst [vmem:[%s530 + $0x8c] sm:%s522] %v601
                  %v603 = vld [vmem:[%s529 + $0x120] sm:%s522]
                  %604 = vst [vmem:[%s530 + $0x90] sm:%s522] %v603
                  %v605 = vld [vmem:[%s529 + $0x124] sm:%s522]
                  %606 = vst [vmem:[%s530 + $0x94] sm:%s522] %v605
                  %v607 = vld [vmem:[%s529 + $0x130] sm:%s522]
                  %608 = vst [vmem:[%s530 + $0x98] sm:%s522] %v607
                  %v609 = vld [vmem:[%s529 + $0x134] sm:%s522]
                  %610 = vst [vmem:[%s530 + $0x9c] sm:%s522] %v609
                  %v611 = vld [vmem:[%s529 + $0x140] sm:%s522]
                  %612 = vst [vmem:[%s530 + $0xa0] sm:%s522] %v611
                  %v613 = vld [vmem:[%s529 + $0x144] sm:%s522]
                  %614 = vst [vmem:[%s530 + $0xa4] sm:%s522] %v613
                  %v615 = vld [vmem:[%s529 + $0x150] sm:%s522]
                  %616 = vst [vmem:[%s530 + $0xa8] sm:%s522] %v615
                  %v617 = vld [vmem:[%s529 + $0x154] sm:%s522]
                  %618 = vst [vmem:[%s530 + $0xac] sm:%s522] %v617
                  %v619 = vld [vmem:[%s529 + $0x160] sm:%s522]
                  %620 = vst [vmem:[%s530 + $0xb0] sm:%s522] %v619
                  %v621 = vld [vmem:[%s529 + $0x164] sm:%s522]
                  %622 = vst [vmem:[%s530 + $0xb4] sm:%s522] %v621
                  %v623 = vld [vmem:[%s529 + $0x170] sm:%s522]
                  %624 = vst [vmem:[%s530 + $0xb8] sm:%s522] %v623
                  %v625 = vld [vmem:[%s529 + $0x174] sm:%s522]
                  %626 = vst [vmem:[%s530 + $0xbc] sm:%s522] %v625
                  %v627 = vld [vmem:[%s529 + $0x180] sm:%s522]
                  %628 = vst [vmem:[%s530 + $0xc0] sm:%s522] %v627
                  %v629 = vld [vmem:[%s529 + $0x184] sm:%s522]
                  %630 = vst [vmem:[%s530 + $0xc4] sm:%s522] %v629
                  %v631 = vld [vmem:[%s529 + $0x190] sm:%s522]
                  %632 = vst [vmem:[%s530 + $0xc8] sm:%s522] %v631
                  %v633 = vld [vmem:[%s529 + $0x194] sm:%s522]
                  %634 = vst [vmem:[%s530 + $0xcc] sm:%s522] %v633
                  %v635 = vld [vmem:[%s529 + $0x1a0] sm:%s522]
                  %636 = vst [vmem:[%s530 + $0xd0] sm:%s522] %v635
                  %v637 = vld [vmem:[%s529 + $0x1a4] sm:%s522]
                  %638 = vst [vmem:[%s530 + $0xd4] sm:%s522] %v637
                  %v639 = vld [vmem:[%s529 + $0x1b0] sm:%s522]
                  %640 = vst [vmem:[%s530 + $0xd8] sm:%s522] %v639
                  %v641 = vld [vmem:[%s529 + $0x1b4] sm:%s522]
                  %642 = vst [vmem:[%s530 + $0xdc] sm:%s522] %v641
                  %v643 = vld [vmem:[%s529 + $0x1c0] sm:%s522]
                  %644 = vst [vmem:[%s530 + $0xe0] sm:%s522] %v643
                  %v645 = vld [vmem:[%s529 + $0x1c4] sm:%s522]
                  %646 = vst [vmem:[%s530 + $0xe4] sm:%s522] %v645
                  %v647 = vld [vmem:[%s529 + $0x1d0] sm:%s522]
                  %648 = vst [vmem:[%s530 + $0xe8] sm:%s522] %v647
                  %v649 = vld [vmem:[%s529 + $0x1d4] sm:%s522]
                  %650 = vst [vmem:[%s530 + $0xec] sm:%s522] %v649
                  %v651 = vld [vmem:[%s529 + $0x1e0] sm:%s522]
                  %652 = vst [vmem:[%s530 + $0xf0] sm:%s522] %v651
                  %v653 = vld [vmem:[%s529 + $0x1e4] sm:%s522]
                  %654 = vst [vmem:[%s530 + $0xf4] sm:%s522] %v653
                  %v655 = vld [vmem:[%s529 + $0x1f0] sm:%s522]
                  %656 = vst [vmem:[%s530 + $0xf8] sm:%s522] %v655
                  %v657 = vld [vmem:[%s529 + $0x1f4] sm:%s522]
                  %658 = vst [vmem:[%s530 + $0xfc] sm:%s522] %v657
                  %v659 = vld [vmem:[%s529 + $0x200] sm:%s522]
                  %660 = vst [vmem:[%s530 + $0x100] sm:%s522] %v659
                  %v661 = vld [vmem:[%s529 + $0x204] sm:%s522]
                  %662 = vst [vmem:[%s530 + $0x104] sm:%s522] %v661
                  %v663 = vld [vmem:[%s529 + $0x210] sm:%s522]
                  %664 = vst [vmem:[%s530 + $0x108] sm:%s522] %v663
                  %v665 = vld [vmem:[%s529 + $0x214] sm:%s522]
                  %666 = vst [vmem:[%s530 + $0x10c] sm:%s522] %v665
                  %v667 = vld [vmem:[%s529 + $0x220] sm:%s522]
                  %668 = vst [vmem:[%s530 + $0x110] sm:%s522] %v667
                  %v669 = vld [vmem:[%s529 + $0x224] sm:%s522]
                  %670 = vst [vmem:[%s530 + $0x114] sm:%s522] %v669
                  %v671 = vld [vmem:[%s529 + $0x230] sm:%s522]
                  %672 = vst [vmem:[%s530 + $0x118] sm:%s522] %v671
                  %v673 = vld [vmem:[%s529 + $0x234] sm:%s522]
                  %674 = vst [vmem:[%s530 + $0x11c] sm:%s522] %v673
                  %v675 = vld [vmem:[%s529 + $0x240] sm:%s522]
                  %676 = vst [vmem:[%s530 + $0x120] sm:%s522] %v675
                  %v677 = vld [vmem:[%s529 + $0x244] sm:%s522]
                  %678 = vst [vmem:[%s530 + $0x124] sm:%s522] %v677
                  %v679 = vld [vmem:[%s529 + $0x250] sm:%s522]
                  %680 = vst [vmem:[%s530 + $0x128] sm:%s522] %v679
                  %v681 = vld [vmem:[%s529 + $0x254] sm:%s522]
                  %682 = vst [vmem:[%s530 + $0x12c] sm:%s522] %v681
                  %v683 = vld [vmem:[%s529 + $0x260] sm:%s522]
                  %684 = vst [vmem:[%s530 + $0x130] sm:%s522] %v683
                  %v685 = vld [vmem:[%s529 + $0x264] sm:%s522]
                  %686 = vst [vmem:[%s530 + $0x134] sm:%s522] %v685
                  %v687 = vld [vmem:[%s529 + $0x270] sm:%s522]
                  %688 = vst [vmem:[%s530 + $0x138] sm:%s522] %v687
                  %v689 = vld [vmem:[%s529 + $0x274] sm:%s522]
                  %690 = vst [vmem:[%s530 + $0x13c] sm:%s522] %v689
                  %v691 = vld [vmem:[%s529 + $0x280] sm:%s522]
                  %692 = vst [vmem:[%s530 + $0x140] sm:%s522] %v691
                  %v693 = vld [vmem:[%s529 + $0x284] sm:%s522]
                  %694 = vst [vmem:[%s530 + $0x144] sm:%s522] %v693
                  %v695 = vld [vmem:[%s529 + $0x290] sm:%s522]
                  %696 = vst [vmem:[%s530 + $0x148] sm:%s522] %v695
                  %v697 = vld [vmem:[%s529 + $0x294] sm:%s522]
                  %698 = vst [vmem:[%s530 + $0x14c] sm:%s522] %v697
                  %v699 = vld [vmem:[%s529 + $0x2a0] sm:%s522]
                  %700 = vst [vmem:[%s530 + $0x150] sm:%s522] %v699
                  %v701 = vld [vmem:[%s529 + $0x2a4] sm:%s522]
                  %702 = vst [vmem:[%s530 + $0x154] sm:%s522] %v701
                  %v703 = vld [vmem:[%s529 + $0x2b0] sm:%s522]
                  %704 = vst [vmem:[%s530 + $0x158] sm:%s522] %v703
                  %v705 = vld [vmem:[%s529 + $0x2b4] sm:%s522]
                  %706 = vst [vmem:[%s530 + $0x15c] sm:%s522] %v705
                  %v707 = vld [vmem:[%s529 + $0x2c0] sm:%s522]
                  %708 = vst [vmem:[%s530 + $0x160] sm:%s522] %v707
                  %v709 = vld [vmem:[%s529 + $0x2c4] sm:%s522]
                  %710 = vst [vmem:[%s530 + $0x164] sm:%s522] %v709
                  %v711 = vld [vmem:[%s529 + $0x2d0] sm:%s522]
                  %712 = vst [vmem:[%s530 + $0x168] sm:%s522] %v711
                  %v713 = vld [vmem:[%s529 + $0x2d4] sm:%s522]
                  %714 = vst [vmem:[%s530 + $0x16c] sm:%s522] %v713
                  %v715 = vld [vmem:[%s529 + $0x2e0] sm:%s522]
                  %716 = vst [vmem:[%s530 + $0x170] sm:%s522] %v715
                  %v717 = vld [vmem:[%s529 + $0x2e4] sm:%s522]
                  %718 = vst [vmem:[%s530 + $0x174] sm:%s522] %v717
                  %v719 = vld [vmem:[%s529 + $0x2f0] sm:%s522]
                  %720 = vst [vmem:[%s530 + $0x178] sm:%s522] %v719
                  %v721 = vld [vmem:[%s529 + $0x2f4] sm:%s522]
                  %722 = vst [vmem:[%s530 + $0x17c] sm:%s522] %v721
                  %v723 = vld [vmem:[%s529 + $0x300] sm:%s522]
                  %724 = vst [vmem:[%s530 + $0x180] sm:%s522] %v723
                  %v725 = vld [vmem:[%s529 + $0x304] sm:%s522]
                  %726 = vst [vmem:[%s530 + $0x184] sm:%s522] %v725
                  %v727 = vld [vmem:[%s529 + $0x310] sm:%s522]
                  %728 = vst [vmem:[%s530 + $0x188] sm:%s522] %v727
                  %v729 = vld [vmem:[%s529 + $0x314] sm:%s522]
                  %730 = vst [vmem:[%s530 + $0x18c] sm:%s522] %v729
                  %v731 = vld [vmem:[%s529 + $0x320] sm:%s522]
                  %732 = vst [vmem:[%s530 + $0x190] sm:%s522] %v731
                  %v733 = vld [vmem:[%s529 + $0x324] sm:%s522]
                  %734 = vst [vmem:[%s530 + $0x194] sm:%s522] %v733
                  %v735 = vld [vmem:[%s529 + $0x330] sm:%s522]
                  %736 = vst [vmem:[%s530 + $0x198] sm:%s522] %v735
                  %v737 = vld [vmem:[%s529 + $0x334] sm:%s522]
                  %738 = vst [vmem:[%s530 + $0x19c] sm:%s522] %v737
                  %v739 = vld [vmem:[%s529 + $0x340] sm:%s522]
                  %740 = vst [vmem:[%s530 + $0x1a0] sm:%s522] %v739
                  %v741 = vld [vmem:[%s529 + $0x344] sm:%s522]
                  %742 = vst [vmem:[%s530 + $0x1a4] sm:%s522] %v741
                  %v743 = vld [vmem:[%s529 + $0x350] sm:%s522]
                  %744 = vst [vmem:[%s530 + $0x1a8] sm:%s522] %v743
                  %v745 = vld [vmem:[%s529 + $0x354] sm:%s522]
                  %746 = vst [vmem:[%s530 + $0x1ac] sm:%s522] %v745
                  %v747 = vld [vmem:[%s529 + $0x360] sm:%s522]
                  %748 = vst [vmem:[%s530 + $0x1b0] sm:%s522] %v747
                  %v749 = vld [vmem:[%s529 + $0x364] sm:%s522]
                  %750 = vst [vmem:[%s530 + $0x1b4] sm:%s522] %v749
                  %v751 = vld [vmem:[%s529 + $0x370] sm:%s522]
                  %752 = vst [vmem:[%s530 + $0x1b8] sm:%s522] %v751
                  %v753 = vld [vmem:[%s529 + $0x374] sm:%s522]
                  %754 = vst [vmem:[%s530 + $0x1bc] sm:%s522] %v753
                  %v755 = vld [vmem:[%s529 + $0x380] sm:%s522]
                  %756 = vst [vmem:[%s530 + $0x1c0] sm:%s522] %v755
                  %v757 = vld [vmem:[%s529 + $0x384] sm:%s522]
                  %758 = vst [vmem:[%s530 + $0x1c4] sm:%s522] %v757
                  %v759 = vld [vmem:[%s529 + $0x390] sm:%s522]
                  %760 = vst [vmem:[%s530 + $0x1c8] sm:%s522] %v759
                  %v761 = vld [vmem:[%s529 + $0x394] sm:%s522]
                  %762 = vst [vmem:[%s530 + $0x1cc] sm:%s522] %v761
                  %v763 = vld [vmem:[%s529 + $0x3a0] sm:%s522]
                  %764 = vst [vmem:[%s530 + $0x1d0] sm:%s522] %v763
                  %v765 = vld [vmem:[%s529 + $0x3a4] sm:%s522]
                  %766 = vst [vmem:[%s530 + $0x1d4] sm:%s522] %v765
                  %v767 = vld [vmem:[%s529 + $0x3b0] sm:%s522]
                  %768 = vst [vmem:[%s530 + $0x1d8] sm:%s522] %v767
                  %v769 = vld [vmem:[%s529 + $0x3b4] sm:%s522]
                  %770 = vst [vmem:[%s530 + $0x1dc] sm:%s522] %v769
                  %v771 = vld [vmem:[%s529 + $0x3c0] sm:%s522]
                  %772 = vst [vmem:[%s530 + $0x1e0] sm:%s522] %v771
                  %v773 = vld [vmem:[%s529 + $0x3c4] sm:%s522]
                  %774 = vst [vmem:[%s530 + $0x1e4] sm:%s522] %v773
                  %v775 = vld [vmem:[%s529 + $0x3d0] sm:%s522]
                  %776 = vst [vmem:[%s530 + $0x1e8] sm:%s522] %v775
                  %v777 = vld [vmem:[%s529 + $0x3d4] sm:%s522]
                  %778 = vst [vmem:[%s530 + $0x1ec] sm:%s522] %v777
                  %v779 = vld [vmem:[%s529 + $0x3e0] sm:%s522]
                  %780 = vst [vmem:[%s530 + $0x1f0] sm:%s522] %v779
                  %v781 = vld [vmem:[%s529 + $0x3e4] sm:%s522]
                  %782 = vst [vmem:[%s530 + $0x1f4] sm:%s522] %v781
                  %v783 = vld [vmem:[%s529 + $0x3f0] sm:%s522]
                  %784 = vst [vmem:[%s530 + $0x1f8] sm:%s522] %v783
                  %v785 = vld [vmem:[%s529 + $0x3f4] sm:%s522]
                  %786 = vst [vmem:[%s530 + $0x1fc] sm:%s522] %v785
                $region63: #{gnn_layer.1} parent=50 // loop_footer
                  %s528 = sadd.s32 1, %s524
                $region64: #{gnn_layer.1} parent=50 // loop_footer_branch
                  %523 = sbr.rel target = $region60
                $region65: #{gnn_layer.1} parent=50 // loop_exit
                  _
              $region51: #{gnn_layer.1} parent=35 // pred_fallthru
                _
            $region36: #{gnn_layer.1} parent=31 // pred_fallthru
              _
            // Predicated region
            $region37: #{gnn_layer.1} parent=31 // pred_check
              _
            $region38: #{gnn_layer.1} parent=31 // pred_check_branch
              %244 = sbr.rel (0) target = $region40
            $region39: #{gnn_layer.1} parent=31 // pred_region
              %s246 = ssub.s32 16, 1
              loop: start=0, step=1, limit=1
              $region41: #{gnn_layer.1} parent=39 // loop_pre_header
                _
              $region42: #{gnn_layer.1} parent=39 // loop_header
                %s248 = sphi 0, %s252
                %p249 = scmp.ge.s32.totalorder %s248, 1
                %s253 = sphi %s238, %s238
                %s254 = sphi %s232, %s232
              $region43: #{gnn_layer.1} parent=39 // loop_header_branch
                %251 = sbr.rel (%p249) target = $region47
              $region44: #{gnn_layer.1} parent=39 // loop_body
                %v255 = vld [vmem:[%s253] sm:%s246]
                %256 = vst [vmem:[%s254] sm:%s246] %v255
                %v257 = vld [vmem:[%s253 + $0x4] sm:%s246]
                %258 = vst [vmem:[%s254 + $0x4] sm:%s246] %v257
                %v259 = vld [vmem:[%s253 + $0x10] sm:%s246]
                %260 = vst [vmem:[%s254 + $0x8] sm:%s246] %v259
                %v261 = vld [vmem:[%s253 + $0x14] sm:%s246]
                %262 = vst [vmem:[%s254 + $0xc] sm:%s246] %v261
                %v263 = vld [vmem:[%s253 + $0x20] sm:%s246]
                %264 = vst [vmem:[%s254 + $0x10] sm:%s246] %v263
                %v265 = vld [vmem:[%s253 + $0x24] sm:%s246]
                %266 = vst [vmem:[%s254 + $0x14] sm:%s246] %v265
                %v267 = vld [vmem:[%s253 + $0x30] sm:%s246]
                %268 = vst [vmem:[%s254 + $0x18] sm:%s246] %v267
                %v269 = vld [vmem:[%s253 + $0x34] sm:%s246]
                %270 = vst [vmem:[%s254 + $0x1c] sm:%s246] %v269
                %v271 = vld [vmem:[%s253 + $0x40] sm:%s246]
                %272 = vst [vmem:[%s254 + $0x20] sm:%s246] %v271
                %v273 = vld [vmem:[%s253 + $0x44] sm:%s246]
                %274 = vst [vmem:[%s254 + $0x24] sm:%s246] %v273
                %v275 = vld [vmem:[%s253 + $0x50] sm:%s246]
                %276 = vst [vmem:[%s254 + $0x28] sm:%s246] %v275
                %v277 = vld [vmem:[%s253 + $0x54] sm:%s246]
                %278 = vst [vmem:[%s254 + $0x2c] sm:%s246] %v277
                %v279 = vld [vmem:[%s253 + $0x60] sm:%s246]
                %280 = vst [vmem:[%s254 + $0x30] sm:%s246] %v279
                %v281 = vld [vmem:[%s253 + $0x64] sm:%s246]
                %282 = vst [vmem:[%s254 + $0x34] sm:%s246] %v281
                %v283 = vld [vmem:[%s253 + $0x70] sm:%s246]
                %284 = vst [vmem:[%s254 + $0x38] sm:%s246] %v283
                %v285 = vld [vmem:[%s253 + $0x74] sm:%s246]
                %286 = vst [vmem:[%s254 + $0x3c] sm:%s246] %v285
                %v287 = vld [vmem:[%s253 + $0x80] sm:%s246]
                %288 = vst [vmem:[%s254 + $0x40] sm:%s246] %v287
                %v289 = vld [vmem:[%s253 + $0x84] sm:%s246]
                %290 = vst [vmem:[%s254 + $0x44] sm:%s246] %v289
                %v291 = vld [vmem:[%s253 + $0x90] sm:%s246]
                %292 = vst [vmem:[%s254 + $0x48] sm:%s246] %v291
                %v293 = vld [vmem:[%s253 + $0x94] sm:%s246]
                %294 = vst [vmem:[%s254 + $0x4c] sm:%s246] %v293
                %v295 = vld [vmem:[%s253 + $0xa0] sm:%s246]
                %296 = vst [vmem:[%s254 + $0x50] sm:%s246] %v295
                %v297 = vld [vmem:[%s253 + $0xa4] sm:%s246]
                %298 = vst [vmem:[%s254 + $0x54] sm:%s246] %v297
                %v299 = vld [vmem:[%s253 + $0xb0] sm:%s246]
                %300 = vst [vmem:[%s254 + $0x58] sm:%s246] %v299
                %v301 = vld [vmem:[%s253 + $0xb4] sm:%s246]
                %302 = vst [vmem:[%s254 + $0x5c] sm:%s246] %v301
                %v303 = vld [vmem:[%s253 + $0xc0] sm:%s246]
                %304 = vst [vmem:[%s254 + $0x60] sm:%s246] %v303
                %v305 = vld [vmem:[%s253 + $0xc4] sm:%s246]
                %306 = vst [vmem:[%s254 + $0x64] sm:%s246] %v305
                %v307 = vld [vmem:[%s253 + $0xd0] sm:%s246]
                %308 = vst [vmem:[%s254 + $0x68] sm:%s246] %v307
                %v309 = vld [vmem:[%s253 + $0xd4] sm:%s246]
                %310 = vst [vmem:[%s254 + $0x6c] sm:%s246] %v309
                %v311 = vld [vmem:[%s253 + $0xe0] sm:%s246]
                %312 = vst [vmem:[%s254 + $0x70] sm:%s246] %v311
                %v313 = vld [vmem:[%s253 + $0xe4] sm:%s246]
                %314 = vst [vmem:[%s254 + $0x74] sm:%s246] %v313
                %v315 = vld [vmem:[%s253 + $0xf0] sm:%s246]
                %316 = vst [vmem:[%s254 + $0x78] sm:%s246] %v315
                %v317 = vld [vmem:[%s253 + $0xf4] sm:%s246]
                %318 = vst [vmem:[%s254 + $0x7c] sm:%s246] %v317
                %v319 = vld [vmem:[%s253 + $0x100] sm:%s246]
                %320 = vst [vmem:[%s254 + $0x80] sm:%s246] %v319
                %v321 = vld [vmem:[%s253 + $0x104] sm:%s246]
                %322 = vst [vmem:[%s254 + $0x84] sm:%s246] %v321
                %v323 = vld [vmem:[%s253 + $0x110] sm:%s246]
                %324 = vst [vmem:[%s254 + $0x88] sm:%s246] %v323
                %v325 = vld [vmem:[%s253 + $0x114] sm:%s246]
                %326 = vst [vmem:[%s254 + $0x8c] sm:%s246] %v325
                %v327 = vld [vmem:[%s253 + $0x120] sm:%s246]
                %328 = vst [vmem:[%s254 + $0x90] sm:%s246] %v327
                %v329 = vld [vmem:[%s253 + $0x124] sm:%s246]
                %330 = vst [vmem:[%s254 + $0x94] sm:%s246] %v329
                %v331 = vld [vmem:[%s253 + $0x130] sm:%s246]
                %332 = vst [vmem:[%s254 + $0x98] sm:%s246] %v331
                %v333 = vld [vmem:[%s253 + $0x134] sm:%s246]
                %334 = vst [vmem:[%s254 + $0x9c] sm:%s246] %v333
                %v335 = vld [vmem:[%s253 + $0x140] sm:%s246]
                %336 = vst [vmem:[%s254 + $0xa0] sm:%s246] %v335
                %v337 = vld [vmem:[%s253 + $0x144] sm:%s246]
                %338 = vst [vmem:[%s254 + $0xa4] sm:%s246] %v337
                %v339 = vld [vmem:[%s253 + $0x150] sm:%s246]
                %340 = vst [vmem:[%s254 + $0xa8] sm:%s246] %v339
                %v341 = vld [vmem:[%s253 + $0x154] sm:%s246]
                %342 = vst [vmem:[%s254 + $0xac] sm:%s246] %v341
                %v343 = vld [vmem:[%s253 + $0x160] sm:%s246]
                %344 = vst [vmem:[%s254 + $0xb0] sm:%s246] %v343
                %v345 = vld [vmem:[%s253 + $0x164] sm:%s246]
                %346 = vst [vmem:[%s254 + $0xb4] sm:%s246] %v345
                %v347 = vld [vmem:[%s253 + $0x170] sm:%s246]
                %348 = vst [vmem:[%s254 + $0xb8] sm:%s246] %v347
                %v349 = vld [vmem:[%s253 + $0x174] sm:%s246]
                %350 = vst [vmem:[%s254 + $0xbc] sm:%s246] %v349
                %v351 = vld [vmem:[%s253 + $0x180] sm:%s246]
                %352 = vst [vmem:[%s254 + $0xc0] sm:%s246] %v351
                %v353 = vld [vmem:[%s253 + $0x184] sm:%s246]
                %354 = vst [vmem:[%s254 + $0xc4] sm:%s246] %v353
                %v355 = vld [vmem:[%s253 + $0x190] sm:%s246]
                %356 = vst [vmem:[%s254 + $0xc8] sm:%s246] %v355
                %v357 = vld [vmem:[%s253 + $0x194] sm:%s246]
                %358 = vst [vmem:[%s254 + $0xcc] sm:%s246] %v357
                %v359 = vld [vmem:[%s253 + $0x1a0] sm:%s246]
                %360 = vst [vmem:[%s254 + $0xd0] sm:%s246] %v359
                %v361 = vld [vmem:[%s253 + $0x1a4] sm:%s246]
                %362 = vst [vmem:[%s254 + $0xd4] sm:%s246] %v361
                %v363 = vld [vmem:[%s253 + $0x1b0] sm:%s246]
                %364 = vst [vmem:[%s254 + $0xd8] sm:%s246] %v363
                %v365 = vld [vmem:[%s253 + $0x1b4] sm:%s246]
                %366 = vst [vmem:[%s254 + $0xdc] sm:%s246] %v365
                %v367 = vld [vmem:[%s253 + $0x1c0] sm:%s246]
                %368 = vst [vmem:[%s254 + $0xe0] sm:%s246] %v367
                %v369 = vld [vmem:[%s253 + $0x1c4] sm:%s246]
                %370 = vst [vmem:[%s254 + $0xe4] sm:%s246] %v369
                %v371 = vld [vmem:[%s253 + $0x1d0] sm:%s246]
                %372 = vst [vmem:[%s254 + $0xe8] sm:%s246] %v371
                %v373 = vld [vmem:[%s253 + $0x1d4] sm:%s246]
                %374 = vst [vmem:[%s254 + $0xec] sm:%s246] %v373
                %v375 = vld [vmem:[%s253 + $0x1e0] sm:%s246]
                %376 = vst [vmem:[%s254 + $0xf0] sm:%s246] %v375
                %v377 = vld [vmem:[%s253 + $0x1e4] sm:%s246]
                %378 = vst [vmem:[%s254 + $0xf4] sm:%s246] %v377
                %v379 = vld [vmem:[%s253 + $0x1f0] sm:%s246]
                %380 = vst [vmem:[%s254 + $0xf8] sm:%s246] %v379
                %v381 = vld [vmem:[%s253 + $0x1f4] sm:%s246]
                %382 = vst [vmem:[%s254 + $0xfc] sm:%s246] %v381
                %v383 = vld [vmem:[%s253 + $0x200] sm:%s246]
                %384 = vst [vmem:[%s254 + $0x100] sm:%s246] %v383
                %v385 = vld [vmem:[%s253 + $0x204] sm:%s246]
                %386 = vst [vmem:[%s254 + $0x104] sm:%s246] %v385
                %v387 = vld [vmem:[%s253 + $0x210] sm:%s246]
                %388 = vst [vmem:[%s254 + $0x108] sm:%s246] %v387
                %v389 = vld [vmem:[%s253 + $0x214] sm:%s246]
                %390 = vst [vmem:[%s254 + $0x10c] sm:%s246] %v389
                %v391 = vld [vmem:[%s253 + $0x220] sm:%s246]
                %392 = vst [vmem:[%s254 + $0x110] sm:%s246] %v391
                %v393 = vld [vmem:[%s253 + $0x224] sm:%s246]
                %394 = vst [vmem:[%s254 + $0x114] sm:%s246] %v393
                %v395 = vld [vmem:[%s253 + $0x230] sm:%s246]
                %396 = vst [vmem:[%s254 + $0x118] sm:%s246] %v395
                %v397 = vld [vmem:[%s253 + $0x234] sm:%s246]
                %398 = vst [vmem:[%s254 + $0x11c] sm:%s246] %v397
                %v399 = vld [vmem:[%s253 + $0x240] sm:%s246]
                %400 = vst [vmem:[%s254 + $0x120] sm:%s246] %v399
                %v401 = vld [vmem:[%s253 + $0x244] sm:%s246]
                %402 = vst [vmem:[%s254 + $0x124] sm:%s246] %v401
                %v403 = vld [vmem:[%s253 + $0x250] sm:%s246]
                %404 = vst [vmem:[%s254 + $0x128] sm:%s246] %v403
                %v405 = vld [vmem:[%s253 + $0x254] sm:%s246]
                %406 = vst [vmem:[%s254 + $0x12c] sm:%s246] %v405
                %v407 = vld [vmem:[%s253 + $0x260] sm:%s246]
                %408 = vst [vmem:[%s254 + $0x130] sm:%s246] %v407
                %v409 = vld [vmem:[%s253 + $0x264] sm:%s246]
                %410 = vst [vmem:[%s254 + $0x134] sm:%s246] %v409
                %v411 = vld [vmem:[%s253 + $0x270] sm:%s246]
                %412 = vst [vmem:[%s254 + $0x138] sm:%s246] %v411
                %v413 = vld [vmem:[%s253 + $0x274] sm:%s246]
                %414 = vst [vmem:[%s254 + $0x13c] sm:%s246] %v413
                %v415 = vld [vmem:[%s253 + $0x280] sm:%s246]
                %416 = vst [vmem:[%s254 + $0x140] sm:%s246] %v415
                %v417 = vld [vmem:[%s253 + $0x284] sm:%s246]
                %418 = vst [vmem:[%s254 + $0x144] sm:%s246] %v417
                %v419 = vld [vmem:[%s253 + $0x290] sm:%s246]
                %420 = vst [vmem:[%s254 + $0x148] sm:%s246] %v419
                %v421 = vld [vmem:[%s253 + $0x294] sm:%s246]
                %422 = vst [vmem:[%s254 + $0x14c] sm:%s246] %v421
                %v423 = vld [vmem:[%s253 + $0x2a0] sm:%s246]
                %424 = vst [vmem:[%s254 + $0x150] sm:%s246] %v423
                %v425 = vld [vmem:[%s253 + $0x2a4] sm:%s246]
                %426 = vst [vmem:[%s254 + $0x154] sm:%s246] %v425
                %v427 = vld [vmem:[%s253 + $0x2b0] sm:%s246]
                %428 = vst [vmem:[%s254 + $0x158] sm:%s246] %v427
                %v429 = vld [vmem:[%s253 + $0x2b4] sm:%s246]
                %430 = vst [vmem:[%s254 + $0x15c] sm:%s246] %v429
                %v431 = vld [vmem:[%s253 + $0x2c0] sm:%s246]
                %432 = vst [vmem:[%s254 + $0x160] sm:%s246] %v431
                %v433 = vld [vmem:[%s253 + $0x2c4] sm:%s246]
                %434 = vst [vmem:[%s254 + $0x164] sm:%s246] %v433
                %v435 = vld [vmem:[%s253 + $0x2d0] sm:%s246]
                %436 = vst [vmem:[%s254 + $0x168] sm:%s246] %v435
                %v437 = vld [vmem:[%s253 + $0x2d4] sm:%s246]
                %438 = vst [vmem:[%s254 + $0x16c] sm:%s246] %v437
                %v439 = vld [vmem:[%s253 + $0x2e0] sm:%s246]
                %440 = vst [vmem:[%s254 + $0x170] sm:%s246] %v439
                %v441 = vld [vmem:[%s253 + $0x2e4] sm:%s246]
                %442 = vst [vmem:[%s254 + $0x174] sm:%s246] %v441
                %v443 = vld [vmem:[%s253 + $0x2f0] sm:%s246]
                %444 = vst [vmem:[%s254 + $0x178] sm:%s246] %v443
                %v445 = vld [vmem:[%s253 + $0x2f4] sm:%s246]
                %446 = vst [vmem:[%s254 + $0x17c] sm:%s246] %v445
                %v447 = vld [vmem:[%s253 + $0x300] sm:%s246]
                %448 = vst [vmem:[%s254 + $0x180] sm:%s246] %v447
                %v449 = vld [vmem:[%s253 + $0x304] sm:%s246]
                %450 = vst [vmem:[%s254 + $0x184] sm:%s246] %v449
                %v451 = vld [vmem:[%s253 + $0x310] sm:%s246]
                %452 = vst [vmem:[%s254 + $0x188] sm:%s246] %v451
                %v453 = vld [vmem:[%s253 + $0x314] sm:%s246]
                %454 = vst [vmem:[%s254 + $0x18c] sm:%s246] %v453
                %v455 = vld [vmem:[%s253 + $0x320] sm:%s246]
                %456 = vst [vmem:[%s254 + $0x190] sm:%s246] %v455
                %v457 = vld [vmem:[%s253 + $0x324] sm:%s246]
                %458 = vst [vmem:[%s254 + $0x194] sm:%s246] %v457
                %v459 = vld [vmem:[%s253 + $0x330] sm:%s246]
                %460 = vst [vmem:[%s254 + $0x198] sm:%s246] %v459
                %v461 = vld [vmem:[%s253 + $0x334] sm:%s246]
                %462 = vst [vmem:[%s254 + $0x19c] sm:%s246] %v461
                %v463 = vld [vmem:[%s253 + $0x340] sm:%s246]
                %464 = vst [vmem:[%s254 + $0x1a0] sm:%s246] %v463
                %v465 = vld [vmem:[%s253 + $0x344] sm:%s246]
                %466 = vst [vmem:[%s254 + $0x1a4] sm:%s246] %v465
                %v467 = vld [vmem:[%s253 + $0x350] sm:%s246]
                %468 = vst [vmem:[%s254 + $0x1a8] sm:%s246] %v467
                %v469 = vld [vmem:[%s253 + $0x354] sm:%s246]
                %470 = vst [vmem:[%s254 + $0x1ac] sm:%s246] %v469
                %v471 = vld [vmem:[%s253 + $0x360] sm:%s246]
                %472 = vst [vmem:[%s254 + $0x1b0] sm:%s246] %v471
                %v473 = vld [vmem:[%s253 + $0x364] sm:%s246]
                %474 = vst [vmem:[%s254 + $0x1b4] sm:%s246] %v473
                %v475 = vld [vmem:[%s253 + $0x370] sm:%s246]
                %476 = vst [vmem:[%s254 + $0x1b8] sm:%s246] %v475
                %v477 = vld [vmem:[%s253 + $0x374] sm:%s246]
                %478 = vst [vmem:[%s254 + $0x1bc] sm:%s246] %v477
                %v479 = vld [vmem:[%s253 + $0x380] sm:%s246]
                %480 = vst [vmem:[%s254 + $0x1c0] sm:%s246] %v479
                %v481 = vld [vmem:[%s253 + $0x384] sm:%s246]
                %482 = vst [vmem:[%s254 + $0x1c4] sm:%s246] %v481
                %v483 = vld [vmem:[%s253 + $0x390] sm:%s246]
                %484 = vst [vmem:[%s254 + $0x1c8] sm:%s246] %v483
                %v485 = vld [vmem:[%s253 + $0x394] sm:%s246]
                %486 = vst [vmem:[%s254 + $0x1cc] sm:%s246] %v485
                %v487 = vld [vmem:[%s253 + $0x3a0] sm:%s246]
                %488 = vst [vmem:[%s254 + $0x1d0] sm:%s246] %v487
                %v489 = vld [vmem:[%s253 + $0x3a4] sm:%s246]
                %490 = vst [vmem:[%s254 + $0x1d4] sm:%s246] %v489
                %v491 = vld [vmem:[%s253 + $0x3b0] sm:%s246]
                %492 = vst [vmem:[%s254 + $0x1d8] sm:%s246] %v491
                %v493 = vld [vmem:[%s253 + $0x3b4] sm:%s246]
                %494 = vst [vmem:[%s254 + $0x1dc] sm:%s246] %v493
                %v495 = vld [vmem:[%s253 + $0x3c0] sm:%s246]
                %496 = vst [vmem:[%s254 + $0x1e0] sm:%s246] %v495
                %v497 = vld [vmem:[%s253 + $0x3c4] sm:%s246]
                %498 = vst [vmem:[%s254 + $0x1e4] sm:%s246] %v497
                %v499 = vld [vmem:[%s253 + $0x3d0] sm:%s246]
                %500 = vst [vmem:[%s254 + $0x1e8] sm:%s246] %v499
                %v501 = vld [vmem:[%s253 + $0x3d4] sm:%s246]
                %502 = vst [vmem:[%s254 + $0x1ec] sm:%s246] %v501
                %v503 = vld [vmem:[%s253 + $0x3e0] sm:%s246]
                %504 = vst [vmem:[%s254 + $0x1f0] sm:%s246] %v503
                %v505 = vld [vmem:[%s253 + $0x3e4] sm:%s246]
                %506 = vst [vmem:[%s254 + $0x1f4] sm:%s246] %v505
                %v507 = vld [vmem:[%s253 + $0x3f0] sm:%s246]
                %508 = vst [vmem:[%s254 + $0x1f8] sm:%s246] %v507
                %v509 = vld [vmem:[%s253 + $0x3f4] sm:%s246]
                %510 = vst [vmem:[%s254 + $0x1fc] sm:%s246] %v509
              $region45: #{gnn_layer.1} parent=39 // loop_footer
                %s252 = sadd.s32 1, %s248
              $region46: #{gnn_layer.1} parent=39 // loop_footer_branch
                %247 = sbr.rel target = $region42
              $region47: #{gnn_layer.1} parent=39 // loop_exit
                _
            $region40: #{gnn_layer.1} parent=31 // pred_fallthru
              _
          $region32: #{gnn_layer.1} parent=27 // pred_fallthru
            _
          %787 = vnop
        $region28: #{gnn_layer.1} parent=23 // pred_fallthru
          _
        // Predicated region
        $region66: #{gnn_layer.1} parent=23 // pred_check
          %p788 = pneg %p75
        $region67: #{gnn_layer.1} parent=23 // pred_check_branch
          %790 = sbr.rel (%p788) target = $region69
        $region68: #{gnn_layer.1} parent=23 // pred_region
          %s791 = smul.u32 2, %s23
          %p792 = scmp.lt.s32.totalorder %s791, 3
          %s793 = scalar_select %p792, %s791, 3
          %s794 = smul.addr %s793, 8
          %s795 = smul.addr %s794, 8
          %s796 = scalar_lea.vmem %s1, %s795
          %s797 = smul.u32 2, %s23
        $region69: #{gnn_layer.1} parent=23 // pred_fallthru
          _
        // Predicated region
        $region70: #{gnn_layer.1} parent=23 // pred_check
          %p798 = pneg %p101
        $region71: #{gnn_layer.1} parent=23 // pred_check_branch
          %800 = sbr.rel (%p798) target = $region73
        $region72: #{gnn_layer.1} parent=23 // pred_region
          %s801 = smul.u32 8, %s22
          %p802 = scmp.lt.s32.totalorder %s801, 31
          %s803 = scalar_select %p802, %s801, 31
          %s804 = smul.addr %s803, 8
          %s805 = scalar_lea.vmem %s2, %s804
          %s806 = smul.u32 8, %s22
        $region73: #{gnn_layer.1} parent=23 // pred_fallthru
          _
        // Predicated region
        $region74: #{gnn_layer.1} parent=23 // pred_check
          %p807 = pneg %p127
        $region75: #{gnn_layer.1} parent=23 // pred_check_branch
          %809 = sbr.rel (%p807) target = $region77
        $region76: #{gnn_layer.1} parent=23 // pred_region
          %s810 = smul.u32 8, %s22
          %p811 = scmp.lt.s32.totalorder %s810, 31
          %s812 = scalar_select %p811, %s810, 31
          %s813 = smul.addr %s812, 8
          %s814 = scalar_lea.vmem %s3, %s813
          %s815 = smul.u32 8, %s22
        $region77: #{gnn_layer.1} parent=23 // pred_fallthru
          _
      $region24: #{gnn_layer.1} parent=5 // pred_fallthru
        _
      %p816 = scmp.le.s32.totalorder 1, %s15
      %p817 = scmp.lt.s32.totalorder %s15, 9
      %p818 = pnand %p816, %p817
      %p819 = pneg %p818
      // Predicated region
      $region78: #{gnn_layer.1} parent=5 // pred_check
        _
      $region79: #{gnn_layer.1} parent=5 // pred_check_branch
        %821 = sbr.rel (%p818) target = $region81
      $region80: #{gnn_layer.1} parent=5 // pred_region
        %s822 = ssub.s32 %s15, 1
        %s823 = sand.u32 %s42, 1
        %s824 = sand.u32 %s42, 1
        %s825 = smul.addr %s824, 512
        %s826 = scalar_lea.vmem [#allocation3], %s825
        // Predicated region
        $region82: #{gnn_layer.1} parent=80 // pred_check
          %p827 = pneg %p55
        $region83: #{gnn_layer.1} parent=80 // pred_check_branch
          %829 = sbr.rel (%p827) target = $region85
        $region84: #{gnn_layer.1} parent=80 // pred_region
          _
        $region85: #{gnn_layer.1} parent=80 // pred_fallthru
          _
        %s830 = sand.u32 %s42, 1
        %s831 = sand.u32 %s42, 1
        %s832 = smul.addr %s831, 512
        %s833 = scalar_lea.vmem [#allocation3], %s832
        %p834 = pneg %p55
        %p835 = pneg %p52
        %s836 = smul.u32 2, %s25
        %p837 = scmp.lt.s32.totalorder %s836, 3
        %s838 = scalar_select %p837, %s836, 3
        %s839 = smul.addr %s838, 8
        %s840 = smul.addr %s839, 8
        %s841 = scalar_lea.vmem %s1, %s840
        %p842 = pneg %p81
        %p843 = pneg %p78
        %s844 = smul.u32 8, %s24
        %p845 = scmp.lt.s32.totalorder %s844, 31
        %s846 = scalar_select %p845, %s844, 31
        %s847 = smul.addr %s846, 8
        %s848 = scalar_lea.vmem %s2, %s847
        %p849 = pneg %p107
        %p850 = pneg %p104
        %s851 = smul.u32 8, %s24
        %p852 = scmp.lt.s32.totalorder %s851, 31
        %s853 = scalar_select %p852, %s851, 31
        %s854 = smul.addr %s853, 8
        %s855 = scalar_lea.vmem %s3, %s854
        %p856 = pneg %p133
        %p857 = pneg %p130
        %p858 = pneg %p154
        %p859 = pneg %p151
        %p860 = pneg %p175
        %p861 = pneg %p172
        %p862 = pneg %p201
        %p863 = pneg %p198
        %s864 = sand.u32 %s188, 1
        %s865 = scalar_lea.sflag [#allocation5], %s864
        %s866 = sand.u32 %s188, 1
        %s867 = smul.addr %s866, 64
        %s868 = scalar_lea.vmem [#allocation4], %s867
        %s869 = smul.u32 64, %s24
        %s870 = smul.u32 2, %s25
        %s871 = smul.u32 2, %s25
        %p872 = scmp.lt.s32.totalorder %s871, 3
        %s873 = scalar_select %p872, %s871, 3
        %s874 = smul.addr %s873, 8
        %s875 = smul.addr %s874, 8
        %s876 = scalar_lea.vmem %s1, %s875
        %s877 = smul.u32 2, %s25
        %s878 = smul.u32 8, %s24
        %p879 = scmp.lt.s32.totalorder %s878, 31
        %s880 = scalar_select %p879, %s878, 31
        %s881 = smul.addr %s880, 8
        %s882 = scalar_lea.vmem %s2, %s881
        %s883 = smul.u32 8, %s24
        %s884 = smul.u32 8, %s24
        %p885 = scmp.lt.s32.totalorder %s884, 31
        %s886 = scalar_select %p885, %s884, 31
        %s887 = smul.addr %s886, 8
        %s888 = scalar_lea.vmem %s3, %s887
        %s889 = smul.u32 8, %s24
        %s890 = smul.u32 8, %s24
        %p892 = scmp.eq.s32.totalorder %s25, 0
        // Predicated region
        $region86: #{gnn_layer.1} parent=80 // pred_check
          %p893 = pneg %p892
        $region87: #{gnn_layer.1} parent=80 // pred_check_branch
          %895 = sbr.rel (%p893) target = $region89
        $region88: #{gnn_layer.1} parent=80 // pred_region
          %896 = vst [vmem:[#allocation2] sm:$0xff] 0.0
          %897 = vst [vmem:[#allocation2 + $0x8] sm:$0xff] 0.0
          %898 = vst [vmem:[#allocation2 + $0x10] sm:$0xff] 0.0
          %899 = vst [vmem:[#allocation2 + $0x18] sm:$0xff] 0.0
          %900 = vst [vmem:[#allocation2 + $0x20] sm:$0xff] 0.0
          %901 = vst [vmem:[#allocation2 + $0x28] sm:$0xff] 0.0
          %902 = vst [vmem:[#allocation2 + $0x30] sm:$0xff] 0.0
          %903 = vst [vmem:[#allocation2 + $0x38] sm:$0xff] 0.0
        $region89: #{gnn_layer.1} parent=80 // pred_fallthru
          _
        %v904 = vld [vmem:[%s826] sm:$0xf]
        %v905 = vld [vmem:[%s826 + $0x4] sm:$0xf]
        %v906 = vld [vmem:[%s826 + $0x8] sm:$0xf]
        %v907 = vld [vmem:[%s826 + $0xc] sm:$0xf]
        %v908 = vld [vmem:[%s826 + $0x10] sm:$0xf]
        %v909 = vld [vmem:[%s826 + $0x14] sm:$0xf]
        %v910 = vld [vmem:[%s826 + $0x18] sm:$0xf]
        %v911 = vld [vmem:[%s826 + $0x1c] sm:$0xf]
        %v912 = vld [vmem:[%s826 + $0x20] sm:$0xf]
        %v913 = vld [vmem:[%s826 + $0x24] sm:$0xf]
        %v914 = vld [vmem:[%s826 + $0x28] sm:$0xf]
        %v915 = vld [vmem:[%s826 + $0x2c] sm:$0xf]
        %v916 = vld [vmem:[%s826 + $0x30] sm:$0xf]
        %v917 = vld [vmem:[%s826 + $0x34] sm:$0xf]
        %v918 = vld [vmem:[%s826 + $0x38] sm:$0xf]
        %v919 = vld [vmem:[%s826 + $0x3c] sm:$0xf]
        %v920 = vld [vmem:[%s826 + $0x40] sm:$0xf]
        %v921 = vld [vmem:[%s826 + $0x44] sm:$0xf]
        %v922 = vld [vmem:[%s826 + $0x48] sm:$0xf]
        %v923 = vld [vmem:[%s826 + $0x4c] sm:$0xf]
        %v924 = vld [vmem:[%s826 + $0x50] sm:$0xf]
        %v925 = vld [vmem:[%s826 + $0x54] sm:$0xf]
        %v926 = vld [vmem:[%s826 + $0x58] sm:$0xf]
        %v927 = vld [vmem:[%s826 + $0x5c] sm:$0xf]
        %v928 = vld [vmem:[%s826 + $0x60] sm:$0xf]
        %v929 = vld [vmem:[%s826 + $0x64] sm:$0xf]
        %v930 = vld [vmem:[%s826 + $0x68] sm:$0xf]
        %v931 = vld [vmem:[%s826 + $0x6c] sm:$0xf]
        %v932 = vld [vmem:[%s826 + $0x70] sm:$0xf]
        %v933 = vld [vmem:[%s826 + $0x74] sm:$0xf]
        %v934 = vld [vmem:[%s826 + $0x78] sm:$0xf]
        %v935 = vld [vmem:[%s826 + $0x7c] sm:$0xf]
        %v936 = vld [vmem:[%s826 + $0x80] sm:$0xf]
        %v937 = vld [vmem:[%s826 + $0x84] sm:$0xf]
        %v938 = vld [vmem:[%s826 + $0x88] sm:$0xf]
        %v939 = vld [vmem:[%s826 + $0x8c] sm:$0xf]
        %v940 = vld [vmem:[%s826 + $0x90] sm:$0xf]
        %v941 = vld [vmem:[%s826 + $0x94] sm:$0xf]
        %v942 = vld [vmem:[%s826 + $0x98] sm:$0xf]
        %v943 = vld [vmem:[%s826 + $0x9c] sm:$0xf]
        %v944 = vld [vmem:[%s826 + $0xa0] sm:$0xf]
        %v945 = vld [vmem:[%s826 + $0xa4] sm:$0xf]
        %v946 = vld [vmem:[%s826 + $0xa8] sm:$0xf]
        %v947 = vld [vmem:[%s826 + $0xac] sm:$0xf]
        %v948 = vld [vmem:[%s826 + $0xb0] sm:$0xf]
        %v949 = vld [vmem:[%s826 + $0xb4] sm:$0xf]
        %v950 = vld [vmem:[%s826 + $0xb8] sm:$0xf]
        %v951 = vld [vmem:[%s826 + $0xbc] sm:$0xf]
        %v952 = vld [vmem:[%s826 + $0xc0] sm:$0xf]
        %v953 = vld [vmem:[%s826 + $0xc4] sm:$0xf]
        %v954 = vld [vmem:[%s826 + $0xc8] sm:$0xf]
        %v955 = vld [vmem:[%s826 + $0xcc] sm:$0xf]
        %v956 = vld [vmem:[%s826 + $0xd0] sm:$0xf]
        %v957 = vld [vmem:[%s826 + $0xd4] sm:$0xf]
        %v958 = vld [vmem:[%s826 + $0xd8] sm:$0xf]
        %v959 = vld [vmem:[%s826 + $0xdc] sm:$0xf]
        %v960 = vld [vmem:[%s826 + $0xe0] sm:$0xf]
        %v961 = vld [vmem:[%s826 + $0xe4] sm:$0xf]
        %v962 = vld [vmem:[%s826 + $0xe8] sm:$0xf]
        %v963 = vld [vmem:[%s826 + $0xec] sm:$0xf]
        %v964 = vld [vmem:[%s826 + $0xf0] sm:$0xf]
        %v965 = vld [vmem:[%s826 + $0xf4] sm:$0xf]
        %v966 = vld [vmem:[%s826 + $0xf8] sm:$0xf]
        %v967 = vld [vmem:[%s826 + $0xfc] sm:$0xf]
        %v968 = vld [vmem:[%s826 + $0x100] sm:$0xf]
        %v969 = vld [vmem:[%s826 + $0x104] sm:$0xf]
        %v970 = vld [vmem:[%s826 + $0x108] sm:$0xf]
        %v971 = vld [vmem:[%s826 + $0x10c] sm:$0xf]
        %v972 = vld [vmem:[%s826 + $0x110] sm:$0xf]
        %v973 = vld [vmem:[%s826 + $0x114] sm:$0xf]
        %v974 = vld [vmem:[%s826 + $0x118] sm:$0xf]
        %v975 = vld [vmem:[%s826 + $0x11c] sm:$0xf]
        %v976 = vld [vmem:[%s826 + $0x120] sm:$0xf]
        %v977 = vld [vmem:[%s826 + $0x124] sm:$0xf]
        %v978 = vld [vmem:[%s826 + $0x128] sm:$0xf]
        %v979 = vld [vmem:[%s826 + $0x12c] sm:$0xf]
        %v980 = vld [vmem:[%s826 + $0x130] sm:$0xf]
        %v981 = vld [vmem:[%s826 + $0x134] sm:$0xf]
        %v982 = vld [vmem:[%s826 + $0x138] sm:$0xf]
        %v983 = vld [vmem:[%s826 + $0x13c] sm:$0xf]
        %v984 = vld [vmem:[%s826 + $0x140] sm:$0xf]
        %v985 = vld [vmem:[%s826 + $0x144] sm:$0xf]
        %v986 = vld [vmem:[%s826 + $0x148] sm:$0xf]
        %v987 = vld [vmem:[%s826 + $0x14c] sm:$0xf]
        %v988 = vld [vmem:[%s826 + $0x150] sm:$0xf]
        %v989 = vld [vmem:[%s826 + $0x154] sm:$0xf]
        %v990 = vld [vmem:[%s826 + $0x158] sm:$0xf]
        %v991 = vld [vmem:[%s826 + $0x15c] sm:$0xf]
        %v992 = vld [vmem:[%s826 + $0x160] sm:$0xf]
        %v993 = vld [vmem:[%s826 + $0x164] sm:$0xf]
        %v994 = vld [vmem:[%s826 + $0x168] sm:$0xf]
        %v995 = vld [vmem:[%s826 + $0x16c] sm:$0xf]
        %v996 = vld [vmem:[%s826 + $0x170] sm:$0xf]
        %v997 = vld [vmem:[%s826 + $0x174] sm:$0xf]
        %v998 = vld [vmem:[%s826 + $0x178] sm:$0xf]
        %v999 = vld [vmem:[%s826 + $0x17c] sm:$0xf]
        %v1000 = vld [vmem:[%s826 + $0x180] sm:$0xf]
        %v1001 = vld [vmem:[%s826 + $0x184] sm:$0xf]
        %v1002 = vld [vmem:[%s826 + $0x188] sm:$0xf]
        %v1003 = vld [vmem:[%s826 + $0x18c] sm:$0xf]
        %v1004 = vld [vmem:[%s826 + $0x190] sm:$0xf]
        %v1005 = vld [vmem:[%s826 + $0x194] sm:$0xf]
        %v1006 = vld [vmem:[%s826 + $0x198] sm:$0xf]
        %v1007 = vld [vmem:[%s826 + $0x19c] sm:$0xf]
        %v1008 = vld [vmem:[%s826 + $0x1a0] sm:$0xf]
        %v1009 = vld [vmem:[%s826 + $0x1a4] sm:$0xf]
        %v1010 = vld [vmem:[%s826 + $0x1a8] sm:$0xf]
        %v1011 = vld [vmem:[%s826 + $0x1ac] sm:$0xf]
        %v1012 = vld [vmem:[%s826 + $0x1b0] sm:$0xf]
        %v1013 = vld [vmem:[%s826 + $0x1b4] sm:$0xf]
        %v1014 = vld [vmem:[%s826 + $0x1b8] sm:$0xf]
        %v1015 = vld [vmem:[%s826 + $0x1bc] sm:$0xf]
        %v1016 = vld [vmem:[%s826 + $0x1c0] sm:$0xf]
        %v1017 = vld [vmem:[%s826 + $0x1c4] sm:$0xf]
        %v1018 = vld [vmem:[%s826 + $0x1c8] sm:$0xf]
        %v1019 = vld [vmem:[%s826 + $0x1cc] sm:$0xf]
        %v1020 = vld [vmem:[%s826 + $0x1d0] sm:$0xf]
        %v1021 = vld [vmem:[%s826 + $0x1d4] sm:$0xf]
        %v1022 = vld [vmem:[%s826 + $0x1d8] sm:$0xf]
        %v1023 = vld [vmem:[%s826 + $0x1dc] sm:$0xf]
        %v1024 = vld [vmem:[%s826 + $0x1e0] sm:$0xf]
        %v1025 = vld [vmem:[%s826 + $0x1e4] sm:$0xf]
        %v1026 = vld [vmem:[%s826 + $0x1e8] sm:$0xf]
        %v1027 = vld [vmem:[%s826 + $0x1ec] sm:$0xf]
        %v1028 = vld [vmem:[%s826 + $0x1f0] sm:$0xf]
        %v1029 = vld [vmem:[%s826 + $0x1f4] sm:$0xf]
        %v1030 = vld [vmem:[%s826 + $0x1f8] sm:$0xf]
        %v1031 = vld [vmem:[%s826 + $0x1fc] sm:$0xf]
        %v1032 = vld [vmem:[%s4] sm:$0xff]
        %v1033 = vld [vmem:[%s4 + $0x8] sm:$0xff]
        %v1034 = vld [vmem:[%s4 + $0x10] sm:$0xff]
        %v1035 = vld [vmem:[%s4 + $0x18] sm:$0xff]
        %v1036 = vld [vmem:[%s4 + $0x20] sm:$0xff]
        %v1037 = vld [vmem:[%s4 + $0x28] sm:$0xff]
        %v1038 = vld [vmem:[%s4 + $0x30] sm:$0xff]
        %v1039 = vld [vmem:[%s4 + $0x38] sm:$0xff]
        %v1040 = vld [vmem:[%s4 + $0x40] sm:$0xff]
        %v1041 = vld [vmem:[%s4 + $0x48] sm:$0xff]
        %v1042 = vld [vmem:[%s4 + $0x50] sm:$0xff]
        %v1043 = vld [vmem:[%s4 + $0x58] sm:$0xff]
        %v1044 = vld [vmem:[%s4 + $0x60] sm:$0xff]
        %v1045 = vld [vmem:[%s4 + $0x68] sm:$0xff]
        %v1046 = vld [vmem:[%s4 + $0x70] sm:$0xff]
        %v1047 = vld [vmem:[%s4 + $0x78] sm:$0xff]
        %v1048 = vld [vmem:[%s4 + $0x80] sm:$0xff]
        %v1049 = vld [vmem:[%s4 + $0x88] sm:$0xff]
        %v1050 = vld [vmem:[%s4 + $0x90] sm:$0xff]
        %v1051 = vld [vmem:[%s4 + $0x98] sm:$0xff]
        %v1052 = vld [vmem:[%s4 + $0xa0] sm:$0xff]
        %v1053 = vld [vmem:[%s4 + $0xa8] sm:$0xff]
        %v1054 = vld [vmem:[%s4 + $0xb0] sm:$0xff]
        %v1055 = vld [vmem:[%s4 + $0xb8] sm:$0xff]
        %v1056 = vld [vmem:[%s4 + $0xc0] sm:$0xff]
        %v1057 = vld [vmem:[%s4 + $0xc8] sm:$0xff]
        %v1058 = vld [vmem:[%s4 + $0xd0] sm:$0xff]
        %v1059 = vld [vmem:[%s4 + $0xd8] sm:$0xff]
        %v1060 = vld [vmem:[%s4 + $0xe0] sm:$0xff]
        %v1061 = vld [vmem:[%s4 + $0xe8] sm:$0xff]
        %v1062 = vld [vmem:[%s4 + $0xf0] sm:$0xff]
        %v1063 = vld [vmem:[%s4 + $0xf8] sm:$0xff]
        %v1064 = vld [vmem:[%s4 + $0x100] sm:$0xff]
        %v1065 = vld [vmem:[%s4 + $0x108] sm:$0xff]
        %v1066 = vld [vmem:[%s4 + $0x110] sm:$0xff]
        %v1067 = vld [vmem:[%s4 + $0x118] sm:$0xff]
        %v1068 = vld [vmem:[%s4 + $0x120] sm:$0xff]
        %v1069 = vld [vmem:[%s4 + $0x128] sm:$0xff]
        %v1070 = vld [vmem:[%s4 + $0x130] sm:$0xff]
        %v1071 = vld [vmem:[%s4 + $0x138] sm:$0xff]
        %v1072 = vld [vmem:[%s4 + $0x140] sm:$0xff]
        %v1073 = vld [vmem:[%s4 + $0x148] sm:$0xff]
        %v1074 = vld [vmem:[%s4 + $0x150] sm:$0xff]
        %v1075 = vld [vmem:[%s4 + $0x158] sm:$0xff]
        %v1076 = vld [vmem:[%s4 + $0x160] sm:$0xff]
        %v1077 = vld [vmem:[%s4 + $0x168] sm:$0xff]
        %v1078 = vld [vmem:[%s4 + $0x170] sm:$0xff]
        %v1079 = vld [vmem:[%s4 + $0x178] sm:$0xff]
        %v1080 = vld [vmem:[%s4 + $0x180] sm:$0xff]
        %v1081 = vld [vmem:[%s4 + $0x188] sm:$0xff]
        %v1082 = vld [vmem:[%s4 + $0x190] sm:$0xff]
        %v1083 = vld [vmem:[%s4 + $0x198] sm:$0xff]
        %v1084 = vld [vmem:[%s4 + $0x1a0] sm:$0xff]
        %v1085 = vld [vmem:[%s4 + $0x1a8] sm:$0xff]
        %v1086 = vld [vmem:[%s4 + $0x1b0] sm:$0xff]
        %v1087 = vld [vmem:[%s4 + $0x1b8] sm:$0xff]
        %v1088 = vld [vmem:[%s4 + $0x1c0] sm:$0xff]
        %v1089 = vld [vmem:[%s4 + $0x1c8] sm:$0xff]
        %v1090 = vld [vmem:[%s4 + $0x1d0] sm:$0xff]
        %v1091 = vld [vmem:[%s4 + $0x1d8] sm:$0xff]
        %v1092 = vld [vmem:[%s4 + $0x1e0] sm:$0xff]
        %v1093 = vld [vmem:[%s4 + $0x1e8] sm:$0xff]
        %v1094 = vld [vmem:[%s4 + $0x1f0] sm:$0xff]
        %v1095 = vld [vmem:[%s4 + $0x1f8] sm:$0xff]
        %v1224 = vunpack.c.l.b16 %v904
        %v1225 = vunpack.c.l.b16 %v905
        %v1226 = vunpack.c.l.b16 %v906
        %v1227 = vunpack.c.l.b16 %v907
        %v1228 = vunpack.c.l.b16 %v908
        %v1229 = vunpack.c.l.b16 %v909
        %v1230 = vunpack.c.l.b16 %v910
        %v1231 = vunpack.c.l.b16 %v911
        %v1232 = vunpack.c.l.b16 %v912
        %v1233 = vunpack.c.l.b16 %v913
        %v1234 = vunpack.c.l.b16 %v914
        %v1235 = vunpack.c.l.b16 %v915
        %v1236 = vunpack.c.l.b16 %v916
        %v1237 = vunpack.c.l.b16 %v917
        %v1238 = vunpack.c.l.b16 %v918
        %v1239 = vunpack.c.l.b16 %v919
        %v1240 = vunpack.c.l.b16 %v920
        %v1241 = vunpack.c.l.b16 %v921
        %v1242 = vunpack.c.l.b16 %v922
        %v1243 = vunpack.c.l.b16 %v923
        %v1244 = vunpack.c.l.b16 %v924
        %v1245 = vunpack.c.l.b16 %v925
        %v1246 = vunpack.c.l.b16 %v926
        %v1247 = vunpack.c.l.b16 %v927
        %v1248 = vunpack.c.l.b16 %v928
        %v1249 = vunpack.c.l.b16 %v929
        %v1250 = vunpack.c.l.b16 %v930
        %v1251 = vunpack.c.l.b16 %v931
        %v1252 = vunpack.c.l.b16 %v932
        %v1253 = vunpack.c.l.b16 %v933
        %v1254 = vunpack.c.l.b16 %v934
        %v1255 = vunpack.c.l.b16 %v935
        %v1256 = vunpack.c.l.b16 %v936
        %v1257 = vunpack.c.l.b16 %v937
        %v1258 = vunpack.c.l.b16 %v938
        %v1259 = vunpack.c.l.b16 %v939
        %v1260 = vunpack.c.l.b16 %v940
        %v1261 = vunpack.c.l.b16 %v941
        %v1262 = vunpack.c.l.b16 %v942
        %v1263 = vunpack.c.l.b16 %v943
        %v1264 = vunpack.c.l.b16 %v944
        %v1265 = vunpack.c.l.b16 %v945
        %v1266 = vunpack.c.l.b16 %v946
        %v1267 = vunpack.c.l.b16 %v947
        %v1268 = vunpack.c.l.b16 %v948
        %v1269 = vunpack.c.l.b16 %v949
        %v1270 = vunpack.c.l.b16 %v950
        %v1271 = vunpack.c.l.b16 %v951
        %v1272 = vunpack.c.l.b16 %v952
        %v1273 = vunpack.c.l.b16 %v953
        %v1274 = vunpack.c.l.b16 %v954
        %v1275 = vunpack.c.l.b16 %v955
        %v1276 = vunpack.c.l.b16 %v956
        %v1277 = vunpack.c.l.b16 %v957
        %v1278 = vunpack.c.l.b16 %v958
        %v1279 = vunpack.c.l.b16 %v959
        %v1280 = vunpack.c.l.b16 %v960
        %v1281 = vunpack.c.l.b16 %v961
        %v1282 = vunpack.c.l.b16 %v962
        %v1283 = vunpack.c.l.b16 %v963
        %v1284 = vunpack.c.l.b16 %v964
        %v1285 = vunpack.c.l.b16 %v965
        %v1286 = vunpack.c.l.b16 %v966
        %v1287 = vunpack.c.l.b16 %v967
        %v1288 = vunpack.c.l.b16 %v968
        %v1289 = vunpack.c.l.b16 %v969
        %v1290 = vunpack.c.l.b16 %v970
        %v1291 = vunpack.c.l.b16 %v971
        %v1292 = vunpack.c.l.b16 %v972
        %v1293 = vunpack.c.l.b16 %v973
        %v1294 = vunpack.c.l.b16 %v974
        %v1295 = vunpack.c.l.b16 %v975
        %v1296 = vunpack.c.l.b16 %v976
        %v1297 = vunpack.c.l.b16 %v977
        %v1298 = vunpack.c.l.b16 %v978
        %v1299 = vunpack.c.l.b16 %v979
        %v1300 = vunpack.c.l.b16 %v980
        %v1301 = vunpack.c.l.b16 %v981
        %v1302 = vunpack.c.l.b16 %v982
        %v1303 = vunpack.c.l.b16 %v983
        %v1304 = vunpack.c.l.b16 %v984
        %v1305 = vunpack.c.l.b16 %v985
        %v1306 = vunpack.c.l.b16 %v986
        %v1307 = vunpack.c.l.b16 %v987
        %v1308 = vunpack.c.l.b16 %v988
        %v1309 = vunpack.c.l.b16 %v989
        %v1310 = vunpack.c.l.b16 %v990
        %v1311 = vunpack.c.l.b16 %v991
        %v1312 = vunpack.c.l.b16 %v992
        %v1313 = vunpack.c.l.b16 %v993
        %v1314 = vunpack.c.l.b16 %v994
        %v1315 = vunpack.c.l.b16 %v995
        %v1316 = vunpack.c.l.b16 %v996
        %v1317 = vunpack.c.l.b16 %v997
        %v1318 = vunpack.c.l.b16 %v998
        %v1319 = vunpack.c.l.b16 %v999
        %v1320 = vunpack.c.l.b16 %v1000
        %v1321 = vunpack.c.l.b16 %v1001
        %v1322 = vunpack.c.l.b16 %v1002
        %v1323 = vunpack.c.l.b16 %v1003
        %v1324 = vunpack.c.l.b16 %v1004
        %v1325 = vunpack.c.l.b16 %v1005
        %v1326 = vunpack.c.l.b16 %v1006
        %v1327 = vunpack.c.l.b16 %v1007
        %v1328 = vunpack.c.l.b16 %v1008
        %v1329 = vunpack.c.l.b16 %v1009
        %v1330 = vunpack.c.l.b16 %v1010
        %v1331 = vunpack.c.l.b16 %v1011
        %v1332 = vunpack.c.l.b16 %v1012
        %v1333 = vunpack.c.l.b16 %v1013
        %v1334 = vunpack.c.l.b16 %v1014
        %v1335 = vunpack.c.l.b16 %v1015
        %v1336 = vunpack.c.l.b16 %v1016
        %v1337 = vunpack.c.l.b16 %v1017
        %v1338 = vunpack.c.l.b16 %v1018
        %v1339 = vunpack.c.l.b16 %v1019
        %v1340 = vunpack.c.l.b16 %v1020
        %v1341 = vunpack.c.l.b16 %v1021
        %v1342 = vunpack.c.l.b16 %v1022
        %v1343 = vunpack.c.l.b16 %v1023
        %v1344 = vunpack.c.l.b16 %v1024
        %v1345 = vunpack.c.l.b16 %v1025
        %v1346 = vunpack.c.l.b16 %v1026
        %v1347 = vunpack.c.l.b16 %v1027
        %v1348 = vunpack.c.l.b16 %v1028
        %v1349 = vunpack.c.l.b16 %v1029
        %v1350 = vunpack.c.l.b16 %v1030
        %v1351 = vunpack.c.l.b16 %v1031
        %v1352 = vpack.c.b16 %v1225, %v1224
        %v1353 = vpack.c.b16 %v1227, %v1226
        %v1354 = vpack.c.b16 %v1229, %v1228
        %v1355 = vpack.c.b16 %v1231, %v1230
        %v1356 = vpack.c.b16 %v1233, %v1232
        %v1357 = vpack.c.b16 %v1235, %v1234
        %v1358 = vpack.c.b16 %v1237, %v1236
        %v1359 = vpack.c.b16 %v1239, %v1238
        %v1360 = vpack.c.b16 %v1241, %v1240
        %v1361 = vpack.c.b16 %v1243, %v1242
        %v1362 = vpack.c.b16 %v1245, %v1244
        %v1363 = vpack.c.b16 %v1247, %v1246
        %v1364 = vpack.c.b16 %v1249, %v1248
        %v1365 = vpack.c.b16 %v1251, %v1250
        %v1366 = vpack.c.b16 %v1253, %v1252
        %v1367 = vpack.c.b16 %v1255, %v1254
        %v1368 = vpack.c.b16 %v1257, %v1256
        %v1369 = vpack.c.b16 %v1259, %v1258
        %v1370 = vpack.c.b16 %v1261, %v1260
        %v1371 = vpack.c.b16 %v1263, %v1262
        %v1372 = vpack.c.b16 %v1265, %v1264
        %v1373 = vpack.c.b16 %v1267, %v1266
        %v1374 = vpack.c.b16 %v1269, %v1268
        %v1375 = vpack.c.b16 %v1271, %v1270
        %v1376 = vpack.c.b16 %v1273, %v1272
        %v1377 = vpack.c.b16 %v1275, %v1274
        %v1378 = vpack.c.b16 %v1277, %v1276
        %v1379 = vpack.c.b16 %v1279, %v1278
        %v1380 = vpack.c.b16 %v1281, %v1280
        %v1381 = vpack.c.b16 %v1283, %v1282
        %v1382 = vpack.c.b16 %v1285, %v1284
        %v1383 = vpack.c.b16 %v1287, %v1286
        %v1384 = vpack.c.b16 %v1289, %v1288
        %v1385 = vpack.c.b16 %v1291, %v1290
        %v1386 = vpack.c.b16 %v1293, %v1292
        %v1387 = vpack.c.b16 %v1295, %v1294
        %v1388 = vpack.c.b16 %v1297, %v1296
        %v1389 = vpack.c.b16 %v1299, %v1298
        %v1390 = vpack.c.b16 %v1301, %v1300
        %v1391 = vpack.c.b16 %v1303, %v1302
        %v1392 = vpack.c.b16 %v1305, %v1304
        %v1393 = vpack.c.b16 %v1307, %v1306
        %v1394 = vpack.c.b16 %v1309, %v1308
        %v1395 = vpack.c.b16 %v1311, %v1310
        %v1396 = vpack.c.b16 %v1313, %v1312
        %v1397 = vpack.c.b16 %v1315, %v1314
        %v1398 = vpack.c.b16 %v1317, %v1316
        %v1399 = vpack.c.b16 %v1319, %v1318
        %v1400 = vpack.c.b16 %v1321, %v1320
        %v1401 = vpack.c.b16 %v1323, %v1322
        %v1402 = vpack.c.b16 %v1325, %v1324
        %v1403 = vpack.c.b16 %v1327, %v1326
        %v1404 = vpack.c.b16 %v1329, %v1328
        %v1405 = vpack.c.b16 %v1331, %v1330
        %v1406 = vpack.c.b16 %v1333, %v1332
        %v1407 = vpack.c.b16 %v1335, %v1334
        %v1408 = vpack.c.b16 %v1337, %v1336
        %v1409 = vpack.c.b16 %v1339, %v1338
        %v1410 = vpack.c.b16 %v1341, %v1340
        %v1411 = vpack.c.b16 %v1343, %v1342
        %v1412 = vpack.c.b16 %v1345, %v1344
        %v1413 = vpack.c.b16 %v1347, %v1346
        %v1414 = vpack.c.b16 %v1349, %v1348
        %v1415 = vpack.c.b16 %v1351, %v1350
        %v1544 = vunpack.c.l.b16 %v1032
        %v1545 = vunpack.c.h.b16 %v1032
        %v1546 = vunpack.c.l.b16 %v1033
        %v1547 = vunpack.c.h.b16 %v1033
        %v1548 = vunpack.c.l.b16 %v1034
        %v1549 = vunpack.c.h.b16 %v1034
        %v1550 = vunpack.c.l.b16 %v1035
        %v1551 = vunpack.c.h.b16 %v1035
        %v1552 = vunpack.c.l.b16 %v1036
        %v1553 = vunpack.c.h.b16 %v1036
        %v1554 = vunpack.c.l.b16 %v1037
        %v1555 = vunpack.c.h.b16 %v1037
        %v1556 = vunpack.c.l.b16 %v1038
        %v1557 = vunpack.c.h.b16 %v1038
        %v1558 = vunpack.c.l.b16 %v1039
        %v1559 = vunpack.c.h.b16 %v1039
        %v1560 = vunpack.c.l.b16 %v1040
        %v1561 = vunpack.c.h.b16 %v1040
        %v1562 = vunpack.c.l.b16 %v1041
        %v1563 = vunpack.c.h.b16 %v1041
        %v1564 = vunpack.c.l.b16 %v1042
        %v1565 = vunpack.c.h.b16 %v1042
        %v1566 = vunpack.c.l.b16 %v1043
        %v1567 = vunpack.c.h.b16 %v1043
        %v1568 = vunpack.c.l.b16 %v1044
        %v1569 = vunpack.c.h.b16 %v1044
        %v1570 = vunpack.c.l.b16 %v1045
        %v1571 = vunpack.c.h.b16 %v1045
        %v1572 = vunpack.c.l.b16 %v1046
        %v1573 = vunpack.c.h.b16 %v1046
        %v1574 = vunpack.c.l.b16 %v1047
        %v1575 = vunpack.c.h.b16 %v1047
        %v1576 = vunpack.c.l.b16 %v1048
        %v1577 = vunpack.c.h.b16 %v1048
        %v1578 = vunpack.c.l.b16 %v1049
        %v1579 = vunpack.c.h.b16 %v1049
        %v1580 = vunpack.c.l.b16 %v1050
        %v1581 = vunpack.c.h.b16 %v1050
        %v1582 = vunpack.c.l.b16 %v1051
        %v1583 = vunpack.c.h.b16 %v1051
        %v1584 = vunpack.c.l.b16 %v1052
        %v1585 = vunpack.c.h.b16 %v1052
        %v1586 = vunpack.c.l.b16 %v1053
        %v1587 = vunpack.c.h.b16 %v1053
        %v1588 = vunpack.c.l.b16 %v1054
        %v1589 = vunpack.c.h.b16 %v1054
        %v1590 = vunpack.c.l.b16 %v1055
        %v1591 = vunpack.c.h.b16 %v1055
        %v1592 = vunpack.c.l.b16 %v1056
        %v1593 = vunpack.c.h.b16 %v1056
        %v1594 = vunpack.c.l.b16 %v1057
        %v1595 = vunpack.c.h.b16 %v1057
        %v1596 = vunpack.c.l.b16 %v1058
        %v1597 = vunpack.c.h.b16 %v1058
        %v1598 = vunpack.c.l.b16 %v1059
        %v1599 = vunpack.c.h.b16 %v1059
        %v1600 = vunpack.c.l.b16 %v1060
        %v1601 = vunpack.c.h.b16 %v1060
        %v1602 = vunpack.c.l.b16 %v1061
        %v1603 = vunpack.c.h.b16 %v1061
        %v1604 = vunpack.c.l.b16 %v1062
        %v1605 = vunpack.c.h.b16 %v1062
        %v1606 = vunpack.c.l.b16 %v1063
        %v1607 = vunpack.c.h.b16 %v1063
        %v1608 = vunpack.c.l.b16 %v1064
        %v1609 = vunpack.c.h.b16 %v1064
        %v1610 = vunpack.c.l.b16 %v1065
        %v1611 = vunpack.c.h.b16 %v1065
        %v1612 = vunpack.c.l.b16 %v1066
        %v1613 = vunpack.c.h.b16 %v1066
        %v1614 = vunpack.c.l.b16 %v1067
        %v1615 = vunpack.c.h.b16 %v1067
        %v1616 = vunpack.c.l.b16 %v1068
        %v1617 = vunpack.c.h.b16 %v1068
        %v1618 = vunpack.c.l.b16 %v1069
        %v1619 = vunpack.c.h.b16 %v1069
        %v1620 = vunpack.c.l.b16 %v1070
        %v1621 = vunpack.c.h.b16 %v1070
        %v1622 = vunpack.c.l.b16 %v1071
        %v1623 = vunpack.c.h.b16 %v1071
        %v1624 = vunpack.c.l.b16 %v1072
        %v1625 = vunpack.c.h.b16 %v1072
        %v1626 = vunpack.c.l.b16 %v1073
        %v1627 = vunpack.c.h.b16 %v1073
        %v1628 = vunpack.c.l.b16 %v1074
        %v1629 = vunpack.c.h.b16 %v1074
        %v1630 = vunpack.c.l.b16 %v1075
        %v1631 = vunpack.c.h.b16 %v1075
        %v1632 = vunpack.c.l.b16 %v1076
        %v1633 = vunpack.c.h.b16 %v1076
        %v1634 = vunpack.c.l.b16 %v1077
        %v1635 = vunpack.c.h.b16 %v1077
        %v1636 = vunpack.c.l.b16 %v1078
        %v1637 = vunpack.c.h.b16 %v1078
        %v1638 = vunpack.c.l.b16 %v1079
        %v1639 = vunpack.c.h.b16 %v1079
        %v1640 = vunpack.c.l.b16 %v1080
        %v1641 = vunpack.c.h.b16 %v1080
        %v1642 = vunpack.c.l.b16 %v1081
        %v1643 = vunpack.c.h.b16 %v1081
        %v1644 = vunpack.c.l.b16 %v1082
        %v1645 = vunpack.c.h.b16 %v1082
        %v1646 = vunpack.c.l.b16 %v1083
        %v1647 = vunpack.c.h.b16 %v1083
        %v1648 = vunpack.c.l.b16 %v1084
        %v1649 = vunpack.c.h.b16 %v1084
        %v1650 = vunpack.c.l.b16 %v1085
        %v1651 = vunpack.c.h.b16 %v1085
        %v1652 = vunpack.c.l.b16 %v1086
        %v1653 = vunpack.c.h.b16 %v1086
        %v1654 = vunpack.c.l.b16 %v1087
        %v1655 = vunpack.c.h.b16 %v1087
        %v1656 = vunpack.c.l.b16 %v1088
        %v1657 = vunpack.c.h.b16 %v1088
        %v1658 = vunpack.c.l.b16 %v1089
        %v1659 = vunpack.c.h.b16 %v1089
        %v1660 = vunpack.c.l.b16 %v1090
        %v1661 = vunpack.c.h.b16 %v1090
        %v1662 = vunpack.c.l.b16 %v1091
        %v1663 = vunpack.c.h.b16 %v1091
        %v1664 = vunpack.c.l.b16 %v1092
        %v1665 = vunpack.c.h.b16 %v1092
        %v1666 = vunpack.c.l.b16 %v1093
        %v1667 = vunpack.c.h.b16 %v1093
        %v1668 = vunpack.c.l.b16 %v1094
        %v1669 = vunpack.c.h.b16 %v1094
        %v1670 = vunpack.c.l.b16 %v1095
        %v1671 = vunpack.c.h.b16 %v1095
        %v1672 = vpack.c.b16 %v1552, %v1544
        %v1673 = vpack.c.b16 %v1553, %v1545
        %v1674 = vpack.c.b16 %v1554, %v1546
        %v1675 = vpack.c.b16 %v1555, %v1547
        %v1676 = vpack.c.b16 %v1556, %v1548
        %v1677 = vpack.c.b16 %v1557, %v1549
        %v1678 = vpack.c.b16 %v1558, %v1550
        %v1679 = vpack.c.b16 %v1559, %v1551
        %v1680 = vpack.c.b16 %v1568, %v1560
        %v1681 = vpack.c.b16 %v1569, %v1561
        %v1682 = vpack.c.b16 %v1570, %v1562
        %v1683 = vpack.c.b16 %v1571, %v1563
        %v1684 = vpack.c.b16 %v1572, %v1564
        %v1685 = vpack.c.b16 %v1573, %v1565
        %v1686 = vpack.c.b16 %v1574, %v1566
        %v1687 = vpack.c.b16 %v1575, %v1567
        %v1688 = vpack.c.b16 %v1584, %v1576
        %v1689 = vpack.c.b16 %v1585, %v1577
        %v1690 = vpack.c.b16 %v1586, %v1578
        %v1691 = vpack.c.b16 %v1587, %v1579
        %v1692 = vpack.c.b16 %v1588, %v1580
        %v1693 = vpack.c.b16 %v1589, %v1581
        %v1694 = vpack.c.b16 %v1590, %v1582
        %v1695 = vpack.c.b16 %v1591, %v1583
        %v1696 = vpack.c.b16 %v1600, %v1592
        %v1697 = vpack.c.b16 %v1601, %v1593
        %v1698 = vpack.c.b16 %v1602, %v1594
        %v1699 = vpack.c.b16 %v1603, %v1595
        %v1700 = vpack.c.b16 %v1604, %v1596
        %v1701 = vpack.c.b16 %v1605, %v1597
        %v1702 = vpack.c.b16 %v1606, %v1598
        %v1703 = vpack.c.b16 %v1607, %v1599
        %v1704 = vpack.c.b16 %v1616, %v1608
        %v1705 = vpack.c.b16 %v1617, %v1609
        %v1706 = vpack.c.b16 %v1618, %v1610
        %v1707 = vpack.c.b16 %v1619, %v1611
        %v1708 = vpack.c.b16 %v1620, %v1612
        %v1709 = vpack.c.b16 %v1621, %v1613
        %v1710 = vpack.c.b16 %v1622, %v1614
        %v1711 = vpack.c.b16 %v1623, %v1615
        %v1712 = vpack.c.b16 %v1632, %v1624
        %v1713 = vpack.c.b16 %v1633, %v1625
        %v1714 = vpack.c.b16 %v1634, %v1626
        %v1715 = vpack.c.b16 %v1635, %v1627
        %v1716 = vpack.c.b16 %v1636, %v1628
        %v1717 = vpack.c.b16 %v1637, %v1629
        %v1718 = vpack.c.b16 %v1638, %v1630
        %v1719 = vpack.c.b16 %v1639, %v1631
        %v1720 = vpack.c.b16 %v1648, %v1640
        %v1721 = vpack.c.b16 %v1649, %v1641
        %v1722 = vpack.c.b16 %v1650, %v1642
        %v1723 = vpack.c.b16 %v1651, %v1643
        %v1724 = vpack.c.b16 %v1652, %v1644
        %v1725 = vpack.c.b16 %v1653, %v1645
        %v1726 = vpack.c.b16 %v1654, %v1646
        %v1727 = vpack.c.b16 %v1655, %v1647
        %v1728 = vpack.c.b16 %v1664, %v1656
        %v1729 = vpack.c.b16 %v1665, %v1657
        %v1730 = vpack.c.b16 %v1666, %v1658
        %v1731 = vpack.c.b16 %v1667, %v1659
        %v1732 = vpack.c.b16 %v1668, %v1660
        %v1733 = vpack.c.b16 %v1669, %v1661
        %v1734 = vpack.c.b16 %v1670, %v1662
        %v1735 = vpack.c.b16 %v1671, %v1663
        %1800 = vmatprep.subr.bf16.mxu0 %v1729
        %1801 = vmatpush1.bf16.msra.mxu0 %v1728
        %1802 = vmatprep.subr.bf16.mxu0 %v1721
        %1803 = vmatpush1.bf16.msra.mxu0 %v1720
        %1804 = vmatprep.subr.bf16.mxu0 %v1713
        %1805 = vmatpush1.bf16.msra.mxu0 %v1712
        %1806 = vmatprep.subr.bf16.mxu0 %v1705
        %1807 = vmatpush1.bf16.msra.mxu0 %v1704
        %1808 = vmatprep.subr.bf16.mxu0 %v1697
        %1809 = vmatpush1.bf16.msra.mxu0 %v1696
        %1810 = vmatprep.subr.bf16.mxu0 %v1689
        %1811 = vmatpush1.bf16.msra.mxu0 %v1688
        %1812 = vmatprep.subr.bf16.mxu0 %v1681
        %1813 = vmatpush1.bf16.msra.mxu0 %v1680
        %1814 = vmatprep.subr.bf16.mxu0 %v1673
        %1815 = vmatpush1.bf16.msra.mxu0 %v1672
        %1816 = vmatprep.subr.bf16.mxu0 0
        %1817 = vmatpush2.bf16.msra.mxu0 0
        %1818 = vmatprep.subr.bf16.mxu0 0
        %1819 = vmatpush2.bf16.msra.mxu0 0
        %1820 = vmatprep.subr.bf16.mxu0 0
        %1821 = vmatpush2.bf16.msra.mxu0 0
        %1822 = vmatprep.subr.bf16.mxu0 0
        %1823 = vmatpush2.bf16.msra.mxu0 0
        %1824 = vmatprep.subr.bf16.mxu0 0
        %1825 = vmatpush2.bf16.msra.mxu0 0
        %1826 = vmatprep.subr.bf16.mxu0 0
        %1827 = vmatpush2.bf16.msra.mxu0 0
        %1828 = vmatprep.subr.bf16.mxu0 0
        %1829 = vmatpush2.bf16.msra.mxu0 0
        %1830 = vmatprep.subr.bf16.mxu0 0
        %1831 = vmatpush2.bf16.msra.mxu0 0
        %1832 = vmatprep.mubr.bf16.mxu0 0
        %1833 = vmatmul.mubr.bf16.gmra.mxu0 %v1352
        %v1834 = vpop.f32.mrf.mxu0
        %v1835 = vadd.f32 0.0, %v1834
        %v1836 = vpop.f32.mrf.mxu0
        %v1837 = vadd.f32 0.0, %v1836
        %v1838 = vpop.f32.mrf.mxu0
        %v1839 = vadd.f32 0.0, %v1838
        %v1840 = vpop.f32.mrf.mxu0
        %v1841 = vadd.f32 0.0, %v1840
        %1842 = vmatprep.mubr.bf16.mxu0 0
        %1843 = vmatmul.mubr.bf16.gmra.mxu0 %v1353
        %v1844 = vpop.f32.mrf.mxu0
        %v1845 = vadd.f32 0.0, %v1844
        %v1846 = vpop.f32.mrf.mxu0
        %v1847 = vadd.f32 0.0, %v1846
        %v1848 = vpop.f32.mrf.mxu0
        %v1849 = vadd.f32 0.0, %v1848
        %v1850 = vpop.f32.mrf.mxu0
        %v1851 = vadd.f32 0.0, %v1850
        %1852 = vmatprep.mubr.bf16.mxu0 0
        %1853 = vmatmul.mubr.bf16.gmra.mxu0 %v1354
        %v1854 = vpop.f32.mrf.mxu0
        %v1855 = vadd.f32 0.0, %v1854
        %v1856 = vpop.f32.mrf.mxu0
        %v1857 = vadd.f32 0.0, %v1856
        %v1858 = vpop.f32.mrf.mxu0
        %v1859 = vadd.f32 0.0, %v1858
        %v1860 = vpop.f32.mrf.mxu0
        %v1861 = vadd.f32 0.0, %v1860
        %1862 = vmatprep.mubr.bf16.mxu0 0
        %1863 = vmatmul.mubr.bf16.gmra.mxu0 %v1355
        %v1864 = vpop.f32.mrf.mxu0
        %v1865 = vadd.f32 0.0, %v1864
        %v1866 = vpop.f32.mrf.mxu0
        %v1867 = vadd.f32 0.0, %v1866
        %v1868 = vpop.f32.mrf.mxu0
        %v1869 = vadd.f32 0.0, %v1868
        %v1870 = vpop.f32.mrf.mxu0
        %v1871 = vadd.f32 0.0, %v1870
        %1872 = vmatprep.mubr.bf16.mxu0 0
        %1873 = vmatmul.mubr.bf16.gmra.mxu0 %v1356
        %v1874 = vpop.f32.mrf.mxu0
        %v1875 = vadd.f32 0.0, %v1874
        %v1876 = vpop.f32.mrf.mxu0
        %v1877 = vadd.f32 0.0, %v1876
        %v1878 = vpop.f32.mrf.mxu0
        %v1879 = vadd.f32 0.0, %v1878
        %v1880 = vpop.f32.mrf.mxu0
        %v1881 = vadd.f32 0.0, %v1880
        %1882 = vmatprep.mubr.bf16.mxu0 0
        %1883 = vmatmul.mubr.bf16.gmra.mxu0 %v1357
        %v1884 = vpop.f32.mrf.mxu0
        %v1885 = vadd.f32 0.0, %v1884
        %v1886 = vpop.f32.mrf.mxu0
        %v1887 = vadd.f32 0.0, %v1886
        %v1888 = vpop.f32.mrf.mxu0
        %v1889 = vadd.f32 0.0, %v1888
        %v1890 = vpop.f32.mrf.mxu0
        %v1891 = vadd.f32 0.0, %v1890
        %1892 = vmatprep.mubr.bf16.mxu0 0
        %1893 = vmatmul.mubr.bf16.gmra.mxu0 %v1358
        %v1894 = vpop.f32.mrf.mxu0
        %v1895 = vadd.f32 0.0, %v1894
        %v1896 = vpop.f32.mrf.mxu0
        %v1897 = vadd.f32 0.0, %v1896
        %v1898 = vpop.f32.mrf.mxu0
        %v1899 = vadd.f32 0.0, %v1898
        %v1900 = vpop.f32.mrf.mxu0
        %v1901 = vadd.f32 0.0, %v1900
        %1902 = vmatprep.mubr.bf16.mxu0 0
        %1903 = vmatmul.mubr.bf16.gmra.mxu0 %v1359
        %v1904 = vpop.f32.mrf.mxu0
        %v1905 = vadd.f32 0.0, %v1904
        %v1906 = vpop.f32.mrf.mxu0
        %v1907 = vadd.f32 0.0, %v1906
        %v1908 = vpop.f32.mrf.mxu0
        %v1909 = vadd.f32 0.0, %v1908
        %v1910 = vpop.f32.mrf.mxu0
        %v1911 = vadd.f32 0.0, %v1910
        %1912 = vmatprep.mubr.bf16.mxu0 0
        %1913 = vmatmul.mubr.bf16.gmra.mxu0 %v1360
        %v1914 = vpop.f32.mrf.mxu0
        %v1915 = vadd.f32 0.0, %v1914
        %v1916 = vpop.f32.mrf.mxu0
        %v1917 = vadd.f32 0.0, %v1916
        %v1918 = vpop.f32.mrf.mxu0
        %v1919 = vadd.f32 0.0, %v1918
        %v1920 = vpop.f32.mrf.mxu0
        %v1921 = vadd.f32 0.0, %v1920
        %1922 = vmatprep.mubr.bf16.mxu0 0
        %1923 = vmatmul.mubr.bf16.gmra.mxu0 %v1361
        %v1924 = vpop.f32.mrf.mxu0
        %v1925 = vadd.f32 0.0, %v1924
        %v1926 = vpop.f32.mrf.mxu0
        %v1927 = vadd.f32 0.0, %v1926
        %v1928 = vpop.f32.mrf.mxu0
        %v1929 = vadd.f32 0.0, %v1928
        %v1930 = vpop.f32.mrf.mxu0
        %v1931 = vadd.f32 0.0, %v1930
        %1932 = vmatprep.mubr.bf16.mxu0 0
        %1933 = vmatmul.mubr.bf16.gmra.mxu0 %v1362
        %v1934 = vpop.f32.mrf.mxu0
        %v1935 = vadd.f32 0.0, %v1934
        %v1936 = vpop.f32.mrf.mxu0
        %v1937 = vadd.f32 0.0, %v1936
        %v1938 = vpop.f32.mrf.mxu0
        %v1939 = vadd.f32 0.0, %v1938
        %v1940 = vpop.f32.mrf.mxu0
        %v1941 = vadd.f32 0.0, %v1940
        %1942 = vmatprep.mubr.bf16.mxu0 0
        %1943 = vmatmul.mubr.bf16.gmra.mxu0 %v1363
        %v1944 = vpop.f32.mrf.mxu0
        %v1945 = vadd.f32 0.0, %v1944
        %v1946 = vpop.f32.mrf.mxu0
        %v1947 = vadd.f32 0.0, %v1946
        %v1948 = vpop.f32.mrf.mxu0
        %v1949 = vadd.f32 0.0, %v1948
        %v1950 = vpop.f32.mrf.mxu0
        %v1951 = vadd.f32 0.0, %v1950
        %1952 = vmatprep.mubr.bf16.mxu0 0
        %1953 = vmatmul.mubr.bf16.gmra.mxu0 %v1364
        %v1954 = vpop.f32.mrf.mxu0
        %v1955 = vadd.f32 0.0, %v1954
        %v1956 = vpop.f32.mrf.mxu0
        %v1957 = vadd.f32 0.0, %v1956
        %v1958 = vpop.f32.mrf.mxu0
        %v1959 = vadd.f32 0.0, %v1958
        %v1960 = vpop.f32.mrf.mxu0
        %v1961 = vadd.f32 0.0, %v1960
        %1962 = vmatprep.mubr.bf16.mxu0 0
        %1963 = vmatmul.mubr.bf16.gmra.mxu0 %v1365
        %v1964 = vpop.f32.mrf.mxu0
        %v1965 = vadd.f32 0.0, %v1964
        %v1966 = vpop.f32.mrf.mxu0
        %v1967 = vadd.f32 0.0, %v1966
        %v1968 = vpop.f32.mrf.mxu0
        %v1969 = vadd.f32 0.0, %v1968
        %v1970 = vpop.f32.mrf.mxu0
        %v1971 = vadd.f32 0.0, %v1970
        %1972 = vmatprep.mubr.bf16.mxu0 0
        %1973 = vmatmul.mubr.bf16.gmra.mxu0 %v1366
        %v1974 = vpop.f32.mrf.mxu0
        %v1975 = vadd.f32 0.0, %v1974
        %v1976 = vpop.f32.mrf.mxu0
        %v1977 = vadd.f32 0.0, %v1976
        %v1978 = vpop.f32.mrf.mxu0
        %v1979 = vadd.f32 0.0, %v1978
        %v1980 = vpop.f32.mrf.mxu0
        %v1981 = vadd.f32 0.0, %v1980
        %1982 = vmatprep.mubr.bf16.mxu0 0
        %1983 = vmatmul.mubr.bf16.gmra.mxu0 %v1367
        %v1984 = vpop.f32.mrf.mxu0
        %v1985 = vadd.f32 0.0, %v1984
        %v1986 = vpop.f32.mrf.mxu0
        %v1987 = vadd.f32 0.0, %v1986
        %v1988 = vpop.f32.mrf.mxu0
        %v1989 = vadd.f32 0.0, %v1988
        %v1990 = vpop.f32.mrf.mxu0
        %v1991 = vadd.f32 0.0, %v1990
        %1992 = vmatprep.mubr.bf16.mxu0 0
        %1993 = vmatmul.mubr.bf16.gmra.mxu0 %v1368
        %v1994 = vpop.f32.mrf.mxu0
        %v1995 = vadd.f32 0.0, %v1994
        %v1996 = vpop.f32.mrf.mxu0
        %v1997 = vadd.f32 0.0, %v1996
        %v1998 = vpop.f32.mrf.mxu0
        %v1999 = vadd.f32 0.0, %v1998
        %v2000 = vpop.f32.mrf.mxu0
        %v2001 = vadd.f32 0.0, %v2000
        %2002 = vmatprep.mubr.bf16.mxu0 0
        %2003 = vmatmul.mubr.bf16.gmra.mxu0 %v1369
        %v2004 = vpop.f32.mrf.mxu0
        %v2005 = vadd.f32 0.0, %v2004
        %v2006 = vpop.f32.mrf.mxu0
        %v2007 = vadd.f32 0.0, %v2006
        %v2008 = vpop.f32.mrf.mxu0
        %v2009 = vadd.f32 0.0, %v2008
        %v2010 = vpop.f32.mrf.mxu0
        %v2011 = vadd.f32 0.0, %v2010
        %2012 = vmatprep.mubr.bf16.mxu0 0
        %2013 = vmatmul.mubr.bf16.gmra.mxu0 %v1370
        %v2014 = vpop.f32.mrf.mxu0
        %v2015 = vadd.f32 0.0, %v2014
        %v2016 = vpop.f32.mrf.mxu0
        %v2017 = vadd.f32 0.0, %v2016
        %v2018 = vpop.f32.mrf.mxu0
        %v2019 = vadd.f32 0.0, %v2018
        %v2020 = vpop.f32.mrf.mxu0
        %v2021 = vadd.f32 0.0, %v2020
        %2022 = vmatprep.mubr.bf16.mxu0 0
        %2023 = vmatmul.mubr.bf16.gmra.mxu0 %v1371
        %v2024 = vpop.f32.mrf.mxu0
        %v2025 = vadd.f32 0.0, %v2024
        %v2026 = vpop.f32.mrf.mxu0
        %v2027 = vadd.f32 0.0, %v2026
        %v2028 = vpop.f32.mrf.mxu0
        %v2029 = vadd.f32 0.0, %v2028
        %v2030 = vpop.f32.mrf.mxu0
        %v2031 = vadd.f32 0.0, %v2030
        %2032 = vmatprep.mubr.bf16.mxu0 0
        %2033 = vmatmul.mubr.bf16.gmra.mxu0 %v1372
        %v2034 = vpop.f32.mrf.mxu0
        %v2035 = vadd.f32 0.0, %v2034
        %v2036 = vpop.f32.mrf.mxu0
        %v2037 = vadd.f32 0.0, %v2036
        %v2038 = vpop.f32.mrf.mxu0
        %v2039 = vadd.f32 0.0, %v2038
        %v2040 = vpop.f32.mrf.mxu0
        %v2041 = vadd.f32 0.0, %v2040
        %2042 = vmatprep.mubr.bf16.mxu0 0
        %2043 = vmatmul.mubr.bf16.gmra.mxu0 %v1373
        %v2044 = vpop.f32.mrf.mxu0
        %v2045 = vadd.f32 0.0, %v2044
        %v2046 = vpop.f32.mrf.mxu0
        %v2047 = vadd.f32 0.0, %v2046
        %v2048 = vpop.f32.mrf.mxu0
        %v2049 = vadd.f32 0.0, %v2048
        %v2050 = vpop.f32.mrf.mxu0
        %v2051 = vadd.f32 0.0, %v2050
        %2052 = vmatprep.mubr.bf16.mxu0 0
        %2053 = vmatmul.mubr.bf16.gmra.mxu0 %v1374
        %v2054 = vpop.f32.mrf.mxu0
        %v2055 = vadd.f32 0.0, %v2054
        %v2056 = vpop.f32.mrf.mxu0
        %v2057 = vadd.f32 0.0, %v2056
        %v2058 = vpop.f32.mrf.mxu0
        %v2059 = vadd.f32 0.0, %v2058
        %v2060 = vpop.f32.mrf.mxu0
        %v2061 = vadd.f32 0.0, %v2060
        %2062 = vmatprep.mubr.bf16.mxu0 0
        %2063 = vmatmul.mubr.bf16.gmra.mxu0 %v1375
        %v2064 = vpop.f32.mrf.mxu0
        %v2065 = vadd.f32 0.0, %v2064
        %v2066 = vpop.f32.mrf.mxu0
        %v2067 = vadd.f32 0.0, %v2066
        %v2068 = vpop.f32.mrf.mxu0
        %v2069 = vadd.f32 0.0, %v2068
        %v2070 = vpop.f32.mrf.mxu0
        %v2071 = vadd.f32 0.0, %v2070
        %2072 = vmatprep.mubr.bf16.mxu0 0
        %2073 = vmatmul.mubr.bf16.gmra.mxu0 %v1376
        %v2074 = vpop.f32.mrf.mxu0
        %v2075 = vadd.f32 0.0, %v2074
        %v2076 = vpop.f32.mrf.mxu0
        %v2077 = vadd.f32 0.0, %v2076
        %v2078 = vpop.f32.mrf.mxu0
        %v2079 = vadd.f32 0.0, %v2078
        %v2080 = vpop.f32.mrf.mxu0
        %v2081 = vadd.f32 0.0, %v2080
        %2082 = vmatprep.mubr.bf16.mxu0 0
        %2083 = vmatmul.mubr.bf16.gmra.mxu0 %v1377
        %v2084 = vpop.f32.mrf.mxu0
        %v2085 = vadd.f32 0.0, %v2084
        %v2086 = vpop.f32.mrf.mxu0
        %v2087 = vadd.f32 0.0, %v2086
        %v2088 = vpop.f32.mrf.mxu0
        %v2089 = vadd.f32 0.0, %v2088
        %v2090 = vpop.f32.mrf.mxu0
        %v2091 = vadd.f32 0.0, %v2090
        %2092 = vmatprep.mubr.bf16.mxu0 0
        %2093 = vmatmul.mubr.bf16.gmra.mxu0 %v1378
        %v2094 = vpop.f32.mrf.mxu0
        %v2095 = vadd.f32 0.0, %v2094
        %v2096 = vpop.f32.mrf.mxu0
        %v2097 = vadd.f32 0.0, %v2096
        %v2098 = vpop.f32.mrf.mxu0
        %v2099 = vadd.f32 0.0, %v2098
        %v2100 = vpop.f32.mrf.mxu0
        %v2101 = vadd.f32 0.0, %v2100
        %2102 = vmatprep.mubr.bf16.mxu0 0
        %2103 = vmatmul.mubr.bf16.gmra.mxu0 %v1379
        %v2104 = vpop.f32.mrf.mxu0
        %v2105 = vadd.f32 0.0, %v2104
        %v2106 = vpop.f32.mrf.mxu0
        %v2107 = vadd.f32 0.0, %v2106
        %v2108 = vpop.f32.mrf.mxu0
        %v2109 = vadd.f32 0.0, %v2108
        %v2110 = vpop.f32.mrf.mxu0
        %v2111 = vadd.f32 0.0, %v2110
        %2112 = vmatprep.mubr.bf16.mxu0 0
        %2113 = vmatmul.mubr.bf16.gmra.mxu0 %v1380
        %v2114 = vpop.f32.mrf.mxu0
        %v2115 = vadd.f32 0.0, %v2114
        %v2116 = vpop.f32.mrf.mxu0
        %v2117 = vadd.f32 0.0, %v2116
        %v2118 = vpop.f32.mrf.mxu0
        %v2119 = vadd.f32 0.0, %v2118
        %v2120 = vpop.f32.mrf.mxu0
        %v2121 = vadd.f32 0.0, %v2120
        %2122 = vmatprep.mubr.bf16.mxu0 0
        %2123 = vmatmul.mubr.bf16.gmra.mxu0 %v1381
        %v2124 = vpop.f32.mrf.mxu0
        %v2125 = vadd.f32 0.0, %v2124
        %v2126 = vpop.f32.mrf.mxu0
        %v2127 = vadd.f32 0.0, %v2126
        %v2128 = vpop.f32.mrf.mxu0
        %v2129 = vadd.f32 0.0, %v2128
        %v2130 = vpop.f32.mrf.mxu0
        %v2131 = vadd.f32 0.0, %v2130
        %2132 = vmatprep.mubr.bf16.mxu0 0
        %2133 = vmatmul.mubr.bf16.gmra.mxu0 %v1382
        %v2134 = vpop.f32.mrf.mxu0
        %v2135 = vadd.f32 0.0, %v2134
        %v2136 = vpop.f32.mrf.mxu0
        %v2137 = vadd.f32 0.0, %v2136
        %v2138 = vpop.f32.mrf.mxu0
        %v2139 = vadd.f32 0.0, %v2138
        %v2140 = vpop.f32.mrf.mxu0
        %v2141 = vadd.f32 0.0, %v2140
        %2142 = vmatprep.mubr.bf16.mxu0 0
        %2143 = vmatmul.mubr.bf16.gmra.mxu0 %v1383
        %v2144 = vpop.f32.mrf.mxu0
        %v2145 = vadd.f32 0.0, %v2144
        %v2146 = vpop.f32.mrf.mxu0
        %v2147 = vadd.f32 0.0, %v2146
        %v2148 = vpop.f32.mrf.mxu0
        %v2149 = vadd.f32 0.0, %v2148
        %v2150 = vpop.f32.mrf.mxu0
        %v2151 = vadd.f32 0.0, %v2150
        %2152 = vmatprep.mubr.bf16.mxu0 0
        %2153 = vmatmul.mubr.bf16.gmra.mxu0 %v1384
        %v2154 = vpop.f32.mrf.mxu0
        %v2155 = vadd.f32 0.0, %v2154
        %v2156 = vpop.f32.mrf.mxu0
        %v2157 = vadd.f32 0.0, %v2156
        %v2158 = vpop.f32.mrf.mxu0
        %v2159 = vadd.f32 0.0, %v2158
        %v2160 = vpop.f32.mrf.mxu0
        %v2161 = vadd.f32 0.0, %v2160
        %2162 = vmatprep.mubr.bf16.mxu0 0
        %2163 = vmatmul.mubr.bf16.gmra.mxu0 %v1385
        %v2164 = vpop.f32.mrf.mxu0
        %v2165 = vadd.f32 0.0, %v2164
        %v2166 = vpop.f32.mrf.mxu0
        %v2167 = vadd.f32 0.0, %v2166
        %v2168 = vpop.f32.mrf.mxu0
        %v2169 = vadd.f32 0.0, %v2168
        %v2170 = vpop.f32.mrf.mxu0
        %v2171 = vadd.f32 0.0, %v2170
        %2172 = vmatprep.mubr.bf16.mxu0 0
        %2173 = vmatmul.mubr.bf16.gmra.mxu0 %v1386
        %v2174 = vpop.f32.mrf.mxu0
        %v2175 = vadd.f32 0.0, %v2174
        %v2176 = vpop.f32.mrf.mxu0
        %v2177 = vadd.f32 0.0, %v2176
        %v2178 = vpop.f32.mrf.mxu0
        %v2179 = vadd.f32 0.0, %v2178
        %v2180 = vpop.f32.mrf.mxu0
        %v2181 = vadd.f32 0.0, %v2180
        %2182 = vmatprep.mubr.bf16.mxu0 0
        %2183 = vmatmul.mubr.bf16.gmra.mxu0 %v1387
        %v2184 = vpop.f32.mrf.mxu0
        %v2185 = vadd.f32 0.0, %v2184
        %v2186 = vpop.f32.mrf.mxu0
        %v2187 = vadd.f32 0.0, %v2186
        %v2188 = vpop.f32.mrf.mxu0
        %v2189 = vadd.f32 0.0, %v2188
        %v2190 = vpop.f32.mrf.mxu0
        %v2191 = vadd.f32 0.0, %v2190
        %2192 = vmatprep.mubr.bf16.mxu0 0
        %2193 = vmatmul.mubr.bf16.gmra.mxu0 %v1388
        %v2194 = vpop.f32.mrf.mxu0
        %v2195 = vadd.f32 0.0, %v2194
        %v2196 = vpop.f32.mrf.mxu0
        %v2197 = vadd.f32 0.0, %v2196
        %v2198 = vpop.f32.mrf.mxu0
        %v2199 = vadd.f32 0.0, %v2198
        %v2200 = vpop.f32.mrf.mxu0
        %v2201 = vadd.f32 0.0, %v2200
        %2202 = vmatprep.mubr.bf16.mxu0 0
        %2203 = vmatmul.mubr.bf16.gmra.mxu0 %v1389
        %v2204 = vpop.f32.mrf.mxu0
        %v2205 = vadd.f32 0.0, %v2204
        %v2206 = vpop.f32.mrf.mxu0
        %v2207 = vadd.f32 0.0, %v2206
        %v2208 = vpop.f32.mrf.mxu0
        %v2209 = vadd.f32 0.0, %v2208
        %v2210 = vpop.f32.mrf.mxu0
        %v2211 = vadd.f32 0.0, %v2210
        %2212 = vmatprep.mubr.bf16.mxu0 0
        %2213 = vmatmul.mubr.bf16.gmra.mxu0 %v1390
        %v2214 = vpop.f32.mrf.mxu0
        %v2215 = vadd.f32 0.0, %v2214
        %v2216 = vpop.f32.mrf.mxu0
        %v2217 = vadd.f32 0.0, %v2216
        %v2218 = vpop.f32.mrf.mxu0
        %v2219 = vadd.f32 0.0, %v2218
        %v2220 = vpop.f32.mrf.mxu0
        %v2221 = vadd.f32 0.0, %v2220
        %2222 = vmatprep.mubr.bf16.mxu0 0
        %2223 = vmatmul.mubr.bf16.gmra.mxu0 %v1391
        %v2224 = vpop.f32.mrf.mxu0
        %v2225 = vadd.f32 0.0, %v2224
        %v2226 = vpop.f32.mrf.mxu0
        %v2227 = vadd.f32 0.0, %v2226
        %v2228 = vpop.f32.mrf.mxu0
        %v2229 = vadd.f32 0.0, %v2228
        %v2230 = vpop.f32.mrf.mxu0
        %v2231 = vadd.f32 0.0, %v2230
        %2232 = vmatprep.mubr.bf16.mxu0 0
        %2233 = vmatmul.mubr.bf16.gmra.mxu0 %v1392
        %v2234 = vpop.f32.mrf.mxu0
        %v2235 = vadd.f32 0.0, %v2234
        %v2236 = vpop.f32.mrf.mxu0
        %v2237 = vadd.f32 0.0, %v2236
        %v2238 = vpop.f32.mrf.mxu0
        %v2239 = vadd.f32 0.0, %v2238
        %v2240 = vpop.f32.mrf.mxu0
        %v2241 = vadd.f32 0.0, %v2240
        %2242 = vmatprep.mubr.bf16.mxu0 0
        %2243 = vmatmul.mubr.bf16.gmra.mxu0 %v1393
        %v2244 = vpop.f32.mrf.mxu0
        %v2245 = vadd.f32 0.0, %v2244
        %v2246 = vpop.f32.mrf.mxu0
        %v2247 = vadd.f32 0.0, %v2246
        %v2248 = vpop.f32.mrf.mxu0
        %v2249 = vadd.f32 0.0, %v2248
        %v2250 = vpop.f32.mrf.mxu0
        %v2251 = vadd.f32 0.0, %v2250
        %2252 = vmatprep.mubr.bf16.mxu0 0
        %2253 = vmatmul.mubr.bf16.gmra.mxu0 %v1394
        %v2254 = vpop.f32.mrf.mxu0
        %v2255 = vadd.f32 0.0, %v2254
        %v2256 = vpop.f32.mrf.mxu0
        %v2257 = vadd.f32 0.0, %v2256
        %v2258 = vpop.f32.mrf.mxu0
        %v2259 = vadd.f32 0.0, %v2258
        %v2260 = vpop.f32.mrf.mxu0
        %v2261 = vadd.f32 0.0, %v2260
        %2262 = vmatprep.mubr.bf16.mxu0 0
        %2263 = vmatmul.mubr.bf16.gmra.mxu0 %v1395
        %v2264 = vpop.f32.mrf.mxu0
        %v2265 = vadd.f32 0.0, %v2264
        %v2266 = vpop.f32.mrf.mxu0
        %v2267 = vadd.f32 0.0, %v2266
        %v2268 = vpop.f32.mrf.mxu0
        %v2269 = vadd.f32 0.0, %v2268
        %v2270 = vpop.f32.mrf.mxu0
        %v2271 = vadd.f32 0.0, %v2270
        %2272 = vmatprep.mubr.bf16.mxu0 0
        %2273 = vmatmul.mubr.bf16.gmra.mxu0 %v1396
        %v2274 = vpop.f32.mrf.mxu0
        %v2275 = vadd.f32 0.0, %v2274
        %v2276 = vpop.f32.mrf.mxu0
        %v2277 = vadd.f32 0.0, %v2276
        %v2278 = vpop.f32.mrf.mxu0
        %v2279 = vadd.f32 0.0, %v2278
        %v2280 = vpop.f32.mrf.mxu0
        %v2281 = vadd.f32 0.0, %v2280
        %2282 = vmatprep.mubr.bf16.mxu0 0
        %2283 = vmatmul.mubr.bf16.gmra.mxu0 %v1397
        %v2284 = vpop.f32.mrf.mxu0
        %v2285 = vadd.f32 0.0, %v2284
        %v2286 = vpop.f32.mrf.mxu0
        %v2287 = vadd.f32 0.0, %v2286
        %v2288 = vpop.f32.mrf.mxu0
        %v2289 = vadd.f32 0.0, %v2288
        %v2290 = vpop.f32.mrf.mxu0
        %v2291 = vadd.f32 0.0, %v2290
        %2292 = vmatprep.mubr.bf16.mxu0 0
        %2293 = vmatmul.mubr.bf16.gmra.mxu0 %v1398
        %v2294 = vpop.f32.mrf.mxu0
        %v2295 = vadd.f32 0.0, %v2294
        %v2296 = vpop.f32.mrf.mxu0
        %v2297 = vadd.f32 0.0, %v2296
        %v2298 = vpop.f32.mrf.mxu0
        %v2299 = vadd.f32 0.0, %v2298
        %v2300 = vpop.f32.mrf.mxu0
        %v2301 = vadd.f32 0.0, %v2300
        %2302 = vmatprep.mubr.bf16.mxu0 0
        %2303 = vmatmul.mubr.bf16.gmra.mxu0 %v1399
        %v2304 = vpop.f32.mrf.mxu0
        %v2305 = vadd.f32 0.0, %v2304
        %v2306 = vpop.f32.mrf.mxu0
        %v2307 = vadd.f32 0.0, %v2306
        %v2308 = vpop.f32.mrf.mxu0
        %v2309 = vadd.f32 0.0, %v2308
        %v2310 = vpop.f32.mrf.mxu0
        %v2311 = vadd.f32 0.0, %v2310
        %2312 = vmatprep.mubr.bf16.mxu0 0
        %2313 = vmatmul.mubr.bf16.gmra.mxu0 %v1400
        %v2314 = vpop.f32.mrf.mxu0
        %v2315 = vadd.f32 0.0, %v2314
        %v2316 = vpop.f32.mrf.mxu0
        %v2317 = vadd.f32 0.0, %v2316
        %v2318 = vpop.f32.mrf.mxu0
        %v2319 = vadd.f32 0.0, %v2318
        %v2320 = vpop.f32.mrf.mxu0
        %v2321 = vadd.f32 0.0, %v2320
        %2322 = vmatprep.mubr.bf16.mxu0 0
        %2323 = vmatmul.mubr.bf16.gmra.mxu0 %v1401
        %v2324 = vpop.f32.mrf.mxu0
        %v2325 = vadd.f32 0.0, %v2324
        %v2326 = vpop.f32.mrf.mxu0
        %v2327 = vadd.f32 0.0, %v2326
        %v2328 = vpop.f32.mrf.mxu0
        %v2329 = vadd.f32 0.0, %v2328
        %v2330 = vpop.f32.mrf.mxu0
        %v2331 = vadd.f32 0.0, %v2330
        %2332 = vmatprep.mubr.bf16.mxu0 0
        %2333 = vmatmul.mubr.bf16.gmra.mxu0 %v1402
        %v2334 = vpop.f32.mrf.mxu0
        %v2335 = vadd.f32 0.0, %v2334
        %v2336 = vpop.f32.mrf.mxu0
        %v2337 = vadd.f32 0.0, %v2336
        %v2338 = vpop.f32.mrf.mxu0
        %v2339 = vadd.f32 0.0, %v2338
        %v2340 = vpop.f32.mrf.mxu0
        %v2341 = vadd.f32 0.0, %v2340
        %2342 = vmatprep.mubr.bf16.mxu0 0
        %2343 = vmatmul.mubr.bf16.gmra.mxu0 %v1403
        %v2344 = vpop.f32.mrf.mxu0
        %v2345 = vadd.f32 0.0, %v2344
        %v2346 = vpop.f32.mrf.mxu0
        %v2347 = vadd.f32 0.0, %v2346
        %v2348 = vpop.f32.mrf.mxu0
        %v2349 = vadd.f32 0.0, %v2348
        %v2350 = vpop.f32.mrf.mxu0
        %v2351 = vadd.f32 0.0, %v2350
        %2352 = vmatprep.mubr.bf16.mxu0 0
        %2353 = vmatmul.mubr.bf16.gmra.mxu0 %v1404
        %v2354 = vpop.f32.mrf.mxu0
        %v2355 = vadd.f32 0.0, %v2354
        %v2356 = vpop.f32.mrf.mxu0
        %v2357 = vadd.f32 0.0, %v2356
        %v2358 = vpop.f32.mrf.mxu0
        %v2359 = vadd.f32 0.0, %v2358
        %v2360 = vpop.f32.mrf.mxu0
        %v2361 = vadd.f32 0.0, %v2360
        %2362 = vmatprep.mubr.bf16.mxu0 0
        %2363 = vmatmul.mubr.bf16.gmra.mxu0 %v1405
        %v2364 = vpop.f32.mrf.mxu0
        %v2365 = vadd.f32 0.0, %v2364
        %v2366 = vpop.f32.mrf.mxu0
        %v2367 = vadd.f32 0.0, %v2366
        %v2368 = vpop.f32.mrf.mxu0
        %v2369 = vadd.f32 0.0, %v2368
        %v2370 = vpop.f32.mrf.mxu0
        %v2371 = vadd.f32 0.0, %v2370
        %2372 = vmatprep.mubr.bf16.mxu0 0
        %2373 = vmatmul.mubr.bf16.gmra.mxu0 %v1406
        %v2374 = vpop.f32.mrf.mxu0
        %v2375 = vadd.f32 0.0, %v2374
        %v2376 = vpop.f32.mrf.mxu0
        %v2377 = vadd.f32 0.0, %v2376
        %v2378 = vpop.f32.mrf.mxu0
        %v2379 = vadd.f32 0.0, %v2378
        %v2380 = vpop.f32.mrf.mxu0
        %v2381 = vadd.f32 0.0, %v2380
        %2382 = vmatprep.mubr.bf16.mxu0 0
        %2383 = vmatmul.mubr.bf16.gmra.mxu0 %v1407
        %v2384 = vpop.f32.mrf.mxu0
        %v2385 = vadd.f32 0.0, %v2384
        %v2386 = vpop.f32.mrf.mxu0
        %v2387 = vadd.f32 0.0, %v2386
        %v2388 = vpop.f32.mrf.mxu0
        %v2389 = vadd.f32 0.0, %v2388
        %v2390 = vpop.f32.mrf.mxu0
        %v2391 = vadd.f32 0.0, %v2390
        %2392 = vmatprep.mubr.bf16.mxu0 0
        %2393 = vmatmul.mubr.bf16.gmra.mxu0 %v1408
        %v2394 = vpop.f32.mrf.mxu0
        %v2395 = vadd.f32 0.0, %v2394
        %v2396 = vpop.f32.mrf.mxu0
        %v2397 = vadd.f32 0.0, %v2396
        %v2398 = vpop.f32.mrf.mxu0
        %v2399 = vadd.f32 0.0, %v2398
        %v2400 = vpop.f32.mrf.mxu0
        %v2401 = vadd.f32 0.0, %v2400
        %2402 = vmatprep.mubr.bf16.mxu0 0
        %2403 = vmatmul.mubr.bf16.gmra.mxu0 %v1409
        %v2404 = vpop.f32.mrf.mxu0
        %v2405 = vadd.f32 0.0, %v2404
        %v2406 = vpop.f32.mrf.mxu0
        %v2407 = vadd.f32 0.0, %v2406
        %v2408 = vpop.f32.mrf.mxu0
        %v2409 = vadd.f32 0.0, %v2408
        %v2410 = vpop.f32.mrf.mxu0
        %v2411 = vadd.f32 0.0, %v2410
        %2412 = vmatprep.mubr.bf16.mxu0 0
        %2413 = vmatmul.mubr.bf16.gmra.mxu0 %v1410
        %v2414 = vpop.f32.mrf.mxu0
        %v2415 = vadd.f32 0.0, %v2414
        %v2416 = vpop.f32.mrf.mxu0
        %v2417 = vadd.f32 0.0, %v2416
        %v2418 = vpop.f32.mrf.mxu0
        %v2419 = vadd.f32 0.0, %v2418
        %v2420 = vpop.f32.mrf.mxu0
        %v2421 = vadd.f32 0.0, %v2420
        %2422 = vmatprep.mubr.bf16.mxu0 0
        %2423 = vmatmul.mubr.bf16.gmra.mxu0 %v1411
        %v2424 = vpop.f32.mrf.mxu0
        %v2425 = vadd.f32 0.0, %v2424
        %v2426 = vpop.f32.mrf.mxu0
        %v2427 = vadd.f32 0.0, %v2426
        %v2428 = vpop.f32.mrf.mxu0
        %v2429 = vadd.f32 0.0, %v2428
        %v2430 = vpop.f32.mrf.mxu0
        %v2431 = vadd.f32 0.0, %v2430
        %2432 = vmatprep.mubr.bf16.mxu0 0
        %2433 = vmatmul.mubr.bf16.gmra.mxu0 %v1412
        %v2434 = vpop.f32.mrf.mxu0
        %v2435 = vadd.f32 0.0, %v2434
        %v2436 = vpop.f32.mrf.mxu0
        %v2437 = vadd.f32 0.0, %v2436
        %v2438 = vpop.f32.mrf.mxu0
        %v2439 = vadd.f32 0.0, %v2438
        %v2440 = vpop.f32.mrf.mxu0
        %v2441 = vadd.f32 0.0, %v2440
        %2442 = vmatprep.mubr.bf16.mxu0 0
        %2443 = vmatmul.mubr.bf16.gmra.mxu0 %v1413
        %v2444 = vpop.f32.mrf.mxu0
        %v2445 = vadd.f32 0.0, %v2444
        %v2446 = vpop.f32.mrf.mxu0
        %v2447 = vadd.f32 0.0, %v2446
        %v2448 = vpop.f32.mrf.mxu0
        %v2449 = vadd.f32 0.0, %v2448
        %v2450 = vpop.f32.mrf.mxu0
        %v2451 = vadd.f32 0.0, %v2450
        %2452 = vmatprep.mubr.bf16.mxu0 0
        %2453 = vmatmul.mubr.bf16.gmra.mxu0 %v1414
        %v2454 = vpop.f32.mrf.mxu0
        %v2455 = vadd.f32 0.0, %v2454
        %v2456 = vpop.f32.mrf.mxu0
        %v2457 = vadd.f32 0.0, %v2456
        %v2458 = vpop.f32.mrf.mxu0
        %v2459 = vadd.f32 0.0, %v2458
        %v2460 = vpop.f32.mrf.mxu0
        %v2461 = vadd.f32 0.0, %v2460
        %2462 = vmatprep.mubr.bf16.mxu0 0
        %2463 = vmatmul.mubr.bf16.gmra.mxu0 %v1415
        %v2464 = vpop.f32.mrf.mxu0
        %v2465 = vadd.f32 0.0, %v2464
        %v2466 = vpop.f32.mrf.mxu0
        %v2467 = vadd.f32 0.0, %v2466
        %v2468 = vpop.f32.mrf.mxu0
        %v2469 = vadd.f32 0.0, %v2468
        %v2470 = vpop.f32.mrf.mxu0
        %v2471 = vadd.f32 0.0, %v2470
        %2472 = vdwg.mxu0
        %2473 = vmatprep.subr.bf16.mxu0 %v1731
        %2474 = vmatpush1.bf16.msra.mxu0 %v1730
        %2475 = vmatprep.subr.bf16.mxu0 %v1723
        %2476 = vmatpush1.bf16.msra.mxu0 %v1722
        %2477 = vmatprep.subr.bf16.mxu0 %v1715
        %2478 = vmatpush1.bf16.msra.mxu0 %v1714
        %2479 = vmatprep.subr.bf16.mxu0 %v1707
        %2480 = vmatpush1.bf16.msra.mxu0 %v1706
        %2481 = vmatprep.subr.bf16.mxu0 %v1699
        %2482 = vmatpush1.bf16.msra.mxu0 %v1698
        %2483 = vmatprep.subr.bf16.mxu0 %v1691
        %2484 = vmatpush1.bf16.msra.mxu0 %v1690
        %2485 = vmatprep.subr.bf16.mxu0 %v1683
        %2486 = vmatpush1.bf16.msra.mxu0 %v1682
        %2487 = vmatprep.subr.bf16.mxu0 %v1675
        %2488 = vmatpush1.bf16.msra.mxu0 %v1674
        %2489 = vmatprep.subr.bf16.mxu0 0
        %2490 = vmatpush2.bf16.msra.mxu0 0
        %2491 = vmatprep.subr.bf16.mxu0 0
        %2492 = vmatpush2.bf16.msra.mxu0 0
        %2493 = vmatprep.subr.bf16.mxu0 0
        %2494 = vmatpush2.bf16.msra.mxu0 0
        %2495 = vmatprep.subr.bf16.mxu0 0
        %2496 = vmatpush2.bf16.msra.mxu0 0
        %2497 = vmatprep.subr.bf16.mxu0 0
        %2498 = vmatpush2.bf16.msra.mxu0 0
        %2499 = vmatprep.subr.bf16.mxu0 0
        %2500 = vmatpush2.bf16.msra.mxu0 0
        %2501 = vmatprep.subr.bf16.mxu0 0
        %2502 = vmatpush2.bf16.msra.mxu0 0
        %2503 = vmatprep.subr.bf16.mxu0 0
        %2504 = vmatpush2.bf16.msra.mxu0 0
        %2505 = vmatprep.mubr.bf16.mxu0 0
        %2506 = vmatmul.mubr.bf16.gmra.mxu0 %v1352
        %v2507 = vpop.f32.mrf.mxu0
        %v2508 = vadd.f32 0.0, %v2507
        %v2509 = vpop.f32.mrf.mxu0
        %v2510 = vadd.f32 0.0, %v2509
        %v2511 = vpop.f32.mrf.mxu0
        %v2512 = vadd.f32 0.0, %v2511
        %v2513 = vpop.f32.mrf.mxu0
        %v2514 = vadd.f32 0.0, %v2513
        %2515 = vmatprep.mubr.bf16.mxu0 0
        %2516 = vmatmul.mubr.bf16.gmra.mxu0 %v1353
        %v2517 = vpop.f32.mrf.mxu0
        %v2518 = vadd.f32 0.0, %v2517
        %v2519 = vpop.f32.mrf.mxu0
        %v2520 = vadd.f32 0.0, %v2519
        %v2521 = vpop.f32.mrf.mxu0
        %v2522 = vadd.f32 0.0, %v2521
        %v2523 = vpop.f32.mrf.mxu0
        %v2524 = vadd.f32 0.0, %v2523
        %2525 = vmatprep.mubr.bf16.mxu0 0
        %2526 = vmatmul.mubr.bf16.gmra.mxu0 %v1354
        %v2527 = vpop.f32.mrf.mxu0
        %v2528 = vadd.f32 0.0, %v2527
        %v2529 = vpop.f32.mrf.mxu0
        %v2530 = vadd.f32 0.0, %v2529
        %v2531 = vpop.f32.mrf.mxu0
        %v2532 = vadd.f32 0.0, %v2531
        %v2533 = vpop.f32.mrf.mxu0
        %v2534 = vadd.f32 0.0, %v2533
        %2535 = vmatprep.mubr.bf16.mxu0 0
        %2536 = vmatmul.mubr.bf16.gmra.mxu0 %v1355
        %v2537 = vpop.f32.mrf.mxu0
        %v2538 = vadd.f32 0.0, %v2537
        %v2539 = vpop.f32.mrf.mxu0
        %v2540 = vadd.f32 0.0, %v2539
        %v2541 = vpop.f32.mrf.mxu0
        %v2542 = vadd.f32 0.0, %v2541
        %v2543 = vpop.f32.mrf.mxu0
        %v2544 = vadd.f32 0.0, %v2543
        %2545 = vmatprep.mubr.bf16.mxu0 0
        %2546 = vmatmul.mubr.bf16.gmra.mxu0 %v1356
        %v2547 = vpop.f32.mrf.mxu0
        %v2548 = vadd.f32 0.0, %v2547
        %v2549 = vpop.f32.mrf.mxu0
        %v2550 = vadd.f32 0.0, %v2549
        %v2551 = vpop.f32.mrf.mxu0
        %v2552 = vadd.f32 0.0, %v2551
        %v2553 = vpop.f32.mrf.mxu0
        %v2554 = vadd.f32 0.0, %v2553
        %2555 = vmatprep.mubr.bf16.mxu0 0
        %2556 = vmatmul.mubr.bf16.gmra.mxu0 %v1357
        %v2557 = vpop.f32.mrf.mxu0
        %v2558 = vadd.f32 0.0, %v2557
        %v2559 = vpop.f32.mrf.mxu0
        %v2560 = vadd.f32 0.0, %v2559
        %v2561 = vpop.f32.mrf.mxu0
        %v2562 = vadd.f32 0.0, %v2561
        %v2563 = vpop.f32.mrf.mxu0
        %v2564 = vadd.f32 0.0, %v2563
        %2565 = vmatprep.mubr.bf16.mxu0 0
        %2566 = vmatmul.mubr.bf16.gmra.mxu0 %v1358
        %v2567 = vpop.f32.mrf.mxu0
        %v2568 = vadd.f32 0.0, %v2567
        %v2569 = vpop.f32.mrf.mxu0
        %v2570 = vadd.f32 0.0, %v2569
        %v2571 = vpop.f32.mrf.mxu0
        %v2572 = vadd.f32 0.0, %v2571
        %v2573 = vpop.f32.mrf.mxu0
        %v2574 = vadd.f32 0.0, %v2573
        %2575 = vmatprep.mubr.bf16.mxu0 0
        %2576 = vmatmul.mubr.bf16.gmra.mxu0 %v1359
        %v2577 = vpop.f32.mrf.mxu0
        %v2578 = vadd.f32 0.0, %v2577
        %v2579 = vpop.f32.mrf.mxu0
        %v2580 = vadd.f32 0.0, %v2579
        %v2581 = vpop.f32.mrf.mxu0
        %v2582 = vadd.f32 0.0, %v2581
        %v2583 = vpop.f32.mrf.mxu0
        %v2584 = vadd.f32 0.0, %v2583
        %2585 = vmatprep.mubr.bf16.mxu0 0
        %2586 = vmatmul.mubr.bf16.gmra.mxu0 %v1360
        %v2587 = vpop.f32.mrf.mxu0
        %v2588 = vadd.f32 0.0, %v2587
        %v2589 = vpop.f32.mrf.mxu0
        %v2590 = vadd.f32 0.0, %v2589
        %v2591 = vpop.f32.mrf.mxu0
        %v2592 = vadd.f32 0.0, %v2591
        %v2593 = vpop.f32.mrf.mxu0
        %v2594 = vadd.f32 0.0, %v2593
        %2595 = vmatprep.mubr.bf16.mxu0 0
        %2596 = vmatmul.mubr.bf16.gmra.mxu0 %v1361
        %v2597 = vpop.f32.mrf.mxu0
        %v2598 = vadd.f32 0.0, %v2597
        %v2599 = vpop.f32.mrf.mxu0
        %v2600 = vadd.f32 0.0, %v2599
        %v2601 = vpop.f32.mrf.mxu0
        %v2602 = vadd.f32 0.0, %v2601
        %v2603 = vpop.f32.mrf.mxu0
        %v2604 = vadd.f32 0.0, %v2603
        %2605 = vmatprep.mubr.bf16.mxu0 0
        %2606 = vmatmul.mubr.bf16.gmra.mxu0 %v1362
        %v2607 = vpop.f32.mrf.mxu0
        %v2608 = vadd.f32 0.0, %v2607
        %v2609 = vpop.f32.mrf.mxu0
        %v2610 = vadd.f32 0.0, %v2609
        %v2611 = vpop.f32.mrf.mxu0
        %v2612 = vadd.f32 0.0, %v2611
        %v2613 = vpop.f32.mrf.mxu0
        %v2614 = vadd.f32 0.0, %v2613
        %2615 = vmatprep.mubr.bf16.mxu0 0
        %2616 = vmatmul.mubr.bf16.gmra.mxu0 %v1363
        %v2617 = vpop.f32.mrf.mxu0
        %v2618 = vadd.f32 0.0, %v2617
        %v2619 = vpop.f32.mrf.mxu0
        %v2620 = vadd.f32 0.0, %v2619
        %v2621 = vpop.f32.mrf.mxu0
        %v2622 = vadd.f32 0.0, %v2621
        %v2623 = vpop.f32.mrf.mxu0
        %v2624 = vadd.f32 0.0, %v2623
        %2625 = vmatprep.mubr.bf16.mxu0 0
        %2626 = vmatmul.mubr.bf16.gmra.mxu0 %v1364
        %v2627 = vpop.f32.mrf.mxu0
        %v2628 = vadd.f32 0.0, %v2627
        %v2629 = vpop.f32.mrf.mxu0
        %v2630 = vadd.f32 0.0, %v2629
        %v2631 = vpop.f32.mrf.mxu0
        %v2632 = vadd.f32 0.0, %v2631
        %v2633 = vpop.f32.mrf.mxu0
        %v2634 = vadd.f32 0.0, %v2633
        %2635 = vmatprep.mubr.bf16.mxu0 0
        %2636 = vmatmul.mubr.bf16.gmra.mxu0 %v1365
        %v2637 = vpop.f32.mrf.mxu0
        %v2638 = vadd.f32 0.0, %v2637
        %v2639 = vpop.f32.mrf.mxu0
        %v2640 = vadd.f32 0.0, %v2639
        %v2641 = vpop.f32.mrf.mxu0
        %v2642 = vadd.f32 0.0, %v2641
        %v2643 = vpop.f32.mrf.mxu0
        %v2644 = vadd.f32 0.0, %v2643
        %2645 = vmatprep.mubr.bf16.mxu0 0
        %2646 = vmatmul.mubr.bf16.gmra.mxu0 %v1366
        %v2647 = vpop.f32.mrf.mxu0
        %v2648 = vadd.f32 0.0, %v2647
        %v2649 = vpop.f32.mrf.mxu0
        %v2650 = vadd.f32 0.0, %v2649
        %v2651 = vpop.f32.mrf.mxu0
        %v2652 = vadd.f32 0.0, %v2651
        %v2653 = vpop.f32.mrf.mxu0
        %v2654 = vadd.f32 0.0, %v2653
        %2655 = vmatprep.mubr.bf16.mxu0 0
        %2656 = vmatmul.mubr.bf16.gmra.mxu0 %v1367
        %v2657 = vpop.f32.mrf.mxu0
        %v2658 = vadd.f32 0.0, %v2657
        %v2659 = vpop.f32.mrf.mxu0
        %v2660 = vadd.f32 0.0, %v2659
        %v2661 = vpop.f32.mrf.mxu0
        %v2662 = vadd.f32 0.0, %v2661
        %v2663 = vpop.f32.mrf.mxu0
        %v2664 = vadd.f32 0.0, %v2663
        %2665 = vmatprep.mubr.bf16.mxu0 0
        %2666 = vmatmul.mubr.bf16.gmra.mxu0 %v1368
        %v2667 = vpop.f32.mrf.mxu0
        %v2668 = vadd.f32 0.0, %v2667
        %v2669 = vpop.f32.mrf.mxu0
        %v2670 = vadd.f32 0.0, %v2669
        %v2671 = vpop.f32.mrf.mxu0
        %v2672 = vadd.f32 0.0, %v2671
        %v2673 = vpop.f32.mrf.mxu0
        %v2674 = vadd.f32 0.0, %v2673
        %2675 = vmatprep.mubr.bf16.mxu0 0
        %2676 = vmatmul.mubr.bf16.gmra.mxu0 %v1369
        %v2677 = vpop.f32.mrf.mxu0
        %v2678 = vadd.f32 0.0, %v2677
        %v2679 = vpop.f32.mrf.mxu0
        %v2680 = vadd.f32 0.0, %v2679
        %v2681 = vpop.f32.mrf.mxu0
        %v2682 = vadd.f32 0.0, %v2681
        %v2683 = vpop.f32.mrf.mxu0
        %v2684 = vadd.f32 0.0, %v2683
        %2685 = vmatprep.mubr.bf16.mxu0 0
        %2686 = vmatmul.mubr.bf16.gmra.mxu0 %v1370
        %v2687 = vpop.f32.mrf.mxu0
        %v2688 = vadd.f32 0.0, %v2687
        %v2689 = vpop.f32.mrf.mxu0
        %v2690 = vadd.f32 0.0, %v2689
        %v2691 = vpop.f32.mrf.mxu0
        %v2692 = vadd.f32 0.0, %v2691
        %v2693 = vpop.f32.mrf.mxu0
        %v2694 = vadd.f32 0.0, %v2693
        %2695 = vmatprep.mubr.bf16.mxu0 0
        %2696 = vmatmul.mubr.bf16.gmra.mxu0 %v1371
        %v2697 = vpop.f32.mrf.mxu0
        %v2698 = vadd.f32 0.0, %v2697
        %v2699 = vpop.f32.mrf.mxu0
        %v2700 = vadd.f32 0.0, %v2699
        %v2701 = vpop.f32.mrf.mxu0
        %v2702 = vadd.f32 0.0, %v2701
        %v2703 = vpop.f32.mrf.mxu0
        %v2704 = vadd.f32 0.0, %v2703
        %2705 = vmatprep.mubr.bf16.mxu0 0
        %2706 = vmatmul.mubr.bf16.gmra.mxu0 %v1372
        %v2707 = vpop.f32.mrf.mxu0
        %v2708 = vadd.f32 0.0, %v2707
        %v2709 = vpop.f32.mrf.mxu0
        %v2710 = vadd.f32 0.0, %v2709
        %v2711 = vpop.f32.mrf.mxu0
        %v2712 = vadd.f32 0.0, %v2711
        %v2713 = vpop.f32.mrf.mxu0
        %v2714 = vadd.f32 0.0, %v2713
        %2715 = vmatprep.mubr.bf16.mxu0 0
        %2716 = vmatmul.mubr.bf16.gmra.mxu0 %v1373
        %v2717 = vpop.f32.mrf.mxu0
        %v2718 = vadd.f32 0.0, %v2717
        %v2719 = vpop.f32.mrf.mxu0
        %v2720 = vadd.f32 0.0, %v2719
        %v2721 = vpop.f32.mrf.mxu0
        %v2722 = vadd.f32 0.0, %v2721
        %v2723 = vpop.f32.mrf.mxu0
        %v2724 = vadd.f32 0.0, %v2723
        %2725 = vmatprep.mubr.bf16.mxu0 0
        %2726 = vmatmul.mubr.bf16.gmra.mxu0 %v1374
        %v2727 = vpop.f32.mrf.mxu0
        %v2728 = vadd.f32 0.0, %v2727
        %v2729 = vpop.f32.mrf.mxu0
        %v2730 = vadd.f32 0.0, %v2729
        %v2731 = vpop.f32.mrf.mxu0
        %v2732 = vadd.f32 0.0, %v2731
        %v2733 = vpop.f32.mrf.mxu0
        %v2734 = vadd.f32 0.0, %v2733
        %2735 = vmatprep.mubr.bf16.mxu0 0
        %2736 = vmatmul.mubr.bf16.gmra.mxu0 %v1375
        %v2737 = vpop.f32.mrf.mxu0
        %v2738 = vadd.f32 0.0, %v2737
        %v2739 = vpop.f32.mrf.mxu0
        %v2740 = vadd.f32 0.0, %v2739
        %v2741 = vpop.f32.mrf.mxu0
        %v2742 = vadd.f32 0.0, %v2741
        %v2743 = vpop.f32.mrf.mxu0
        %v2744 = vadd.f32 0.0, %v2743
        %2745 = vmatprep.mubr.bf16.mxu0 0
        %2746 = vmatmul.mubr.bf16.gmra.mxu0 %v1376
        %v2747 = vpop.f32.mrf.mxu0
        %v2748 = vadd.f32 0.0, %v2747
        %v2749 = vpop.f32.mrf.mxu0
        %v2750 = vadd.f32 0.0, %v2749
        %v2751 = vpop.f32.mrf.mxu0
        %v2752 = vadd.f32 0.0, %v2751
        %v2753 = vpop.f32.mrf.mxu0
        %v2754 = vadd.f32 0.0, %v2753
        %2755 = vmatprep.mubr.bf16.mxu0 0
        %2756 = vmatmul.mubr.bf16.gmra.mxu0 %v1377
        %v2757 = vpop.f32.mrf.mxu0
        %v2758 = vadd.f32 0.0, %v2757
        %v2759 = vpop.f32.mrf.mxu0
        %v2760 = vadd.f32 0.0, %v2759
        %v2761 = vpop.f32.mrf.mxu0
        %v2762 = vadd.f32 0.0, %v2761
        %v2763 = vpop.f32.mrf.mxu0
        %v2764 = vadd.f32 0.0, %v2763
        %2765 = vmatprep.mubr.bf16.mxu0 0
        %2766 = vmatmul.mubr.bf16.gmra.mxu0 %v1378
        %v2767 = vpop.f32.mrf.mxu0
        %v2768 = vadd.f32 0.0, %v2767
        %v2769 = vpop.f32.mrf.mxu0
        %v2770 = vadd.f32 0.0, %v2769
        %v2771 = vpop.f32.mrf.mxu0
        %v2772 = vadd.f32 0.0, %v2771
        %v2773 = vpop.f32.mrf.mxu0
        %v2774 = vadd.f32 0.0, %v2773
        %2775 = vmatprep.mubr.bf16.mxu0 0
        %2776 = vmatmul.mubr.bf16.gmra.mxu0 %v1379
        %v2777 = vpop.f32.mrf.mxu0
        %v2778 = vadd.f32 0.0, %v2777
        %v2779 = vpop.f32.mrf.mxu0
        %v2780 = vadd.f32 0.0, %v2779
        %v2781 = vpop.f32.mrf.mxu0
        %v2782 = vadd.f32 0.0, %v2781
        %v2783 = vpop.f32.mrf.mxu0
        %v2784 = vadd.f32 0.0, %v2783
        %2785 = vmatprep.mubr.bf16.mxu0 0
        %2786 = vmatmul.mubr.bf16.gmra.mxu0 %v1380
        %v2787 = vpop.f32.mrf.mxu0
        %v2788 = vadd.f32 0.0, %v2787
        %v2789 = vpop.f32.mrf.mxu0
        %v2790 = vadd.f32 0.0, %v2789
        %v2791 = vpop.f32.mrf.mxu0
        %v2792 = vadd.f32 0.0, %v2791
        %v2793 = vpop.f32.mrf.mxu0
        %v2794 = vadd.f32 0.0, %v2793
        %2795 = vmatprep.mubr.bf16.mxu0 0
        %2796 = vmatmul.mubr.bf16.gmra.mxu0 %v1381
        %v2797 = vpop.f32.mrf.mxu0
        %v2798 = vadd.f32 0.0, %v2797
        %v2799 = vpop.f32.mrf.mxu0
        %v2800 = vadd.f32 0.0, %v2799
        %v2801 = vpop.f32.mrf.mxu0
        %v2802 = vadd.f32 0.0, %v2801
        %v2803 = vpop.f32.mrf.mxu0
        %v2804 = vadd.f32 0.0, %v2803
        %2805 = vmatprep.mubr.bf16.mxu0 0
        %2806 = vmatmul.mubr.bf16.gmra.mxu0 %v1382
        %v2807 = vpop.f32.mrf.mxu0
        %v2808 = vadd.f32 0.0, %v2807
        %v2809 = vpop.f32.mrf.mxu0
        %v2810 = vadd.f32 0.0, %v2809
        %v2811 = vpop.f32.mrf.mxu0
        %v2812 = vadd.f32 0.0, %v2811
        %v2813 = vpop.f32.mrf.mxu0
        %v2814 = vadd.f32 0.0, %v2813
        %2815 = vmatprep.mubr.bf16.mxu0 0
        %2816 = vmatmul.mubr.bf16.gmra.mxu0 %v1383
        %v2817 = vpop.f32.mrf.mxu0
        %v2818 = vadd.f32 0.0, %v2817
        %v2819 = vpop.f32.mrf.mxu0
        %v2820 = vadd.f32 0.0, %v2819
        %v2821 = vpop.f32.mrf.mxu0
        %v2822 = vadd.f32 0.0, %v2821
        %v2823 = vpop.f32.mrf.mxu0
        %v2824 = vadd.f32 0.0, %v2823
        %2825 = vmatprep.mubr.bf16.mxu0 0
        %2826 = vmatmul.mubr.bf16.gmra.mxu0 %v1384
        %v2827 = vpop.f32.mrf.mxu0
        %v2828 = vadd.f32 0.0, %v2827
        %v2829 = vpop.f32.mrf.mxu0
        %v2830 = vadd.f32 0.0, %v2829
        %v2831 = vpop.f32.mrf.mxu0
        %v2832 = vadd.f32 0.0, %v2831
        %v2833 = vpop.f32.mrf.mxu0
        %v2834 = vadd.f32 0.0, %v2833
        %2835 = vmatprep.mubr.bf16.mxu0 0
        %2836 = vmatmul.mubr.bf16.gmra.mxu0 %v1385
        %v2837 = vpop.f32.mrf.mxu0
        %v2838 = vadd.f32 0.0, %v2837
        %v2839 = vpop.f32.mrf.mxu0
        %v2840 = vadd.f32 0.0, %v2839
        %v2841 = vpop.f32.mrf.mxu0
        %v2842 = vadd.f32 0.0, %v2841
        %v2843 = vpop.f32.mrf.mxu0
        %v2844 = vadd.f32 0.0, %v2843
        %2845 = vmatprep.mubr.bf16.mxu0 0
        %2846 = vmatmul.mubr.bf16.gmra.mxu0 %v1386
        %v2847 = vpop.f32.mrf.mxu0
        %v2848 = vadd.f32 0.0, %v2847
        %v2849 = vpop.f32.mrf.mxu0
        %v2850 = vadd.f32 0.0, %v2849
        %v2851 = vpop.f32.mrf.mxu0
        %v2852 = vadd.f32 0.0, %v2851
        %v2853 = vpop.f32.mrf.mxu0
        %v2854 = vadd.f32 0.0, %v2853
        %2855 = vmatprep.mubr.bf16.mxu0 0
        %2856 = vmatmul.mubr.bf16.gmra.mxu0 %v1387
        %v2857 = vpop.f32.mrf.mxu0
        %v2858 = vadd.f32 0.0, %v2857
        %v2859 = vpop.f32.mrf.mxu0
        %v2860 = vadd.f32 0.0, %v2859
        %v2861 = vpop.f32.mrf.mxu0
        %v2862 = vadd.f32 0.0, %v2861
        %v2863 = vpop.f32.mrf.mxu0
        %v2864 = vadd.f32 0.0, %v2863
        %2865 = vmatprep.mubr.bf16.mxu0 0
        %2866 = vmatmul.mubr.bf16.gmra.mxu0 %v1388
        %v2867 = vpop.f32.mrf.mxu0
        %v2868 = vadd.f32 0.0, %v2867
        %v2869 = vpop.f32.mrf.mxu0
        %v2870 = vadd.f32 0.0, %v2869
        %v2871 = vpop.f32.mrf.mxu0
        %v2872 = vadd.f32 0.0, %v2871
        %v2873 = vpop.f32.mrf.mxu0
        %v2874 = vadd.f32 0.0, %v2873
        %2875 = vmatprep.mubr.bf16.mxu0 0
        %2876 = vmatmul.mubr.bf16.gmra.mxu0 %v1389
        %v2877 = vpop.f32.mrf.mxu0
        %v2878 = vadd.f32 0.0, %v2877
        %v2879 = vpop.f32.mrf.mxu0
        %v2880 = vadd.f32 0.0, %v2879
        %v2881 = vpop.f32.mrf.mxu0
        %v2882 = vadd.f32 0.0, %v2881
        %v2883 = vpop.f32.mrf.mxu0
        %v2884 = vadd.f32 0.0, %v2883
        %2885 = vmatprep.mubr.bf16.mxu0 0
        %2886 = vmatmul.mubr.bf16.gmra.mxu0 %v1390
        %v2887 = vpop.f32.mrf.mxu0
        %v2888 = vadd.f32 0.0, %v2887
        %v2889 = vpop.f32.mrf.mxu0
        %v2890 = vadd.f32 0.0, %v2889
        %v2891 = vpop.f32.mrf.mxu0
        %v2892 = vadd.f32 0.0, %v2891
        %v2893 = vpop.f32.mrf.mxu0
        %v2894 = vadd.f32 0.0, %v2893
        %2895 = vmatprep.mubr.bf16.mxu0 0
        %2896 = vmatmul.mubr.bf16.gmra.mxu0 %v1391
        %v2897 = vpop.f32.mrf.mxu0
        %v2898 = vadd.f32 0.0, %v2897
        %v2899 = vpop.f32.mrf.mxu0
        %v2900 = vadd.f32 0.0, %v2899
        %v2901 = vpop.f32.mrf.mxu0
        %v2902 = vadd.f32 0.0, %v2901
        %v2903 = vpop.f32.mrf.mxu0
        %v2904 = vadd.f32 0.0, %v2903
        %2905 = vmatprep.mubr.bf16.mxu0 0
        %2906 = vmatmul.mubr.bf16.gmra.mxu0 %v1392
        %v2907 = vpop.f32.mrf.mxu0
        %v2908 = vadd.f32 0.0, %v2907
        %v2909 = vpop.f32.mrf.mxu0
        %v2910 = vadd.f32 0.0, %v2909
        %v2911 = vpop.f32.mrf.mxu0
        %v2912 = vadd.f32 0.0, %v2911
        %v2913 = vpop.f32.mrf.mxu0
        %v2914 = vadd.f32 0.0, %v2913
        %2915 = vmatprep.mubr.bf16.mxu0 0
        %2916 = vmatmul.mubr.bf16.gmra.mxu0 %v1393
        %v2917 = vpop.f32.mrf.mxu0
        %v2918 = vadd.f32 0.0, %v2917
        %v2919 = vpop.f32.mrf.mxu0
        %v2920 = vadd.f32 0.0, %v2919
        %v2921 = vpop.f32.mrf.mxu0
        %v2922 = vadd.f32 0.0, %v2921
        %v2923 = vpop.f32.mrf.mxu0
        %v2924 = vadd.f32 0.0, %v2923
        %2925 = vmatprep.mubr.bf16.mxu0 0
        %2926 = vmatmul.mubr.bf16.gmra.mxu0 %v1394
        %v2927 = vpop.f32.mrf.mxu0
        %v2928 = vadd.f32 0.0, %v2927
        %v2929 = vpop.f32.mrf.mxu0
        %v2930 = vadd.f32 0.0, %v2929
        %v2931 = vpop.f32.mrf.mxu0
        %v2932 = vadd.f32 0.0, %v2931
        %v2933 = vpop.f32.mrf.mxu0
        %v2934 = vadd.f32 0.0, %v2933
        %2935 = vmatprep.mubr.bf16.mxu0 0
        %2936 = vmatmul.mubr.bf16.gmra.mxu0 %v1395
        %v2937 = vpop.f32.mrf.mxu0
        %v2938 = vadd.f32 0.0, %v2937
        %v2939 = vpop.f32.mrf.mxu0
        %v2940 = vadd.f32 0.0, %v2939
        %v2941 = vpop.f32.mrf.mxu0
        %v2942 = vadd.f32 0.0, %v2941
        %v2943 = vpop.f32.mrf.mxu0
        %v2944 = vadd.f32 0.0, %v2943
        %2945 = vmatprep.mubr.bf16.mxu0 0
        %2946 = vmatmul.mubr.bf16.gmra.mxu0 %v1396
        %v2947 = vpop.f32.mrf.mxu0
        %v2948 = vadd.f32 0.0, %v2947
        %v2949 = vpop.f32.mrf.mxu0
        %v2950 = vadd.f32 0.0, %v2949
        %v2951 = vpop.f32.mrf.mxu0
        %v2952 = vadd.f32 0.0, %v2951
        %v2953 = vpop.f32.mrf.mxu0
        %v2954 = vadd.f32 0.0, %v2953
        %2955 = vmatprep.mubr.bf16.mxu0 0
        %2956 = vmatmul.mubr.bf16.gmra.mxu0 %v1397
        %v2957 = vpop.f32.mrf.mxu0
        %v2958 = vadd.f32 0.0, %v2957
        %v2959 = vpop.f32.mrf.mxu0
        %v2960 = vadd.f32 0.0, %v2959
        %v2961 = vpop.f32.mrf.mxu0
        %v2962 = vadd.f32 0.0, %v2961
        %v2963 = vpop.f32.mrf.mxu0
        %v2964 = vadd.f32 0.0, %v2963
        %2965 = vmatprep.mubr.bf16.mxu0 0
        %2966 = vmatmul.mubr.bf16.gmra.mxu0 %v1398
        %v2967 = vpop.f32.mrf.mxu0
        %v2968 = vadd.f32 0.0, %v2967
        %v2969 = vpop.f32.mrf.mxu0
        %v2970 = vadd.f32 0.0, %v2969
        %v2971 = vpop.f32.mrf.mxu0
        %v2972 = vadd.f32 0.0, %v2971
        %v2973 = vpop.f32.mrf.mxu0
        %v2974 = vadd.f32 0.0, %v2973
        %2975 = vmatprep.mubr.bf16.mxu0 0
        %2976 = vmatmul.mubr.bf16.gmra.mxu0 %v1399
        %v2977 = vpop.f32.mrf.mxu0
        %v2978 = vadd.f32 0.0, %v2977
        %v2979 = vpop.f32.mrf.mxu0
        %v2980 = vadd.f32 0.0, %v2979
        %v2981 = vpop.f32.mrf.mxu0
        %v2982 = vadd.f32 0.0, %v2981
        %v2983 = vpop.f32.mrf.mxu0
        %v2984 = vadd.f32 0.0, %v2983
        %2985 = vmatprep.mubr.bf16.mxu0 0
        %2986 = vmatmul.mubr.bf16.gmra.mxu0 %v1400
        %v2987 = vpop.f32.mrf.mxu0
        %v2988 = vadd.f32 0.0, %v2987
        %v2989 = vpop.f32.mrf.mxu0
        %v2990 = vadd.f32 0.0, %v2989
        %v2991 = vpop.f32.mrf.mxu0
        %v2992 = vadd.f32 0.0, %v2991
        %v2993 = vpop.f32.mrf.mxu0
        %v2994 = vadd.f32 0.0, %v2993
        %2995 = vmatprep.mubr.bf16.mxu0 0
        %2996 = vmatmul.mubr.bf16.gmra.mxu0 %v1401
        %v2997 = vpop.f32.mrf.mxu0
        %v2998 = vadd.f32 0.0, %v2997
        %v2999 = vpop.f32.mrf.mxu0
        %v3000 = vadd.f32 0.0, %v2999
        %v3001 = vpop.f32.mrf.mxu0
        %v3002 = vadd.f32 0.0, %v3001
        %v3003 = vpop.f32.mrf.mxu0
        %v3004 = vadd.f32 0.0, %v3003
        %3005 = vmatprep.mubr.bf16.mxu0 0
        %3006 = vmatmul.mubr.bf16.gmra.mxu0 %v1402
        %v3007 = vpop.f32.mrf.mxu0
        %v3008 = vadd.f32 0.0, %v3007
        %v3009 = vpop.f32.mrf.mxu0
        %v3010 = vadd.f32 0.0, %v3009
        %v3011 = vpop.f32.mrf.mxu0
        %v3012 = vadd.f32 0.0, %v3011
        %v3013 = vpop.f32.mrf.mxu0
        %v3014 = vadd.f32 0.0, %v3013
        %3015 = vmatprep.mubr.bf16.mxu0 0
        %3016 = vmatmul.mubr.bf16.gmra.mxu0 %v1403
        %v3017 = vpop.f32.mrf.mxu0
        %v3018 = vadd.f32 0.0, %v3017
        %v3019 = vpop.f32.mrf.mxu0
        %v3020 = vadd.f32 0.0, %v3019
        %v3021 = vpop.f32.mrf.mxu0
        %v3022 = vadd.f32 0.0, %v3021
        %v3023 = vpop.f32.mrf.mxu0
        %v3024 = vadd.f32 0.0, %v3023
        %3025 = vmatprep.mubr.bf16.mxu0 0
        %3026 = vmatmul.mubr.bf16.gmra.mxu0 %v1404
        %v3027 = vpop.f32.mrf.mxu0
        %v3028 = vadd.f32 0.0, %v3027
        %v3029 = vpop.f32.mrf.mxu0
        %v3030 = vadd.f32 0.0, %v3029
        %v3031 = vpop.f32.mrf.mxu0
        %v3032 = vadd.f32 0.0, %v3031
        %v3033 = vpop.f32.mrf.mxu0
        %v3034 = vadd.f32 0.0, %v3033
        %3035 = vmatprep.mubr.bf16.mxu0 0
        %3036 = vmatmul.mubr.bf16.gmra.mxu0 %v1405
        %v3037 = vpop.f32.mrf.mxu0
        %v3038 = vadd.f32 0.0, %v3037
        %v3039 = vpop.f32.mrf.mxu0
        %v3040 = vadd.f32 0.0, %v3039
        %v3041 = vpop.f32.mrf.mxu0
        %v3042 = vadd.f32 0.0, %v3041
        %v3043 = vpop.f32.mrf.mxu0
        %v3044 = vadd.f32 0.0, %v3043
        %3045 = vmatprep.mubr.bf16.mxu0 0
        %3046 = vmatmul.mubr.bf16.gmra.mxu0 %v1406
        %v3047 = vpop.f32.mrf.mxu0
        %v3048 = vadd.f32 0.0, %v3047
        %v3049 = vpop.f32.mrf.mxu0
        %v3050 = vadd.f32 0.0, %v3049
        %v3051 = vpop.f32.mrf.mxu0
        %v3052 = vadd.f32 0.0, %v3051
        %v3053 = vpop.f32.mrf.mxu0
        %v3054 = vadd.f32 0.0, %v3053
        %3055 = vmatprep.mubr.bf16.mxu0 0
        %3056 = vmatmul.mubr.bf16.gmra.mxu0 %v1407
        %v3057 = vpop.f32.mrf.mxu0
        %v3058 = vadd.f32 0.0, %v3057
        %v3059 = vpop.f32.mrf.mxu0
        %v3060 = vadd.f32 0.0, %v3059
        %v3061 = vpop.f32.mrf.mxu0
        %v3062 = vadd.f32 0.0, %v3061
        %v3063 = vpop.f32.mrf.mxu0
        %v3064 = vadd.f32 0.0, %v3063
        %3065 = vmatprep.mubr.bf16.mxu0 0
        %3066 = vmatmul.mubr.bf16.gmra.mxu0 %v1408
        %v3067 = vpop.f32.mrf.mxu0
        %v3068 = vadd.f32 0.0, %v3067
        %v3069 = vpop.f32.mrf.mxu0
        %v3070 = vadd.f32 0.0, %v3069
        %v3071 = vpop.f32.mrf.mxu0
        %v3072 = vadd.f32 0.0, %v3071
        %v3073 = vpop.f32.mrf.mxu0
        %v3074 = vadd.f32 0.0, %v3073
        %3075 = vmatprep.mubr.bf16.mxu0 0
        %3076 = vmatmul.mubr.bf16.gmra.mxu0 %v1409
        %v3077 = vpop.f32.mrf.mxu0
        %v3078 = vadd.f32 0.0, %v3077
        %v3079 = vpop.f32.mrf.mxu0
        %v3080 = vadd.f32 0.0, %v3079
        %v3081 = vpop.f32.mrf.mxu0
        %v3082 = vadd.f32 0.0, %v3081
        %v3083 = vpop.f32.mrf.mxu0
        %v3084 = vadd.f32 0.0, %v3083
        %3085 = vmatprep.mubr.bf16.mxu0 0
        %3086 = vmatmul.mubr.bf16.gmra.mxu0 %v1410
        %v3087 = vpop.f32.mrf.mxu0
        %v3088 = vadd.f32 0.0, %v3087
        %v3089 = vpop.f32.mrf.mxu0
        %v3090 = vadd.f32 0.0, %v3089
        %v3091 = vpop.f32.mrf.mxu0
        %v3092 = vadd.f32 0.0, %v3091
        %v3093 = vpop.f32.mrf.mxu0
        %v3094 = vadd.f32 0.0, %v3093
        %3095 = vmatprep.mubr.bf16.mxu0 0
        %3096 = vmatmul.mubr.bf16.gmra.mxu0 %v1411
        %v3097 = vpop.f32.mrf.mxu0
        %v3098 = vadd.f32 0.0, %v3097
        %v3099 = vpop.f32.mrf.mxu0
        %v3100 = vadd.f32 0.0, %v3099
        %v3101 = vpop.f32.mrf.mxu0
        %v3102 = vadd.f32 0.0, %v3101
        %v3103 = vpop.f32.mrf.mxu0
        %v3104 = vadd.f32 0.0, %v3103
        %3105 = vmatprep.mubr.bf16.mxu0 0
        %3106 = vmatmul.mubr.bf16.gmra.mxu0 %v1412
        %v3107 = vpop.f32.mrf.mxu0
        %v3108 = vadd.f32 0.0, %v3107
        %v3109 = vpop.f32.mrf.mxu0
        %v3110 = vadd.f32 0.0, %v3109
        %v3111 = vpop.f32.mrf.mxu0
        %v3112 = vadd.f32 0.0, %v3111
        %v3113 = vpop.f32.mrf.mxu0
        %v3114 = vadd.f32 0.0, %v3113
        %3115 = vmatprep.mubr.bf16.mxu0 0
        %3116 = vmatmul.mubr.bf16.gmra.mxu0 %v1413
        %v3117 = vpop.f32.mrf.mxu0
        %v3118 = vadd.f32 0.0, %v3117
        %v3119 = vpop.f32.mrf.mxu0
        %v3120 = vadd.f32 0.0, %v3119
        %v3121 = vpop.f32.mrf.mxu0
        %v3122 = vadd.f32 0.0, %v3121
        %v3123 = vpop.f32.mrf.mxu0
        %v3124 = vadd.f32 0.0, %v3123
        %3125 = vmatprep.mubr.bf16.mxu0 0
        %3126 = vmatmul.mubr.bf16.gmra.mxu0 %v1414
        %v3127 = vpop.f32.mrf.mxu0
        %v3128 = vadd.f32 0.0, %v3127
        %v3129 = vpop.f32.mrf.mxu0
        %v3130 = vadd.f32 0.0, %v3129
        %v3131 = vpop.f32.mrf.mxu0
        %v3132 = vadd.f32 0.0, %v3131
        %v3133 = vpop.f32.mrf.mxu0
        %v3134 = vadd.f32 0.0, %v3133
        %3135 = vmatprep.mubr.bf16.mxu0 0
        %3136 = vmatmul.mubr.bf16.gmra.mxu0 %v1415
        %v3137 = vpop.f32.mrf.mxu0
        %v3138 = vadd.f32 0.0, %v3137
        %v3139 = vpop.f32.mrf.mxu0
        %v3140 = vadd.f32 0.0, %v3139
        %v3141 = vpop.f32.mrf.mxu0
        %v3142 = vadd.f32 0.0, %v3141
        %v3143 = vpop.f32.mrf.mxu0
        %v3144 = vadd.f32 0.0, %v3143
        %3145 = vdwg.mxu0
        %3146 = vmatprep.subr.bf16.mxu0 %v1733
        %3147 = vmatpush1.bf16.msra.mxu0 %v1732
        %3148 = vmatprep.subr.bf16.mxu0 %v1725
        %3149 = vmatpush1.bf16.msra.mxu0 %v1724
        %3150 = vmatprep.subr.bf16.mxu0 %v1717
        %3151 = vmatpush1.bf16.msra.mxu0 %v1716
        %3152 = vmatprep.subr.bf16.mxu0 %v1709
        %3153 = vmatpush1.bf16.msra.mxu0 %v1708
        %3154 = vmatprep.subr.bf16.mxu0 %v1701
        %3155 = vmatpush1.bf16.msra.mxu0 %v1700
        %3156 = vmatprep.subr.bf16.mxu0 %v1693
        %3157 = vmatpush1.bf16.msra.mxu0 %v1692
        %3158 = vmatprep.subr.bf16.mxu0 %v1685
        %3159 = vmatpush1.bf16.msra.mxu0 %v1684
        %3160 = vmatprep.subr.bf16.mxu0 %v1677
        %3161 = vmatpush1.bf16.msra.mxu0 %v1676
        %3162 = vmatprep.subr.bf16.mxu0 0
        %3163 = vmatpush2.bf16.msra.mxu0 0
        %3164 = vmatprep.subr.bf16.mxu0 0
        %3165 = vmatpush2.bf16.msra.mxu0 0
        %3166 = vmatprep.subr.bf16.mxu0 0
        %3167 = vmatpush2.bf16.msra.mxu0 0
        %3168 = vmatprep.subr.bf16.mxu0 0
        %3169 = vmatpush2.bf16.msra.mxu0 0
        %3170 = vmatprep.subr.bf16.mxu0 0
        %3171 = vmatpush2.bf16.msra.mxu0 0
        %3172 = vmatprep.subr.bf16.mxu0 0
        %3173 = vmatpush2.bf16.msra.mxu0 0
        %3174 = vmatprep.subr.bf16.mxu0 0
        %3175 = vmatpush2.bf16.msra.mxu0 0
        %3176 = vmatprep.subr.bf16.mxu0 0
        %3177 = vmatpush2.bf16.msra.mxu0 0
        %3178 = vmatprep.mubr.bf16.mxu0 0
        %3179 = vmatmul.mubr.bf16.gmra.mxu0 %v1352
        %v3180 = vpop.f32.mrf.mxu0
        %v3181 = vadd.f32 0.0, %v3180
        %v3182 = vpop.f32.mrf.mxu0
        %v3183 = vadd.f32 0.0, %v3182
        %v3184 = vpop.f32.mrf.mxu0
        %v3185 = vadd.f32 0.0, %v3184
        %v3186 = vpop.f32.mrf.mxu0
        %v3187 = vadd.f32 0.0, %v3186
        %3188 = vmatprep.mubr.bf16.mxu0 0
        %3189 = vmatmul.mubr.bf16.gmra.mxu0 %v1353
        %v3190 = vpop.f32.mrf.mxu0
        %v3191 = vadd.f32 0.0, %v3190
        %v3192 = vpop.f32.mrf.mxu0
        %v3193 = vadd.f32 0.0, %v3192
        %v3194 = vpop.f32.mrf.mxu0
        %v3195 = vadd.f32 0.0, %v3194
        %v3196 = vpop.f32.mrf.mxu0
        %v3197 = vadd.f32 0.0, %v3196
        %3198 = vmatprep.mubr.bf16.mxu0 0
        %3199 = vmatmul.mubr.bf16.gmra.mxu0 %v1354
        %v3200 = vpop.f32.mrf.mxu0
        %v3201 = vadd.f32 0.0, %v3200
        %v3202 = vpop.f32.mrf.mxu0
        %v3203 = vadd.f32 0.0, %v3202
        %v3204 = vpop.f32.mrf.mxu0
        %v3205 = vadd.f32 0.0, %v3204
        %v3206 = vpop.f32.mrf.mxu0
        %v3207 = vadd.f32 0.0, %v3206
        %3208 = vmatprep.mubr.bf16.mxu0 0
        %3209 = vmatmul.mubr.bf16.gmra.mxu0 %v1355
        %v3210 = vpop.f32.mrf.mxu0
        %v3211 = vadd.f32 0.0, %v3210
        %v3212 = vpop.f32.mrf.mxu0
        %v3213 = vadd.f32 0.0, %v3212
        %v3214 = vpop.f32.mrf.mxu0
        %v3215 = vadd.f32 0.0, %v3214
        %v3216 = vpop.f32.mrf.mxu0
        %v3217 = vadd.f32 0.0, %v3216
        %3218 = vmatprep.mubr.bf16.mxu0 0
        %3219 = vmatmul.mubr.bf16.gmra.mxu0 %v1356
        %v3220 = vpop.f32.mrf.mxu0
        %v3221 = vadd.f32 0.0, %v3220
        %v3222 = vpop.f32.mrf.mxu0
        %v3223 = vadd.f32 0.0, %v3222
        %v3224 = vpop.f32.mrf.mxu0
        %v3225 = vadd.f32 0.0, %v3224
        %v3226 = vpop.f32.mrf.mxu0
        %v3227 = vadd.f32 0.0, %v3226
        %3228 = vmatprep.mubr.bf16.mxu0 0
        %3229 = vmatmul.mubr.bf16.gmra.mxu0 %v1357
        %v3230 = vpop.f32.mrf.mxu0
        %v3231 = vadd.f32 0.0, %v3230
        %v3232 = vpop.f32.mrf.mxu0
        %v3233 = vadd.f32 0.0, %v3232
        %v3234 = vpop.f32.mrf.mxu0
        %v3235 = vadd.f32 0.0, %v3234
        %v3236 = vpop.f32.mrf.mxu0
        %v3237 = vadd.f32 0.0, %v3236
        %3238 = vmatprep.mubr.bf16.mxu0 0
        %3239 = vmatmul.mubr.bf16.gmra.mxu0 %v1358
        %v3240 = vpop.f32.mrf.mxu0
        %v3241 = vadd.f32 0.0, %v3240
        %v3242 = vpop.f32.mrf.mxu0
        %v3243 = vadd.f32 0.0, %v3242
        %v3244 = vpop.f32.mrf.mxu0
        %v3245 = vadd.f32 0.0, %v3244
        %v3246 = vpop.f32.mrf.mxu0
        %v3247 = vadd.f32 0.0, %v3246
        %3248 = vmatprep.mubr.bf16.mxu0 0
        %3249 = vmatmul.mubr.bf16.gmra.mxu0 %v1359
        %v3250 = vpop.f32.mrf.mxu0
        %v3251 = vadd.f32 0.0, %v3250
        %v3252 = vpop.f32.mrf.mxu0
        %v3253 = vadd.f32 0.0, %v3252
        %v3254 = vpop.f32.mrf.mxu0
        %v3255 = vadd.f32 0.0, %v3254
        %v3256 = vpop.f32.mrf.mxu0
        %v3257 = vadd.f32 0.0, %v3256
        %3258 = vmatprep.mubr.bf16.mxu0 0
        %3259 = vmatmul.mubr.bf16.gmra.mxu0 %v1360
        %v3260 = vpop.f32.mrf.mxu0
        %v3261 = vadd.f32 0.0, %v3260
        %v3262 = vpop.f32.mrf.mxu0
        %v3263 = vadd.f32 0.0, %v3262
        %v3264 = vpop.f32.mrf.mxu0
        %v3265 = vadd.f32 0.0, %v3264
        %v3266 = vpop.f32.mrf.mxu0
        %v3267 = vadd.f32 0.0, %v3266
        %3268 = vmatprep.mubr.bf16.mxu0 0
        %3269 = vmatmul.mubr.bf16.gmra.mxu0 %v1361
        %v3270 = vpop.f32.mrf.mxu0
        %v3271 = vadd.f32 0.0, %v3270
        %v3272 = vpop.f32.mrf.mxu0
        %v3273 = vadd.f32 0.0, %v3272
        %v3274 = vpop.f32.mrf.mxu0
        %v3275 = vadd.f32 0.0, %v3274
        %v3276 = vpop.f32.mrf.mxu0
        %v3277 = vadd.f32 0.0, %v3276
        %3278 = vmatprep.mubr.bf16.mxu0 0
        %3279 = vmatmul.mubr.bf16.gmra.mxu0 %v1362
        %v3280 = vpop.f32.mrf.mxu0
        %v3281 = vadd.f32 0.0, %v3280
        %v3282 = vpop.f32.mrf.mxu0
        %v3283 = vadd.f32 0.0, %v3282
        %v3284 = vpop.f32.mrf.mxu0
        %v3285 = vadd.f32 0.0, %v3284
        %v3286 = vpop.f32.mrf.mxu0
        %v3287 = vadd.f32 0.0, %v3286
        %3288 = vmatprep.mubr.bf16.mxu0 0
        %3289 = vmatmul.mubr.bf16.gmra.mxu0 %v1363
        %v3290 = vpop.f32.mrf.mxu0
        %v3291 = vadd.f32 0.0, %v3290
        %v3292 = vpop.f32.mrf.mxu0
        %v3293 = vadd.f32 0.0, %v3292
        %v3294 = vpop.f32.mrf.mxu0
        %v3295 = vadd.f32 0.0, %v3294
        %v3296 = vpop.f32.mrf.mxu0
        %v3297 = vadd.f32 0.0, %v3296
        %3298 = vmatprep.mubr.bf16.mxu0 0
        %3299 = vmatmul.mubr.bf16.gmra.mxu0 %v1364
        %v3300 = vpop.f32.mrf.mxu0
        %v3301 = vadd.f32 0.0, %v3300
        %v3302 = vpop.f32.mrf.mxu0
        %v3303 = vadd.f32 0.0, %v3302
        %v3304 = vpop.f32.mrf.mxu0
        %v3305 = vadd.f32 0.0, %v3304
        %v3306 = vpop.f32.mrf.mxu0
        %v3307 = vadd.f32 0.0, %v3306
        %3308 = vmatprep.mubr.bf16.mxu0 0
        %3309 = vmatmul.mubr.bf16.gmra.mxu0 %v1365
        %v3310 = vpop.f32.mrf.mxu0
        %v3311 = vadd.f32 0.0, %v3310
        %v3312 = vpop.f32.mrf.mxu0
        %v3313 = vadd.f32 0.0, %v3312
        %v3314 = vpop.f32.mrf.mxu0
        %v3315 = vadd.f32 0.0, %v3314
        %v3316 = vpop.f32.mrf.mxu0
        %v3317 = vadd.f32 0.0, %v3316
        %3318 = vmatprep.mubr.bf16.mxu0 0
        %3319 = vmatmul.mubr.bf16.gmra.mxu0 %v1366
        %v3320 = vpop.f32.mrf.mxu0
        %v3321 = vadd.f32 0.0, %v3320
        %v3322 = vpop.f32.mrf.mxu0
        %v3323 = vadd.f32 0.0, %v3322
        %v3324 = vpop.f32.mrf.mxu0
        %v3325 = vadd.f32 0.0, %v3324
        %v3326 = vpop.f32.mrf.mxu0
        %v3327 = vadd.f32 0.0, %v3326
        %3328 = vmatprep.mubr.bf16.mxu0 0
        %3329 = vmatmul.mubr.bf16.gmra.mxu0 %v1367
        %v3330 = vpop.f32.mrf.mxu0
        %v3331 = vadd.f32 0.0, %v3330
        %v3332 = vpop.f32.mrf.mxu0
        %v3333 = vadd.f32 0.0, %v3332
        %v3334 = vpop.f32.mrf.mxu0
        %v3335 = vadd.f32 0.0, %v3334
        %v3336 = vpop.f32.mrf.mxu0
        %v3337 = vadd.f32 0.0, %v3336
        %3338 = vmatprep.mubr.bf16.mxu0 0
        %3339 = vmatmul.mubr.bf16.gmra.mxu0 %v1368
        %v3340 = vpop.f32.mrf.mxu0
        %v3341 = vadd.f32 0.0, %v3340
        %v3342 = vpop.f32.mrf.mxu0
        %v3343 = vadd.f32 0.0, %v3342
        %v3344 = vpop.f32.mrf.mxu0
        %v3345 = vadd.f32 0.0, %v3344
        %v3346 = vpop.f32.mrf.mxu0
        %v3347 = vadd.f32 0.0, %v3346
        %3348 = vmatprep.mubr.bf16.mxu0 0
        %3349 = vmatmul.mubr.bf16.gmra.mxu0 %v1369
        %v3350 = vpop.f32.mrf.mxu0
        %v3351 = vadd.f32 0.0, %v3350
        %v3352 = vpop.f32.mrf.mxu0
        %v3353 = vadd.f32 0.0, %v3352
        %v3354 = vpop.f32.mrf.mxu0
        %v3355 = vadd.f32 0.0, %v3354
        %v3356 = vpop.f32.mrf.mxu0
        %v3357 = vadd.f32 0.0, %v3356
        %3358 = vmatprep.mubr.bf16.mxu0 0
        %3359 = vmatmul.mubr.bf16.gmra.mxu0 %v1370
        %v3360 = vpop.f32.mrf.mxu0
        %v3361 = vadd.f32 0.0, %v3360
        %v3362 = vpop.f32.mrf.mxu0
        %v3363 = vadd.f32 0.0, %v3362
        %v3364 = vpop.f32.mrf.mxu0
        %v3365 = vadd.f32 0.0, %v3364
        %v3366 = vpop.f32.mrf.mxu0
        %v3367 = vadd.f32 0.0, %v3366
        %3368 = vmatprep.mubr.bf16.mxu0 0
        %3369 = vmatmul.mubr.bf16.gmra.mxu0 %v1371
        %v3370 = vpop.f32.mrf.mxu0
        %v3371 = vadd.f32 0.0, %v3370
        %v3372 = vpop.f32.mrf.mxu0
        %v3373 = vadd.f32 0.0, %v3372
        %v3374 = vpop.f32.mrf.mxu0
        %v3375 = vadd.f32 0.0, %v3374
        %v3376 = vpop.f32.mrf.mxu0
        %v3377 = vadd.f32 0.0, %v3376
        %3378 = vmatprep.mubr.bf16.mxu0 0
        %3379 = vmatmul.mubr.bf16.gmra.mxu0 %v1372
        %v3380 = vpop.f32.mrf.mxu0
        %v3381 = vadd.f32 0.0, %v3380
        %v3382 = vpop.f32.mrf.mxu0
        %v3383 = vadd.f32 0.0, %v3382
        %v3384 = vpop.f32.mrf.mxu0
        %v3385 = vadd.f32 0.0, %v3384
        %v3386 = vpop.f32.mrf.mxu0
        %v3387 = vadd.f32 0.0, %v3386
        %3388 = vmatprep.mubr.bf16.mxu0 0
        %3389 = vmatmul.mubr.bf16.gmra.mxu0 %v1373
        %v3390 = vpop.f32.mrf.mxu0
        %v3391 = vadd.f32 0.0, %v3390
        %v3392 = vpop.f32.mrf.mxu0
        %v3393 = vadd.f32 0.0, %v3392
        %v3394 = vpop.f32.mrf.mxu0
        %v3395 = vadd.f32 0.0, %v3394
        %v3396 = vpop.f32.mrf.mxu0
        %v3397 = vadd.f32 0.0, %v3396
        %3398 = vmatprep.mubr.bf16.mxu0 0
        %3399 = vmatmul.mubr.bf16.gmra.mxu0 %v1374
        %v3400 = vpop.f32.mrf.mxu0
        %v3401 = vadd.f32 0.0, %v3400
        %v3402 = vpop.f32.mrf.mxu0
        %v3403 = vadd.f32 0.0, %v3402
        %v3404 = vpop.f32.mrf.mxu0
        %v3405 = vadd.f32 0.0, %v3404
        %v3406 = vpop.f32.mrf.mxu0
        %v3407 = vadd.f32 0.0, %v3406
        %3408 = vmatprep.mubr.bf16.mxu0 0
        %3409 = vmatmul.mubr.bf16.gmra.mxu0 %v1375
        %v3410 = vpop.f32.mrf.mxu0
        %v3411 = vadd.f32 0.0, %v3410
        %v3412 = vpop.f32.mrf.mxu0
        %v3413 = vadd.f32 0.0, %v3412
        %v3414 = vpop.f32.mrf.mxu0
        %v3415 = vadd.f32 0.0, %v3414
        %v3416 = vpop.f32.mrf.mxu0
        %v3417 = vadd.f32 0.0, %v3416
        %3418 = vmatprep.mubr.bf16.mxu0 0
        %3419 = vmatmul.mubr.bf16.gmra.mxu0 %v1376
        %v3420 = vpop.f32.mrf.mxu0
        %v3421 = vadd.f32 0.0, %v3420
        %v3422 = vpop.f32.mrf.mxu0
        %v3423 = vadd.f32 0.0, %v3422
        %v3424 = vpop.f32.mrf.mxu0
        %v3425 = vadd.f32 0.0, %v3424
        %v3426 = vpop.f32.mrf.mxu0
        %v3427 = vadd.f32 0.0, %v3426
        %3428 = vmatprep.mubr.bf16.mxu0 0
        %3429 = vmatmul.mubr.bf16.gmra.mxu0 %v1377
        %v3430 = vpop.f32.mrf.mxu0
        %v3431 = vadd.f32 0.0, %v3430
        %v3432 = vpop.f32.mrf.mxu0
        %v3433 = vadd.f32 0.0, %v3432
        %v3434 = vpop.f32.mrf.mxu0
        %v3435 = vadd.f32 0.0, %v3434
        %v3436 = vpop.f32.mrf.mxu0
        %v3437 = vadd.f32 0.0, %v3436
        %3438 = vmatprep.mubr.bf16.mxu0 0
        %3439 = vmatmul.mubr.bf16.gmra.mxu0 %v1378
        %v3440 = vpop.f32.mrf.mxu0
        %v3441 = vadd.f32 0.0, %v3440
        %v3442 = vpop.f32.mrf.mxu0
        %v3443 = vadd.f32 0.0, %v3442
        %v3444 = vpop.f32.mrf.mxu0
        %v3445 = vadd.f32 0.0, %v3444
        %v3446 = vpop.f32.mrf.mxu0
        %v3447 = vadd.f32 0.0, %v3446
        %3448 = vmatprep.mubr.bf16.mxu0 0
        %3449 = vmatmul.mubr.bf16.gmra.mxu0 %v1379
        %v3450 = vpop.f32.mrf.mxu0
        %v3451 = vadd.f32 0.0, %v3450
        %v3452 = vpop.f32.mrf.mxu0
        %v3453 = vadd.f32 0.0, %v3452
        %v3454 = vpop.f32.mrf.mxu0
        %v3455 = vadd.f32 0.0, %v3454
        %v3456 = vpop.f32.mrf.mxu0
        %v3457 = vadd.f32 0.0, %v3456
        %3458 = vmatprep.mubr.bf16.mxu0 0
        %3459 = vmatmul.mubr.bf16.gmra.mxu0 %v1380
        %v3460 = vpop.f32.mrf.mxu0
        %v3461 = vadd.f32 0.0, %v3460
        %v3462 = vpop.f32.mrf.mxu0
        %v3463 = vadd.f32 0.0, %v3462
        %v3464 = vpop.f32.mrf.mxu0
        %v3465 = vadd.f32 0.0, %v3464
        %v3466 = vpop.f32.mrf.mxu0
        %v3467 = vadd.f32 0.0, %v3466
        %3468 = vmatprep.mubr.bf16.mxu0 0
        %3469 = vmatmul.mubr.bf16.gmra.mxu0 %v1381
        %v3470 = vpop.f32.mrf.mxu0
        %v3471 = vadd.f32 0.0, %v3470
        %v3472 = vpop.f32.mrf.mxu0
        %v3473 = vadd.f32 0.0, %v3472
        %v3474 = vpop.f32.mrf.mxu0
        %v3475 = vadd.f32 0.0, %v3474
        %v3476 = vpop.f32.mrf.mxu0
        %v3477 = vadd.f32 0.0, %v3476
        %3478 = vmatprep.mubr.bf16.mxu0 0
        %3479 = vmatmul.mubr.bf16.gmra.mxu0 %v1382
        %v3480 = vpop.f32.mrf.mxu0
        %v3481 = vadd.f32 0.0, %v3480
        %v3482 = vpop.f32.mrf.mxu0
        %v3483 = vadd.f32 0.0, %v3482
        %v3484 = vpop.f32.mrf.mxu0
        %v3485 = vadd.f32 0.0, %v3484
        %v3486 = vpop.f32.mrf.mxu0
        %v3487 = vadd.f32 0.0, %v3486
        %3488 = vmatprep.mubr.bf16.mxu0 0
        %3489 = vmatmul.mubr.bf16.gmra.mxu0 %v1383
        %v3490 = vpop.f32.mrf.mxu0
        %v3491 = vadd.f32 0.0, %v3490
        %v3492 = vpop.f32.mrf.mxu0
        %v3493 = vadd.f32 0.0, %v3492
        %v3494 = vpop.f32.mrf.mxu0
        %v3495 = vadd.f32 0.0, %v3494
        %v3496 = vpop.f32.mrf.mxu0
        %v3497 = vadd.f32 0.0, %v3496
        %3498 = vmatprep.mubr.bf16.mxu0 0
        %3499 = vmatmul.mubr.bf16.gmra.mxu0 %v1384
        %v3500 = vpop.f32.mrf.mxu0
        %v3501 = vadd.f32 0.0, %v3500
        %v3502 = vpop.f32.mrf.mxu0
        %v3503 = vadd.f32 0.0, %v3502
        %v3504 = vpop.f32.mrf.mxu0
        %v3505 = vadd.f32 0.0, %v3504
        %v3506 = vpop.f32.mrf.mxu0
        %v3507 = vadd.f32 0.0, %v3506
        %3508 = vmatprep.mubr.bf16.mxu0 0
        %3509 = vmatmul.mubr.bf16.gmra.mxu0 %v1385
        %v3510 = vpop.f32.mrf.mxu0
        %v3511 = vadd.f32 0.0, %v3510
        %v3512 = vpop.f32.mrf.mxu0
        %v3513 = vadd.f32 0.0, %v3512
        %v3514 = vpop.f32.mrf.mxu0
        %v3515 = vadd.f32 0.0, %v3514
        %v3516 = vpop.f32.mrf.mxu0
        %v3517 = vadd.f32 0.0, %v3516
        %3518 = vmatprep.mubr.bf16.mxu0 0
        %3519 = vmatmul.mubr.bf16.gmra.mxu0 %v1386
        %v3520 = vpop.f32.mrf.mxu0
        %v3521 = vadd.f32 0.0, %v3520
        %v3522 = vpop.f32.mrf.mxu0
        %v3523 = vadd.f32 0.0, %v3522
        %v3524 = vpop.f32.mrf.mxu0
        %v3525 = vadd.f32 0.0, %v3524
        %v3526 = vpop.f32.mrf.mxu0
        %v3527 = vadd.f32 0.0, %v3526
        %3528 = vmatprep.mubr.bf16.mxu0 0
        %3529 = vmatmul.mubr.bf16.gmra.mxu0 %v1387
        %v3530 = vpop.f32.mrf.mxu0
        %v3531 = vadd.f32 0.0, %v3530
        %v3532 = vpop.f32.mrf.mxu0
        %v3533 = vadd.f32 0.0, %v3532
        %v3534 = vpop.f32.mrf.mxu0
        %v3535 = vadd.f32 0.0, %v3534
        %v3536 = vpop.f32.mrf.mxu0
        %v3537 = vadd.f32 0.0, %v3536
        %3538 = vmatprep.mubr.bf16.mxu0 0
        %3539 = vmatmul.mubr.bf16.gmra.mxu0 %v1388
        %v3540 = vpop.f32.mrf.mxu0
        %v3541 = vadd.f32 0.0, %v3540
        %v3542 = vpop.f32.mrf.mxu0
        %v3543 = vadd.f32 0.0, %v3542
        %v3544 = vpop.f32.mrf.mxu0
        %v3545 = vadd.f32 0.0, %v3544
        %v3546 = vpop.f32.mrf.mxu0
        %v3547 = vadd.f32 0.0, %v3546
        %3548 = vmatprep.mubr.bf16.mxu0 0
        %3549 = vmatmul.mubr.bf16.gmra.mxu0 %v1389
        %v3550 = vpop.f32.mrf.mxu0
        %v3551 = vadd.f32 0.0, %v3550
        %v3552 = vpop.f32.mrf.mxu0
        %v3553 = vadd.f32 0.0, %v3552
        %v3554 = vpop.f32.mrf.mxu0
        %v3555 = vadd.f32 0.0, %v3554
        %v3556 = vpop.f32.mrf.mxu0
        %v3557 = vadd.f32 0.0, %v3556
        %3558 = vmatprep.mubr.bf16.mxu0 0
        %3559 = vmatmul.mubr.bf16.gmra.mxu0 %v1390
        %v3560 = vpop.f32.mrf.mxu0
        %v3561 = vadd.f32 0.0, %v3560
        %v3562 = vpop.f32.mrf.mxu0
        %v3563 = vadd.f32 0.0, %v3562
        %v3564 = vpop.f32.mrf.mxu0
        %v3565 = vadd.f32 0.0, %v3564
        %v3566 = vpop.f32.mrf.mxu0
        %v3567 = vadd.f32 0.0, %v3566
        %3568 = vmatprep.mubr.bf16.mxu0 0
        %3569 = vmatmul.mubr.bf16.gmra.mxu0 %v1391
        %v3570 = vpop.f32.mrf.mxu0
        %v3571 = vadd.f32 0.0, %v3570
        %v3572 = vpop.f32.mrf.mxu0
        %v3573 = vadd.f32 0.0, %v3572
        %v3574 = vpop.f32.mrf.mxu0
        %v3575 = vadd.f32 0.0, %v3574
        %v3576 = vpop.f32.mrf.mxu0
        %v3577 = vadd.f32 0.0, %v3576
        %3578 = vmatprep.mubr.bf16.mxu0 0
        %3579 = vmatmul.mubr.bf16.gmra.mxu0 %v1392
        %v3580 = vpop.f32.mrf.mxu0
        %v3581 = vadd.f32 0.0, %v3580
        %v3582 = vpop.f32.mrf.mxu0
        %v3583 = vadd.f32 0.0, %v3582
        %v3584 = vpop.f32.mrf.mxu0
        %v3585 = vadd.f32 0.0, %v3584
        %v3586 = vpop.f32.mrf.mxu0
        %v3587 = vadd.f32 0.0, %v3586
        %3588 = vmatprep.mubr.bf16.mxu0 0
        %3589 = vmatmul.mubr.bf16.gmra.mxu0 %v1393
        %v3590 = vpop.f32.mrf.mxu0
        %v3591 = vadd.f32 0.0, %v3590
        %v3592 = vpop.f32.mrf.mxu0
        %v3593 = vadd.f32 0.0, %v3592
        %v3594 = vpop.f32.mrf.mxu0
        %v3595 = vadd.f32 0.0, %v3594
        %v3596 = vpop.f32.mrf.mxu0
        %v3597 = vadd.f32 0.0, %v3596
        %3598 = vmatprep.mubr.bf16.mxu0 0
        %3599 = vmatmul.mubr.bf16.gmra.mxu0 %v1394
        %v3600 = vpop.f32.mrf.mxu0
        %v3601 = vadd.f32 0.0, %v3600
        %v3602 = vpop.f32.mrf.mxu0
        %v3603 = vadd.f32 0.0, %v3602
        %v3604 = vpop.f32.mrf.mxu0
        %v3605 = vadd.f32 0.0, %v3604
        %v3606 = vpop.f32.mrf.mxu0
        %v3607 = vadd.f32 0.0, %v3606
        %3608 = vmatprep.mubr.bf16.mxu0 0
        %3609 = vmatmul.mubr.bf16.gmra.mxu0 %v1395
        %v3610 = vpop.f32.mrf.mxu0
        %v3611 = vadd.f32 0.0, %v3610
        %v3612 = vpop.f32.mrf.mxu0
        %v3613 = vadd.f32 0.0, %v3612
        %v3614 = vpop.f32.mrf.mxu0
        %v3615 = vadd.f32 0.0, %v3614
        %v3616 = vpop.f32.mrf.mxu0
        %v3617 = vadd.f32 0.0, %v3616
        %3618 = vmatprep.mubr.bf16.mxu0 0
        %3619 = vmatmul.mubr.bf16.gmra.mxu0 %v1396
        %v3620 = vpop.f32.mrf.mxu0
        %v3621 = vadd.f32 0.0, %v3620
        %v3622 = vpop.f32.mrf.mxu0
        %v3623 = vadd.f32 0.0, %v3622
        %v3624 = vpop.f32.mrf.mxu0
        %v3625 = vadd.f32 0.0, %v3624
        %v3626 = vpop.f32.mrf.mxu0
        %v3627 = vadd.f32 0.0, %v3626
        %3628 = vmatprep.mubr.bf16.mxu0 0
        %3629 = vmatmul.mubr.bf16.gmra.mxu0 %v1397
        %v3630 = vpop.f32.mrf.mxu0
        %v3631 = vadd.f32 0.0, %v3630
        %v3632 = vpop.f32.mrf.mxu0
        %v3633 = vadd.f32 0.0, %v3632
        %v3634 = vpop.f32.mrf.mxu0
        %v3635 = vadd.f32 0.0, %v3634
        %v3636 = vpop.f32.mrf.mxu0
        %v3637 = vadd.f32 0.0, %v3636
        %3638 = vmatprep.mubr.bf16.mxu0 0
        %3639 = vmatmul.mubr.bf16.gmra.mxu0 %v1398
        %v3640 = vpop.f32.mrf.mxu0
        %v3641 = vadd.f32 0.0, %v3640
        %v3642 = vpop.f32.mrf.mxu0
        %v3643 = vadd.f32 0.0, %v3642
        %v3644 = vpop.f32.mrf.mxu0
        %v3645 = vadd.f32 0.0, %v3644
        %v3646 = vpop.f32.mrf.mxu0
        %v3647 = vadd.f32 0.0, %v3646
        %3648 = vmatprep.mubr.bf16.mxu0 0
        %3649 = vmatmul.mubr.bf16.gmra.mxu0 %v1399
        %v3650 = vpop.f32.mrf.mxu0
        %v3651 = vadd.f32 0.0, %v3650
        %v3652 = vpop.f32.mrf.mxu0
        %v3653 = vadd.f32 0.0, %v3652
        %v3654 = vpop.f32.mrf.mxu0
        %v3655 = vadd.f32 0.0, %v3654
        %v3656 = vpop.f32.mrf.mxu0
        %v3657 = vadd.f32 0.0, %v3656
        %3658 = vmatprep.mubr.bf16.mxu0 0
        %3659 = vmatmul.mubr.bf16.gmra.mxu0 %v1400
        %v3660 = vpop.f32.mrf.mxu0
        %v3661 = vadd.f32 0.0, %v3660
        %v3662 = vpop.f32.mrf.mxu0
        %v3663 = vadd.f32 0.0, %v3662
        %v3664 = vpop.f32.mrf.mxu0
        %v3665 = vadd.f32 0.0, %v3664
        %v3666 = vpop.f32.mrf.mxu0
        %v3667 = vadd.f32 0.0, %v3666
        %3668 = vmatprep.mubr.bf16.mxu0 0
        %3669 = vmatmul.mubr.bf16.gmra.mxu0 %v1401
        %v3670 = vpop.f32.mrf.mxu0
        %v3671 = vadd.f32 0.0, %v3670
        %v3672 = vpop.f32.mrf.mxu0
        %v3673 = vadd.f32 0.0, %v3672
        %v3674 = vpop.f32.mrf.mxu0
        %v3675 = vadd.f32 0.0, %v3674
        %v3676 = vpop.f32.mrf.mxu0
        %v3677 = vadd.f32 0.0, %v3676
        %3678 = vmatprep.mubr.bf16.mxu0 0
        %3679 = vmatmul.mubr.bf16.gmra.mxu0 %v1402
        %v3680 = vpop.f32.mrf.mxu0
        %v3681 = vadd.f32 0.0, %v3680
        %v3682 = vpop.f32.mrf.mxu0
        %v3683 = vadd.f32 0.0, %v3682
        %v3684 = vpop.f32.mrf.mxu0
        %v3685 = vadd.f32 0.0, %v3684
        %v3686 = vpop.f32.mrf.mxu0
        %v3687 = vadd.f32 0.0, %v3686
        %3688 = vmatprep.mubr.bf16.mxu0 0
        %3689 = vmatmul.mubr.bf16.gmra.mxu0 %v1403
        %v3690 = vpop.f32.mrf.mxu0
        %v3691 = vadd.f32 0.0, %v3690
        %v3692 = vpop.f32.mrf.mxu0
        %v3693 = vadd.f32 0.0, %v3692
        %v3694 = vpop.f32.mrf.mxu0
        %v3695 = vadd.f32 0.0, %v3694
        %v3696 = vpop.f32.mrf.mxu0
        %v3697 = vadd.f32 0.0, %v3696
        %3698 = vmatprep.mubr.bf16.mxu0 0
        %3699 = vmatmul.mubr.bf16.gmra.mxu0 %v1404
        %v3700 = vpop.f32.mrf.mxu0
        %v3701 = vadd.f32 0.0, %v3700
        %v3702 = vpop.f32.mrf.mxu0
        %v3703 = vadd.f32 0.0, %v3702
        %v3704 = vpop.f32.mrf.mxu0
        %v3705 = vadd.f32 0.0, %v3704
        %v3706 = vpop.f32.mrf.mxu0
        %v3707 = vadd.f32 0.0, %v3706
        %3708 = vmatprep.mubr.bf16.mxu0 0
        %3709 = vmatmul.mubr.bf16.gmra.mxu0 %v1405
        %v3710 = vpop.f32.mrf.mxu0
        %v3711 = vadd.f32 0.0, %v3710
        %v3712 = vpop.f32.mrf.mxu0
        %v3713 = vadd.f32 0.0, %v3712
        %v3714 = vpop.f32.mrf.mxu0
        %v3715 = vadd.f32 0.0, %v3714
        %v3716 = vpop.f32.mrf.mxu0
        %v3717 = vadd.f32 0.0, %v3716
        %3718 = vmatprep.mubr.bf16.mxu0 0
        %3719 = vmatmul.mubr.bf16.gmra.mxu0 %v1406
        %v3720 = vpop.f32.mrf.mxu0
        %v3721 = vadd.f32 0.0, %v3720
        %v3722 = vpop.f32.mrf.mxu0
        %v3723 = vadd.f32 0.0, %v3722
        %v3724 = vpop.f32.mrf.mxu0
        %v3725 = vadd.f32 0.0, %v3724
        %v3726 = vpop.f32.mrf.mxu0
        %v3727 = vadd.f32 0.0, %v3726
        %3728 = vmatprep.mubr.bf16.mxu0 0
        %3729 = vmatmul.mubr.bf16.gmra.mxu0 %v1407
        %v3730 = vpop.f32.mrf.mxu0
        %v3731 = vadd.f32 0.0, %v3730
        %v3732 = vpop.f32.mrf.mxu0
        %v3733 = vadd.f32 0.0, %v3732
        %v3734 = vpop.f32.mrf.mxu0
        %v3735 = vadd.f32 0.0, %v3734
        %v3736 = vpop.f32.mrf.mxu0
        %v3737 = vadd.f32 0.0, %v3736
        %3738 = vmatprep.mubr.bf16.mxu0 0
        %3739 = vmatmul.mubr.bf16.gmra.mxu0 %v1408
        %v3740 = vpop.f32.mrf.mxu0
        %v3741 = vadd.f32 0.0, %v3740
        %v3742 = vpop.f32.mrf.mxu0
        %v3743 = vadd.f32 0.0, %v3742
        %v3744 = vpop.f32.mrf.mxu0
        %v3745 = vadd.f32 0.0, %v3744
        %v3746 = vpop.f32.mrf.mxu0
        %v3747 = vadd.f32 0.0, %v3746
        %3748 = vmatprep.mubr.bf16.mxu0 0
        %3749 = vmatmul.mubr.bf16.gmra.mxu0 %v1409
        %v3750 = vpop.f32.mrf.mxu0
        %v3751 = vadd.f32 0.0, %v3750
        %v3752 = vpop.f32.mrf.mxu0
        %v3753 = vadd.f32 0.0, %v3752
        %v3754 = vpop.f32.mrf.mxu0
        %v3755 = vadd.f32 0.0, %v3754
        %v3756 = vpop.f32.mrf.mxu0
        %v3757 = vadd.f32 0.0, %v3756
        %3758 = vmatprep.mubr.bf16.mxu0 0
        %3759 = vmatmul.mubr.bf16.gmra.mxu0 %v1410
        %v3760 = vpop.f32.mrf.mxu0
        %v3761 = vadd.f32 0.0, %v3760
        %v3762 = vpop.f32.mrf.mxu0
        %v3763 = vadd.f32 0.0, %v3762
        %v3764 = vpop.f32.mrf.mxu0
        %v3765 = vadd.f32 0.0, %v3764
        %v3766 = vpop.f32.mrf.mxu0
        %v3767 = vadd.f32 0.0, %v3766
        %3768 = vmatprep.mubr.bf16.mxu0 0
        %3769 = vmatmul.mubr.bf16.gmra.mxu0 %v1411
        %v3770 = vpop.f32.mrf.mxu0
        %v3771 = vadd.f32 0.0, %v3770
        %v3772 = vpop.f32.mrf.mxu0
        %v3773 = vadd.f32 0.0, %v3772
        %v3774 = vpop.f32.mrf.mxu0
        %v3775 = vadd.f32 0.0, %v3774
        %v3776 = vpop.f32.mrf.mxu0
        %v3777 = vadd.f32 0.0, %v3776
        %3778 = vmatprep.mubr.bf16.mxu0 0
        %3779 = vmatmul.mubr.bf16.gmra.mxu0 %v1412
        %v3780 = vpop.f32.mrf.mxu0
        %v3781 = vadd.f32 0.0, %v3780
        %v3782 = vpop.f32.mrf.mxu0
        %v3783 = vadd.f32 0.0, %v3782
        %v3784 = vpop.f32.mrf.mxu0
        %v3785 = vadd.f32 0.0, %v3784
        %v3786 = vpop.f32.mrf.mxu0
        %v3787 = vadd.f32 0.0, %v3786
        %3788 = vmatprep.mubr.bf16.mxu0 0
        %3789 = vmatmul.mubr.bf16.gmra.mxu0 %v1413
        %v3790 = vpop.f32.mrf.mxu0
        %v3791 = vadd.f32 0.0, %v3790
        %v3792 = vpop.f32.mrf.mxu0
        %v3793 = vadd.f32 0.0, %v3792
        %v3794 = vpop.f32.mrf.mxu0
        %v3795 = vadd.f32 0.0, %v3794
        %v3796 = vpop.f32.mrf.mxu0
        %v3797 = vadd.f32 0.0, %v3796
        %3798 = vmatprep.mubr.bf16.mxu0 0
        %3799 = vmatmul.mubr.bf16.gmra.mxu0 %v1414
        %v3800 = vpop.f32.mrf.mxu0
        %v3801 = vadd.f32 0.0, %v3800
        %v3802 = vpop.f32.mrf.mxu0
        %v3803 = vadd.f32 0.0, %v3802
        %v3804 = vpop.f32.mrf.mxu0
        %v3805 = vadd.f32 0.0, %v3804
        %v3806 = vpop.f32.mrf.mxu0
        %v3807 = vadd.f32 0.0, %v3806
        %3808 = vmatprep.mubr.bf16.mxu0 0
        %3809 = vmatmul.mubr.bf16.gmra.mxu0 %v1415
        %v3810 = vpop.f32.mrf.mxu0
        %v3811 = vadd.f32 0.0, %v3810
        %v3812 = vpop.f32.mrf.mxu0
        %v3813 = vadd.f32 0.0, %v3812
        %v3814 = vpop.f32.mrf.mxu0
        %v3815 = vadd.f32 0.0, %v3814
        %v3816 = vpop.f32.mrf.mxu0
        %v3817 = vadd.f32 0.0, %v3816
        %3818 = vdwg.mxu0
        %3819 = vmatprep.subr.bf16.mxu0 %v1735
        %3820 = vmatpush1.bf16.msra.mxu0 %v1734
        %3821 = vmatprep.subr.bf16.mxu0 %v1727
        %3822 = vmatpush1.bf16.msra.mxu0 %v1726
        %3823 = vmatprep.subr.bf16.mxu0 %v1719
        %3824 = vmatpush1.bf16.msra.mxu0 %v1718
        %3825 = vmatprep.subr.bf16.mxu0 %v1711
        %3826 = vmatpush1.bf16.msra.mxu0 %v1710
        %3827 = vmatprep.subr.bf16.mxu0 %v1703
        %3828 = vmatpush1.bf16.msra.mxu0 %v1702
        %3829 = vmatprep.subr.bf16.mxu0 %v1695
        %3830 = vmatpush1.bf16.msra.mxu0 %v1694
        %3831 = vmatprep.subr.bf16.mxu0 %v1687
        %3832 = vmatpush1.bf16.msra.mxu0 %v1686
        %3833 = vmatprep.subr.bf16.mxu0 %v1679
        %3834 = vmatpush1.bf16.msra.mxu0 %v1678
        %3835 = vmatprep.subr.bf16.mxu0 0
        %3836 = vmatpush2.bf16.msra.mxu0 0
        %3837 = vmatprep.subr.bf16.mxu0 0
        %3838 = vmatpush2.bf16.msra.mxu0 0
        %3839 = vmatprep.subr.bf16.mxu0 0
        %3840 = vmatpush2.bf16.msra.mxu0 0
        %3841 = vmatprep.subr.bf16.mxu0 0
        %3842 = vmatpush2.bf16.msra.mxu0 0
        %3843 = vmatprep.subr.bf16.mxu0 0
        %3844 = vmatpush2.bf16.msra.mxu0 0
        %3845 = vmatprep.subr.bf16.mxu0 0
        %3846 = vmatpush2.bf16.msra.mxu0 0
        %3847 = vmatprep.subr.bf16.mxu0 0
        %3848 = vmatpush2.bf16.msra.mxu0 0
        %3849 = vmatprep.subr.bf16.mxu0 0
        %3850 = vmatpush2.bf16.msra.mxu0 0
        %3851 = vmatprep.mubr.bf16.mxu0 0
        %3852 = vmatmul.mubr.bf16.gmra.mxu0 %v1352
        %v3853 = vpop.f32.mrf.mxu0
        %v3854 = vadd.f32 0.0, %v3853
        %v3855 = vpop.f32.mrf.mxu0
        %v3856 = vadd.f32 0.0, %v3855
        %v3857 = vpop.f32.mrf.mxu0
        %v3858 = vadd.f32 0.0, %v3857
        %v3859 = vpop.f32.mrf.mxu0
        %v3860 = vadd.f32 0.0, %v3859
        %3861 = vmatprep.mubr.bf16.mxu0 0
        %3862 = vmatmul.mubr.bf16.gmra.mxu0 %v1353
        %v3863 = vpop.f32.mrf.mxu0
        %v3864 = vadd.f32 0.0, %v3863
        %v3865 = vpop.f32.mrf.mxu0
        %v3866 = vadd.f32 0.0, %v3865
        %v3867 = vpop.f32.mrf.mxu0
        %v3868 = vadd.f32 0.0, %v3867
        %v3869 = vpop.f32.mrf.mxu0
        %v3870 = vadd.f32 0.0, %v3869
        %3871 = vmatprep.mubr.bf16.mxu0 0
        %3872 = vmatmul.mubr.bf16.gmra.mxu0 %v1354
        %v3873 = vpop.f32.mrf.mxu0
        %v3874 = vadd.f32 0.0, %v3873
        %v3875 = vpop.f32.mrf.mxu0
        %v3876 = vadd.f32 0.0, %v3875
        %v3877 = vpop.f32.mrf.mxu0
        %v3878 = vadd.f32 0.0, %v3877
        %v3879 = vpop.f32.mrf.mxu0
        %v3880 = vadd.f32 0.0, %v3879
        %3881 = vmatprep.mubr.bf16.mxu0 0
        %3882 = vmatmul.mubr.bf16.gmra.mxu0 %v1355
        %v3883 = vpop.f32.mrf.mxu0
        %v3884 = vadd.f32 0.0, %v3883
        %v3885 = vpop.f32.mrf.mxu0
        %v3886 = vadd.f32 0.0, %v3885
        %v3887 = vpop.f32.mrf.mxu0
        %v3888 = vadd.f32 0.0, %v3887
        %v3889 = vpop.f32.mrf.mxu0
        %v3890 = vadd.f32 0.0, %v3889
        %3891 = vmatprep.mubr.bf16.mxu0 0
        %3892 = vmatmul.mubr.bf16.gmra.mxu0 %v1356
        %v3893 = vpop.f32.mrf.mxu0
        %v3894 = vadd.f32 0.0, %v3893
        %v3895 = vpop.f32.mrf.mxu0
        %v3896 = vadd.f32 0.0, %v3895
        %v3897 = vpop.f32.mrf.mxu0
        %v3898 = vadd.f32 0.0, %v3897
        %v3899 = vpop.f32.mrf.mxu0
        %v3900 = vadd.f32 0.0, %v3899
        %3901 = vmatprep.mubr.bf16.mxu0 0
        %3902 = vmatmul.mubr.bf16.gmra.mxu0 %v1357
        %v3903 = vpop.f32.mrf.mxu0
        %v3904 = vadd.f32 0.0, %v3903
        %v3905 = vpop.f32.mrf.mxu0
        %v3906 = vadd.f32 0.0, %v3905
        %v3907 = vpop.f32.mrf.mxu0
        %v3908 = vadd.f32 0.0, %v3907
        %v3909 = vpop.f32.mrf.mxu0
        %v3910 = vadd.f32 0.0, %v3909
        %3911 = vmatprep.mubr.bf16.mxu0 0
        %3912 = vmatmul.mubr.bf16.gmra.mxu0 %v1358
        %v3913 = vpop.f32.mrf.mxu0
        %v3914 = vadd.f32 0.0, %v3913
        %v3915 = vpop.f32.mrf.mxu0
        %v3916 = vadd.f32 0.0, %v3915
        %v3917 = vpop.f32.mrf.mxu0
        %v3918 = vadd.f32 0.0, %v3917
        %v3919 = vpop.f32.mrf.mxu0
        %v3920 = vadd.f32 0.0, %v3919
        %3921 = vmatprep.mubr.bf16.mxu0 0
        %3922 = vmatmul.mubr.bf16.gmra.mxu0 %v1359
        %v3923 = vpop.f32.mrf.mxu0
        %v3924 = vadd.f32 0.0, %v3923
        %v3925 = vpop.f32.mrf.mxu0
        %v3926 = vadd.f32 0.0, %v3925
        %v3927 = vpop.f32.mrf.mxu0
        %v3928 = vadd.f32 0.0, %v3927
        %v3929 = vpop.f32.mrf.mxu0
        %v3930 = vadd.f32 0.0, %v3929
        %3931 = vmatprep.mubr.bf16.mxu0 0
        %3932 = vmatmul.mubr.bf16.gmra.mxu0 %v1360
        %v3933 = vpop.f32.mrf.mxu0
        %v3934 = vadd.f32 0.0, %v3933
        %v3935 = vpop.f32.mrf.mxu0
        %v3936 = vadd.f32 0.0, %v3935
        %v3937 = vpop.f32.mrf.mxu0
        %v3938 = vadd.f32 0.0, %v3937
        %v3939 = vpop.f32.mrf.mxu0
        %v3940 = vadd.f32 0.0, %v3939
        %3941 = vmatprep.mubr.bf16.mxu0 0
        %3942 = vmatmul.mubr.bf16.gmra.mxu0 %v1361
        %v3943 = vpop.f32.mrf.mxu0
        %v3944 = vadd.f32 0.0, %v3943
        %v3945 = vpop.f32.mrf.mxu0
        %v3946 = vadd.f32 0.0, %v3945
        %v3947 = vpop.f32.mrf.mxu0
        %v3948 = vadd.f32 0.0, %v3947
        %v3949 = vpop.f32.mrf.mxu0
        %v3950 = vadd.f32 0.0, %v3949
        %3951 = vmatprep.mubr.bf16.mxu0 0
        %3952 = vmatmul.mubr.bf16.gmra.mxu0 %v1362
        %v3953 = vpop.f32.mrf.mxu0
        %v3954 = vadd.f32 0.0, %v3953
        %v3955 = vpop.f32.mrf.mxu0
        %v3956 = vadd.f32 0.0, %v3955
        %v3957 = vpop.f32.mrf.mxu0
        %v3958 = vadd.f32 0.0, %v3957
        %v3959 = vpop.f32.mrf.mxu0
        %v3960 = vadd.f32 0.0, %v3959
        %3961 = vmatprep.mubr.bf16.mxu0 0
        %3962 = vmatmul.mubr.bf16.gmra.mxu0 %v1363
        %v3963 = vpop.f32.mrf.mxu0
        %v3964 = vadd.f32 0.0, %v3963
        %v3965 = vpop.f32.mrf.mxu0
        %v3966 = vadd.f32 0.0, %v3965
        %v3967 = vpop.f32.mrf.mxu0
        %v3968 = vadd.f32 0.0, %v3967
        %v3969 = vpop.f32.mrf.mxu0
        %v3970 = vadd.f32 0.0, %v3969
        %3971 = vmatprep.mubr.bf16.mxu0 0
        %3972 = vmatmul.mubr.bf16.gmra.mxu0 %v1364
        %v3973 = vpop.f32.mrf.mxu0
        %v3974 = vadd.f32 0.0, %v3973
        %v3975 = vpop.f32.mrf.mxu0
        %v3976 = vadd.f32 0.0, %v3975
        %v3977 = vpop.f32.mrf.mxu0
        %v3978 = vadd.f32 0.0, %v3977
        %v3979 = vpop.f32.mrf.mxu0
        %v3980 = vadd.f32 0.0, %v3979
        %3981 = vmatprep.mubr.bf16.mxu0 0
        %3982 = vmatmul.mubr.bf16.gmra.mxu0 %v1365
        %v3983 = vpop.f32.mrf.mxu0
        %v3984 = vadd.f32 0.0, %v3983
        %v3985 = vpop.f32.mrf.mxu0
        %v3986 = vadd.f32 0.0, %v3985
        %v3987 = vpop.f32.mrf.mxu0
        %v3988 = vadd.f32 0.0, %v3987
        %v3989 = vpop.f32.mrf.mxu0
        %v3990 = vadd.f32 0.0, %v3989
        %3991 = vmatprep.mubr.bf16.mxu0 0
        %3992 = vmatmul.mubr.bf16.gmra.mxu0 %v1366
        %v3993 = vpop.f32.mrf.mxu0
        %v3994 = vadd.f32 0.0, %v3993
        %v3995 = vpop.f32.mrf.mxu0
        %v3996 = vadd.f32 0.0, %v3995
        %v3997 = vpop.f32.mrf.mxu0
        %v3998 = vadd.f32 0.0, %v3997
        %v3999 = vpop.f32.mrf.mxu0
        %v4000 = vadd.f32 0.0, %v3999
        %4001 = vmatprep.mubr.bf16.mxu0 0
        %4002 = vmatmul.mubr.bf16.gmra.mxu0 %v1367
        %v4003 = vpop.f32.mrf.mxu0
        %v4004 = vadd.f32 0.0, %v4003
        %v4005 = vpop.f32.mrf.mxu0
        %v4006 = vadd.f32 0.0, %v4005
        %v4007 = vpop.f32.mrf.mxu0
        %v4008 = vadd.f32 0.0, %v4007
        %v4009 = vpop.f32.mrf.mxu0
        %v4010 = vadd.f32 0.0, %v4009
        %4011 = vmatprep.mubr.bf16.mxu0 0
        %4012 = vmatmul.mubr.bf16.gmra.mxu0 %v1368
        %v4013 = vpop.f32.mrf.mxu0
        %v4014 = vadd.f32 0.0, %v4013
        %v4015 = vpop.f32.mrf.mxu0
        %v4016 = vadd.f32 0.0, %v4015
        %v4017 = vpop.f32.mrf.mxu0
        %v4018 = vadd.f32 0.0, %v4017
        %v4019 = vpop.f32.mrf.mxu0
        %v4020 = vadd.f32 0.0, %v4019
        %4021 = vmatprep.mubr.bf16.mxu0 0
        %4022 = vmatmul.mubr.bf16.gmra.mxu0 %v1369
        %v4023 = vpop.f32.mrf.mxu0
        %v4024 = vadd.f32 0.0, %v4023
        %v4025 = vpop.f32.mrf.mxu0
        %v4026 = vadd.f32 0.0, %v4025
        %v4027 = vpop.f32.mrf.mxu0
        %v4028 = vadd.f32 0.0, %v4027
        %v4029 = vpop.f32.mrf.mxu0
        %v4030 = vadd.f32 0.0, %v4029
        %4031 = vmatprep.mubr.bf16.mxu0 0
        %4032 = vmatmul.mubr.bf16.gmra.mxu0 %v1370
        %v4033 = vpop.f32.mrf.mxu0
        %v4034 = vadd.f32 0.0, %v4033
        %v4035 = vpop.f32.mrf.mxu0
        %v4036 = vadd.f32 0.0, %v4035
        %v4037 = vpop.f32.mrf.mxu0
        %v4038 = vadd.f32 0.0, %v4037
        %v4039 = vpop.f32.mrf.mxu0
        %v4040 = vadd.f32 0.0, %v4039
        %4041 = vmatprep.mubr.bf16.mxu0 0
        %4042 = vmatmul.mubr.bf16.gmra.mxu0 %v1371
        %v4043 = vpop.f32.mrf.mxu0
        %v4044 = vadd.f32 0.0, %v4043
        %v4045 = vpop.f32.mrf.mxu0
        %v4046 = vadd.f32 0.0, %v4045
        %v4047 = vpop.f32.mrf.mxu0
        %v4048 = vadd.f32 0.0, %v4047
        %v4049 = vpop.f32.mrf.mxu0
        %v4050 = vadd.f32 0.0, %v4049
        %4051 = vmatprep.mubr.bf16.mxu0 0
        %4052 = vmatmul.mubr.bf16.gmra.mxu0 %v1372
        %v4053 = vpop.f32.mrf.mxu0
        %v4054 = vadd.f32 0.0, %v4053
        %v4055 = vpop.f32.mrf.mxu0
        %v4056 = vadd.f32 0.0, %v4055
        %v4057 = vpop.f32.mrf.mxu0
        %v4058 = vadd.f32 0.0, %v4057
        %v4059 = vpop.f32.mrf.mxu0
        %v4060 = vadd.f32 0.0, %v4059
        %4061 = vmatprep.mubr.bf16.mxu0 0
        %4062 = vmatmul.mubr.bf16.gmra.mxu0 %v1373
        %v4063 = vpop.f32.mrf.mxu0
        %v4064 = vadd.f32 0.0, %v4063
        %v4065 = vpop.f32.mrf.mxu0
        %v4066 = vadd.f32 0.0, %v4065
        %v4067 = vpop.f32.mrf.mxu0
        %v4068 = vadd.f32 0.0, %v4067
        %v4069 = vpop.f32.mrf.mxu0
        %v4070 = vadd.f32 0.0, %v4069
        %4071 = vmatprep.mubr.bf16.mxu0 0
        %4072 = vmatmul.mubr.bf16.gmra.mxu0 %v1374
        %v4073 = vpop.f32.mrf.mxu0
        %v4074 = vadd.f32 0.0, %v4073
        %v4075 = vpop.f32.mrf.mxu0
        %v4076 = vadd.f32 0.0, %v4075
        %v4077 = vpop.f32.mrf.mxu0
        %v4078 = vadd.f32 0.0, %v4077
        %v4079 = vpop.f32.mrf.mxu0
        %v4080 = vadd.f32 0.0, %v4079
        %4081 = vmatprep.mubr.bf16.mxu0 0
        %4082 = vmatmul.mubr.bf16.gmra.mxu0 %v1375
        %v4083 = vpop.f32.mrf.mxu0
        %v4084 = vadd.f32 0.0, %v4083
        %v4085 = vpop.f32.mrf.mxu0
        %v4086 = vadd.f32 0.0, %v4085
        %v4087 = vpop.f32.mrf.mxu0
        %v4088 = vadd.f32 0.0, %v4087
        %v4089 = vpop.f32.mrf.mxu0
        %v4090 = vadd.f32 0.0, %v4089
        %4091 = vmatprep.mubr.bf16.mxu0 0
        %4092 = vmatmul.mubr.bf16.gmra.mxu0 %v1376
        %v4093 = vpop.f32.mrf.mxu0
        %v4094 = vadd.f32 0.0, %v4093
        %v4095 = vpop.f32.mrf.mxu0
        %v4096 = vadd.f32 0.0, %v4095
        %v4097 = vpop.f32.mrf.mxu0
        %v4098 = vadd.f32 0.0, %v4097
        %v4099 = vpop.f32.mrf.mxu0
        %v4100 = vadd.f32 0.0, %v4099
        %4101 = vmatprep.mubr.bf16.mxu0 0
        %4102 = vmatmul.mubr.bf16.gmra.mxu0 %v1377
        %v4103 = vpop.f32.mrf.mxu0
        %v4104 = vadd.f32 0.0, %v4103
        %v4105 = vpop.f32.mrf.mxu0
        %v4106 = vadd.f32 0.0, %v4105
        %v4107 = vpop.f32.mrf.mxu0
        %v4108 = vadd.f32 0.0, %v4107
        %v4109 = vpop.f32.mrf.mxu0
        %v4110 = vadd.f32 0.0, %v4109
        %4111 = vmatprep.mubr.bf16.mxu0 0
        %4112 = vmatmul.mubr.bf16.gmra.mxu0 %v1378
        %v4113 = vpop.f32.mrf.mxu0
        %v4114 = vadd.f32 0.0, %v4113
        %v4115 = vpop.f32.mrf.mxu0
        %v4116 = vadd.f32 0.0, %v4115
        %v4117 = vpop.f32.mrf.mxu0
        %v4118 = vadd.f32 0.0, %v4117
        %v4119 = vpop.f32.mrf.mxu0
        %v4120 = vadd.f32 0.0, %v4119
        %4121 = vmatprep.mubr.bf16.mxu0 0
        %4122 = vmatmul.mubr.bf16.gmra.mxu0 %v1379
        %v4123 = vpop.f32.mrf.mxu0
        %v4124 = vadd.f32 0.0, %v4123
        %v4125 = vpop.f32.mrf.mxu0
        %v4126 = vadd.f32 0.0, %v4125
        %v4127 = vpop.f32.mrf.mxu0
        %v4128 = vadd.f32 0.0, %v4127
        %v4129 = vpop.f32.mrf.mxu0
        %v4130 = vadd.f32 0.0, %v4129
        %4131 = vmatprep.mubr.bf16.mxu0 0
        %4132 = vmatmul.mubr.bf16.gmra.mxu0 %v1380
        %v4133 = vpop.f32.mrf.mxu0
        %v4134 = vadd.f32 0.0, %v4133
        %v4135 = vpop.f32.mrf.mxu0
        %v4136 = vadd.f32 0.0, %v4135
        %v4137 = vpop.f32.mrf.mxu0
        %v4138 = vadd.f32 0.0, %v4137
        %v4139 = vpop.f32.mrf.mxu0
        %v4140 = vadd.f32 0.0, %v4139
        %4141 = vmatprep.mubr.bf16.mxu0 0
        %4142 = vmatmul.mubr.bf16.gmra.mxu0 %v1381
        %v4143 = vpop.f32.mrf.mxu0
        %v4144 = vadd.f32 0.0, %v4143
        %v4145 = vpop.f32.mrf.mxu0
        %v4146 = vadd.f32 0.0, %v4145
        %v4147 = vpop.f32.mrf.mxu0
        %v4148 = vadd.f32 0.0, %v4147
        %v4149 = vpop.f32.mrf.mxu0
        %v4150 = vadd.f32 0.0, %v4149
        %4151 = vmatprep.mubr.bf16.mxu0 0
        %4152 = vmatmul.mubr.bf16.gmra.mxu0 %v1382
        %v4153 = vpop.f32.mrf.mxu0
        %v4154 = vadd.f32 0.0, %v4153
        %v4155 = vpop.f32.mrf.mxu0
        %v4156 = vadd.f32 0.0, %v4155
        %v4157 = vpop.f32.mrf.mxu0
        %v4158 = vadd.f32 0.0, %v4157
        %v4159 = vpop.f32.mrf.mxu0
        %v4160 = vadd.f32 0.0, %v4159
        %4161 = vmatprep.mubr.bf16.mxu0 0
        %4162 = vmatmul.mubr.bf16.gmra.mxu0 %v1383
        %v4163 = vpop.f32.mrf.mxu0
        %v4164 = vadd.f32 0.0, %v4163
        %v4165 = vpop.f32.mrf.mxu0
        %v4166 = vadd.f32 0.0, %v4165
        %v4167 = vpop.f32.mrf.mxu0
        %v4168 = vadd.f32 0.0, %v4167
        %v4169 = vpop.f32.mrf.mxu0
        %v4170 = vadd.f32 0.0, %v4169
        %4171 = vmatprep.mubr.bf16.mxu0 0
        %4172 = vmatmul.mubr.bf16.gmra.mxu0 %v1384
        %v4173 = vpop.f32.mrf.mxu0
        %v4174 = vadd.f32 0.0, %v4173
        %v4175 = vpop.f32.mrf.mxu0
        %v4176 = vadd.f32 0.0, %v4175
        %v4177 = vpop.f32.mrf.mxu0
        %v4178 = vadd.f32 0.0, %v4177
        %v4179 = vpop.f32.mrf.mxu0
        %v4180 = vadd.f32 0.0, %v4179
        %4181 = vmatprep.mubr.bf16.mxu0 0
        %4182 = vmatmul.mubr.bf16.gmra.mxu0 %v1385
        %v4183 = vpop.f32.mrf.mxu0
        %v4184 = vadd.f32 0.0, %v4183
        %v4185 = vpop.f32.mrf.mxu0
        %v4186 = vadd.f32 0.0, %v4185
        %v4187 = vpop.f32.mrf.mxu0
        %v4188 = vadd.f32 0.0, %v4187
        %v4189 = vpop.f32.mrf.mxu0
        %v4190 = vadd.f32 0.0, %v4189
        %4191 = vmatprep.mubr.bf16.mxu0 0
        %4192 = vmatmul.mubr.bf16.gmra.mxu0 %v1386
        %v4193 = vpop.f32.mrf.mxu0
        %v4194 = vadd.f32 0.0, %v4193
        %v4195 = vpop.f32.mrf.mxu0
        %v4196 = vadd.f32 0.0, %v4195
        %v4197 = vpop.f32.mrf.mxu0
        %v4198 = vadd.f32 0.0, %v4197
        %v4199 = vpop.f32.mrf.mxu0
        %v4200 = vadd.f32 0.0, %v4199
        %4201 = vmatprep.mubr.bf16.mxu0 0
        %4202 = vmatmul.mubr.bf16.gmra.mxu0 %v1387
        %v4203 = vpop.f32.mrf.mxu0
        %v4204 = vadd.f32 0.0, %v4203
        %v4205 = vpop.f32.mrf.mxu0
        %v4206 = vadd.f32 0.0, %v4205
        %v4207 = vpop.f32.mrf.mxu0
        %v4208 = vadd.f32 0.0, %v4207
        %v4209 = vpop.f32.mrf.mxu0
        %v4210 = vadd.f32 0.0, %v4209
        %4211 = vmatprep.mubr.bf16.mxu0 0
        %4212 = vmatmul.mubr.bf16.gmra.mxu0 %v1388
        %v4213 = vpop.f32.mrf.mxu0
        %v4214 = vadd.f32 0.0, %v4213
        %v4215 = vpop.f32.mrf.mxu0
        %v4216 = vadd.f32 0.0, %v4215
        %v4217 = vpop.f32.mrf.mxu0
        %v4218 = vadd.f32 0.0, %v4217
        %v4219 = vpop.f32.mrf.mxu0
        %v4220 = vadd.f32 0.0, %v4219
        %4221 = vmatprep.mubr.bf16.mxu0 0
        %4222 = vmatmul.mubr.bf16.gmra.mxu0 %v1389
        %v4223 = vpop.f32.mrf.mxu0
        %v4224 = vadd.f32 0.0, %v4223
        %v4225 = vpop.f32.mrf.mxu0
        %v4226 = vadd.f32 0.0, %v4225
        %v4227 = vpop.f32.mrf.mxu0
        %v4228 = vadd.f32 0.0, %v4227
        %v4229 = vpop.f32.mrf.mxu0
        %v4230 = vadd.f32 0.0, %v4229
        %4231 = vmatprep.mubr.bf16.mxu0 0
        %4232 = vmatmul.mubr.bf16.gmra.mxu0 %v1390
        %v4233 = vpop.f32.mrf.mxu0
        %v4234 = vadd.f32 0.0, %v4233
        %v4235 = vpop.f32.mrf.mxu0
        %v4236 = vadd.f32 0.0, %v4235
        %v4237 = vpop.f32.mrf.mxu0
        %v4238 = vadd.f32 0.0, %v4237
        %v4239 = vpop.f32.mrf.mxu0
        %v4240 = vadd.f32 0.0, %v4239
        %4241 = vmatprep.mubr.bf16.mxu0 0
        %4242 = vmatmul.mubr.bf16.gmra.mxu0 %v1391
        %v4243 = vpop.f32.mrf.mxu0
        %v4244 = vadd.f32 0.0, %v4243
        %v4245 = vpop.f32.mrf.mxu0
        %v4246 = vadd.f32 0.0, %v4245
        %v4247 = vpop.f32.mrf.mxu0
        %v4248 = vadd.f32 0.0, %v4247
        %v4249 = vpop.f32.mrf.mxu0
        %v4250 = vadd.f32 0.0, %v4249
        %4251 = vmatprep.mubr.bf16.mxu0 0
        %4252 = vmatmul.mubr.bf16.gmra.mxu0 %v1392
        %v4253 = vpop.f32.mrf.mxu0
        %v4254 = vadd.f32 0.0, %v4253
        %v4255 = vpop.f32.mrf.mxu0
        %v4256 = vadd.f32 0.0, %v4255
        %v4257 = vpop.f32.mrf.mxu0
        %v4258 = vadd.f32 0.0, %v4257
        %v4259 = vpop.f32.mrf.mxu0
        %v4260 = vadd.f32 0.0, %v4259
        %4261 = vmatprep.mubr.bf16.mxu0 0
        %4262 = vmatmul.mubr.bf16.gmra.mxu0 %v1393
        %v4263 = vpop.f32.mrf.mxu0
        %v4264 = vadd.f32 0.0, %v4263
        %v4265 = vpop.f32.mrf.mxu0
        %v4266 = vadd.f32 0.0, %v4265
        %v4267 = vpop.f32.mrf.mxu0
        %v4268 = vadd.f32 0.0, %v4267
        %v4269 = vpop.f32.mrf.mxu0
        %v4270 = vadd.f32 0.0, %v4269
        %4271 = vmatprep.mubr.bf16.mxu0 0
        %4272 = vmatmul.mubr.bf16.gmra.mxu0 %v1394
        %v4273 = vpop.f32.mrf.mxu0
        %v4274 = vadd.f32 0.0, %v4273
        %v4275 = vpop.f32.mrf.mxu0
        %v4276 = vadd.f32 0.0, %v4275
        %v4277 = vpop.f32.mrf.mxu0
        %v4278 = vadd.f32 0.0, %v4277
        %v4279 = vpop.f32.mrf.mxu0
        %v4280 = vadd.f32 0.0, %v4279
        %4281 = vmatprep.mubr.bf16.mxu0 0
        %4282 = vmatmul.mubr.bf16.gmra.mxu0 %v1395
        %v4283 = vpop.f32.mrf.mxu0
        %v4284 = vadd.f32 0.0, %v4283
        %v4285 = vpop.f32.mrf.mxu0
        %v4286 = vadd.f32 0.0, %v4285
        %v4287 = vpop.f32.mrf.mxu0
        %v4288 = vadd.f32 0.0, %v4287
        %v4289 = vpop.f32.mrf.mxu0
        %v4290 = vadd.f32 0.0, %v4289
        %4291 = vmatprep.mubr.bf16.mxu0 0
        %4292 = vmatmul.mubr.bf16.gmra.mxu0 %v1396
        %v4293 = vpop.f32.mrf.mxu0
        %v4294 = vadd.f32 0.0, %v4293
        %v4295 = vpop.f32.mrf.mxu0
        %v4296 = vadd.f32 0.0, %v4295
        %v4297 = vpop.f32.mrf.mxu0
        %v4298 = vadd.f32 0.0, %v4297
        %v4299 = vpop.f32.mrf.mxu0
        %v4300 = vadd.f32 0.0, %v4299
        %4301 = vmatprep.mubr.bf16.mxu0 0
        %4302 = vmatmul.mubr.bf16.gmra.mxu0 %v1397
        %v4303 = vpop.f32.mrf.mxu0
        %v4304 = vadd.f32 0.0, %v4303
        %v4305 = vpop.f32.mrf.mxu0
        %v4306 = vadd.f32 0.0, %v4305
        %v4307 = vpop.f32.mrf.mxu0
        %v4308 = vadd.f32 0.0, %v4307
        %v4309 = vpop.f32.mrf.mxu0
        %v4310 = vadd.f32 0.0, %v4309
        %4311 = vmatprep.mubr.bf16.mxu0 0
        %4312 = vmatmul.mubr.bf16.gmra.mxu0 %v1398
        %v4313 = vpop.f32.mrf.mxu0
        %v4314 = vadd.f32 0.0, %v4313
        %v4315 = vpop.f32.mrf.mxu0
        %v4316 = vadd.f32 0.0, %v4315
        %v4317 = vpop.f32.mrf.mxu0
        %v4318 = vadd.f32 0.0, %v4317
        %v4319 = vpop.f32.mrf.mxu0
        %v4320 = vadd.f32 0.0, %v4319
        %4321 = vmatprep.mubr.bf16.mxu0 0
        %4322 = vmatmul.mubr.bf16.gmra.mxu0 %v1399
        %v4323 = vpop.f32.mrf.mxu0
        %v4324 = vadd.f32 0.0, %v4323
        %v4325 = vpop.f32.mrf.mxu0
        %v4326 = vadd.f32 0.0, %v4325
        %v4327 = vpop.f32.mrf.mxu0
        %v4328 = vadd.f32 0.0, %v4327
        %v4329 = vpop.f32.mrf.mxu0
        %v4330 = vadd.f32 0.0, %v4329
        %4331 = vmatprep.mubr.bf16.mxu0 0
        %4332 = vmatmul.mubr.bf16.gmra.mxu0 %v1400
        %v4333 = vpop.f32.mrf.mxu0
        %v4334 = vadd.f32 0.0, %v4333
        %v4335 = vpop.f32.mrf.mxu0
        %v4336 = vadd.f32 0.0, %v4335
        %v4337 = vpop.f32.mrf.mxu0
        %v4338 = vadd.f32 0.0, %v4337
        %v4339 = vpop.f32.mrf.mxu0
        %v4340 = vadd.f32 0.0, %v4339
        %4341 = vmatprep.mubr.bf16.mxu0 0
        %4342 = vmatmul.mubr.bf16.gmra.mxu0 %v1401
        %v4343 = vpop.f32.mrf.mxu0
        %v4344 = vadd.f32 0.0, %v4343
        %v4345 = vpop.f32.mrf.mxu0
        %v4346 = vadd.f32 0.0, %v4345
        %v4347 = vpop.f32.mrf.mxu0
        %v4348 = vadd.f32 0.0, %v4347
        %v4349 = vpop.f32.mrf.mxu0
        %v4350 = vadd.f32 0.0, %v4349
        %4351 = vmatprep.mubr.bf16.mxu0 0
        %4352 = vmatmul.mubr.bf16.gmra.mxu0 %v1402
        %v4353 = vpop.f32.mrf.mxu0
        %v4354 = vadd.f32 0.0, %v4353
        %v4355 = vpop.f32.mrf.mxu0
        %v4356 = vadd.f32 0.0, %v4355
        %v4357 = vpop.f32.mrf.mxu0
        %v4358 = vadd.f32 0.0, %v4357
        %v4359 = vpop.f32.mrf.mxu0
        %v4360 = vadd.f32 0.0, %v4359
        %4361 = vmatprep.mubr.bf16.mxu0 0
        %4362 = vmatmul.mubr.bf16.gmra.mxu0 %v1403
        %v4363 = vpop.f32.mrf.mxu0
        %v4364 = vadd.f32 0.0, %v4363
        %v4365 = vpop.f32.mrf.mxu0
        %v4366 = vadd.f32 0.0, %v4365
        %v4367 = vpop.f32.mrf.mxu0
        %v4368 = vadd.f32 0.0, %v4367
        %v4369 = vpop.f32.mrf.mxu0
        %v4370 = vadd.f32 0.0, %v4369
        %4371 = vmatprep.mubr.bf16.mxu0 0
        %4372 = vmatmul.mubr.bf16.gmra.mxu0 %v1404
        %v4373 = vpop.f32.mrf.mxu0
        %v4374 = vadd.f32 0.0, %v4373
        %v4375 = vpop.f32.mrf.mxu0
        %v4376 = vadd.f32 0.0, %v4375
        %v4377 = vpop.f32.mrf.mxu0
        %v4378 = vadd.f32 0.0, %v4377
        %v4379 = vpop.f32.mrf.mxu0
        %v4380 = vadd.f32 0.0, %v4379
        %4381 = vmatprep.mubr.bf16.mxu0 0
        %4382 = vmatmul.mubr.bf16.gmra.mxu0 %v1405
        %v4383 = vpop.f32.mrf.mxu0
        %v4384 = vadd.f32 0.0, %v4383
        %v4385 = vpop.f32.mrf.mxu0
        %v4386 = vadd.f32 0.0, %v4385
        %v4387 = vpop.f32.mrf.mxu0
        %v4388 = vadd.f32 0.0, %v4387
        %v4389 = vpop.f32.mrf.mxu0
        %v4390 = vadd.f32 0.0, %v4389
        %4391 = vmatprep.mubr.bf16.mxu0 0
        %4392 = vmatmul.mubr.bf16.gmra.mxu0 %v1406
        %v4393 = vpop.f32.mrf.mxu0
        %v4394 = vadd.f32 0.0, %v4393
        %v4395 = vpop.f32.mrf.mxu0
        %v4396 = vadd.f32 0.0, %v4395
        %v4397 = vpop.f32.mrf.mxu0
        %v4398 = vadd.f32 0.0, %v4397
        %v4399 = vpop.f32.mrf.mxu0
        %v4400 = vadd.f32 0.0, %v4399
        %4401 = vmatprep.mubr.bf16.mxu0 0
        %4402 = vmatmul.mubr.bf16.gmra.mxu0 %v1407
        %v4403 = vpop.f32.mrf.mxu0
        %v4404 = vadd.f32 0.0, %v4403
        %v4405 = vpop.f32.mrf.mxu0
        %v4406 = vadd.f32 0.0, %v4405
        %v4407 = vpop.f32.mrf.mxu0
        %v4408 = vadd.f32 0.0, %v4407
        %v4409 = vpop.f32.mrf.mxu0
        %v4410 = vadd.f32 0.0, %v4409
        %4411 = vmatprep.mubr.bf16.mxu0 0
        %4412 = vmatmul.mubr.bf16.gmra.mxu0 %v1408
        %v4413 = vpop.f32.mrf.mxu0
        %v4414 = vadd.f32 0.0, %v4413
        %v4415 = vpop.f32.mrf.mxu0
        %v4416 = vadd.f32 0.0, %v4415
        %v4417 = vpop.f32.mrf.mxu0
        %v4418 = vadd.f32 0.0, %v4417
        %v4419 = vpop.f32.mrf.mxu0
        %v4420 = vadd.f32 0.0, %v4419
        %4421 = vmatprep.mubr.bf16.mxu0 0
        %4422 = vmatmul.mubr.bf16.gmra.mxu0 %v1409
        %v4423 = vpop.f32.mrf.mxu0
        %v4424 = vadd.f32 0.0, %v4423
        %v4425 = vpop.f32.mrf.mxu0
        %v4426 = vadd.f32 0.0, %v4425
        %v4427 = vpop.f32.mrf.mxu0
        %v4428 = vadd.f32 0.0, %v4427
        %v4429 = vpop.f32.mrf.mxu0
        %v4430 = vadd.f32 0.0, %v4429
        %4431 = vmatprep.mubr.bf16.mxu0 0
        %4432 = vmatmul.mubr.bf16.gmra.mxu0 %v1410
        %v4433 = vpop.f32.mrf.mxu0
        %v4434 = vadd.f32 0.0, %v4433
        %v4435 = vpop.f32.mrf.mxu0
        %v4436 = vadd.f32 0.0, %v4435
        %v4437 = vpop.f32.mrf.mxu0
        %v4438 = vadd.f32 0.0, %v4437
        %v4439 = vpop.f32.mrf.mxu0
        %v4440 = vadd.f32 0.0, %v4439
        %4441 = vmatprep.mubr.bf16.mxu0 0
        %4442 = vmatmul.mubr.bf16.gmra.mxu0 %v1411
        %v4443 = vpop.f32.mrf.mxu0
        %v4444 = vadd.f32 0.0, %v4443
        %v4445 = vpop.f32.mrf.mxu0
        %v4446 = vadd.f32 0.0, %v4445
        %v4447 = vpop.f32.mrf.mxu0
        %v4448 = vadd.f32 0.0, %v4447
        %v4449 = vpop.f32.mrf.mxu0
        %v4450 = vadd.f32 0.0, %v4449
        %4451 = vmatprep.mubr.bf16.mxu0 0
        %4452 = vmatmul.mubr.bf16.gmra.mxu0 %v1412
        %v4453 = vpop.f32.mrf.mxu0
        %v4454 = vadd.f32 0.0, %v4453
        %v4455 = vpop.f32.mrf.mxu0
        %v4456 = vadd.f32 0.0, %v4455
        %v4457 = vpop.f32.mrf.mxu0
        %v4458 = vadd.f32 0.0, %v4457
        %v4459 = vpop.f32.mrf.mxu0
        %v4460 = vadd.f32 0.0, %v4459
        %4461 = vmatprep.mubr.bf16.mxu0 0
        %4462 = vmatmul.mubr.bf16.gmra.mxu0 %v1413
        %v4463 = vpop.f32.mrf.mxu0
        %v4464 = vadd.f32 0.0, %v4463
        %v4465 = vpop.f32.mrf.mxu0
        %v4466 = vadd.f32 0.0, %v4465
        %v4467 = vpop.f32.mrf.mxu0
        %v4468 = vadd.f32 0.0, %v4467
        %v4469 = vpop.f32.mrf.mxu0
        %v4470 = vadd.f32 0.0, %v4469
        %4471 = vmatprep.mubr.bf16.mxu0 0
        %4472 = vmatmul.mubr.bf16.gmra.mxu0 %v1414
        %v4473 = vpop.f32.mrf.mxu0
        %v4474 = vadd.f32 0.0, %v4473
        %v4475 = vpop.f32.mrf.mxu0
        %v4476 = vadd.f32 0.0, %v4475
        %v4477 = vpop.f32.mrf.mxu0
        %v4478 = vadd.f32 0.0, %v4477
        %v4479 = vpop.f32.mrf.mxu0
        %v4480 = vadd.f32 0.0, %v4479
        %4481 = vmatprep.mubr.bf16.mxu0 0
        %4482 = vmatmul.mubr.bf16.gmra.mxu0 %v1415
        %v4483 = vpop.f32.mrf.mxu0
        %v4484 = vadd.f32 0.0, %v4483
        %v4485 = vpop.f32.mrf.mxu0
        %v4486 = vadd.f32 0.0, %v4485
        %v4487 = vpop.f32.mrf.mxu0
        %v4488 = vadd.f32 0.0, %v4487
        %v4489 = vpop.f32.mrf.mxu0
        %v4490 = vadd.f32 0.0, %v4489
        %4491 = vdwg.mxu0
        %v4492 = vld [vmem:[%s876] sm:$0xff]
        %v4493 = vld [vmem:[%s876 + $0x8] sm:$0xff]
        %v4494 = vld [vmem:[%s876 + $0x10] sm:$0xff]
        %v4495 = vld [vmem:[%s876 + $0x18] sm:$0xff]
        %v4496 = vld [vmem:[%s876 + $0x20] sm:$0xff]
        %v4497 = vld [vmem:[%s876 + $0x28] sm:$0xff]
        %v4498 = vld [vmem:[%s876 + $0x30] sm:$0xff]
        %v4499 = vld [vmem:[%s876 + $0x38] sm:$0xff]
        %v4500 = vld [vmem:[%s876 + $0x40] sm:$0xff]
        %v4501 = vld [vmem:[%s876 + $0x48] sm:$0xff]
        %v4502 = vld [vmem:[%s876 + $0x50] sm:$0xff]
        %v4503 = vld [vmem:[%s876 + $0x58] sm:$0xff]
        %v4504 = vld [vmem:[%s876 + $0x60] sm:$0xff]
        %v4505 = vld [vmem:[%s876 + $0x68] sm:$0xff]
        %v4506 = vld [vmem:[%s876 + $0x70] sm:$0xff]
        %v4507 = vld [vmem:[%s876 + $0x78] sm:$0xff]
        %v4508 = vadd.f32 %v1835, %v4492
        %v4509 = vadd.f32 %v1837, %v4493
        %v4510 = vadd.f32 %v2508, %v4494
        %v4511 = vadd.f32 %v2510, %v4495
        %v4512 = vadd.f32 %v3181, %v4496
        %v4513 = vadd.f32 %v3183, %v4497
        %v4514 = vadd.f32 %v3854, %v4498
        %v4515 = vadd.f32 %v3856, %v4499
        %v4516 = vadd.f32 %v1839, %v4500
        %v4517 = vadd.f32 %v1841, %v4501
        %v4518 = vadd.f32 %v2512, %v4502
        %v4519 = vadd.f32 %v2514, %v4503
        %v4520 = vadd.f32 %v3185, %v4504
        %v4521 = vadd.f32 %v3187, %v4505
        %v4522 = vadd.f32 %v3858, %v4506
        %v4523 = vadd.f32 %v3860, %v4507
        %v4524 = vadd.f32 %v1845, %v4492
        %v4525 = vadd.f32 %v1847, %v4493
        %v4526 = vadd.f32 %v2518, %v4494
        %v4527 = vadd.f32 %v2520, %v4495
        %v4528 = vadd.f32 %v3191, %v4496
        %v4529 = vadd.f32 %v3193, %v4497
        %v4530 = vadd.f32 %v3864, %v4498
        %v4531 = vadd.f32 %v3866, %v4499
        %v4532 = vadd.f32 %v1849, %v4500
        %v4533 = vadd.f32 %v1851, %v4501
        %v4534 = vadd.f32 %v2522, %v4502
        %v4535 = vadd.f32 %v2524, %v4503
        %v4536 = vadd.f32 %v3195, %v4504
        %v4537 = vadd.f32 %v3197, %v4505
        %v4538 = vadd.f32 %v3868, %v4506
        %v4539 = vadd.f32 %v3870, %v4507
        %v4540 = vadd.f32 %v1855, %v4492
        %v4541 = vadd.f32 %v1857, %v4493
        %v4542 = vadd.f32 %v2528, %v4494
        %v4543 = vadd.f32 %v2530, %v4495
        %v4544 = vadd.f32 %v3201, %v4496
        %v4545 = vadd.f32 %v3203, %v4497
        %v4546 = vadd.f32 %v3874, %v4498
        %v4547 = vadd.f32 %v3876, %v4499
        %v4548 = vadd.f32 %v1859, %v4500
        %v4549 = vadd.f32 %v1861, %v4501
        %v4550 = vadd.f32 %v2532, %v4502
        %v4551 = vadd.f32 %v2534, %v4503
        %v4552 = vadd.f32 %v3205, %v4504
        %v4553 = vadd.f32 %v3207, %v4505
        %v4554 = vadd.f32 %v3878, %v4506
        %v4555 = vadd.f32 %v3880, %v4507
        %v4556 = vadd.f32 %v1865, %v4492
        %v4557 = vadd.f32 %v1867, %v4493
        %v4558 = vadd.f32 %v2538, %v4494
        %v4559 = vadd.f32 %v2540, %v4495
        %v4560 = vadd.f32 %v3211, %v4496
        %v4561 = vadd.f32 %v3213, %v4497
        %v4562 = vadd.f32 %v3884, %v4498
        %v4563 = vadd.f32 %v3886, %v4499
        %v4564 = vadd.f32 %v1869, %v4500
        %v4565 = vadd.f32 %v1871, %v4501
        %v4566 = vadd.f32 %v2542, %v4502
        %v4567 = vadd.f32 %v2544, %v4503
        %v4568 = vadd.f32 %v3215, %v4504
        %v4569 = vadd.f32 %v3217, %v4505
        %v4570 = vadd.f32 %v3888, %v4506
        %v4571 = vadd.f32 %v3890, %v4507
        %v4572 = vadd.f32 %v1875, %v4492
        %v4573 = vadd.f32 %v1877, %v4493
        %v4574 = vadd.f32 %v2548, %v4494
        %v4575 = vadd.f32 %v2550, %v4495
        %v4576 = vadd.f32 %v3221, %v4496
        %v4577 = vadd.f32 %v3223, %v4497
        %v4578 = vadd.f32 %v3894, %v4498
        %v4579 = vadd.f32 %v3896, %v4499
        %v4580 = vadd.f32 %v1879, %v4500
        %v4581 = vadd.f32 %v1881, %v4501
        %v4582 = vadd.f32 %v2552, %v4502
        %v4583 = vadd.f32 %v2554, %v4503
        %v4584 = vadd.f32 %v3225, %v4504
        %v4585 = vadd.f32 %v3227, %v4505
        %v4586 = vadd.f32 %v3898, %v4506
        %v4587 = vadd.f32 %v3900, %v4507
        %v4588 = vadd.f32 %v1885, %v4492
        %v4589 = vadd.f32 %v1887, %v4493
        %v4590 = vadd.f32 %v2558, %v4494
        %v4591 = vadd.f32 %v2560, %v4495
        %v4592 = vadd.f32 %v3231, %v4496
        %v4593 = vadd.f32 %v3233, %v4497
        %v4594 = vadd.f32 %v3904, %v4498
        %v4595 = vadd.f32 %v3906, %v4499
        %v4596 = vadd.f32 %v1889, %v4500
        %v4597 = vadd.f32 %v1891, %v4501
        %v4598 = vadd.f32 %v2562, %v4502
        %v4599 = vadd.f32 %v2564, %v4503
        %v4600 = vadd.f32 %v3235, %v4504
        %v4601 = vadd.f32 %v3237, %v4505
        %v4602 = vadd.f32 %v3908, %v4506
        %v4603 = vadd.f32 %v3910, %v4507
        %v4604 = vadd.f32 %v1895, %v4492
        %v4605 = vadd.f32 %v1897, %v4493
        %v4606 = vadd.f32 %v2568, %v4494
        %v4607 = vadd.f32 %v2570, %v4495
        %v4608 = vadd.f32 %v3241, %v4496
        %v4609 = vadd.f32 %v3243, %v4497
        %v4610 = vadd.f32 %v3914, %v4498
        %v4611 = vadd.f32 %v3916, %v4499
        %v4612 = vadd.f32 %v1899, %v4500
        %v4613 = vadd.f32 %v1901, %v4501
        %v4614 = vadd.f32 %v2572, %v4502
        %v4615 = vadd.f32 %v2574, %v4503
        %v4616 = vadd.f32 %v3245, %v4504
        %v4617 = vadd.f32 %v3247, %v4505
        %v4618 = vadd.f32 %v3918, %v4506
        %v4619 = vadd.f32 %v3920, %v4507
        %v4620 = vadd.f32 %v1905, %v4492
        %v4621 = vadd.f32 %v1907, %v4493
        %v4622 = vadd.f32 %v2578, %v4494
        %v4623 = vadd.f32 %v2580, %v4495
        %v4624 = vadd.f32 %v3251, %v4496
        %v4625 = vadd.f32 %v3253, %v4497
        %v4626 = vadd.f32 %v3924, %v4498
        %v4627 = vadd.f32 %v3926, %v4499
        %v4628 = vadd.f32 %v1909, %v4500
        %v4629 = vadd.f32 %v1911, %v4501
        %v4630 = vadd.f32 %v2582, %v4502
        %v4631 = vadd.f32 %v2584, %v4503
        %v4632 = vadd.f32 %v3255, %v4504
        %v4633 = vadd.f32 %v3257, %v4505
        %v4634 = vadd.f32 %v3928, %v4506
        %v4635 = vadd.f32 %v3930, %v4507
        %v4636 = vadd.f32 %v1915, %v4492
        %v4637 = vadd.f32 %v1917, %v4493
        %v4638 = vadd.f32 %v2588, %v4494
        %v4639 = vadd.f32 %v2590, %v4495
        %v4640 = vadd.f32 %v3261, %v4496
        %v4641 = vadd.f32 %v3263, %v4497
        %v4642 = vadd.f32 %v3934, %v4498
        %v4643 = vadd.f32 %v3936, %v4499
        %v4644 = vadd.f32 %v1919, %v4500
        %v4645 = vadd.f32 %v1921, %v4501
        %v4646 = vadd.f32 %v2592, %v4502
        %v4647 = vadd.f32 %v2594, %v4503
        %v4648 = vadd.f32 %v3265, %v4504
        %v4649 = vadd.f32 %v3267, %v4505
        %v4650 = vadd.f32 %v3938, %v4506
        %v4651 = vadd.f32 %v3940, %v4507
        %v4652 = vadd.f32 %v1925, %v4492
        %v4653 = vadd.f32 %v1927, %v4493
        %v4654 = vadd.f32 %v2598, %v4494
        %v4655 = vadd.f32 %v2600, %v4495
        %v4656 = vadd.f32 %v3271, %v4496
        %v4657 = vadd.f32 %v3273, %v4497
        %v4658 = vadd.f32 %v3944, %v4498
        %v4659 = vadd.f32 %v3946, %v4499
        %v4660 = vadd.f32 %v1929, %v4500
        %v4661 = vadd.f32 %v1931, %v4501
        %v4662 = vadd.f32 %v2602, %v4502
        %v4663 = vadd.f32 %v2604, %v4503
        %v4664 = vadd.f32 %v3275, %v4504
        %v4665 = vadd.f32 %v3277, %v4505
        %v4666 = vadd.f32 %v3948, %v4506
        %v4667 = vadd.f32 %v3950, %v4507
        %v4668 = vadd.f32 %v1935, %v4492
        %v4669 = vadd.f32 %v1937, %v4493
        %v4670 = vadd.f32 %v2608, %v4494
        %v4671 = vadd.f32 %v2610, %v4495
        %v4672 = vadd.f32 %v3281, %v4496
        %v4673 = vadd.f32 %v3283, %v4497
        %v4674 = vadd.f32 %v3954, %v4498
        %v4675 = vadd.f32 %v3956, %v4499
        %v4676 = vadd.f32 %v1939, %v4500
        %v4677 = vadd.f32 %v1941, %v4501
        %v4678 = vadd.f32 %v2612, %v4502
        %v4679 = vadd.f32 %v2614, %v4503
        %v4680 = vadd.f32 %v3285, %v4504
        %v4681 = vadd.f32 %v3287, %v4505
        %v4682 = vadd.f32 %v3958, %v4506
        %v4683 = vadd.f32 %v3960, %v4507
        %v4684 = vadd.f32 %v1945, %v4492
        %v4685 = vadd.f32 %v1947, %v4493
        %v4686 = vadd.f32 %v2618, %v4494
        %v4687 = vadd.f32 %v2620, %v4495
        %v4688 = vadd.f32 %v3291, %v4496
        %v4689 = vadd.f32 %v3293, %v4497
        %v4690 = vadd.f32 %v3964, %v4498
        %v4691 = vadd.f32 %v3966, %v4499
        %v4692 = vadd.f32 %v1949, %v4500
        %v4693 = vadd.f32 %v1951, %v4501
        %v4694 = vadd.f32 %v2622, %v4502
        %v4695 = vadd.f32 %v2624, %v4503
        %v4696 = vadd.f32 %v3295, %v4504
        %v4697 = vadd.f32 %v3297, %v4505
        %v4698 = vadd.f32 %v3968, %v4506
        %v4699 = vadd.f32 %v3970, %v4507
        %v4700 = vadd.f32 %v1955, %v4492
        %v4701 = vadd.f32 %v1957, %v4493
        %v4702 = vadd.f32 %v2628, %v4494
        %v4703 = vadd.f32 %v2630, %v4495
        %v4704 = vadd.f32 %v3301, %v4496
        %v4705 = vadd.f32 %v3303, %v4497
        %v4706 = vadd.f32 %v3974, %v4498
        %v4707 = vadd.f32 %v3976, %v4499
        %v4708 = vadd.f32 %v1959, %v4500
        %v4709 = vadd.f32 %v1961, %v4501
        %v4710 = vadd.f32 %v2632, %v4502
        %v4711 = vadd.f32 %v2634, %v4503
        %v4712 = vadd.f32 %v3305, %v4504
        %v4713 = vadd.f32 %v3307, %v4505
        %v4714 = vadd.f32 %v3978, %v4506
        %v4715 = vadd.f32 %v3980, %v4507
        %v4716 = vadd.f32 %v1965, %v4492
        %v4717 = vadd.f32 %v1967, %v4493
        %v4718 = vadd.f32 %v2638, %v4494
        %v4719 = vadd.f32 %v2640, %v4495
        %v4720 = vadd.f32 %v3311, %v4496
        %v4721 = vadd.f32 %v3313, %v4497
        %v4722 = vadd.f32 %v3984, %v4498
        %v4723 = vadd.f32 %v3986, %v4499
        %v4724 = vadd.f32 %v1969, %v4500
        %v4725 = vadd.f32 %v1971, %v4501
        %v4726 = vadd.f32 %v2642, %v4502
        %v4727 = vadd.f32 %v2644, %v4503
        %v4728 = vadd.f32 %v3315, %v4504
        %v4729 = vadd.f32 %v3317, %v4505
        %v4730 = vadd.f32 %v3988, %v4506
        %v4731 = vadd.f32 %v3990, %v4507
        %v4732 = vadd.f32 %v1975, %v4492
        %v4733 = vadd.f32 %v1977, %v4493
        %v4734 = vadd.f32 %v2648, %v4494
        %v4735 = vadd.f32 %v2650, %v4495
        %v4736 = vadd.f32 %v3321, %v4496
        %v4737 = vadd.f32 %v3323, %v4497
        %v4738 = vadd.f32 %v3994, %v4498
        %v4739 = vadd.f32 %v3996, %v4499
        %v4740 = vadd.f32 %v1979, %v4500
        %v4741 = vadd.f32 %v1981, %v4501
        %v4742 = vadd.f32 %v2652, %v4502
        %v4743 = vadd.f32 %v2654, %v4503
        %v4744 = vadd.f32 %v3325, %v4504
        %v4745 = vadd.f32 %v3327, %v4505
        %v4746 = vadd.f32 %v3998, %v4506
        %v4747 = vadd.f32 %v4000, %v4507
        %v4748 = vadd.f32 %v1985, %v4492
        %v4749 = vadd.f32 %v1987, %v4493
        %v4750 = vadd.f32 %v2658, %v4494
        %v4751 = vadd.f32 %v2660, %v4495
        %v4752 = vadd.f32 %v3331, %v4496
        %v4753 = vadd.f32 %v3333, %v4497
        %v4754 = vadd.f32 %v4004, %v4498
        %v4755 = vadd.f32 %v4006, %v4499
        %v4756 = vadd.f32 %v1989, %v4500
        %v4757 = vadd.f32 %v1991, %v4501
        %v4758 = vadd.f32 %v2662, %v4502
        %v4759 = vadd.f32 %v2664, %v4503
        %v4760 = vadd.f32 %v3335, %v4504
        %v4761 = vadd.f32 %v3337, %v4505
        %v4762 = vadd.f32 %v4008, %v4506
        %v4763 = vadd.f32 %v4010, %v4507
        %v4764 = vadd.f32 %v1995, %v4492
        %v4765 = vadd.f32 %v1997, %v4493
        %v4766 = vadd.f32 %v2668, %v4494
        %v4767 = vadd.f32 %v2670, %v4495
        %v4768 = vadd.f32 %v3341, %v4496
        %v4769 = vadd.f32 %v3343, %v4497
        %v4770 = vadd.f32 %v4014, %v4498
        %v4771 = vadd.f32 %v4016, %v4499
        %v4772 = vadd.f32 %v1999, %v4500
        %v4773 = vadd.f32 %v2001, %v4501
        %v4774 = vadd.f32 %v2672, %v4502
        %v4775 = vadd.f32 %v2674, %v4503
        %v4776 = vadd.f32 %v3345, %v4504
        %v4777 = vadd.f32 %v3347, %v4505
        %v4778 = vadd.f32 %v4018, %v4506
        %v4779 = vadd.f32 %v4020, %v4507
        %v4780 = vadd.f32 %v2005, %v4492
        %v4781 = vadd.f32 %v2007, %v4493
        %v4782 = vadd.f32 %v2678, %v4494
        %v4783 = vadd.f32 %v2680, %v4495
        %v4784 = vadd.f32 %v3351, %v4496
        %v4785 = vadd.f32 %v3353, %v4497
        %v4786 = vadd.f32 %v4024, %v4498
        %v4787 = vadd.f32 %v4026, %v4499
        %v4788 = vadd.f32 %v2009, %v4500
        %v4789 = vadd.f32 %v2011, %v4501
        %v4790 = vadd.f32 %v2682, %v4502
        %v4791 = vadd.f32 %v2684, %v4503
        %v4792 = vadd.f32 %v3355, %v4504
        %v4793 = vadd.f32 %v3357, %v4505
        %v4794 = vadd.f32 %v4028, %v4506
        %v4795 = vadd.f32 %v4030, %v4507
        %v4796 = vadd.f32 %v2015, %v4492
        %v4797 = vadd.f32 %v2017, %v4493
        %v4798 = vadd.f32 %v2688, %v4494
        %v4799 = vadd.f32 %v2690, %v4495
        %v4800 = vadd.f32 %v3361, %v4496
        %v4801 = vadd.f32 %v3363, %v4497
        %v4802 = vadd.f32 %v4034, %v4498
        %v4803 = vadd.f32 %v4036, %v4499
        %v4804 = vadd.f32 %v2019, %v4500
        %v4805 = vadd.f32 %v2021, %v4501
        %v4806 = vadd.f32 %v2692, %v4502
        %v4807 = vadd.f32 %v2694, %v4503
        %v4808 = vadd.f32 %v3365, %v4504
        %v4809 = vadd.f32 %v3367, %v4505
        %v4810 = vadd.f32 %v4038, %v4506
        %v4811 = vadd.f32 %v4040, %v4507
        %v4812 = vadd.f32 %v2025, %v4492
        %v4813 = vadd.f32 %v2027, %v4493
        %v4814 = vadd.f32 %v2698, %v4494
        %v4815 = vadd.f32 %v2700, %v4495
        %v4816 = vadd.f32 %v3371, %v4496
        %v4817 = vadd.f32 %v3373, %v4497
        %v4818 = vadd.f32 %v4044, %v4498
        %v4819 = vadd.f32 %v4046, %v4499
        %v4820 = vadd.f32 %v2029, %v4500
        %v4821 = vadd.f32 %v2031, %v4501
        %v4822 = vadd.f32 %v2702, %v4502
        %v4823 = vadd.f32 %v2704, %v4503
        %v4824 = vadd.f32 %v3375, %v4504
        %v4825 = vadd.f32 %v3377, %v4505
        %v4826 = vadd.f32 %v4048, %v4506
        %v4827 = vadd.f32 %v4050, %v4507
        %v4828 = vadd.f32 %v2035, %v4492
        %v4829 = vadd.f32 %v2037, %v4493
        %v4830 = vadd.f32 %v2708, %v4494
        %v4831 = vadd.f32 %v2710, %v4495
        %v4832 = vadd.f32 %v3381, %v4496
        %v4833 = vadd.f32 %v3383, %v4497
        %v4834 = vadd.f32 %v4054, %v4498
        %v4835 = vadd.f32 %v4056, %v4499
        %v4836 = vadd.f32 %v2039, %v4500
        %v4837 = vadd.f32 %v2041, %v4501
        %v4838 = vadd.f32 %v2712, %v4502
        %v4839 = vadd.f32 %v2714, %v4503
        %v4840 = vadd.f32 %v3385, %v4504
        %v4841 = vadd.f32 %v3387, %v4505
        %v4842 = vadd.f32 %v4058, %v4506
        %v4843 = vadd.f32 %v4060, %v4507
        %v4844 = vadd.f32 %v2045, %v4492
        %v4845 = vadd.f32 %v2047, %v4493
        %v4846 = vadd.f32 %v2718, %v4494
        %v4847 = vadd.f32 %v2720, %v4495
        %v4848 = vadd.f32 %v3391, %v4496
        %v4849 = vadd.f32 %v3393, %v4497
        %v4850 = vadd.f32 %v4064, %v4498
        %v4851 = vadd.f32 %v4066, %v4499
        %v4852 = vadd.f32 %v2049, %v4500
        %v4853 = vadd.f32 %v2051, %v4501
        %v4854 = vadd.f32 %v2722, %v4502
        %v4855 = vadd.f32 %v2724, %v4503
        %v4856 = vadd.f32 %v3395, %v4504
        %v4857 = vadd.f32 %v3397, %v4505
        %v4858 = vadd.f32 %v4068, %v4506
        %v4859 = vadd.f32 %v4070, %v4507
        %v4860 = vadd.f32 %v2055, %v4492
        %v4861 = vadd.f32 %v2057, %v4493
        %v4862 = vadd.f32 %v2728, %v4494
        %v4863 = vadd.f32 %v2730, %v4495
        %v4864 = vadd.f32 %v3401, %v4496
        %v4865 = vadd.f32 %v3403, %v4497
        %v4866 = vadd.f32 %v4074, %v4498
        %v4867 = vadd.f32 %v4076, %v4499
        %v4868 = vadd.f32 %v2059, %v4500
        %v4869 = vadd.f32 %v2061, %v4501
        %v4870 = vadd.f32 %v2732, %v4502
        %v4871 = vadd.f32 %v2734, %v4503
        %v4872 = vadd.f32 %v3405, %v4504
        %v4873 = vadd.f32 %v3407, %v4505
        %v4874 = vadd.f32 %v4078, %v4506
        %v4875 = vadd.f32 %v4080, %v4507
        %v4876 = vadd.f32 %v2065, %v4492
        %v4877 = vadd.f32 %v2067, %v4493
        %v4878 = vadd.f32 %v2738, %v4494
        %v4879 = vadd.f32 %v2740, %v4495
        %v4880 = vadd.f32 %v3411, %v4496
        %v4881 = vadd.f32 %v3413, %v4497
        %v4882 = vadd.f32 %v4084, %v4498
        %v4883 = vadd.f32 %v4086, %v4499
        %v4884 = vadd.f32 %v2069, %v4500
        %v4885 = vadd.f32 %v2071, %v4501
        %v4886 = vadd.f32 %v2742, %v4502
        %v4887 = vadd.f32 %v2744, %v4503
        %v4888 = vadd.f32 %v3415, %v4504
        %v4889 = vadd.f32 %v3417, %v4505
        %v4890 = vadd.f32 %v4088, %v4506
        %v4891 = vadd.f32 %v4090, %v4507
        %v4892 = vadd.f32 %v2075, %v4492
        %v4893 = vadd.f32 %v2077, %v4493
        %v4894 = vadd.f32 %v2748, %v4494
        %v4895 = vadd.f32 %v2750, %v4495
        %v4896 = vadd.f32 %v3421, %v4496
        %v4897 = vadd.f32 %v3423, %v4497
        %v4898 = vadd.f32 %v4094, %v4498
        %v4899 = vadd.f32 %v4096, %v4499
        %v4900 = vadd.f32 %v2079, %v4500
        %v4901 = vadd.f32 %v2081, %v4501
        %v4902 = vadd.f32 %v2752, %v4502
        %v4903 = vadd.f32 %v2754, %v4503
        %v4904 = vadd.f32 %v3425, %v4504
        %v4905 = vadd.f32 %v3427, %v4505
        %v4906 = vadd.f32 %v4098, %v4506
        %v4907 = vadd.f32 %v4100, %v4507
        %v4908 = vadd.f32 %v2085, %v4492
        %v4909 = vadd.f32 %v2087, %v4493
        %v4910 = vadd.f32 %v2758, %v4494
        %v4911 = vadd.f32 %v2760, %v4495
        %v4912 = vadd.f32 %v3431, %v4496
        %v4913 = vadd.f32 %v3433, %v4497
        %v4914 = vadd.f32 %v4104, %v4498
        %v4915 = vadd.f32 %v4106, %v4499
        %v4916 = vadd.f32 %v2089, %v4500
        %v4917 = vadd.f32 %v2091, %v4501
        %v4918 = vadd.f32 %v2762, %v4502
        %v4919 = vadd.f32 %v2764, %v4503
        %v4920 = vadd.f32 %v3435, %v4504
        %v4921 = vadd.f32 %v3437, %v4505
        %v4922 = vadd.f32 %v4108, %v4506
        %v4923 = vadd.f32 %v4110, %v4507
        %v4924 = vadd.f32 %v2095, %v4492
        %v4925 = vadd.f32 %v2097, %v4493
        %v4926 = vadd.f32 %v2768, %v4494
        %v4927 = vadd.f32 %v2770, %v4495
        %v4928 = vadd.f32 %v3441, %v4496
        %v4929 = vadd.f32 %v3443, %v4497
        %v4930 = vadd.f32 %v4114, %v4498
        %v4931 = vadd.f32 %v4116, %v4499
        %v4932 = vadd.f32 %v2099, %v4500
        %v4933 = vadd.f32 %v2101, %v4501
        %v4934 = vadd.f32 %v2772, %v4502
        %v4935 = vadd.f32 %v2774, %v4503
        %v4936 = vadd.f32 %v3445, %v4504
        %v4937 = vadd.f32 %v3447, %v4505
        %v4938 = vadd.f32 %v4118, %v4506
        %v4939 = vadd.f32 %v4120, %v4507
        %v4940 = vadd.f32 %v2105, %v4492
        %v4941 = vadd.f32 %v2107, %v4493
        %v4942 = vadd.f32 %v2778, %v4494
        %v4943 = vadd.f32 %v2780, %v4495
        %v4944 = vadd.f32 %v3451, %v4496
        %v4945 = vadd.f32 %v3453, %v4497
        %v4946 = vadd.f32 %v4124, %v4498
        %v4947 = vadd.f32 %v4126, %v4499
        %v4948 = vadd.f32 %v2109, %v4500
        %v4949 = vadd.f32 %v2111, %v4501
        %v4950 = vadd.f32 %v2782, %v4502
        %v4951 = vadd.f32 %v2784, %v4503
        %v4952 = vadd.f32 %v3455, %v4504
        %v4953 = vadd.f32 %v3457, %v4505
        %v4954 = vadd.f32 %v4128, %v4506
        %v4955 = vadd.f32 %v4130, %v4507
        %v4956 = vadd.f32 %v2115, %v4492
        %v4957 = vadd.f32 %v2117, %v4493
        %v4958 = vadd.f32 %v2788, %v4494
        %v4959 = vadd.f32 %v2790, %v4495
        %v4960 = vadd.f32 %v3461, %v4496
        %v4961 = vadd.f32 %v3463, %v4497
        %v4962 = vadd.f32 %v4134, %v4498
        %v4963 = vadd.f32 %v4136, %v4499
        %v4964 = vadd.f32 %v2119, %v4500
        %v4965 = vadd.f32 %v2121, %v4501
        %v4966 = vadd.f32 %v2792, %v4502
        %v4967 = vadd.f32 %v2794, %v4503
        %v4968 = vadd.f32 %v3465, %v4504
        %v4969 = vadd.f32 %v3467, %v4505
        %v4970 = vadd.f32 %v4138, %v4506
        %v4971 = vadd.f32 %v4140, %v4507
        %v4972 = vadd.f32 %v2125, %v4492
        %v4973 = vadd.f32 %v2127, %v4493
        %v4974 = vadd.f32 %v2798, %v4494
        %v4975 = vadd.f32 %v2800, %v4495
        %v4976 = vadd.f32 %v3471, %v4496
        %v4977 = vadd.f32 %v3473, %v4497
        %v4978 = vadd.f32 %v4144, %v4498
        %v4979 = vadd.f32 %v4146, %v4499
        %v4980 = vadd.f32 %v2129, %v4500
        %v4981 = vadd.f32 %v2131, %v4501
        %v4982 = vadd.f32 %v2802, %v4502
        %v4983 = vadd.f32 %v2804, %v4503
        %v4984 = vadd.f32 %v3475, %v4504
        %v4985 = vadd.f32 %v3477, %v4505
        %v4986 = vadd.f32 %v4148, %v4506
        %v4987 = vadd.f32 %v4150, %v4507
        %v4988 = vadd.f32 %v2135, %v4492
        %v4989 = vadd.f32 %v2137, %v4493
        %v4990 = vadd.f32 %v2808, %v4494
        %v4991 = vadd.f32 %v2810, %v4495
        %v4992 = vadd.f32 %v3481, %v4496
        %v4993 = vadd.f32 %v3483, %v4497
        %v4994 = vadd.f32 %v4154, %v4498
        %v4995 = vadd.f32 %v4156, %v4499
        %v4996 = vadd.f32 %v2139, %v4500
        %v4997 = vadd.f32 %v2141, %v4501
        %v4998 = vadd.f32 %v2812, %v4502
        %v4999 = vadd.f32 %v2814, %v4503
        %v5000 = vadd.f32 %v3485, %v4504
        %v5001 = vadd.f32 %v3487, %v4505
        %v5002 = vadd.f32 %v4158, %v4506
        %v5003 = vadd.f32 %v4160, %v4507
        %v5004 = vadd.f32 %v2145, %v4492
        %v5005 = vadd.f32 %v2147, %v4493
        %v5006 = vadd.f32 %v2818, %v4494
        %v5007 = vadd.f32 %v2820, %v4495
        %v5008 = vadd.f32 %v3491, %v4496
        %v5009 = vadd.f32 %v3493, %v4497
        %v5010 = vadd.f32 %v4164, %v4498
        %v5011 = vadd.f32 %v4166, %v4499
        %v5012 = vadd.f32 %v2149, %v4500
        %v5013 = vadd.f32 %v2151, %v4501
        %v5014 = vadd.f32 %v2822, %v4502
        %v5015 = vadd.f32 %v2824, %v4503
        %v5016 = vadd.f32 %v3495, %v4504
        %v5017 = vadd.f32 %v3497, %v4505
        %v5018 = vadd.f32 %v4168, %v4506
        %v5019 = vadd.f32 %v4170, %v4507
        %v5020 = vadd.f32 %v2155, %v4492
        %v5021 = vadd.f32 %v2157, %v4493
        %v5022 = vadd.f32 %v2828, %v4494
        %v5023 = vadd.f32 %v2830, %v4495
        %v5024 = vadd.f32 %v3501, %v4496
        %v5025 = vadd.f32 %v3503, %v4497
        %v5026 = vadd.f32 %v4174, %v4498
        %v5027 = vadd.f32 %v4176, %v4499
        %v5028 = vadd.f32 %v2159, %v4500
        %v5029 = vadd.f32 %v2161, %v4501
        %v5030 = vadd.f32 %v2832, %v4502
        %v5031 = vadd.f32 %v2834, %v4503
        %v5032 = vadd.f32 %v3505, %v4504
        %v5033 = vadd.f32 %v3507, %v4505
        %v5034 = vadd.f32 %v4178, %v4506
        %v5035 = vadd.f32 %v4180, %v4507
        %v5036 = vadd.f32 %v2165, %v4492
        %v5037 = vadd.f32 %v2167, %v4493
        %v5038 = vadd.f32 %v2838, %v4494
        %v5039 = vadd.f32 %v2840, %v4495
        %v5040 = vadd.f32 %v3511, %v4496
        %v5041 = vadd.f32 %v3513, %v4497
        %v5042 = vadd.f32 %v4184, %v4498
        %v5043 = vadd.f32 %v4186, %v4499
        %v5044 = vadd.f32 %v2169, %v4500
        %v5045 = vadd.f32 %v2171, %v4501
        %v5046 = vadd.f32 %v2842, %v4502
        %v5047 = vadd.f32 %v2844, %v4503
        %v5048 = vadd.f32 %v3515, %v4504
        %v5049 = vadd.f32 %v3517, %v4505
        %v5050 = vadd.f32 %v4188, %v4506
        %v5051 = vadd.f32 %v4190, %v4507
        %v5052 = vadd.f32 %v2175, %v4492
        %v5053 = vadd.f32 %v2177, %v4493
        %v5054 = vadd.f32 %v2848, %v4494
        %v5055 = vadd.f32 %v2850, %v4495
        %v5056 = vadd.f32 %v3521, %v4496
        %v5057 = vadd.f32 %v3523, %v4497
        %v5058 = vadd.f32 %v4194, %v4498
        %v5059 = vadd.f32 %v4196, %v4499
        %v5060 = vadd.f32 %v2179, %v4500
        %v5061 = vadd.f32 %v2181, %v4501
        %v5062 = vadd.f32 %v2852, %v4502
        %v5063 = vadd.f32 %v2854, %v4503
        %v5064 = vadd.f32 %v3525, %v4504
        %v5065 = vadd.f32 %v3527, %v4505
        %v5066 = vadd.f32 %v4198, %v4506
        %v5067 = vadd.f32 %v4200, %v4507
        %v5068 = vadd.f32 %v2185, %v4492
        %v5069 = vadd.f32 %v2187, %v4493
        %v5070 = vadd.f32 %v2858, %v4494
        %v5071 = vadd.f32 %v2860, %v4495
        %v5072 = vadd.f32 %v3531, %v4496
        %v5073 = vadd.f32 %v3533, %v4497
        %v5074 = vadd.f32 %v4204, %v4498
        %v5075 = vadd.f32 %v4206, %v4499
        %v5076 = vadd.f32 %v2189, %v4500
        %v5077 = vadd.f32 %v2191, %v4501
        %v5078 = vadd.f32 %v2862, %v4502
        %v5079 = vadd.f32 %v2864, %v4503
        %v5080 = vadd.f32 %v3535, %v4504
        %v5081 = vadd.f32 %v3537, %v4505
        %v5082 = vadd.f32 %v4208, %v4506
        %v5083 = vadd.f32 %v4210, %v4507
        %v5084 = vadd.f32 %v2195, %v4492
        %v5085 = vadd.f32 %v2197, %v4493
        %v5086 = vadd.f32 %v2868, %v4494
        %v5087 = vadd.f32 %v2870, %v4495
        %v5088 = vadd.f32 %v3541, %v4496
        %v5089 = vadd.f32 %v3543, %v4497
        %v5090 = vadd.f32 %v4214, %v4498
        %v5091 = vadd.f32 %v4216, %v4499
        %v5092 = vadd.f32 %v2199, %v4500
        %v5093 = vadd.f32 %v2201, %v4501
        %v5094 = vadd.f32 %v2872, %v4502
        %v5095 = vadd.f32 %v2874, %v4503
        %v5096 = vadd.f32 %v3545, %v4504
        %v5097 = vadd.f32 %v3547, %v4505
        %v5098 = vadd.f32 %v4218, %v4506
        %v5099 = vadd.f32 %v4220, %v4507
        %v5100 = vadd.f32 %v2205, %v4492
        %v5101 = vadd.f32 %v2207, %v4493
        %v5102 = vadd.f32 %v2878, %v4494
        %v5103 = vadd.f32 %v2880, %v4495
        %v5104 = vadd.f32 %v3551, %v4496
        %v5105 = vadd.f32 %v3553, %v4497
        %v5106 = vadd.f32 %v4224, %v4498
        %v5107 = vadd.f32 %v4226, %v4499
        %v5108 = vadd.f32 %v2209, %v4500
        %v5109 = vadd.f32 %v2211, %v4501
        %v5110 = vadd.f32 %v2882, %v4502
        %v5111 = vadd.f32 %v2884, %v4503
        %v5112 = vadd.f32 %v3555, %v4504
        %v5113 = vadd.f32 %v3557, %v4505
        %v5114 = vadd.f32 %v4228, %v4506
        %v5115 = vadd.f32 %v4230, %v4507
        %v5116 = vadd.f32 %v2215, %v4492
        %v5117 = vadd.f32 %v2217, %v4493
        %v5118 = vadd.f32 %v2888, %v4494
        %v5119 = vadd.f32 %v2890, %v4495
        %v5120 = vadd.f32 %v3561, %v4496
        %v5121 = vadd.f32 %v3563, %v4497
        %v5122 = vadd.f32 %v4234, %v4498
        %v5123 = vadd.f32 %v4236, %v4499
        %v5124 = vadd.f32 %v2219, %v4500
        %v5125 = vadd.f32 %v2221, %v4501
        %v5126 = vadd.f32 %v2892, %v4502
        %v5127 = vadd.f32 %v2894, %v4503
        %v5128 = vadd.f32 %v3565, %v4504
        %v5129 = vadd.f32 %v3567, %v4505
        %v5130 = vadd.f32 %v4238, %v4506
        %v5131 = vadd.f32 %v4240, %v4507
        %v5132 = vadd.f32 %v2225, %v4492
        %v5133 = vadd.f32 %v2227, %v4493
        %v5134 = vadd.f32 %v2898, %v4494
        %v5135 = vadd.f32 %v2900, %v4495
        %v5136 = vadd.f32 %v3571, %v4496
        %v5137 = vadd.f32 %v3573, %v4497
        %v5138 = vadd.f32 %v4244, %v4498
        %v5139 = vadd.f32 %v4246, %v4499
        %v5140 = vadd.f32 %v2229, %v4500
        %v5141 = vadd.f32 %v2231, %v4501
        %v5142 = vadd.f32 %v2902, %v4502
        %v5143 = vadd.f32 %v2904, %v4503
        %v5144 = vadd.f32 %v3575, %v4504
        %v5145 = vadd.f32 %v3577, %v4505
        %v5146 = vadd.f32 %v4248, %v4506
        %v5147 = vadd.f32 %v4250, %v4507
        %v5148 = vadd.f32 %v2235, %v4492
        %v5149 = vadd.f32 %v2237, %v4493
        %v5150 = vadd.f32 %v2908, %v4494
        %v5151 = vadd.f32 %v2910, %v4495
        %v5152 = vadd.f32 %v3581, %v4496
        %v5153 = vadd.f32 %v3583, %v4497
        %v5154 = vadd.f32 %v4254, %v4498
        %v5155 = vadd.f32 %v4256, %v4499
        %v5156 = vadd.f32 %v2239, %v4500
        %v5157 = vadd.f32 %v2241, %v4501
        %v5158 = vadd.f32 %v2912, %v4502
        %v5159 = vadd.f32 %v2914, %v4503
        %v5160 = vadd.f32 %v3585, %v4504
        %v5161 = vadd.f32 %v3587, %v4505
        %v5162 = vadd.f32 %v4258, %v4506
        %v5163 = vadd.f32 %v4260, %v4507
        %v5164 = vadd.f32 %v2245, %v4492
        %v5165 = vadd.f32 %v2247, %v4493
        %v5166 = vadd.f32 %v2918, %v4494
        %v5167 = vadd.f32 %v2920, %v4495
        %v5168 = vadd.f32 %v3591, %v4496
        %v5169 = vadd.f32 %v3593, %v4497
        %v5170 = vadd.f32 %v4264, %v4498
        %v5171 = vadd.f32 %v4266, %v4499
        %v5172 = vadd.f32 %v2249, %v4500
        %v5173 = vadd.f32 %v2251, %v4501
        %v5174 = vadd.f32 %v2922, %v4502
        %v5175 = vadd.f32 %v2924, %v4503
        %v5176 = vadd.f32 %v3595, %v4504
        %v5177 = vadd.f32 %v3597, %v4505
        %v5178 = vadd.f32 %v4268, %v4506
        %v5179 = vadd.f32 %v4270, %v4507
        %v5180 = vadd.f32 %v2255, %v4492
        %v5181 = vadd.f32 %v2257, %v4493
        %v5182 = vadd.f32 %v2928, %v4494
        %v5183 = vadd.f32 %v2930, %v4495
        %v5184 = vadd.f32 %v3601, %v4496
        %v5185 = vadd.f32 %v3603, %v4497
        %v5186 = vadd.f32 %v4274, %v4498
        %v5187 = vadd.f32 %v4276, %v4499
        %v5188 = vadd.f32 %v2259, %v4500
        %v5189 = vadd.f32 %v2261, %v4501
        %v5190 = vadd.f32 %v2932, %v4502
        %v5191 = vadd.f32 %v2934, %v4503
        %v5192 = vadd.f32 %v3605, %v4504
        %v5193 = vadd.f32 %v3607, %v4505
        %v5194 = vadd.f32 %v4278, %v4506
        %v5195 = vadd.f32 %v4280, %v4507
        %v5196 = vadd.f32 %v2265, %v4492
        %v5197 = vadd.f32 %v2267, %v4493
        %v5198 = vadd.f32 %v2938, %v4494
        %v5199 = vadd.f32 %v2940, %v4495
        %v5200 = vadd.f32 %v3611, %v4496
        %v5201 = vadd.f32 %v3613, %v4497
        %v5202 = vadd.f32 %v4284, %v4498
        %v5203 = vadd.f32 %v4286, %v4499
        %v5204 = vadd.f32 %v2269, %v4500
        %v5205 = vadd.f32 %v2271, %v4501
        %v5206 = vadd.f32 %v2942, %v4502
        %v5207 = vadd.f32 %v2944, %v4503
        %v5208 = vadd.f32 %v3615, %v4504
        %v5209 = vadd.f32 %v3617, %v4505
        %v5210 = vadd.f32 %v4288, %v4506
        %v5211 = vadd.f32 %v4290, %v4507
        %v5212 = vadd.f32 %v2275, %v4492
        %v5213 = vadd.f32 %v2277, %v4493
        %v5214 = vadd.f32 %v2948, %v4494
        %v5215 = vadd.f32 %v2950, %v4495
        %v5216 = vadd.f32 %v3621, %v4496
        %v5217 = vadd.f32 %v3623, %v4497
        %v5218 = vadd.f32 %v4294, %v4498
        %v5219 = vadd.f32 %v4296, %v4499
        %v5220 = vadd.f32 %v2279, %v4500
        %v5221 = vadd.f32 %v2281, %v4501
        %v5222 = vadd.f32 %v2952, %v4502
        %v5223 = vadd.f32 %v2954, %v4503
        %v5224 = vadd.f32 %v3625, %v4504
        %v5225 = vadd.f32 %v3627, %v4505
        %v5226 = vadd.f32 %v4298, %v4506
        %v5227 = vadd.f32 %v4300, %v4507
        %v5228 = vadd.f32 %v2285, %v4492
        %v5229 = vadd.f32 %v2287, %v4493
        %v5230 = vadd.f32 %v2958, %v4494
        %v5231 = vadd.f32 %v2960, %v4495
        %v5232 = vadd.f32 %v3631, %v4496
        %v5233 = vadd.f32 %v3633, %v4497
        %v5234 = vadd.f32 %v4304, %v4498
        %v5235 = vadd.f32 %v4306, %v4499
        %v5236 = vadd.f32 %v2289, %v4500
        %v5237 = vadd.f32 %v2291, %v4501
        %v5238 = vadd.f32 %v2962, %v4502
        %v5239 = vadd.f32 %v2964, %v4503
        %v5240 = vadd.f32 %v3635, %v4504
        %v5241 = vadd.f32 %v3637, %v4505
        %v5242 = vadd.f32 %v4308, %v4506
        %v5243 = vadd.f32 %v4310, %v4507
        %v5244 = vadd.f32 %v2295, %v4492
        %v5245 = vadd.f32 %v2297, %v4493
        %v5246 = vadd.f32 %v2968, %v4494
        %v5247 = vadd.f32 %v2970, %v4495
        %v5248 = vadd.f32 %v3641, %v4496
        %v5249 = vadd.f32 %v3643, %v4497
        %v5250 = vadd.f32 %v4314, %v4498
        %v5251 = vadd.f32 %v4316, %v4499
        %v5252 = vadd.f32 %v2299, %v4500
        %v5253 = vadd.f32 %v2301, %v4501
        %v5254 = vadd.f32 %v2972, %v4502
        %v5255 = vadd.f32 %v2974, %v4503
        %v5256 = vadd.f32 %v3645, %v4504
        %v5257 = vadd.f32 %v3647, %v4505
        %v5258 = vadd.f32 %v4318, %v4506
        %v5259 = vadd.f32 %v4320, %v4507
        %v5260 = vadd.f32 %v2305, %v4492
        %v5261 = vadd.f32 %v2307, %v4493
        %v5262 = vadd.f32 %v2978, %v4494
        %v5263 = vadd.f32 %v2980, %v4495
        %v5264 = vadd.f32 %v3651, %v4496
        %v5265 = vadd.f32 %v3653, %v4497
        %v5266 = vadd.f32 %v4324, %v4498
        %v5267 = vadd.f32 %v4326, %v4499
        %v5268 = vadd.f32 %v2309, %v4500
        %v5269 = vadd.f32 %v2311, %v4501
        %v5270 = vadd.f32 %v2982, %v4502
        %v5271 = vadd.f32 %v2984, %v4503
        %v5272 = vadd.f32 %v3655, %v4504
        %v5273 = vadd.f32 %v3657, %v4505
        %v5274 = vadd.f32 %v4328, %v4506
        %v5275 = vadd.f32 %v4330, %v4507
        %v5276 = vadd.f32 %v2315, %v4492
        %v5277 = vadd.f32 %v2317, %v4493
        %v5278 = vadd.f32 %v2988, %v4494
        %v5279 = vadd.f32 %v2990, %v4495
        %v5280 = vadd.f32 %v3661, %v4496
        %v5281 = vadd.f32 %v3663, %v4497
        %v5282 = vadd.f32 %v4334, %v4498
        %v5283 = vadd.f32 %v4336, %v4499
        %v5284 = vadd.f32 %v2319, %v4500
        %v5285 = vadd.f32 %v2321, %v4501
        %v5286 = vadd.f32 %v2992, %v4502
        %v5287 = vadd.f32 %v2994, %v4503
        %v5288 = vadd.f32 %v3665, %v4504
        %v5289 = vadd.f32 %v3667, %v4505
        %v5290 = vadd.f32 %v4338, %v4506
        %v5291 = vadd.f32 %v4340, %v4507
        %v5292 = vadd.f32 %v2325, %v4492
        %v5293 = vadd.f32 %v2327, %v4493
        %v5294 = vadd.f32 %v2998, %v4494
        %v5295 = vadd.f32 %v3000, %v4495
        %v5296 = vadd.f32 %v3671, %v4496
        %v5297 = vadd.f32 %v3673, %v4497
        %v5298 = vadd.f32 %v4344, %v4498
        %v5299 = vadd.f32 %v4346, %v4499
        %v5300 = vadd.f32 %v2329, %v4500
        %v5301 = vadd.f32 %v2331, %v4501
        %v5302 = vadd.f32 %v3002, %v4502
        %v5303 = vadd.f32 %v3004, %v4503
        %v5304 = vadd.f32 %v3675, %v4504
        %v5305 = vadd.f32 %v3677, %v4505
        %v5306 = vadd.f32 %v4348, %v4506
        %v5307 = vadd.f32 %v4350, %v4507
        %v5308 = vadd.f32 %v2335, %v4492
        %v5309 = vadd.f32 %v2337, %v4493
        %v5310 = vadd.f32 %v3008, %v4494
        %v5311 = vadd.f32 %v3010, %v4495
        %v5312 = vadd.f32 %v3681, %v4496
        %v5313 = vadd.f32 %v3683, %v4497
        %v5314 = vadd.f32 %v4354, %v4498
        %v5315 = vadd.f32 %v4356, %v4499
        %v5316 = vadd.f32 %v2339, %v4500
        %v5317 = vadd.f32 %v2341, %v4501
        %v5318 = vadd.f32 %v3012, %v4502
        %v5319 = vadd.f32 %v3014, %v4503
        %v5320 = vadd.f32 %v3685, %v4504
        %v5321 = vadd.f32 %v3687, %v4505
        %v5322 = vadd.f32 %v4358, %v4506
        %v5323 = vadd.f32 %v4360, %v4507
        %v5324 = vadd.f32 %v2345, %v4492
        %v5325 = vadd.f32 %v2347, %v4493
        %v5326 = vadd.f32 %v3018, %v4494
        %v5327 = vadd.f32 %v3020, %v4495
        %v5328 = vadd.f32 %v3691, %v4496
        %v5329 = vadd.f32 %v3693, %v4497
        %v5330 = vadd.f32 %v4364, %v4498
        %v5331 = vadd.f32 %v4366, %v4499
        %v5332 = vadd.f32 %v2349, %v4500
        %v5333 = vadd.f32 %v2351, %v4501
        %v5334 = vadd.f32 %v3022, %v4502
        %v5335 = vadd.f32 %v3024, %v4503
        %v5336 = vadd.f32 %v3695, %v4504
        %v5337 = vadd.f32 %v3697, %v4505
        %v5338 = vadd.f32 %v4368, %v4506
        %v5339 = vadd.f32 %v4370, %v4507
        %v5340 = vadd.f32 %v2355, %v4492
        %v5341 = vadd.f32 %v2357, %v4493
        %v5342 = vadd.f32 %v3028, %v4494
        %v5343 = vadd.f32 %v3030, %v4495
        %v5344 = vadd.f32 %v3701, %v4496
        %v5345 = vadd.f32 %v3703, %v4497
        %v5346 = vadd.f32 %v4374, %v4498
        %v5347 = vadd.f32 %v4376, %v4499
        %v5348 = vadd.f32 %v2359, %v4500
        %v5349 = vadd.f32 %v2361, %v4501
        %v5350 = vadd.f32 %v3032, %v4502
        %v5351 = vadd.f32 %v3034, %v4503
        %v5352 = vadd.f32 %v3705, %v4504
        %v5353 = vadd.f32 %v3707, %v4505
        %v5354 = vadd.f32 %v4378, %v4506
        %v5355 = vadd.f32 %v4380, %v4507
        %v5356 = vadd.f32 %v2365, %v4492
        %v5357 = vadd.f32 %v2367, %v4493
        %v5358 = vadd.f32 %v3038, %v4494
        %v5359 = vadd.f32 %v3040, %v4495
        %v5360 = vadd.f32 %v3711, %v4496
        %v5361 = vadd.f32 %v3713, %v4497
        %v5362 = vadd.f32 %v4384, %v4498
        %v5363 = vadd.f32 %v4386, %v4499
        %v5364 = vadd.f32 %v2369, %v4500
        %v5365 = vadd.f32 %v2371, %v4501
        %v5366 = vadd.f32 %v3042, %v4502
        %v5367 = vadd.f32 %v3044, %v4503
        %v5368 = vadd.f32 %v3715, %v4504
        %v5369 = vadd.f32 %v3717, %v4505
        %v5370 = vadd.f32 %v4388, %v4506
        %v5371 = vadd.f32 %v4390, %v4507
        %v5372 = vadd.f32 %v2375, %v4492
        %v5373 = vadd.f32 %v2377, %v4493
        %v5374 = vadd.f32 %v3048, %v4494
        %v5375 = vadd.f32 %v3050, %v4495
        %v5376 = vadd.f32 %v3721, %v4496
        %v5377 = vadd.f32 %v3723, %v4497
        %v5378 = vadd.f32 %v4394, %v4498
        %v5379 = vadd.f32 %v4396, %v4499
        %v5380 = vadd.f32 %v2379, %v4500
        %v5381 = vadd.f32 %v2381, %v4501
        %v5382 = vadd.f32 %v3052, %v4502
        %v5383 = vadd.f32 %v3054, %v4503
        %v5384 = vadd.f32 %v3725, %v4504
        %v5385 = vadd.f32 %v3727, %v4505
        %v5386 = vadd.f32 %v4398, %v4506
        %v5387 = vadd.f32 %v4400, %v4507
        %v5388 = vadd.f32 %v2385, %v4492
        %v5389 = vadd.f32 %v2387, %v4493
        %v5390 = vadd.f32 %v3058, %v4494
        %v5391 = vadd.f32 %v3060, %v4495
        %v5392 = vadd.f32 %v3731, %v4496
        %v5393 = vadd.f32 %v3733, %v4497
        %v5394 = vadd.f32 %v4404, %v4498
        %v5395 = vadd.f32 %v4406, %v4499
        %v5396 = vadd.f32 %v2389, %v4500
        %v5397 = vadd.f32 %v2391, %v4501
        %v5398 = vadd.f32 %v3062, %v4502
        %v5399 = vadd.f32 %v3064, %v4503
        %v5400 = vadd.f32 %v3735, %v4504
        %v5401 = vadd.f32 %v3737, %v4505
        %v5402 = vadd.f32 %v4408, %v4506
        %v5403 = vadd.f32 %v4410, %v4507
        %v5404 = vadd.f32 %v2395, %v4492
        %v5405 = vadd.f32 %v2397, %v4493
        %v5406 = vadd.f32 %v3068, %v4494
        %v5407 = vadd.f32 %v3070, %v4495
        %v5408 = vadd.f32 %v3741, %v4496
        %v5409 = vadd.f32 %v3743, %v4497
        %v5410 = vadd.f32 %v4414, %v4498
        %v5411 = vadd.f32 %v4416, %v4499
        %v5412 = vadd.f32 %v2399, %v4500
        %v5413 = vadd.f32 %v2401, %v4501
        %v5414 = vadd.f32 %v3072, %v4502
        %v5415 = vadd.f32 %v3074, %v4503
        %v5416 = vadd.f32 %v3745, %v4504
        %v5417 = vadd.f32 %v3747, %v4505
        %v5418 = vadd.f32 %v4418, %v4506
        %v5419 = vadd.f32 %v4420, %v4507
        %v5420 = vadd.f32 %v2405, %v4492
        %v5421 = vadd.f32 %v2407, %v4493
        %v5422 = vadd.f32 %v3078, %v4494
        %v5423 = vadd.f32 %v3080, %v4495
        %v5424 = vadd.f32 %v3751, %v4496
        %v5425 = vadd.f32 %v3753, %v4497
        %v5426 = vadd.f32 %v4424, %v4498
        %v5427 = vadd.f32 %v4426, %v4499
        %v5428 = vadd.f32 %v2409, %v4500
        %v5429 = vadd.f32 %v2411, %v4501
        %v5430 = vadd.f32 %v3082, %v4502
        %v5431 = vadd.f32 %v3084, %v4503
        %v5432 = vadd.f32 %v3755, %v4504
        %v5433 = vadd.f32 %v3757, %v4505
        %v5434 = vadd.f32 %v4428, %v4506
        %v5435 = vadd.f32 %v4430, %v4507
        %v5436 = vadd.f32 %v2415, %v4492
        %v5437 = vadd.f32 %v2417, %v4493
        %v5438 = vadd.f32 %v3088, %v4494
        %v5439 = vadd.f32 %v3090, %v4495
        %v5440 = vadd.f32 %v3761, %v4496
        %v5441 = vadd.f32 %v3763, %v4497
        %v5442 = vadd.f32 %v4434, %v4498
        %v5443 = vadd.f32 %v4436, %v4499
        %v5444 = vadd.f32 %v2419, %v4500
        %v5445 = vadd.f32 %v2421, %v4501
        %v5446 = vadd.f32 %v3092, %v4502
        %v5447 = vadd.f32 %v3094, %v4503
        %v5448 = vadd.f32 %v3765, %v4504
        %v5449 = vadd.f32 %v3767, %v4505
        %v5450 = vadd.f32 %v4438, %v4506
        %v5451 = vadd.f32 %v4440, %v4507
        %v5452 = vadd.f32 %v2425, %v4492
        %v5453 = vadd.f32 %v2427, %v4493
        %v5454 = vadd.f32 %v3098, %v4494
        %v5455 = vadd.f32 %v3100, %v4495
        %v5456 = vadd.f32 %v3771, %v4496
        %v5457 = vadd.f32 %v3773, %v4497
        %v5458 = vadd.f32 %v4444, %v4498
        %v5459 = vadd.f32 %v4446, %v4499
        %v5460 = vadd.f32 %v2429, %v4500
        %v5461 = vadd.f32 %v2431, %v4501
        %v5462 = vadd.f32 %v3102, %v4502
        %v5463 = vadd.f32 %v3104, %v4503
        %v5464 = vadd.f32 %v3775, %v4504
        %v5465 = vadd.f32 %v3777, %v4505
        %v5466 = vadd.f32 %v4448, %v4506
        %v5467 = vadd.f32 %v4450, %v4507
        %v5468 = vadd.f32 %v2435, %v4492
        %v5469 = vadd.f32 %v2437, %v4493
        %v5470 = vadd.f32 %v3108, %v4494
        %v5471 = vadd.f32 %v3110, %v4495
        %v5472 = vadd.f32 %v3781, %v4496
        %v5473 = vadd.f32 %v3783, %v4497
        %v5474 = vadd.f32 %v4454, %v4498
        %v5475 = vadd.f32 %v4456, %v4499
        %v5476 = vadd.f32 %v2439, %v4500
        %v5477 = vadd.f32 %v2441, %v4501
        %v5478 = vadd.f32 %v3112, %v4502
        %v5479 = vadd.f32 %v3114, %v4503
        %v5480 = vadd.f32 %v3785, %v4504
        %v5481 = vadd.f32 %v3787, %v4505
        %v5482 = vadd.f32 %v4458, %v4506
        %v5483 = vadd.f32 %v4460, %v4507
        %v5484 = vadd.f32 %v2445, %v4492
        %v5485 = vadd.f32 %v2447, %v4493
        %v5486 = vadd.f32 %v3118, %v4494
        %v5487 = vadd.f32 %v3120, %v4495
        %v5488 = vadd.f32 %v3791, %v4496
        %v5489 = vadd.f32 %v3793, %v4497
        %v5490 = vadd.f32 %v4464, %v4498
        %v5491 = vadd.f32 %v4466, %v4499
        %v5492 = vadd.f32 %v2449, %v4500
        %v5493 = vadd.f32 %v2451, %v4501
        %v5494 = vadd.f32 %v3122, %v4502
        %v5495 = vadd.f32 %v3124, %v4503
        %v5496 = vadd.f32 %v3795, %v4504
        %v5497 = vadd.f32 %v3797, %v4505
        %v5498 = vadd.f32 %v4468, %v4506
        %v5499 = vadd.f32 %v4470, %v4507
        %v5500 = vadd.f32 %v2455, %v4492
        %v5501 = vadd.f32 %v2457, %v4493
        %v5502 = vadd.f32 %v3128, %v4494
        %v5503 = vadd.f32 %v3130, %v4495
        %v5504 = vadd.f32 %v3801, %v4496
        %v5505 = vadd.f32 %v3803, %v4497
        %v5506 = vadd.f32 %v4474, %v4498
        %v5507 = vadd.f32 %v4476, %v4499
        %v5508 = vadd.f32 %v2459, %v4500
        %v5509 = vadd.f32 %v2461, %v4501
        %v5510 = vadd.f32 %v3132, %v4502
        %v5511 = vadd.f32 %v3134, %v4503
        %v5512 = vadd.f32 %v3805, %v4504
        %v5513 = vadd.f32 %v3807, %v4505
        %v5514 = vadd.f32 %v4478, %v4506
        %v5515 = vadd.f32 %v4480, %v4507
        %v5516 = vadd.f32 %v2465, %v4492
        %v5517 = vadd.f32 %v2467, %v4493
        %v5518 = vadd.f32 %v3138, %v4494
        %v5519 = vadd.f32 %v3140, %v4495
        %v5520 = vadd.f32 %v3811, %v4496
        %v5521 = vadd.f32 %v3813, %v4497
        %v5522 = vadd.f32 %v4484, %v4498
        %v5523 = vadd.f32 %v4486, %v4499
        %v5524 = vadd.f32 %v2469, %v4500
        %v5525 = vadd.f32 %v2471, %v4501
        %v5526 = vadd.f32 %v3142, %v4502
        %v5527 = vadd.f32 %v3144, %v4503
        %v5528 = vadd.f32 %v3815, %v4504
        %v5529 = vadd.f32 %v3817, %v4505
        %v5530 = vadd.f32 %v4488, %v4506
        %v5531 = vadd.f32 %v4490, %v4507
        %v5532 = vmax.f32 %v4508, 0.0
        %v5533 = vmax.f32 %v4509, 0.0
        %v5534 = vmax.f32 %v4510, 0.0
        %v5535 = vmax.f32 %v4511, 0.0
        %v5536 = vmax.f32 %v4512, 0.0
        %v5537 = vmax.f32 %v4513, 0.0
        %v5538 = vmax.f32 %v4514, 0.0
        %v5539 = vmax.f32 %v4515, 0.0
        %v5540 = vmax.f32 %v4516, 0.0
        %v5541 = vmax.f32 %v4517, 0.0
        %v5542 = vmax.f32 %v4518, 0.0
        %v5543 = vmax.f32 %v4519, 0.0
        %v5544 = vmax.f32 %v4520, 0.0
        %v5545 = vmax.f32 %v4521, 0.0
        %v5546 = vmax.f32 %v4522, 0.0
        %v5547 = vmax.f32 %v4523, 0.0
        %v5548 = vmax.f32 %v4524, 0.0
        %v5549 = vmax.f32 %v4525, 0.0
        %v5550 = vmax.f32 %v4526, 0.0
        %v5551 = vmax.f32 %v4527, 0.0
        %v5552 = vmax.f32 %v4528, 0.0
        %v5553 = vmax.f32 %v4529, 0.0
        %v5554 = vmax.f32 %v4530, 0.0
        %v5555 = vmax.f32 %v4531, 0.0
        %v5556 = vmax.f32 %v4532, 0.0
        %v5557 = vmax.f32 %v4533, 0.0
        %v5558 = vmax.f32 %v4534, 0.0
        %v5559 = vmax.f32 %v4535, 0.0
        %v5560 = vmax.f32 %v4536, 0.0
        %v5561 = vmax.f32 %v4537, 0.0
        %v5562 = vmax.f32 %v4538, 0.0
        %v5563 = vmax.f32 %v4539, 0.0
        %v5564 = vmax.f32 %v4540, 0.0
        %v5565 = vmax.f32 %v4541, 0.0
        %v5566 = vmax.f32 %v4542, 0.0
        %v5567 = vmax.f32 %v4543, 0.0
        %v5568 = vmax.f32 %v4544, 0.0
        %v5569 = vmax.f32 %v4545, 0.0
        %v5570 = vmax.f32 %v4546, 0.0
        %v5571 = vmax.f32 %v4547, 0.0
        %v5572 = vmax.f32 %v4548, 0.0
        %v5573 = vmax.f32 %v4549, 0.0
        %v5574 = vmax.f32 %v4550, 0.0
        %v5575 = vmax.f32 %v4551, 0.0
        %v5576 = vmax.f32 %v4552, 0.0
        %v5577 = vmax.f32 %v4553, 0.0
        %v5578 = vmax.f32 %v4554, 0.0
        %v5579 = vmax.f32 %v4555, 0.0
        %v5580 = vmax.f32 %v4556, 0.0
        %v5581 = vmax.f32 %v4557, 0.0
        %v5582 = vmax.f32 %v4558, 0.0
        %v5583 = vmax.f32 %v4559, 0.0
        %v5584 = vmax.f32 %v4560, 0.0
        %v5585 = vmax.f32 %v4561, 0.0
        %v5586 = vmax.f32 %v4562, 0.0
        %v5587 = vmax.f32 %v4563, 0.0
        %v5588 = vmax.f32 %v4564, 0.0
        %v5589 = vmax.f32 %v4565, 0.0
        %v5590 = vmax.f32 %v4566, 0.0
        %v5591 = vmax.f32 %v4567, 0.0
        %v5592 = vmax.f32 %v4568, 0.0
        %v5593 = vmax.f32 %v4569, 0.0
        %v5594 = vmax.f32 %v4570, 0.0
        %v5595 = vmax.f32 %v4571, 0.0
        %v5596 = vmax.f32 %v4572, 0.0
        %v5597 = vmax.f32 %v4573, 0.0
        %v5598 = vmax.f32 %v4574, 0.0
        %v5599 = vmax.f32 %v4575, 0.0
        %v5600 = vmax.f32 %v4576, 0.0
        %v5601 = vmax.f32 %v4577, 0.0
        %v5602 = vmax.f32 %v4578, 0.0
        %v5603 = vmax.f32 %v4579, 0.0
        %v5604 = vmax.f32 %v4580, 0.0
        %v5605 = vmax.f32 %v4581, 0.0
        %v5606 = vmax.f32 %v4582, 0.0
        %v5607 = vmax.f32 %v4583, 0.0
        %v5608 = vmax.f32 %v4584, 0.0
        %v5609 = vmax.f32 %v4585, 0.0
        %v5610 = vmax.f32 %v4586, 0.0
        %v5611 = vmax.f32 %v4587, 0.0
        %v5612 = vmax.f32 %v4588, 0.0
        %v5613 = vmax.f32 %v4589, 0.0
        %v5614 = vmax.f32 %v4590, 0.0
        %v5615 = vmax.f32 %v4591, 0.0
        %v5616 = vmax.f32 %v4592, 0.0
        %v5617 = vmax.f32 %v4593, 0.0
        %v5618 = vmax.f32 %v4594, 0.0
        %v5619 = vmax.f32 %v4595, 0.0
        %v5620 = vmax.f32 %v4596, 0.0
        %v5621 = vmax.f32 %v4597, 0.0
        %v5622 = vmax.f32 %v4598, 0.0
        %v5623 = vmax.f32 %v4599, 0.0
        %v5624 = vmax.f32 %v4600, 0.0
        %v5625 = vmax.f32 %v4601, 0.0
        %v5626 = vmax.f32 %v4602, 0.0
        %v5627 = vmax.f32 %v4603, 0.0
        %v5628 = vmax.f32 %v4604, 0.0
        %v5629 = vmax.f32 %v4605, 0.0
        %v5630 = vmax.f32 %v4606, 0.0
        %v5631 = vmax.f32 %v4607, 0.0
        %v5632 = vmax.f32 %v4608, 0.0
        %v5633 = vmax.f32 %v4609, 0.0
        %v5634 = vmax.f32 %v4610, 0.0
        %v5635 = vmax.f32 %v4611, 0.0
        %v5636 = vmax.f32 %v4612, 0.0
        %v5637 = vmax.f32 %v4613, 0.0
        %v5638 = vmax.f32 %v4614, 0.0
        %v5639 = vmax.f32 %v4615, 0.0
        %v5640 = vmax.f32 %v4616, 0.0
        %v5641 = vmax.f32 %v4617, 0.0
        %v5642 = vmax.f32 %v4618, 0.0
        %v5643 = vmax.f32 %v4619, 0.0
        %v5644 = vmax.f32 %v4620, 0.0
        %v5645 = vmax.f32 %v4621, 0.0
        %v5646 = vmax.f32 %v4622, 0.0
        %v5647 = vmax.f32 %v4623, 0.0
        %v5648 = vmax.f32 %v4624, 0.0
        %v5649 = vmax.f32 %v4625, 0.0
        %v5650 = vmax.f32 %v4626, 0.0
        %v5651 = vmax.f32 %v4627, 0.0
        %v5652 = vmax.f32 %v4628, 0.0
        %v5653 = vmax.f32 %v4629, 0.0
        %v5654 = vmax.f32 %v4630, 0.0
        %v5655 = vmax.f32 %v4631, 0.0
        %v5656 = vmax.f32 %v4632, 0.0
        %v5657 = vmax.f32 %v4633, 0.0
        %v5658 = vmax.f32 %v4634, 0.0
        %v5659 = vmax.f32 %v4635, 0.0
        %v5660 = vmax.f32 %v4636, 0.0
        %v5661 = vmax.f32 %v4637, 0.0
        %v5662 = vmax.f32 %v4638, 0.0
        %v5663 = vmax.f32 %v4639, 0.0
        %v5664 = vmax.f32 %v4640, 0.0
        %v5665 = vmax.f32 %v4641, 0.0
        %v5666 = vmax.f32 %v4642, 0.0
        %v5667 = vmax.f32 %v4643, 0.0
        %v5668 = vmax.f32 %v4644, 0.0
        %v5669 = vmax.f32 %v4645, 0.0
        %v5670 = vmax.f32 %v4646, 0.0
        %v5671 = vmax.f32 %v4647, 0.0
        %v5672 = vmax.f32 %v4648, 0.0
        %v5673 = vmax.f32 %v4649, 0.0
        %v5674 = vmax.f32 %v4650, 0.0
        %v5675 = vmax.f32 %v4651, 0.0
        %v5676 = vmax.f32 %v4652, 0.0
        %v5677 = vmax.f32 %v4653, 0.0
        %v5678 = vmax.f32 %v4654, 0.0
        %v5679 = vmax.f32 %v4655, 0.0
        %v5680 = vmax.f32 %v4656, 0.0
        %v5681 = vmax.f32 %v4657, 0.0
        %v5682 = vmax.f32 %v4658, 0.0
        %v5683 = vmax.f32 %v4659, 0.0
        %v5684 = vmax.f32 %v4660, 0.0
        %v5685 = vmax.f32 %v4661, 0.0
        %v5686 = vmax.f32 %v4662, 0.0
        %v5687 = vmax.f32 %v4663, 0.0
        %v5688 = vmax.f32 %v4664, 0.0
        %v5689 = vmax.f32 %v4665, 0.0
        %v5690 = vmax.f32 %v4666, 0.0
        %v5691 = vmax.f32 %v4667, 0.0
        %v5692 = vmax.f32 %v4668, 0.0
        %v5693 = vmax.f32 %v4669, 0.0
        %v5694 = vmax.f32 %v4670, 0.0
        %v5695 = vmax.f32 %v4671, 0.0
        %v5696 = vmax.f32 %v4672, 0.0
        %v5697 = vmax.f32 %v4673, 0.0
        %v5698 = vmax.f32 %v4674, 0.0
        %v5699 = vmax.f32 %v4675, 0.0
        %v5700 = vmax.f32 %v4676, 0.0
        %v5701 = vmax.f32 %v4677, 0.0
        %v5702 = vmax.f32 %v4678, 0.0
        %v5703 = vmax.f32 %v4679, 0.0
        %v5704 = vmax.f32 %v4680, 0.0
        %v5705 = vmax.f32 %v4681, 0.0
        %v5706 = vmax.f32 %v4682, 0.0
        %v5707 = vmax.f32 %v4683, 0.0
        %v5708 = vmax.f32 %v4684, 0.0
        %v5709 = vmax.f32 %v4685, 0.0
        %v5710 = vmax.f32 %v4686, 0.0
        %v5711 = vmax.f32 %v4687, 0.0
        %v5712 = vmax.f32 %v4688, 0.0
        %v5713 = vmax.f32 %v4689, 0.0
        %v5714 = vmax.f32 %v4690, 0.0
        %v5715 = vmax.f32 %v4691, 0.0
        %v5716 = vmax.f32 %v4692, 0.0
        %v5717 = vmax.f32 %v4693, 0.0
        %v5718 = vmax.f32 %v4694, 0.0
        %v5719 = vmax.f32 %v4695, 0.0
        %v5720 = vmax.f32 %v4696, 0.0
        %v5721 = vmax.f32 %v4697, 0.0
        %v5722 = vmax.f32 %v4698, 0.0
        %v5723 = vmax.f32 %v4699, 0.0
        %v5724 = vmax.f32 %v4700, 0.0
        %v5725 = vmax.f32 %v4701, 0.0
        %v5726 = vmax.f32 %v4702, 0.0
        %v5727 = vmax.f32 %v4703, 0.0
        %v5728 = vmax.f32 %v4704, 0.0
        %v5729 = vmax.f32 %v4705, 0.0
        %v5730 = vmax.f32 %v4706, 0.0
        %v5731 = vmax.f32 %v4707, 0.0
        %v5732 = vmax.f32 %v4708, 0.0
        %v5733 = vmax.f32 %v4709, 0.0
        %v5734 = vmax.f32 %v4710, 0.0
        %v5735 = vmax.f32 %v4711, 0.0
        %v5736 = vmax.f32 %v4712, 0.0
        %v5737 = vmax.f32 %v4713, 0.0
        %v5738 = vmax.f32 %v4714, 0.0
        %v5739 = vmax.f32 %v4715, 0.0
        %v5740 = vmax.f32 %v4716, 0.0
        %v5741 = vmax.f32 %v4717, 0.0
        %v5742 = vmax.f32 %v4718, 0.0
        %v5743 = vmax.f32 %v4719, 0.0
        %v5744 = vmax.f32 %v4720, 0.0
        %v5745 = vmax.f32 %v4721, 0.0
        %v5746 = vmax.f32 %v4722, 0.0
        %v5747 = vmax.f32 %v4723, 0.0
        %v5748 = vmax.f32 %v4724, 0.0
        %v5749 = vmax.f32 %v4725, 0.0
        %v5750 = vmax.f32 %v4726, 0.0
        %v5751 = vmax.f32 %v4727, 0.0
        %v5752 = vmax.f32 %v4728, 0.0
        %v5753 = vmax.f32 %v4729, 0.0
        %v5754 = vmax.f32 %v4730, 0.0
        %v5755 = vmax.f32 %v4731, 0.0
        %v5756 = vmax.f32 %v4732, 0.0
        %v5757 = vmax.f32 %v4733, 0.0
        %v5758 = vmax.f32 %v4734, 0.0
        %v5759 = vmax.f32 %v4735, 0.0
        %v5760 = vmax.f32 %v4736, 0.0
        %v5761 = vmax.f32 %v4737, 0.0
        %v5762 = vmax.f32 %v4738, 0.0
        %v5763 = vmax.f32 %v4739, 0.0
        %v5764 = vmax.f32 %v4740, 0.0
        %v5765 = vmax.f32 %v4741, 0.0
        %v5766 = vmax.f32 %v4742, 0.0
        %v5767 = vmax.f32 %v4743, 0.0
        %v5768 = vmax.f32 %v4744, 0.0
        %v5769 = vmax.f32 %v4745, 0.0
        %v5770 = vmax.f32 %v4746, 0.0
        %v5771 = vmax.f32 %v4747, 0.0
        %v5772 = vmax.f32 %v4748, 0.0
        %v5773 = vmax.f32 %v4749, 0.0
        %v5774 = vmax.f32 %v4750, 0.0
        %v5775 = vmax.f32 %v4751, 0.0
        %v5776 = vmax.f32 %v4752, 0.0
        %v5777 = vmax.f32 %v4753, 0.0
        %v5778 = vmax.f32 %v4754, 0.0
        %v5779 = vmax.f32 %v4755, 0.0
        %v5780 = vmax.f32 %v4756, 0.0
        %v5781 = vmax.f32 %v4757, 0.0
        %v5782 = vmax.f32 %v4758, 0.0
        %v5783 = vmax.f32 %v4759, 0.0
        %v5784 = vmax.f32 %v4760, 0.0
        %v5785 = vmax.f32 %v4761, 0.0
        %v5786 = vmax.f32 %v4762, 0.0
        %v5787 = vmax.f32 %v4763, 0.0
        %v5788 = vmax.f32 %v4764, 0.0
        %v5789 = vmax.f32 %v4765, 0.0
        %v5790 = vmax.f32 %v4766, 0.0
        %v5791 = vmax.f32 %v4767, 0.0
        %v5792 = vmax.f32 %v4768, 0.0
        %v5793 = vmax.f32 %v4769, 0.0
        %v5794 = vmax.f32 %v4770, 0.0
        %v5795 = vmax.f32 %v4771, 0.0
        %v5796 = vmax.f32 %v4772, 0.0
        %v5797 = vmax.f32 %v4773, 0.0
        %v5798 = vmax.f32 %v4774, 0.0
        %v5799 = vmax.f32 %v4775, 0.0
        %v5800 = vmax.f32 %v4776, 0.0
        %v5801 = vmax.f32 %v4777, 0.0
        %v5802 = vmax.f32 %v4778, 0.0
        %v5803 = vmax.f32 %v4779, 0.0
        %v5804 = vmax.f32 %v4780, 0.0
        %v5805 = vmax.f32 %v4781, 0.0
        %v5806 = vmax.f32 %v4782, 0.0
        %v5807 = vmax.f32 %v4783, 0.0
        %v5808 = vmax.f32 %v4784, 0.0
        %v5809 = vmax.f32 %v4785, 0.0
        %v5810 = vmax.f32 %v4786, 0.0
        %v5811 = vmax.f32 %v4787, 0.0
        %v5812 = vmax.f32 %v4788, 0.0
        %v5813 = vmax.f32 %v4789, 0.0
        %v5814 = vmax.f32 %v4790, 0.0
        %v5815 = vmax.f32 %v4791, 0.0
        %v5816 = vmax.f32 %v4792, 0.0
        %v5817 = vmax.f32 %v4793, 0.0
        %v5818 = vmax.f32 %v4794, 0.0
        %v5819 = vmax.f32 %v4795, 0.0
        %v5820 = vmax.f32 %v4796, 0.0
        %v5821 = vmax.f32 %v4797, 0.0
        %v5822 = vmax.f32 %v4798, 0.0
        %v5823 = vmax.f32 %v4799, 0.0
        %v5824 = vmax.f32 %v4800, 0.0
        %v5825 = vmax.f32 %v4801, 0.0
        %v5826 = vmax.f32 %v4802, 0.0
        %v5827 = vmax.f32 %v4803, 0.0
        %v5828 = vmax.f32 %v4804, 0.0
        %v5829 = vmax.f32 %v4805, 0.0
        %v5830 = vmax.f32 %v4806, 0.0
        %v5831 = vmax.f32 %v4807, 0.0
        %v5832 = vmax.f32 %v4808, 0.0
        %v5833 = vmax.f32 %v4809, 0.0
        %v5834 = vmax.f32 %v4810, 0.0
        %v5835 = vmax.f32 %v4811, 0.0
        %v5836 = vmax.f32 %v4812, 0.0
        %v5837 = vmax.f32 %v4813, 0.0
        %v5838 = vmax.f32 %v4814, 0.0
        %v5839 = vmax.f32 %v4815, 0.0
        %v5840 = vmax.f32 %v4816, 0.0
        %v5841 = vmax.f32 %v4817, 0.0
        %v5842 = vmax.f32 %v4818, 0.0
        %v5843 = vmax.f32 %v4819, 0.0
        %v5844 = vmax.f32 %v4820, 0.0
        %v5845 = vmax.f32 %v4821, 0.0
        %v5846 = vmax.f32 %v4822, 0.0
        %v5847 = vmax.f32 %v4823, 0.0
        %v5848 = vmax.f32 %v4824, 0.0
        %v5849 = vmax.f32 %v4825, 0.0
        %v5850 = vmax.f32 %v4826, 0.0
        %v5851 = vmax.f32 %v4827, 0.0
        %v5852 = vmax.f32 %v4828, 0.0
        %v5853 = vmax.f32 %v4829, 0.0
        %v5854 = vmax.f32 %v4830, 0.0
        %v5855 = vmax.f32 %v4831, 0.0
        %v5856 = vmax.f32 %v4832, 0.0
        %v5857 = vmax.f32 %v4833, 0.0
        %v5858 = vmax.f32 %v4834, 0.0
        %v5859 = vmax.f32 %v4835, 0.0
        %v5860 = vmax.f32 %v4836, 0.0
        %v5861 = vmax.f32 %v4837, 0.0
        %v5862 = vmax.f32 %v4838, 0.0
        %v5863 = vmax.f32 %v4839, 0.0
        %v5864 = vmax.f32 %v4840, 0.0
        %v5865 = vmax.f32 %v4841, 0.0
        %v5866 = vmax.f32 %v4842, 0.0
        %v5867 = vmax.f32 %v4843, 0.0
        %v5868 = vmax.f32 %v4844, 0.0
        %v5869 = vmax.f32 %v4845, 0.0
        %v5870 = vmax.f32 %v4846, 0.0
        %v5871 = vmax.f32 %v4847, 0.0
        %v5872 = vmax.f32 %v4848, 0.0
        %v5873 = vmax.f32 %v4849, 0.0
        %v5874 = vmax.f32 %v4850, 0.0
        %v5875 = vmax.f32 %v4851, 0.0
        %v5876 = vmax.f32 %v4852, 0.0
        %v5877 = vmax.f32 %v4853, 0.0
        %v5878 = vmax.f32 %v4854, 0.0
        %v5879 = vmax.f32 %v4855, 0.0
        %v5880 = vmax.f32 %v4856, 0.0
        %v5881 = vmax.f32 %v4857, 0.0
        %v5882 = vmax.f32 %v4858, 0.0
        %v5883 = vmax.f32 %v4859, 0.0
        %v5884 = vmax.f32 %v4860, 0.0
        %v5885 = vmax.f32 %v4861, 0.0
        %v5886 = vmax.f32 %v4862, 0.0
        %v5887 = vmax.f32 %v4863, 0.0
        %v5888 = vmax.f32 %v4864, 0.0
        %v5889 = vmax.f32 %v4865, 0.0
        %v5890 = vmax.f32 %v4866, 0.0
        %v5891 = vmax.f32 %v4867, 0.0
        %v5892 = vmax.f32 %v4868, 0.0
        %v5893 = vmax.f32 %v4869, 0.0
        %v5894 = vmax.f32 %v4870, 0.0
        %v5895 = vmax.f32 %v4871, 0.0
        %v5896 = vmax.f32 %v4872, 0.0
        %v5897 = vmax.f32 %v4873, 0.0
        %v5898 = vmax.f32 %v4874, 0.0
        %v5899 = vmax.f32 %v4875, 0.0
        %v5900 = vmax.f32 %v4876, 0.0
        %v5901 = vmax.f32 %v4877, 0.0
        %v5902 = vmax.f32 %v4878, 0.0
        %v5903 = vmax.f32 %v4879, 0.0
        %v5904 = vmax.f32 %v4880, 0.0
        %v5905 = vmax.f32 %v4881, 0.0
        %v5906 = vmax.f32 %v4882, 0.0
        %v5907 = vmax.f32 %v4883, 0.0
        %v5908 = vmax.f32 %v4884, 0.0
        %v5909 = vmax.f32 %v4885, 0.0
        %v5910 = vmax.f32 %v4886, 0.0
        %v5911 = vmax.f32 %v4887, 0.0
        %v5912 = vmax.f32 %v4888, 0.0
        %v5913 = vmax.f32 %v4889, 0.0
        %v5914 = vmax.f32 %v4890, 0.0
        %v5915 = vmax.f32 %v4891, 0.0
        %v5916 = vmax.f32 %v4892, 0.0
        %v5917 = vmax.f32 %v4893, 0.0
        %v5918 = vmax.f32 %v4894, 0.0
        %v5919 = vmax.f32 %v4895, 0.0
        %v5920 = vmax.f32 %v4896, 0.0
        %v5921 = vmax.f32 %v4897, 0.0
        %v5922 = vmax.f32 %v4898, 0.0
        %v5923 = vmax.f32 %v4899, 0.0
        %v5924 = vmax.f32 %v4900, 0.0
        %v5925 = vmax.f32 %v4901, 0.0
        %v5926 = vmax.f32 %v4902, 0.0
        %v5927 = vmax.f32 %v4903, 0.0
        %v5928 = vmax.f32 %v4904, 0.0
        %v5929 = vmax.f32 %v4905, 0.0
        %v5930 = vmax.f32 %v4906, 0.0
        %v5931 = vmax.f32 %v4907, 0.0
        %v5932 = vmax.f32 %v4908, 0.0
        %v5933 = vmax.f32 %v4909, 0.0
        %v5934 = vmax.f32 %v4910, 0.0
        %v5935 = vmax.f32 %v4911, 0.0
        %v5936 = vmax.f32 %v4912, 0.0
        %v5937 = vmax.f32 %v4913, 0.0
        %v5938 = vmax.f32 %v4914, 0.0
        %v5939 = vmax.f32 %v4915, 0.0
        %v5940 = vmax.f32 %v4916, 0.0
        %v5941 = vmax.f32 %v4917, 0.0
        %v5942 = vmax.f32 %v4918, 0.0
        %v5943 = vmax.f32 %v4919, 0.0
        %v5944 = vmax.f32 %v4920, 0.0
        %v5945 = vmax.f32 %v4921, 0.0
        %v5946 = vmax.f32 %v4922, 0.0
        %v5947 = vmax.f32 %v4923, 0.0
        %v5948 = vmax.f32 %v4924, 0.0
        %v5949 = vmax.f32 %v4925, 0.0
        %v5950 = vmax.f32 %v4926, 0.0
        %v5951 = vmax.f32 %v4927, 0.0
        %v5952 = vmax.f32 %v4928, 0.0
        %v5953 = vmax.f32 %v4929, 0.0
        %v5954 = vmax.f32 %v4930, 0.0
        %v5955 = vmax.f32 %v4931, 0.0
        %v5956 = vmax.f32 %v4932, 0.0
        %v5957 = vmax.f32 %v4933, 0.0
        %v5958 = vmax.f32 %v4934, 0.0
        %v5959 = vmax.f32 %v4935, 0.0
        %v5960 = vmax.f32 %v4936, 0.0
        %v5961 = vmax.f32 %v4937, 0.0
        %v5962 = vmax.f32 %v4938, 0.0
        %v5963 = vmax.f32 %v4939, 0.0
        %v5964 = vmax.f32 %v4940, 0.0
        %v5965 = vmax.f32 %v4941, 0.0
        %v5966 = vmax.f32 %v4942, 0.0
        %v5967 = vmax.f32 %v4943, 0.0
        %v5968 = vmax.f32 %v4944, 0.0
        %v5969 = vmax.f32 %v4945, 0.0
        %v5970 = vmax.f32 %v4946, 0.0
        %v5971 = vmax.f32 %v4947, 0.0
        %v5972 = vmax.f32 %v4948, 0.0
        %v5973 = vmax.f32 %v4949, 0.0
        %v5974 = vmax.f32 %v4950, 0.0
        %v5975 = vmax.f32 %v4951, 0.0
        %v5976 = vmax.f32 %v4952, 0.0
        %v5977 = vmax.f32 %v4953, 0.0
        %v5978 = vmax.f32 %v4954, 0.0
        %v5979 = vmax.f32 %v4955, 0.0
        %v5980 = vmax.f32 %v4956, 0.0
        %v5981 = vmax.f32 %v4957, 0.0
        %v5982 = vmax.f32 %v4958, 0.0
        %v5983 = vmax.f32 %v4959, 0.0
        %v5984 = vmax.f32 %v4960, 0.0
        %v5985 = vmax.f32 %v4961, 0.0
        %v5986 = vmax.f32 %v4962, 0.0
        %v5987 = vmax.f32 %v4963, 0.0
        %v5988 = vmax.f32 %v4964, 0.0
        %v5989 = vmax.f32 %v4965, 0.0
        %v5990 = vmax.f32 %v4966, 0.0
        %v5991 = vmax.f32 %v4967, 0.0
        %v5992 = vmax.f32 %v4968, 0.0
        %v5993 = vmax.f32 %v4969, 0.0
        %v5994 = vmax.f32 %v4970, 0.0
        %v5995 = vmax.f32 %v4971, 0.0
        %v5996 = vmax.f32 %v4972, 0.0
        %v5997 = vmax.f32 %v4973, 0.0
        %v5998 = vmax.f32 %v4974, 0.0
        %v5999 = vmax.f32 %v4975, 0.0
        %v6000 = vmax.f32 %v4976, 0.0
        %v6001 = vmax.f32 %v4977, 0.0
        %v6002 = vmax.f32 %v4978, 0.0
        %v6003 = vmax.f32 %v4979, 0.0
        %v6004 = vmax.f32 %v4980, 0.0
        %v6005 = vmax.f32 %v4981, 0.0
        %v6006 = vmax.f32 %v4982, 0.0
        %v6007 = vmax.f32 %v4983, 0.0
        %v6008 = vmax.f32 %v4984, 0.0
        %v6009 = vmax.f32 %v4985, 0.0
        %v6010 = vmax.f32 %v4986, 0.0
        %v6011 = vmax.f32 %v4987, 0.0
        %v6012 = vmax.f32 %v4988, 0.0
        %v6013 = vmax.f32 %v4989, 0.0
        %v6014 = vmax.f32 %v4990, 0.0
        %v6015 = vmax.f32 %v4991, 0.0
        %v6016 = vmax.f32 %v4992, 0.0
        %v6017 = vmax.f32 %v4993, 0.0
        %v6018 = vmax.f32 %v4994, 0.0
        %v6019 = vmax.f32 %v4995, 0.0
        %v6020 = vmax.f32 %v4996, 0.0
        %v6021 = vmax.f32 %v4997, 0.0
        %v6022 = vmax.f32 %v4998, 0.0
        %v6023 = vmax.f32 %v4999, 0.0
        %v6024 = vmax.f32 %v5000, 0.0
        %v6025 = vmax.f32 %v5001, 0.0
        %v6026 = vmax.f32 %v5002, 0.0
        %v6027 = vmax.f32 %v5003, 0.0
        %v6028 = vmax.f32 %v5004, 0.0
        %v6029 = vmax.f32 %v5005, 0.0
        %v6030 = vmax.f32 %v5006, 0.0
        %v6031 = vmax.f32 %v5007, 0.0
        %v6032 = vmax.f32 %v5008, 0.0
        %v6033 = vmax.f32 %v5009, 0.0
        %v6034 = vmax.f32 %v5010, 0.0
        %v6035 = vmax.f32 %v5011, 0.0
        %v6036 = vmax.f32 %v5012, 0.0
        %v6037 = vmax.f32 %v5013, 0.0
        %v6038 = vmax.f32 %v5014, 0.0
        %v6039 = vmax.f32 %v5015, 0.0
        %v6040 = vmax.f32 %v5016, 0.0
        %v6041 = vmax.f32 %v5017, 0.0
        %v6042 = vmax.f32 %v5018, 0.0
        %v6043 = vmax.f32 %v5019, 0.0
        %v6044 = vmax.f32 %v5020, 0.0
        %v6045 = vmax.f32 %v5021, 0.0
        %v6046 = vmax.f32 %v5022, 0.0
        %v6047 = vmax.f32 %v5023, 0.0
        %v6048 = vmax.f32 %v5024, 0.0
        %v6049 = vmax.f32 %v5025, 0.0
        %v6050 = vmax.f32 %v5026, 0.0
        %v6051 = vmax.f32 %v5027, 0.0
        %v6052 = vmax.f32 %v5028, 0.0
        %v6053 = vmax.f32 %v5029, 0.0
        %v6054 = vmax.f32 %v5030, 0.0
        %v6055 = vmax.f32 %v5031, 0.0
        %v6056 = vmax.f32 %v5032, 0.0
        %v6057 = vmax.f32 %v5033, 0.0
        %v6058 = vmax.f32 %v5034, 0.0
        %v6059 = vmax.f32 %v5035, 0.0
        %v6060 = vmax.f32 %v5036, 0.0
        %v6061 = vmax.f32 %v5037, 0.0
        %v6062 = vmax.f32 %v5038, 0.0
        %v6063 = vmax.f32 %v5039, 0.0
        %v6064 = vmax.f32 %v5040, 0.0
        %v6065 = vmax.f32 %v5041, 0.0
        %v6066 = vmax.f32 %v5042, 0.0
        %v6067 = vmax.f32 %v5043, 0.0
        %v6068 = vmax.f32 %v5044, 0.0
        %v6069 = vmax.f32 %v5045, 0.0
        %v6070 = vmax.f32 %v5046, 0.0
        %v6071 = vmax.f32 %v5047, 0.0
        %v6072 = vmax.f32 %v5048, 0.0
        %v6073 = vmax.f32 %v5049, 0.0
        %v6074 = vmax.f32 %v5050, 0.0
        %v6075 = vmax.f32 %v5051, 0.0
        %v6076 = vmax.f32 %v5052, 0.0
        %v6077 = vmax.f32 %v5053, 0.0
        %v6078 = vmax.f32 %v5054, 0.0
        %v6079 = vmax.f32 %v5055, 0.0
        %v6080 = vmax.f32 %v5056, 0.0
        %v6081 = vmax.f32 %v5057, 0.0
        %v6082 = vmax.f32 %v5058, 0.0
        %v6083 = vmax.f32 %v5059, 0.0
        %v6084 = vmax.f32 %v5060, 0.0
        %v6085 = vmax.f32 %v5061, 0.0
        %v6086 = vmax.f32 %v5062, 0.0
        %v6087 = vmax.f32 %v5063, 0.0
        %v6088 = vmax.f32 %v5064, 0.0
        %v6089 = vmax.f32 %v5065, 0.0
        %v6090 = vmax.f32 %v5066, 0.0
        %v6091 = vmax.f32 %v5067, 0.0
        %v6092 = vmax.f32 %v5068, 0.0
        %v6093 = vmax.f32 %v5069, 0.0
        %v6094 = vmax.f32 %v5070, 0.0
        %v6095 = vmax.f32 %v5071, 0.0
        %v6096 = vmax.f32 %v5072, 0.0
        %v6097 = vmax.f32 %v5073, 0.0
        %v6098 = vmax.f32 %v5074, 0.0
        %v6099 = vmax.f32 %v5075, 0.0
        %v6100 = vmax.f32 %v5076, 0.0
        %v6101 = vmax.f32 %v5077, 0.0
        %v6102 = vmax.f32 %v5078, 0.0
        %v6103 = vmax.f32 %v5079, 0.0
        %v6104 = vmax.f32 %v5080, 0.0
        %v6105 = vmax.f32 %v5081, 0.0
        %v6106 = vmax.f32 %v5082, 0.0
        %v6107 = vmax.f32 %v5083, 0.0
        %v6108 = vmax.f32 %v5084, 0.0
        %v6109 = vmax.f32 %v5085, 0.0
        %v6110 = vmax.f32 %v5086, 0.0
        %v6111 = vmax.f32 %v5087, 0.0
        %v6112 = vmax.f32 %v5088, 0.0
        %v6113 = vmax.f32 %v5089, 0.0
        %v6114 = vmax.f32 %v5090, 0.0
        %v6115 = vmax.f32 %v5091, 0.0
        %v6116 = vmax.f32 %v5092, 0.0
        %v6117 = vmax.f32 %v5093, 0.0
        %v6118 = vmax.f32 %v5094, 0.0
        %v6119 = vmax.f32 %v5095, 0.0
        %v6120 = vmax.f32 %v5096, 0.0
        %v6121 = vmax.f32 %v5097, 0.0
        %v6122 = vmax.f32 %v5098, 0.0
        %v6123 = vmax.f32 %v5099, 0.0
        %v6124 = vmax.f32 %v5100, 0.0
        %v6125 = vmax.f32 %v5101, 0.0
        %v6126 = vmax.f32 %v5102, 0.0
        %v6127 = vmax.f32 %v5103, 0.0
        %v6128 = vmax.f32 %v5104, 0.0
        %v6129 = vmax.f32 %v5105, 0.0
        %v6130 = vmax.f32 %v5106, 0.0
        %v6131 = vmax.f32 %v5107, 0.0
        %v6132 = vmax.f32 %v5108, 0.0
        %v6133 = vmax.f32 %v5109, 0.0
        %v6134 = vmax.f32 %v5110, 0.0
        %v6135 = vmax.f32 %v5111, 0.0
        %v6136 = vmax.f32 %v5112, 0.0
        %v6137 = vmax.f32 %v5113, 0.0
        %v6138 = vmax.f32 %v5114, 0.0
        %v6139 = vmax.f32 %v5115, 0.0
        %v6140 = vmax.f32 %v5116, 0.0
        %v6141 = vmax.f32 %v5117, 0.0
        %v6142 = vmax.f32 %v5118, 0.0
        %v6143 = vmax.f32 %v5119, 0.0
        %v6144 = vmax.f32 %v5120, 0.0
        %v6145 = vmax.f32 %v5121, 0.0
        %v6146 = vmax.f32 %v5122, 0.0
        %v6147 = vmax.f32 %v5123, 0.0
        %v6148 = vmax.f32 %v5124, 0.0
        %v6149 = vmax.f32 %v5125, 0.0
        %v6150 = vmax.f32 %v5126, 0.0
        %v6151 = vmax.f32 %v5127, 0.0
        %v6152 = vmax.f32 %v5128, 0.0
        %v6153 = vmax.f32 %v5129, 0.0
        %v6154 = vmax.f32 %v5130, 0.0
        %v6155 = vmax.f32 %v5131, 0.0
        %v6156 = vmax.f32 %v5132, 0.0
        %v6157 = vmax.f32 %v5133, 0.0
        %v6158 = vmax.f32 %v5134, 0.0
        %v6159 = vmax.f32 %v5135, 0.0
        %v6160 = vmax.f32 %v5136, 0.0
        %v6161 = vmax.f32 %v5137, 0.0
        %v6162 = vmax.f32 %v5138, 0.0
        %v6163 = vmax.f32 %v5139, 0.0
        %v6164 = vmax.f32 %v5140, 0.0
        %v6165 = vmax.f32 %v5141, 0.0
        %v6166 = vmax.f32 %v5142, 0.0
        %v6167 = vmax.f32 %v5143, 0.0
        %v6168 = vmax.f32 %v5144, 0.0
        %v6169 = vmax.f32 %v5145, 0.0
        %v6170 = vmax.f32 %v5146, 0.0
        %v6171 = vmax.f32 %v5147, 0.0
        %v6172 = vmax.f32 %v5148, 0.0
        %v6173 = vmax.f32 %v5149, 0.0
        %v6174 = vmax.f32 %v5150, 0.0
        %v6175 = vmax.f32 %v5151, 0.0
        %v6176 = vmax.f32 %v5152, 0.0
        %v6177 = vmax.f32 %v5153, 0.0
        %v6178 = vmax.f32 %v5154, 0.0
        %v6179 = vmax.f32 %v5155, 0.0
        %v6180 = vmax.f32 %v5156, 0.0
        %v6181 = vmax.f32 %v5157, 0.0
        %v6182 = vmax.f32 %v5158, 0.0
        %v6183 = vmax.f32 %v5159, 0.0
        %v6184 = vmax.f32 %v5160, 0.0
        %v6185 = vmax.f32 %v5161, 0.0
        %v6186 = vmax.f32 %v5162, 0.0
        %v6187 = vmax.f32 %v5163, 0.0
        %v6188 = vmax.f32 %v5164, 0.0
        %v6189 = vmax.f32 %v5165, 0.0
        %v6190 = vmax.f32 %v5166, 0.0
        %v6191 = vmax.f32 %v5167, 0.0
        %v6192 = vmax.f32 %v5168, 0.0
        %v6193 = vmax.f32 %v5169, 0.0
        %v6194 = vmax.f32 %v5170, 0.0
        %v6195 = vmax.f32 %v5171, 0.0
        %v6196 = vmax.f32 %v5172, 0.0
        %v6197 = vmax.f32 %v5173, 0.0
        %v6198 = vmax.f32 %v5174, 0.0
        %v6199 = vmax.f32 %v5175, 0.0
        %v6200 = vmax.f32 %v5176, 0.0
        %v6201 = vmax.f32 %v5177, 0.0
        %v6202 = vmax.f32 %v5178, 0.0
        %v6203 = vmax.f32 %v5179, 0.0
        %v6204 = vmax.f32 %v5180, 0.0
        %v6205 = vmax.f32 %v5181, 0.0
        %v6206 = vmax.f32 %v5182, 0.0
        %v6207 = vmax.f32 %v5183, 0.0
        %v6208 = vmax.f32 %v5184, 0.0
        %v6209 = vmax.f32 %v5185, 0.0
        %v6210 = vmax.f32 %v5186, 0.0
        %v6211 = vmax.f32 %v5187, 0.0
        %v6212 = vmax.f32 %v5188, 0.0
        %v6213 = vmax.f32 %v5189, 0.0
        %v6214 = vmax.f32 %v5190, 0.0
        %v6215 = vmax.f32 %v5191, 0.0
        %v6216 = vmax.f32 %v5192, 0.0
        %v6217 = vmax.f32 %v5193, 0.0
        %v6218 = vmax.f32 %v5194, 0.0
        %v6219 = vmax.f32 %v5195, 0.0
        %v6220 = vmax.f32 %v5196, 0.0
        %v6221 = vmax.f32 %v5197, 0.0
        %v6222 = vmax.f32 %v5198, 0.0
        %v6223 = vmax.f32 %v5199, 0.0
        %v6224 = vmax.f32 %v5200, 0.0
        %v6225 = vmax.f32 %v5201, 0.0
        %v6226 = vmax.f32 %v5202, 0.0
        %v6227 = vmax.f32 %v5203, 0.0
        %v6228 = vmax.f32 %v5204, 0.0
        %v6229 = vmax.f32 %v5205, 0.0
        %v6230 = vmax.f32 %v5206, 0.0
        %v6231 = vmax.f32 %v5207, 0.0
        %v6232 = vmax.f32 %v5208, 0.0
        %v6233 = vmax.f32 %v5209, 0.0
        %v6234 = vmax.f32 %v5210, 0.0
        %v6235 = vmax.f32 %v5211, 0.0
        %v6236 = vmax.f32 %v5212, 0.0
        %v6237 = vmax.f32 %v5213, 0.0
        %v6238 = vmax.f32 %v5214, 0.0
        %v6239 = vmax.f32 %v5215, 0.0
        %v6240 = vmax.f32 %v5216, 0.0
        %v6241 = vmax.f32 %v5217, 0.0
        %v6242 = vmax.f32 %v5218, 0.0
        %v6243 = vmax.f32 %v5219, 0.0
        %v6244 = vmax.f32 %v5220, 0.0
        %v6245 = vmax.f32 %v5221, 0.0
        %v6246 = vmax.f32 %v5222, 0.0
        %v6247 = vmax.f32 %v5223, 0.0
        %v6248 = vmax.f32 %v5224, 0.0
        %v6249 = vmax.f32 %v5225, 0.0
        %v6250 = vmax.f32 %v5226, 0.0
        %v6251 = vmax.f32 %v5227, 0.0
        %v6252 = vmax.f32 %v5228, 0.0
        %v6253 = vmax.f32 %v5229, 0.0
        %v6254 = vmax.f32 %v5230, 0.0
        %v6255 = vmax.f32 %v5231, 0.0
        %v6256 = vmax.f32 %v5232, 0.0
        %v6257 = vmax.f32 %v5233, 0.0
        %v6258 = vmax.f32 %v5234, 0.0
        %v6259 = vmax.f32 %v5235, 0.0
        %v6260 = vmax.f32 %v5236, 0.0
        %v6261 = vmax.f32 %v5237, 0.0
        %v6262 = vmax.f32 %v5238, 0.0
        %v6263 = vmax.f32 %v5239, 0.0
        %v6264 = vmax.f32 %v5240, 0.0
        %v6265 = vmax.f32 %v5241, 0.0
        %v6266 = vmax.f32 %v5242, 0.0
        %v6267 = vmax.f32 %v5243, 0.0
        %v6268 = vmax.f32 %v5244, 0.0
        %v6269 = vmax.f32 %v5245, 0.0
        %v6270 = vmax.f32 %v5246, 0.0
        %v6271 = vmax.f32 %v5247, 0.0
        %v6272 = vmax.f32 %v5248, 0.0
        %v6273 = vmax.f32 %v5249, 0.0
        %v6274 = vmax.f32 %v5250, 0.0
        %v6275 = vmax.f32 %v5251, 0.0
        %v6276 = vmax.f32 %v5252, 0.0
        %v6277 = vmax.f32 %v5253, 0.0
        %v6278 = vmax.f32 %v5254, 0.0
        %v6279 = vmax.f32 %v5255, 0.0
        %v6280 = vmax.f32 %v5256, 0.0
        %v6281 = vmax.f32 %v5257, 0.0
        %v6282 = vmax.f32 %v5258, 0.0
        %v6283 = vmax.f32 %v5259, 0.0
        %v6284 = vmax.f32 %v5260, 0.0
        %v6285 = vmax.f32 %v5261, 0.0
        %v6286 = vmax.f32 %v5262, 0.0
        %v6287 = vmax.f32 %v5263, 0.0
        %v6288 = vmax.f32 %v5264, 0.0
        %v6289 = vmax.f32 %v5265, 0.0
        %v6290 = vmax.f32 %v5266, 0.0
        %v6291 = vmax.f32 %v5267, 0.0
        %v6292 = vmax.f32 %v5268, 0.0
        %v6293 = vmax.f32 %v5269, 0.0
        %v6294 = vmax.f32 %v5270, 0.0
        %v6295 = vmax.f32 %v5271, 0.0
        %v6296 = vmax.f32 %v5272, 0.0
        %v6297 = vmax.f32 %v5273, 0.0
        %v6298 = vmax.f32 %v5274, 0.0
        %v6299 = vmax.f32 %v5275, 0.0
        %v6300 = vmax.f32 %v5276, 0.0
        %v6301 = vmax.f32 %v5277, 0.0
        %v6302 = vmax.f32 %v5278, 0.0
        %v6303 = vmax.f32 %v5279, 0.0
        %v6304 = vmax.f32 %v5280, 0.0
        %v6305 = vmax.f32 %v5281, 0.0
        %v6306 = vmax.f32 %v5282, 0.0
        %v6307 = vmax.f32 %v5283, 0.0
        %v6308 = vmax.f32 %v5284, 0.0
        %v6309 = vmax.f32 %v5285, 0.0
        %v6310 = vmax.f32 %v5286, 0.0
        %v6311 = vmax.f32 %v5287, 0.0
        %v6312 = vmax.f32 %v5288, 0.0
        %v6313 = vmax.f32 %v5289, 0.0
        %v6314 = vmax.f32 %v5290, 0.0
        %v6315 = vmax.f32 %v5291, 0.0
        %v6316 = vmax.f32 %v5292, 0.0
        %v6317 = vmax.f32 %v5293, 0.0
        %v6318 = vmax.f32 %v5294, 0.0
        %v6319 = vmax.f32 %v5295, 0.0
        %v6320 = vmax.f32 %v5296, 0.0
        %v6321 = vmax.f32 %v5297, 0.0
        %v6322 = vmax.f32 %v5298, 0.0
        %v6323 = vmax.f32 %v5299, 0.0
        %v6324 = vmax.f32 %v5300, 0.0
        %v6325 = vmax.f32 %v5301, 0.0
        %v6326 = vmax.f32 %v5302, 0.0
        %v6327 = vmax.f32 %v5303, 0.0
        %v6328 = vmax.f32 %v5304, 0.0
        %v6329 = vmax.f32 %v5305, 0.0
        %v6330 = vmax.f32 %v5306, 0.0
        %v6331 = vmax.f32 %v5307, 0.0
        %v6332 = vmax.f32 %v5308, 0.0
        %v6333 = vmax.f32 %v5309, 0.0
        %v6334 = vmax.f32 %v5310, 0.0
        %v6335 = vmax.f32 %v5311, 0.0
        %v6336 = vmax.f32 %v5312, 0.0
        %v6337 = vmax.f32 %v5313, 0.0
        %v6338 = vmax.f32 %v5314, 0.0
        %v6339 = vmax.f32 %v5315, 0.0
        %v6340 = vmax.f32 %v5316, 0.0
        %v6341 = vmax.f32 %v5317, 0.0
        %v6342 = vmax.f32 %v5318, 0.0
        %v6343 = vmax.f32 %v5319, 0.0
        %v6344 = vmax.f32 %v5320, 0.0
        %v6345 = vmax.f32 %v5321, 0.0
        %v6346 = vmax.f32 %v5322, 0.0
        %v6347 = vmax.f32 %v5323, 0.0
        %v6348 = vmax.f32 %v5324, 0.0
        %v6349 = vmax.f32 %v5325, 0.0
        %v6350 = vmax.f32 %v5326, 0.0
        %v6351 = vmax.f32 %v5327, 0.0
        %v6352 = vmax.f32 %v5328, 0.0
        %v6353 = vmax.f32 %v5329, 0.0
        %v6354 = vmax.f32 %v5330, 0.0
        %v6355 = vmax.f32 %v5331, 0.0
        %v6356 = vmax.f32 %v5332, 0.0
        %v6357 = vmax.f32 %v5333, 0.0
        %v6358 = vmax.f32 %v5334, 0.0
        %v6359 = vmax.f32 %v5335, 0.0
        %v6360 = vmax.f32 %v5336, 0.0
        %v6361 = vmax.f32 %v5337, 0.0
        %v6362 = vmax.f32 %v5338, 0.0
        %v6363 = vmax.f32 %v5339, 0.0
        %v6364 = vmax.f32 %v5340, 0.0
        %v6365 = vmax.f32 %v5341, 0.0
        %v6366 = vmax.f32 %v5342, 0.0
        %v6367 = vmax.f32 %v5343, 0.0
        %v6368 = vmax.f32 %v5344, 0.0
        %v6369 = vmax.f32 %v5345, 0.0
        %v6370 = vmax.f32 %v5346, 0.0
        %v6371 = vmax.f32 %v5347, 0.0
        %v6372 = vmax.f32 %v5348, 0.0
        %v6373 = vmax.f32 %v5349, 0.0
        %v6374 = vmax.f32 %v5350, 0.0
        %v6375 = vmax.f32 %v5351, 0.0
        %v6376 = vmax.f32 %v5352, 0.0
        %v6377 = vmax.f32 %v5353, 0.0
        %v6378 = vmax.f32 %v5354, 0.0
        %v6379 = vmax.f32 %v5355, 0.0
        %v6380 = vmax.f32 %v5356, 0.0
        %v6381 = vmax.f32 %v5357, 0.0
        %v6382 = vmax.f32 %v5358, 0.0
        %v6383 = vmax.f32 %v5359, 0.0
        %v6384 = vmax.f32 %v5360, 0.0
        %v6385 = vmax.f32 %v5361, 0.0
        %v6386 = vmax.f32 %v5362, 0.0
        %v6387 = vmax.f32 %v5363, 0.0
        %v6388 = vmax.f32 %v5364, 0.0
        %v6389 = vmax.f32 %v5365, 0.0
        %v6390 = vmax.f32 %v5366, 0.0
        %v6391 = vmax.f32 %v5367, 0.0
        %v6392 = vmax.f32 %v5368, 0.0
        %v6393 = vmax.f32 %v5369, 0.0
        %v6394 = vmax.f32 %v5370, 0.0
        %v6395 = vmax.f32 %v5371, 0.0
        %v6396 = vmax.f32 %v5372, 0.0
        %v6397 = vmax.f32 %v5373, 0.0
        %v6398 = vmax.f32 %v5374, 0.0
        %v6399 = vmax.f32 %v5375, 0.0
        %v6400 = vmax.f32 %v5376, 0.0
        %v6401 = vmax.f32 %v5377, 0.0
        %v6402 = vmax.f32 %v5378, 0.0
        %v6403 = vmax.f32 %v5379, 0.0
        %v6404 = vmax.f32 %v5380, 0.0
        %v6405 = vmax.f32 %v5381, 0.0
        %v6406 = vmax.f32 %v5382, 0.0
        %v6407 = vmax.f32 %v5383, 0.0
        %v6408 = vmax.f32 %v5384, 0.0
        %v6409 = vmax.f32 %v5385, 0.0
        %v6410 = vmax.f32 %v5386, 0.0
        %v6411 = vmax.f32 %v5387, 0.0
        %v6412 = vmax.f32 %v5388, 0.0
        %v6413 = vmax.f32 %v5389, 0.0
        %v6414 = vmax.f32 %v5390, 0.0
        %v6415 = vmax.f32 %v5391, 0.0
        %v6416 = vmax.f32 %v5392, 0.0
        %v6417 = vmax.f32 %v5393, 0.0
        %v6418 = vmax.f32 %v5394, 0.0
        %v6419 = vmax.f32 %v5395, 0.0
        %v6420 = vmax.f32 %v5396, 0.0
        %v6421 = vmax.f32 %v5397, 0.0
        %v6422 = vmax.f32 %v5398, 0.0
        %v6423 = vmax.f32 %v5399, 0.0
        %v6424 = vmax.f32 %v5400, 0.0
        %v6425 = vmax.f32 %v5401, 0.0
        %v6426 = vmax.f32 %v5402, 0.0
        %v6427 = vmax.f32 %v5403, 0.0
        %v6428 = vmax.f32 %v5404, 0.0
        %v6429 = vmax.f32 %v5405, 0.0
        %v6430 = vmax.f32 %v5406, 0.0
        %v6431 = vmax.f32 %v5407, 0.0
        %v6432 = vmax.f32 %v5408, 0.0
        %v6433 = vmax.f32 %v5409, 0.0
        %v6434 = vmax.f32 %v5410, 0.0
        %v6435 = vmax.f32 %v5411, 0.0
        %v6436 = vmax.f32 %v5412, 0.0
        %v6437 = vmax.f32 %v5413, 0.0
        %v6438 = vmax.f32 %v5414, 0.0
        %v6439 = vmax.f32 %v5415, 0.0
        %v6440 = vmax.f32 %v5416, 0.0
        %v6441 = vmax.f32 %v5417, 0.0
        %v6442 = vmax.f32 %v5418, 0.0
        %v6443 = vmax.f32 %v5419, 0.0
        %v6444 = vmax.f32 %v5420, 0.0
        %v6445 = vmax.f32 %v5421, 0.0
        %v6446 = vmax.f32 %v5422, 0.0
        %v6447 = vmax.f32 %v5423, 0.0
        %v6448 = vmax.f32 %v5424, 0.0
        %v6449 = vmax.f32 %v5425, 0.0
        %v6450 = vmax.f32 %v5426, 0.0
        %v6451 = vmax.f32 %v5427, 0.0
        %v6452 = vmax.f32 %v5428, 0.0
        %v6453 = vmax.f32 %v5429, 0.0
        %v6454 = vmax.f32 %v5430, 0.0
        %v6455 = vmax.f32 %v5431, 0.0
        %v6456 = vmax.f32 %v5432, 0.0
        %v6457 = vmax.f32 %v5433, 0.0
        %v6458 = vmax.f32 %v5434, 0.0
        %v6459 = vmax.f32 %v5435, 0.0
        %v6460 = vmax.f32 %v5436, 0.0
        %v6461 = vmax.f32 %v5437, 0.0
        %v6462 = vmax.f32 %v5438, 0.0
        %v6463 = vmax.f32 %v5439, 0.0
        %v6464 = vmax.f32 %v5440, 0.0
        %v6465 = vmax.f32 %v5441, 0.0
        %v6466 = vmax.f32 %v5442, 0.0
        %v6467 = vmax.f32 %v5443, 0.0
        %v6468 = vmax.f32 %v5444, 0.0
        %v6469 = vmax.f32 %v5445, 0.0
        %v6470 = vmax.f32 %v5446, 0.0
        %v6471 = vmax.f32 %v5447, 0.0
        %v6472 = vmax.f32 %v5448, 0.0
        %v6473 = vmax.f32 %v5449, 0.0
        %v6474 = vmax.f32 %v5450, 0.0
        %v6475 = vmax.f32 %v5451, 0.0
        %v6476 = vmax.f32 %v5452, 0.0
        %v6477 = vmax.f32 %v5453, 0.0
        %v6478 = vmax.f32 %v5454, 0.0
        %v6479 = vmax.f32 %v5455, 0.0
        %v6480 = vmax.f32 %v5456, 0.0
        %v6481 = vmax.f32 %v5457, 0.0
        %v6482 = vmax.f32 %v5458, 0.0
        %v6483 = vmax.f32 %v5459, 0.0
        %v6484 = vmax.f32 %v5460, 0.0
        %v6485 = vmax.f32 %v5461, 0.0
        %v6486 = vmax.f32 %v5462, 0.0
        %v6487 = vmax.f32 %v5463, 0.0
        %v6488 = vmax.f32 %v5464, 0.0
        %v6489 = vmax.f32 %v5465, 0.0
        %v6490 = vmax.f32 %v5466, 0.0
        %v6491 = vmax.f32 %v5467, 0.0
        %v6492 = vmax.f32 %v5468, 0.0
        %v6493 = vmax.f32 %v5469, 0.0
        %v6494 = vmax.f32 %v5470, 0.0
        %v6495 = vmax.f32 %v5471, 0.0
        %v6496 = vmax.f32 %v5472, 0.0
        %v6497 = vmax.f32 %v5473, 0.0
        %v6498 = vmax.f32 %v5474, 0.0
        %v6499 = vmax.f32 %v5475, 0.0
        %v6500 = vmax.f32 %v5476, 0.0
        %v6501 = vmax.f32 %v5477, 0.0
        %v6502 = vmax.f32 %v5478, 0.0
        %v6503 = vmax.f32 %v5479, 0.0
        %v6504 = vmax.f32 %v5480, 0.0
        %v6505 = vmax.f32 %v5481, 0.0
        %v6506 = vmax.f32 %v5482, 0.0
        %v6507 = vmax.f32 %v5483, 0.0
        %v6508 = vmax.f32 %v5484, 0.0
        %v6509 = vmax.f32 %v5485, 0.0
        %v6510 = vmax.f32 %v5486, 0.0
        %v6511 = vmax.f32 %v5487, 0.0
        %v6512 = vmax.f32 %v5488, 0.0
        %v6513 = vmax.f32 %v5489, 0.0
        %v6514 = vmax.f32 %v5490, 0.0
        %v6515 = vmax.f32 %v5491, 0.0
        %v6516 = vmax.f32 %v5492, 0.0
        %v6517 = vmax.f32 %v5493, 0.0
        %v6518 = vmax.f32 %v5494, 0.0
        %v6519 = vmax.f32 %v5495, 0.0
        %v6520 = vmax.f32 %v5496, 0.0
        %v6521 = vmax.f32 %v5497, 0.0
        %v6522 = vmax.f32 %v5498, 0.0
        %v6523 = vmax.f32 %v5499, 0.0
        %v6524 = vmax.f32 %v5500, 0.0
        %v6525 = vmax.f32 %v5501, 0.0
        %v6526 = vmax.f32 %v5502, 0.0
        %v6527 = vmax.f32 %v5503, 0.0
        %v6528 = vmax.f32 %v5504, 0.0
        %v6529 = vmax.f32 %v5505, 0.0
        %v6530 = vmax.f32 %v5506, 0.0
        %v6531 = vmax.f32 %v5507, 0.0
        %v6532 = vmax.f32 %v5508, 0.0
        %v6533 = vmax.f32 %v5509, 0.0
        %v6534 = vmax.f32 %v5510, 0.0
        %v6535 = vmax.f32 %v5511, 0.0
        %v6536 = vmax.f32 %v5512, 0.0
        %v6537 = vmax.f32 %v5513, 0.0
        %v6538 = vmax.f32 %v5514, 0.0
        %v6539 = vmax.f32 %v5515, 0.0
        %v6540 = vmax.f32 %v5516, 0.0
        %v6541 = vmax.f32 %v5517, 0.0
        %v6542 = vmax.f32 %v5518, 0.0
        %v6543 = vmax.f32 %v5519, 0.0
        %v6544 = vmax.f32 %v5520, 0.0
        %v6545 = vmax.f32 %v5521, 0.0
        %v6546 = vmax.f32 %v5522, 0.0
        %v6547 = vmax.f32 %v5523, 0.0
        %v6548 = vmax.f32 %v5524, 0.0
        %v6549 = vmax.f32 %v5525, 0.0
        %v6550 = vmax.f32 %v5526, 0.0
        %v6551 = vmax.f32 %v5527, 0.0
        %v6552 = vmax.f32 %v5528, 0.0
        %v6553 = vmax.f32 %v5529, 0.0
        %v6554 = vmax.f32 %v5530, 0.0
        %v6555 = vmax.f32 %v5531, 0.0
        %v6556 = vadd.f32 %v5532, %v5540
        %v6557 = vrot.slane %v6556, 4
        %v6558 = vadd.f32 %v6556, %v6557
        %v6559 = vrot.slane %v6558, 2
        %v6560 = vadd.f32 %v6558, %v6559
        %v6561 = vrot.slane %v6560, 1
        %v6562 = vadd.f32 %v6560, %v6561
        %v6563 = vadd.f32 %v5533, %v5541
        %v6564 = vrot.slane %v6563, 4
        %v6565 = vadd.f32 %v6563, %v6564
        %v6566 = vrot.slane %v6565, 2
        %v6567 = vadd.f32 %v6565, %v6566
        %v6568 = vrot.slane %v6567, 1
        %v6569 = vadd.f32 %v6567, %v6568
        %v6570 = vadd.f32 %v5534, %v5542
        %v6571 = vrot.slane %v6570, 4
        %v6572 = vadd.f32 %v6570, %v6571
        %v6573 = vrot.slane %v6572, 2
        %v6574 = vadd.f32 %v6572, %v6573
        %v6575 = vrot.slane %v6574, 1
        %v6576 = vadd.f32 %v6574, %v6575
        %v6577 = vadd.f32 %v5535, %v5543
        %v6578 = vrot.slane %v6577, 4
        %v6579 = vadd.f32 %v6577, %v6578
        %v6580 = vrot.slane %v6579, 2
        %v6581 = vadd.f32 %v6579, %v6580
        %v6582 = vrot.slane %v6581, 1
        %v6583 = vadd.f32 %v6581, %v6582
        %v6584 = vadd.f32 %v5536, %v5544
        %v6585 = vrot.slane %v6584, 4
        %v6586 = vadd.f32 %v6584, %v6585
        %v6587 = vrot.slane %v6586, 2
        %v6588 = vadd.f32 %v6586, %v6587
        %v6589 = vrot.slane %v6588, 1
        %v6590 = vadd.f32 %v6588, %v6589
        %v6591 = vadd.f32 %v5537, %v5545
        %v6592 = vrot.slane %v6591, 4
        %v6593 = vadd.f32 %v6591, %v6592
        %v6594 = vrot.slane %v6593, 2
        %v6595 = vadd.f32 %v6593, %v6594
        %v6596 = vrot.slane %v6595, 1
        %v6597 = vadd.f32 %v6595, %v6596
        %v6598 = vadd.f32 %v5538, %v5546
        %v6599 = vrot.slane %v6598, 4
        %v6600 = vadd.f32 %v6598, %v6599
        %v6601 = vrot.slane %v6600, 2
        %v6602 = vadd.f32 %v6600, %v6601
        %v6603 = vrot.slane %v6602, 1
        %v6604 = vadd.f32 %v6602, %v6603
        %v6605 = vadd.f32 %v5539, %v5547
        %v6606 = vrot.slane %v6605, 4
        %v6607 = vadd.f32 %v6605, %v6606
        %v6608 = vrot.slane %v6607, 2
        %v6609 = vadd.f32 %v6607, %v6608
        %v6610 = vrot.slane %v6609, 1
        %v6611 = vadd.f32 %v6609, %v6610
        %v6612 = vadd.f32 %v5548, %v5556
        %v6613 = vrot.slane %v6612, 4
        %v6614 = vadd.f32 %v6612, %v6613
        %v6615 = vrot.slane %v6614, 2
        %v6616 = vadd.f32 %v6614, %v6615
        %v6617 = vrot.slane %v6616, 1
        %v6618 = vadd.f32 %v6616, %v6617
        %v6619 = vadd.f32 %v5549, %v5557
        %v6620 = vrot.slane %v6619, 4
        %v6621 = vadd.f32 %v6619, %v6620
        %v6622 = vrot.slane %v6621, 2
        %v6623 = vadd.f32 %v6621, %v6622
        %v6624 = vrot.slane %v6623, 1
        %v6625 = vadd.f32 %v6623, %v6624
        %v6626 = vadd.f32 %v5550, %v5558
        %v6627 = vrot.slane %v6626, 4
        %v6628 = vadd.f32 %v6626, %v6627
        %v6629 = vrot.slane %v6628, 2
        %v6630 = vadd.f32 %v6628, %v6629
        %v6631 = vrot.slane %v6630, 1
        %v6632 = vadd.f32 %v6630, %v6631
        %v6633 = vadd.f32 %v5551, %v5559
        %v6634 = vrot.slane %v6633, 4
        %v6635 = vadd.f32 %v6633, %v6634
        %v6636 = vrot.slane %v6635, 2
        %v6637 = vadd.f32 %v6635, %v6636
        %v6638 = vrot.slane %v6637, 1
        %v6639 = vadd.f32 %v6637, %v6638
        %v6640 = vadd.f32 %v5552, %v5560
        %v6641 = vrot.slane %v6640, 4
        %v6642 = vadd.f32 %v6640, %v6641
        %v6643 = vrot.slane %v6642, 2
        %v6644 = vadd.f32 %v6642, %v6643
        %v6645 = vrot.slane %v6644, 1
        %v6646 = vadd.f32 %v6644, %v6645
        %v6647 = vadd.f32 %v5553, %v5561
        %v6648 = vrot.slane %v6647, 4
        %v6649 = vadd.f32 %v6647, %v6648
        %v6650 = vrot.slane %v6649, 2
        %v6651 = vadd.f32 %v6649, %v6650
        %v6652 = vrot.slane %v6651, 1
        %v6653 = vadd.f32 %v6651, %v6652
        %v6654 = vadd.f32 %v5554, %v5562
        %v6655 = vrot.slane %v6654, 4
        %v6656 = vadd.f32 %v6654, %v6655
        %v6657 = vrot.slane %v6656, 2
        %v6658 = vadd.f32 %v6656, %v6657
        %v6659 = vrot.slane %v6658, 1
        %v6660 = vadd.f32 %v6658, %v6659
        %v6661 = vadd.f32 %v5555, %v5563
        %v6662 = vrot.slane %v6661, 4
        %v6663 = vadd.f32 %v6661, %v6662
        %v6664 = vrot.slane %v6663, 2
        %v6665 = vadd.f32 %v6663, %v6664
        %v6666 = vrot.slane %v6665, 1
        %v6667 = vadd.f32 %v6665, %v6666
        %v6668 = vadd.f32 %v5564, %v5572
        %v6669 = vrot.slane %v6668, 4
        %v6670 = vadd.f32 %v6668, %v6669
        %v6671 = vrot.slane %v6670, 2
        %v6672 = vadd.f32 %v6670, %v6671
        %v6673 = vrot.slane %v6672, 1
        %v6674 = vadd.f32 %v6672, %v6673
        %v6675 = vadd.f32 %v5565, %v5573
        %v6676 = vrot.slane %v6675, 4
        %v6677 = vadd.f32 %v6675, %v6676
        %v6678 = vrot.slane %v6677, 2
        %v6679 = vadd.f32 %v6677, %v6678
        %v6680 = vrot.slane %v6679, 1
        %v6681 = vadd.f32 %v6679, %v6680
        %v6682 = vadd.f32 %v5566, %v5574
        %v6683 = vrot.slane %v6682, 4
        %v6684 = vadd.f32 %v6682, %v6683
        %v6685 = vrot.slane %v6684, 2
        %v6686 = vadd.f32 %v6684, %v6685
        %v6687 = vrot.slane %v6686, 1
        %v6688 = vadd.f32 %v6686, %v6687
        %v6689 = vadd.f32 %v5567, %v5575
        %v6690 = vrot.slane %v6689, 4
        %v6691 = vadd.f32 %v6689, %v6690
        %v6692 = vrot.slane %v6691, 2
        %v6693 = vadd.f32 %v6691, %v6692
        %v6694 = vrot.slane %v6693, 1
        %v6695 = vadd.f32 %v6693, %v6694
        %v6696 = vadd.f32 %v5568, %v5576
        %v6697 = vrot.slane %v6696, 4
        %v6698 = vadd.f32 %v6696, %v6697
        %v6699 = vrot.slane %v6698, 2
        %v6700 = vadd.f32 %v6698, %v6699
        %v6701 = vrot.slane %v6700, 1
        %v6702 = vadd.f32 %v6700, %v6701
        %v6703 = vadd.f32 %v5569, %v5577
        %v6704 = vrot.slane %v6703, 4
        %v6705 = vadd.f32 %v6703, %v6704
        %v6706 = vrot.slane %v6705, 2
        %v6707 = vadd.f32 %v6705, %v6706
        %v6708 = vrot.slane %v6707, 1
        %v6709 = vadd.f32 %v6707, %v6708
        %v6710 = vadd.f32 %v5570, %v5578
        %v6711 = vrot.slane %v6710, 4
        %v6712 = vadd.f32 %v6710, %v6711
        %v6713 = vrot.slane %v6712, 2
        %v6714 = vadd.f32 %v6712, %v6713
        %v6715 = vrot.slane %v6714, 1
        %v6716 = vadd.f32 %v6714, %v6715
        %v6717 = vadd.f32 %v5571, %v5579
        %v6718 = vrot.slane %v6717, 4
        %v6719 = vadd.f32 %v6717, %v6718
        %v6720 = vrot.slane %v6719, 2
        %v6721 = vadd.f32 %v6719, %v6720
        %v6722 = vrot.slane %v6721, 1
        %v6723 = vadd.f32 %v6721, %v6722
        %v6724 = vadd.f32 %v5580, %v5588
        %v6725 = vrot.slane %v6724, 4
        %v6726 = vadd.f32 %v6724, %v6725
        %v6727 = vrot.slane %v6726, 2
        %v6728 = vadd.f32 %v6726, %v6727
        %v6729 = vrot.slane %v6728, 1
        %v6730 = vadd.f32 %v6728, %v6729
        %v6731 = vadd.f32 %v5581, %v5589
        %v6732 = vrot.slane %v6731, 4
        %v6733 = vadd.f32 %v6731, %v6732
        %v6734 = vrot.slane %v6733, 2
        %v6735 = vadd.f32 %v6733, %v6734
        %v6736 = vrot.slane %v6735, 1
        %v6737 = vadd.f32 %v6735, %v6736
        %v6738 = vadd.f32 %v5582, %v5590
        %v6739 = vrot.slane %v6738, 4
        %v6740 = vadd.f32 %v6738, %v6739
        %v6741 = vrot.slane %v6740, 2
        %v6742 = vadd.f32 %v6740, %v6741
        %v6743 = vrot.slane %v6742, 1
        %v6744 = vadd.f32 %v6742, %v6743
        %v6745 = vadd.f32 %v5583, %v5591
        %v6746 = vrot.slane %v6745, 4
        %v6747 = vadd.f32 %v6745, %v6746
        %v6748 = vrot.slane %v6747, 2
        %v6749 = vadd.f32 %v6747, %v6748
        %v6750 = vrot.slane %v6749, 1
        %v6751 = vadd.f32 %v6749, %v6750
        %v6752 = vadd.f32 %v5584, %v5592
        %v6753 = vrot.slane %v6752, 4
        %v6754 = vadd.f32 %v6752, %v6753
        %v6755 = vrot.slane %v6754, 2
        %v6756 = vadd.f32 %v6754, %v6755
        %v6757 = vrot.slane %v6756, 1
        %v6758 = vadd.f32 %v6756, %v6757
        %v6759 = vadd.f32 %v5585, %v5593
        %v6760 = vrot.slane %v6759, 4
        %v6761 = vadd.f32 %v6759, %v6760
        %v6762 = vrot.slane %v6761, 2
        %v6763 = vadd.f32 %v6761, %v6762
        %v6764 = vrot.slane %v6763, 1
        %v6765 = vadd.f32 %v6763, %v6764
        %v6766 = vadd.f32 %v5586, %v5594
        %v6767 = vrot.slane %v6766, 4
        %v6768 = vadd.f32 %v6766, %v6767
        %v6769 = vrot.slane %v6768, 2
        %v6770 = vadd.f32 %v6768, %v6769
        %v6771 = vrot.slane %v6770, 1
        %v6772 = vadd.f32 %v6770, %v6771
        %v6773 = vadd.f32 %v5587, %v5595
        %v6774 = vrot.slane %v6773, 4
        %v6775 = vadd.f32 %v6773, %v6774
        %v6776 = vrot.slane %v6775, 2
        %v6777 = vadd.f32 %v6775, %v6776
        %v6778 = vrot.slane %v6777, 1
        %v6779 = vadd.f32 %v6777, %v6778
        %v6780 = vadd.f32 %v5596, %v5604
        %v6781 = vrot.slane %v6780, 4
        %v6782 = vadd.f32 %v6780, %v6781
        %v6783 = vrot.slane %v6782, 2
        %v6784 = vadd.f32 %v6782, %v6783
        %v6785 = vrot.slane %v6784, 1
        %v6786 = vadd.f32 %v6784, %v6785
        %v6787 = vadd.f32 %v5597, %v5605
        %v6788 = vrot.slane %v6787, 4
        %v6789 = vadd.f32 %v6787, %v6788
        %v6790 = vrot.slane %v6789, 2
        %v6791 = vadd.f32 %v6789, %v6790
        %v6792 = vrot.slane %v6791, 1
        %v6793 = vadd.f32 %v6791, %v6792
        %v6794 = vadd.f32 %v5598, %v5606
        %v6795 = vrot.slane %v6794, 4
        %v6796 = vadd.f32 %v6794, %v6795
        %v6797 = vrot.slane %v6796, 2
        %v6798 = vadd.f32 %v6796, %v6797
        %v6799 = vrot.slane %v6798, 1
        %v6800 = vadd.f32 %v6798, %v6799
        %v6801 = vadd.f32 %v5599, %v5607
        %v6802 = vrot.slane %v6801, 4
        %v6803 = vadd.f32 %v6801, %v6802
        %v6804 = vrot.slane %v6803, 2
        %v6805 = vadd.f32 %v6803, %v6804
        %v6806 = vrot.slane %v6805, 1
        %v6807 = vadd.f32 %v6805, %v6806
        %v6808 = vadd.f32 %v5600, %v5608
        %v6809 = vrot.slane %v6808, 4
        %v6810 = vadd.f32 %v6808, %v6809
        %v6811 = vrot.slane %v6810, 2
        %v6812 = vadd.f32 %v6810, %v6811
        %v6813 = vrot.slane %v6812, 1
        %v6814 = vadd.f32 %v6812, %v6813
        %v6815 = vadd.f32 %v5601, %v5609
        %v6816 = vrot.slane %v6815, 4
        %v6817 = vadd.f32 %v6815, %v6816
        %v6818 = vrot.slane %v6817, 2
        %v6819 = vadd.f32 %v6817, %v6818
        %v6820 = vrot.slane %v6819, 1
        %v6821 = vadd.f32 %v6819, %v6820
        %v6822 = vadd.f32 %v5602, %v5610
        %v6823 = vrot.slane %v6822, 4
        %v6824 = vadd.f32 %v6822, %v6823
        %v6825 = vrot.slane %v6824, 2
        %v6826 = vadd.f32 %v6824, %v6825
        %v6827 = vrot.slane %v6826, 1
        %v6828 = vadd.f32 %v6826, %v6827
        %v6829 = vadd.f32 %v5603, %v5611
        %v6830 = vrot.slane %v6829, 4
        %v6831 = vadd.f32 %v6829, %v6830
        %v6832 = vrot.slane %v6831, 2
        %v6833 = vadd.f32 %v6831, %v6832
        %v6834 = vrot.slane %v6833, 1
        %v6835 = vadd.f32 %v6833, %v6834
        %v6836 = vadd.f32 %v5612, %v5620
        %v6837 = vrot.slane %v6836, 4
        %v6838 = vadd.f32 %v6836, %v6837
        %v6839 = vrot.slane %v6838, 2
        %v6840 = vadd.f32 %v6838, %v6839
        %v6841 = vrot.slane %v6840, 1
        %v6842 = vadd.f32 %v6840, %v6841
        %v6843 = vadd.f32 %v5613, %v5621
        %v6844 = vrot.slane %v6843, 4
        %v6845 = vadd.f32 %v6843, %v6844
        %v6846 = vrot.slane %v6845, 2
        %v6847 = vadd.f32 %v6845, %v6846
        %v6848 = vrot.slane %v6847, 1
        %v6849 = vadd.f32 %v6847, %v6848
        %v6850 = vadd.f32 %v5614, %v5622
        %v6851 = vrot.slane %v6850, 4
        %v6852 = vadd.f32 %v6850, %v6851
        %v6853 = vrot.slane %v6852, 2
        %v6854 = vadd.f32 %v6852, %v6853
        %v6855 = vrot.slane %v6854, 1
        %v6856 = vadd.f32 %v6854, %v6855
        %v6857 = vadd.f32 %v5615, %v5623
        %v6858 = vrot.slane %v6857, 4
        %v6859 = vadd.f32 %v6857, %v6858
        %v6860 = vrot.slane %v6859, 2
        %v6861 = vadd.f32 %v6859, %v6860
        %v6862 = vrot.slane %v6861, 1
        %v6863 = vadd.f32 %v6861, %v6862
        %v6864 = vadd.f32 %v5616, %v5624
        %v6865 = vrot.slane %v6864, 4
        %v6866 = vadd.f32 %v6864, %v6865
        %v6867 = vrot.slane %v6866, 2
        %v6868 = vadd.f32 %v6866, %v6867
        %v6869 = vrot.slane %v6868, 1
        %v6870 = vadd.f32 %v6868, %v6869
        %v6871 = vadd.f32 %v5617, %v5625
        %v6872 = vrot.slane %v6871, 4
        %v6873 = vadd.f32 %v6871, %v6872
        %v6874 = vrot.slane %v6873, 2
        %v6875 = vadd.f32 %v6873, %v6874
        %v6876 = vrot.slane %v6875, 1
        %v6877 = vadd.f32 %v6875, %v6876
        %v6878 = vadd.f32 %v5618, %v5626
        %v6879 = vrot.slane %v6878, 4
        %v6880 = vadd.f32 %v6878, %v6879
        %v6881 = vrot.slane %v6880, 2
        %v6882 = vadd.f32 %v6880, %v6881
        %v6883 = vrot.slane %v6882, 1
        %v6884 = vadd.f32 %v6882, %v6883
        %v6885 = vadd.f32 %v5619, %v5627
        %v6886 = vrot.slane %v6885, 4
        %v6887 = vadd.f32 %v6885, %v6886
        %v6888 = vrot.slane %v6887, 2
        %v6889 = vadd.f32 %v6887, %v6888
        %v6890 = vrot.slane %v6889, 1
        %v6891 = vadd.f32 %v6889, %v6890
        %v6892 = vadd.f32 %v5628, %v5636
        %v6893 = vrot.slane %v6892, 4
        %v6894 = vadd.f32 %v6892, %v6893
        %v6895 = vrot.slane %v6894, 2
        %v6896 = vadd.f32 %v6894, %v6895
        %v6897 = vrot.slane %v6896, 1
        %v6898 = vadd.f32 %v6896, %v6897
        %v6899 = vadd.f32 %v5629, %v5637
        %v6900 = vrot.slane %v6899, 4
        %v6901 = vadd.f32 %v6899, %v6900
        %v6902 = vrot.slane %v6901, 2
        %v6903 = vadd.f32 %v6901, %v6902
        %v6904 = vrot.slane %v6903, 1
        %v6905 = vadd.f32 %v6903, %v6904
        %v6906 = vadd.f32 %v5630, %v5638
        %v6907 = vrot.slane %v6906, 4
        %v6908 = vadd.f32 %v6906, %v6907
        %v6909 = vrot.slane %v6908, 2
        %v6910 = vadd.f32 %v6908, %v6909
        %v6911 = vrot.slane %v6910, 1
        %v6912 = vadd.f32 %v6910, %v6911
        %v6913 = vadd.f32 %v5631, %v5639
        %v6914 = vrot.slane %v6913, 4
        %v6915 = vadd.f32 %v6913, %v6914
        %v6916 = vrot.slane %v6915, 2
        %v6917 = vadd.f32 %v6915, %v6916
        %v6918 = vrot.slane %v6917, 1
        %v6919 = vadd.f32 %v6917, %v6918
        %v6920 = vadd.f32 %v5632, %v5640
        %v6921 = vrot.slane %v6920, 4
        %v6922 = vadd.f32 %v6920, %v6921
        %v6923 = vrot.slane %v6922, 2
        %v6924 = vadd.f32 %v6922, %v6923
        %v6925 = vrot.slane %v6924, 1
        %v6926 = vadd.f32 %v6924, %v6925
        %v6927 = vadd.f32 %v5633, %v5641
        %v6928 = vrot.slane %v6927, 4
        %v6929 = vadd.f32 %v6927, %v6928
        %v6930 = vrot.slane %v6929, 2
        %v6931 = vadd.f32 %v6929, %v6930
        %v6932 = vrot.slane %v6931, 1
        %v6933 = vadd.f32 %v6931, %v6932
        %v6934 = vadd.f32 %v5634, %v5642
        %v6935 = vrot.slane %v6934, 4
        %v6936 = vadd.f32 %v6934, %v6935
        %v6937 = vrot.slane %v6936, 2
        %v6938 = vadd.f32 %v6936, %v6937
        %v6939 = vrot.slane %v6938, 1
        %v6940 = vadd.f32 %v6938, %v6939
        %v6941 = vadd.f32 %v5635, %v5643
        %v6942 = vrot.slane %v6941, 4
        %v6943 = vadd.f32 %v6941, %v6942
        %v6944 = vrot.slane %v6943, 2
        %v6945 = vadd.f32 %v6943, %v6944
        %v6946 = vrot.slane %v6945, 1
        %v6947 = vadd.f32 %v6945, %v6946
        %v6948 = vadd.f32 %v5644, %v5652
        %v6949 = vrot.slane %v6948, 4
        %v6950 = vadd.f32 %v6948, %v6949
        %v6951 = vrot.slane %v6950, 2
        %v6952 = vadd.f32 %v6950, %v6951
        %v6953 = vrot.slane %v6952, 1
        %v6954 = vadd.f32 %v6952, %v6953
        %v6955 = vadd.f32 %v5645, %v5653
        %v6956 = vrot.slane %v6955, 4
        %v6957 = vadd.f32 %v6955, %v6956
        %v6958 = vrot.slane %v6957, 2
        %v6959 = vadd.f32 %v6957, %v6958
        %v6960 = vrot.slane %v6959, 1
        %v6961 = vadd.f32 %v6959, %v6960
        %v6962 = vadd.f32 %v5646, %v5654
        %v6963 = vrot.slane %v6962, 4
        %v6964 = vadd.f32 %v6962, %v6963
        %v6965 = vrot.slane %v6964, 2
        %v6966 = vadd.f32 %v6964, %v6965
        %v6967 = vrot.slane %v6966, 1
        %v6968 = vadd.f32 %v6966, %v6967
        %v6969 = vadd.f32 %v5647, %v5655
        %v6970 = vrot.slane %v6969, 4
        %v6971 = vadd.f32 %v6969, %v6970
        %v6972 = vrot.slane %v6971, 2
        %v6973 = vadd.f32 %v6971, %v6972
        %v6974 = vrot.slane %v6973, 1
        %v6975 = vadd.f32 %v6973, %v6974
        %v6976 = vadd.f32 %v5648, %v5656
        %v6977 = vrot.slane %v6976, 4
        %v6978 = vadd.f32 %v6976, %v6977
        %v6979 = vrot.slane %v6978, 2
        %v6980 = vadd.f32 %v6978, %v6979
        %v6981 = vrot.slane %v6980, 1
        %v6982 = vadd.f32 %v6980, %v6981
        %v6983 = vadd.f32 %v5649, %v5657
        %v6984 = vrot.slane %v6983, 4
        %v6985 = vadd.f32 %v6983, %v6984
        %v6986 = vrot.slane %v6985, 2
        %v6987 = vadd.f32 %v6985, %v6986
        %v6988 = vrot.slane %v6987, 1
        %v6989 = vadd.f32 %v6987, %v6988
        %v6990 = vadd.f32 %v5650, %v5658
        %v6991 = vrot.slane %v6990, 4
        %v6992 = vadd.f32 %v6990, %v6991
        %v6993 = vrot.slane %v6992, 2
        %v6994 = vadd.f32 %v6992, %v6993
        %v6995 = vrot.slane %v6994, 1
        %v6996 = vadd.f32 %v6994, %v6995
        %v6997 = vadd.f32 %v5651, %v5659
        %v6998 = vrot.slane %v6997, 4
        %v6999 = vadd.f32 %v6997, %v6998
        %v7000 = vrot.slane %v6999, 2
        %v7001 = vadd.f32 %v6999, %v7000
        %v7002 = vrot.slane %v7001, 1
        %v7003 = vadd.f32 %v7001, %v7002
        %v7004 = vadd.f32 %v5660, %v5668
        %v7005 = vrot.slane %v7004, 4
        %v7006 = vadd.f32 %v7004, %v7005
        %v7007 = vrot.slane %v7006, 2
        %v7008 = vadd.f32 %v7006, %v7007
        %v7009 = vrot.slane %v7008, 1
        %v7010 = vadd.f32 %v7008, %v7009
        %v7011 = vadd.f32 %v5661, %v5669
        %v7012 = vrot.slane %v7011, 4
        %v7013 = vadd.f32 %v7011, %v7012
        %v7014 = vrot.slane %v7013, 2
        %v7015 = vadd.f32 %v7013, %v7014
        %v7016 = vrot.slane %v7015, 1
        %v7017 = vadd.f32 %v7015, %v7016
        %v7018 = vadd.f32 %v5662, %v5670
        %v7019 = vrot.slane %v7018, 4
        %v7020 = vadd.f32 %v7018, %v7019
        %v7021 = vrot.slane %v7020, 2
        %v7022 = vadd.f32 %v7020, %v7021
        %v7023 = vrot.slane %v7022, 1
        %v7024 = vadd.f32 %v7022, %v7023
        %v7025 = vadd.f32 %v5663, %v5671
        %v7026 = vrot.slane %v7025, 4
        %v7027 = vadd.f32 %v7025, %v7026
        %v7028 = vrot.slane %v7027, 2
        %v7029 = vadd.f32 %v7027, %v7028
        %v7030 = vrot.slane %v7029, 1
        %v7031 = vadd.f32 %v7029, %v7030
        %v7032 = vadd.f32 %v5664, %v5672
        %v7033 = vrot.slane %v7032, 4
        %v7034 = vadd.f32 %v7032, %v7033
        %v7035 = vrot.slane %v7034, 2
        %v7036 = vadd.f32 %v7034, %v7035
        %v7037 = vrot.slane %v7036, 1
        %v7038 = vadd.f32 %v7036, %v7037
        %v7039 = vadd.f32 %v5665, %v5673
        %v7040 = vrot.slane %v7039, 4
        %v7041 = vadd.f32 %v7039, %v7040
        %v7042 = vrot.slane %v7041, 2
        %v7043 = vadd.f32 %v7041, %v7042
        %v7044 = vrot.slane %v7043, 1
        %v7045 = vadd.f32 %v7043, %v7044
        %v7046 = vadd.f32 %v5666, %v5674
        %v7047 = vrot.slane %v7046, 4
        %v7048 = vadd.f32 %v7046, %v7047
        %v7049 = vrot.slane %v7048, 2
        %v7050 = vadd.f32 %v7048, %v7049
        %v7051 = vrot.slane %v7050, 1
        %v7052 = vadd.f32 %v7050, %v7051
        %v7053 = vadd.f32 %v5667, %v5675
        %v7054 = vrot.slane %v7053, 4
        %v7055 = vadd.f32 %v7053, %v7054
        %v7056 = vrot.slane %v7055, 2
        %v7057 = vadd.f32 %v7055, %v7056
        %v7058 = vrot.slane %v7057, 1
        %v7059 = vadd.f32 %v7057, %v7058
        %v7060 = vadd.f32 %v5676, %v5684
        %v7061 = vrot.slane %v7060, 4
        %v7062 = vadd.f32 %v7060, %v7061
        %v7063 = vrot.slane %v7062, 2
        %v7064 = vadd.f32 %v7062, %v7063
        %v7065 = vrot.slane %v7064, 1
        %v7066 = vadd.f32 %v7064, %v7065
        %v7067 = vadd.f32 %v5677, %v5685
        %v7068 = vrot.slane %v7067, 4
        %v7069 = vadd.f32 %v7067, %v7068
        %v7070 = vrot.slane %v7069, 2
        %v7071 = vadd.f32 %v7069, %v7070
        %v7072 = vrot.slane %v7071, 1
        %v7073 = vadd.f32 %v7071, %v7072
        %v7074 = vadd.f32 %v5678, %v5686
        %v7075 = vrot.slane %v7074, 4
        %v7076 = vadd.f32 %v7074, %v7075
        %v7077 = vrot.slane %v7076, 2
        %v7078 = vadd.f32 %v7076, %v7077
        %v7079 = vrot.slane %v7078, 1
        %v7080 = vadd.f32 %v7078, %v7079
        %v7081 = vadd.f32 %v5679, %v5687
        %v7082 = vrot.slane %v7081, 4
        %v7083 = vadd.f32 %v7081, %v7082
        %v7084 = vrot.slane %v7083, 2
        %v7085 = vadd.f32 %v7083, %v7084
        %v7086 = vrot.slane %v7085, 1
        %v7087 = vadd.f32 %v7085, %v7086
        %v7088 = vadd.f32 %v5680, %v5688
        %v7089 = vrot.slane %v7088, 4
        %v7090 = vadd.f32 %v7088, %v7089
        %v7091 = vrot.slane %v7090, 2
        %v7092 = vadd.f32 %v7090, %v7091
        %v7093 = vrot.slane %v7092, 1
        %v7094 = vadd.f32 %v7092, %v7093
        %v7095 = vadd.f32 %v5681, %v5689
        %v7096 = vrot.slane %v7095, 4
        %v7097 = vadd.f32 %v7095, %v7096
        %v7098 = vrot.slane %v7097, 2
        %v7099 = vadd.f32 %v7097, %v7098
        %v7100 = vrot.slane %v7099, 1
        %v7101 = vadd.f32 %v7099, %v7100
        %v7102 = vadd.f32 %v5682, %v5690
        %v7103 = vrot.slane %v7102, 4
        %v7104 = vadd.f32 %v7102, %v7103
        %v7105 = vrot.slane %v7104, 2
        %v7106 = vadd.f32 %v7104, %v7105
        %v7107 = vrot.slane %v7106, 1
        %v7108 = vadd.f32 %v7106, %v7107
        %v7109 = vadd.f32 %v5683, %v5691
        %v7110 = vrot.slane %v7109, 4
        %v7111 = vadd.f32 %v7109, %v7110
        %v7112 = vrot.slane %v7111, 2
        %v7113 = vadd.f32 %v7111, %v7112
        %v7114 = vrot.slane %v7113, 1
        %v7115 = vadd.f32 %v7113, %v7114
        %v7116 = vadd.f32 %v5692, %v5700
        %v7117 = vrot.slane %v7116, 4
        %v7118 = vadd.f32 %v7116, %v7117
        %v7119 = vrot.slane %v7118, 2
        %v7120 = vadd.f32 %v7118, %v7119
        %v7121 = vrot.slane %v7120, 1
        %v7122 = vadd.f32 %v7120, %v7121
        %v7123 = vadd.f32 %v5693, %v5701
        %v7124 = vrot.slane %v7123, 4
        %v7125 = vadd.f32 %v7123, %v7124
        %v7126 = vrot.slane %v7125, 2
        %v7127 = vadd.f32 %v7125, %v7126
        %v7128 = vrot.slane %v7127, 1
        %v7129 = vadd.f32 %v7127, %v7128
        %v7130 = vadd.f32 %v5694, %v5702
        %v7131 = vrot.slane %v7130, 4
        %v7132 = vadd.f32 %v7130, %v7131
        %v7133 = vrot.slane %v7132, 2
        %v7134 = vadd.f32 %v7132, %v7133
        %v7135 = vrot.slane %v7134, 1
        %v7136 = vadd.f32 %v7134, %v7135
        %v7137 = vadd.f32 %v5695, %v5703
        %v7138 = vrot.slane %v7137, 4
        %v7139 = vadd.f32 %v7137, %v7138
        %v7140 = vrot.slane %v7139, 2
        %v7141 = vadd.f32 %v7139, %v7140
        %v7142 = vrot.slane %v7141, 1
        %v7143 = vadd.f32 %v7141, %v7142
        %v7144 = vadd.f32 %v5696, %v5704
        %v7145 = vrot.slane %v7144, 4
        %v7146 = vadd.f32 %v7144, %v7145
        %v7147 = vrot.slane %v7146, 2
        %v7148 = vadd.f32 %v7146, %v7147
        %v7149 = vrot.slane %v7148, 1
        %v7150 = vadd.f32 %v7148, %v7149
        %v7151 = vadd.f32 %v5697, %v5705
        %v7152 = vrot.slane %v7151, 4
        %v7153 = vadd.f32 %v7151, %v7152
        %v7154 = vrot.slane %v7153, 2
        %v7155 = vadd.f32 %v7153, %v7154
        %v7156 = vrot.slane %v7155, 1
        %v7157 = vadd.f32 %v7155, %v7156
        %v7158 = vadd.f32 %v5698, %v5706
        %v7159 = vrot.slane %v7158, 4
        %v7160 = vadd.f32 %v7158, %v7159
        %v7161 = vrot.slane %v7160, 2
        %v7162 = vadd.f32 %v7160, %v7161
        %v7163 = vrot.slane %v7162, 1
        %v7164 = vadd.f32 %v7162, %v7163
        %v7165 = vadd.f32 %v5699, %v5707
        %v7166 = vrot.slane %v7165, 4
        %v7167 = vadd.f32 %v7165, %v7166
        %v7168 = vrot.slane %v7167, 2
        %v7169 = vadd.f32 %v7167, %v7168
        %v7170 = vrot.slane %v7169, 1
        %v7171 = vadd.f32 %v7169, %v7170
        %v7172 = vadd.f32 %v5708, %v5716
        %v7173 = vrot.slane %v7172, 4
        %v7174 = vadd.f32 %v7172, %v7173
        %v7175 = vrot.slane %v7174, 2
        %v7176 = vadd.f32 %v7174, %v7175
        %v7177 = vrot.slane %v7176, 1
        %v7178 = vadd.f32 %v7176, %v7177
        %v7179 = vadd.f32 %v5709, %v5717
        %v7180 = vrot.slane %v7179, 4
        %v7181 = vadd.f32 %v7179, %v7180
        %v7182 = vrot.slane %v7181, 2
        %v7183 = vadd.f32 %v7181, %v7182
        %v7184 = vrot.slane %v7183, 1
        %v7185 = vadd.f32 %v7183, %v7184
        %v7186 = vadd.f32 %v5710, %v5718
        %v7187 = vrot.slane %v7186, 4
        %v7188 = vadd.f32 %v7186, %v7187
        %v7189 = vrot.slane %v7188, 2
        %v7190 = vadd.f32 %v7188, %v7189
        %v7191 = vrot.slane %v7190, 1
        %v7192 = vadd.f32 %v7190, %v7191
        %v7193 = vadd.f32 %v5711, %v5719
        %v7194 = vrot.slane %v7193, 4
        %v7195 = vadd.f32 %v7193, %v7194
        %v7196 = vrot.slane %v7195, 2
        %v7197 = vadd.f32 %v7195, %v7196
        %v7198 = vrot.slane %v7197, 1
        %v7199 = vadd.f32 %v7197, %v7198
        %v7200 = vadd.f32 %v5712, %v5720
        %v7201 = vrot.slane %v7200, 4
        %v7202 = vadd.f32 %v7200, %v7201
        %v7203 = vrot.slane %v7202, 2
        %v7204 = vadd.f32 %v7202, %v7203
        %v7205 = vrot.slane %v7204, 1
        %v7206 = vadd.f32 %v7204, %v7205
        %v7207 = vadd.f32 %v5713, %v5721
        %v7208 = vrot.slane %v7207, 4
        %v7209 = vadd.f32 %v7207, %v7208
        %v7210 = vrot.slane %v7209, 2
        %v7211 = vadd.f32 %v7209, %v7210
        %v7212 = vrot.slane %v7211, 1
        %v7213 = vadd.f32 %v7211, %v7212
        %v7214 = vadd.f32 %v5714, %v5722
        %v7215 = vrot.slane %v7214, 4
        %v7216 = vadd.f32 %v7214, %v7215
        %v7217 = vrot.slane %v7216, 2
        %v7218 = vadd.f32 %v7216, %v7217
        %v7219 = vrot.slane %v7218, 1
        %v7220 = vadd.f32 %v7218, %v7219
        %v7221 = vadd.f32 %v5715, %v5723
        %v7222 = vrot.slane %v7221, 4
        %v7223 = vadd.f32 %v7221, %v7222
        %v7224 = vrot.slane %v7223, 2
        %v7225 = vadd.f32 %v7223, %v7224
        %v7226 = vrot.slane %v7225, 1
        %v7227 = vadd.f32 %v7225, %v7226
        %v7228 = vadd.f32 %v5724, %v5732
        %v7229 = vrot.slane %v7228, 4
        %v7230 = vadd.f32 %v7228, %v7229
        %v7231 = vrot.slane %v7230, 2
        %v7232 = vadd.f32 %v7230, %v7231
        %v7233 = vrot.slane %v7232, 1
        %v7234 = vadd.f32 %v7232, %v7233
        %v7235 = vadd.f32 %v5725, %v5733
        %v7236 = vrot.slane %v7235, 4
        %v7237 = vadd.f32 %v7235, %v7236
        %v7238 = vrot.slane %v7237, 2
        %v7239 = vadd.f32 %v7237, %v7238
        %v7240 = vrot.slane %v7239, 1
        %v7241 = vadd.f32 %v7239, %v7240
        %v7242 = vadd.f32 %v5726, %v5734
        %v7243 = vrot.slane %v7242, 4
        %v7244 = vadd.f32 %v7242, %v7243
        %v7245 = vrot.slane %v7244, 2
        %v7246 = vadd.f32 %v7244, %v7245
        %v7247 = vrot.slane %v7246, 1
        %v7248 = vadd.f32 %v7246, %v7247
        %v7249 = vadd.f32 %v5727, %v5735
        %v7250 = vrot.slane %v7249, 4
        %v7251 = vadd.f32 %v7249, %v7250
        %v7252 = vrot.slane %v7251, 2
        %v7253 = vadd.f32 %v7251, %v7252
        %v7254 = vrot.slane %v7253, 1
        %v7255 = vadd.f32 %v7253, %v7254
        %v7256 = vadd.f32 %v5728, %v5736
        %v7257 = vrot.slane %v7256, 4
        %v7258 = vadd.f32 %v7256, %v7257
        %v7259 = vrot.slane %v7258, 2
        %v7260 = vadd.f32 %v7258, %v7259
        %v7261 = vrot.slane %v7260, 1
        %v7262 = vadd.f32 %v7260, %v7261
        %v7263 = vadd.f32 %v5729, %v5737
        %v7264 = vrot.slane %v7263, 4
        %v7265 = vadd.f32 %v7263, %v7264
        %v7266 = vrot.slane %v7265, 2
        %v7267 = vadd.f32 %v7265, %v7266
        %v7268 = vrot.slane %v7267, 1
        %v7269 = vadd.f32 %v7267, %v7268
        %v7270 = vadd.f32 %v5730, %v5738
        %v7271 = vrot.slane %v7270, 4
        %v7272 = vadd.f32 %v7270, %v7271
        %v7273 = vrot.slane %v7272, 2
        %v7274 = vadd.f32 %v7272, %v7273
        %v7275 = vrot.slane %v7274, 1
        %v7276 = vadd.f32 %v7274, %v7275
        %v7277 = vadd.f32 %v5731, %v5739
        %v7278 = vrot.slane %v7277, 4
        %v7279 = vadd.f32 %v7277, %v7278
        %v7280 = vrot.slane %v7279, 2
        %v7281 = vadd.f32 %v7279, %v7280
        %v7282 = vrot.slane %v7281, 1
        %v7283 = vadd.f32 %v7281, %v7282
        %v7284 = vadd.f32 %v5740, %v5748
        %v7285 = vrot.slane %v7284, 4
        %v7286 = vadd.f32 %v7284, %v7285
        %v7287 = vrot.slane %v7286, 2
        %v7288 = vadd.f32 %v7286, %v7287
        %v7289 = vrot.slane %v7288, 1
        %v7290 = vadd.f32 %v7288, %v7289
        %v7291 = vadd.f32 %v5741, %v5749
        %v7292 = vrot.slane %v7291, 4
        %v7293 = vadd.f32 %v7291, %v7292
        %v7294 = vrot.slane %v7293, 2
        %v7295 = vadd.f32 %v7293, %v7294
        %v7296 = vrot.slane %v7295, 1
        %v7297 = vadd.f32 %v7295, %v7296
        %v7298 = vadd.f32 %v5742, %v5750
        %v7299 = vrot.slane %v7298, 4
        %v7300 = vadd.f32 %v7298, %v7299
        %v7301 = vrot.slane %v7300, 2
        %v7302 = vadd.f32 %v7300, %v7301
        %v7303 = vrot.slane %v7302, 1
        %v7304 = vadd.f32 %v7302, %v7303
        %v7305 = vadd.f32 %v5743, %v5751
        %v7306 = vrot.slane %v7305, 4
        %v7307 = vadd.f32 %v7305, %v7306
        %v7308 = vrot.slane %v7307, 2
        %v7309 = vadd.f32 %v7307, %v7308
        %v7310 = vrot.slane %v7309, 1
        %v7311 = vadd.f32 %v7309, %v7310
        %v7312 = vadd.f32 %v5744, %v5752
        %v7313 = vrot.slane %v7312, 4
        %v7314 = vadd.f32 %v7312, %v7313
        %v7315 = vrot.slane %v7314, 2
        %v7316 = vadd.f32 %v7314, %v7315
        %v7317 = vrot.slane %v7316, 1
        %v7318 = vadd.f32 %v7316, %v7317
        %v7319 = vadd.f32 %v5745, %v5753
        %v7320 = vrot.slane %v7319, 4
        %v7321 = vadd.f32 %v7319, %v7320
        %v7322 = vrot.slane %v7321, 2
        %v7323 = vadd.f32 %v7321, %v7322
        %v7324 = vrot.slane %v7323, 1
        %v7325 = vadd.f32 %v7323, %v7324
        %v7326 = vadd.f32 %v5746, %v5754
        %v7327 = vrot.slane %v7326, 4
        %v7328 = vadd.f32 %v7326, %v7327
        %v7329 = vrot.slane %v7328, 2
        %v7330 = vadd.f32 %v7328, %v7329
        %v7331 = vrot.slane %v7330, 1
        %v7332 = vadd.f32 %v7330, %v7331
        %v7333 = vadd.f32 %v5747, %v5755
        %v7334 = vrot.slane %v7333, 4
        %v7335 = vadd.f32 %v7333, %v7334
        %v7336 = vrot.slane %v7335, 2
        %v7337 = vadd.f32 %v7335, %v7336
        %v7338 = vrot.slane %v7337, 1
        %v7339 = vadd.f32 %v7337, %v7338
        %v7340 = vadd.f32 %v5756, %v5764
        %v7341 = vrot.slane %v7340, 4
        %v7342 = vadd.f32 %v7340, %v7341
        %v7343 = vrot.slane %v7342, 2
        %v7344 = vadd.f32 %v7342, %v7343
        %v7345 = vrot.slane %v7344, 1
        %v7346 = vadd.f32 %v7344, %v7345
        %v7347 = vadd.f32 %v5757, %v5765
        %v7348 = vrot.slane %v7347, 4
        %v7349 = vadd.f32 %v7347, %v7348
        %v7350 = vrot.slane %v7349, 2
        %v7351 = vadd.f32 %v7349, %v7350
        %v7352 = vrot.slane %v7351, 1
        %v7353 = vadd.f32 %v7351, %v7352
        %v7354 = vadd.f32 %v5758, %v5766
        %v7355 = vrot.slane %v7354, 4
        %v7356 = vadd.f32 %v7354, %v7355
        %v7357 = vrot.slane %v7356, 2
        %v7358 = vadd.f32 %v7356, %v7357
        %v7359 = vrot.slane %v7358, 1
        %v7360 = vadd.f32 %v7358, %v7359
        %v7361 = vadd.f32 %v5759, %v5767
        %v7362 = vrot.slane %v7361, 4
        %v7363 = vadd.f32 %v7361, %v7362
        %v7364 = vrot.slane %v7363, 2
        %v7365 = vadd.f32 %v7363, %v7364
        %v7366 = vrot.slane %v7365, 1
        %v7367 = vadd.f32 %v7365, %v7366
        %v7368 = vadd.f32 %v5760, %v5768
        %v7369 = vrot.slane %v7368, 4
        %v7370 = vadd.f32 %v7368, %v7369
        %v7371 = vrot.slane %v7370, 2
        %v7372 = vadd.f32 %v7370, %v7371
        %v7373 = vrot.slane %v7372, 1
        %v7374 = vadd.f32 %v7372, %v7373
        %v7375 = vadd.f32 %v5761, %v5769
        %v7376 = vrot.slane %v7375, 4
        %v7377 = vadd.f32 %v7375, %v7376
        %v7378 = vrot.slane %v7377, 2
        %v7379 = vadd.f32 %v7377, %v7378
        %v7380 = vrot.slane %v7379, 1
        %v7381 = vadd.f32 %v7379, %v7380
        %v7382 = vadd.f32 %v5762, %v5770
        %v7383 = vrot.slane %v7382, 4
        %v7384 = vadd.f32 %v7382, %v7383
        %v7385 = vrot.slane %v7384, 2
        %v7386 = vadd.f32 %v7384, %v7385
        %v7387 = vrot.slane %v7386, 1
        %v7388 = vadd.f32 %v7386, %v7387
        %v7389 = vadd.f32 %v5763, %v5771
        %v7390 = vrot.slane %v7389, 4
        %v7391 = vadd.f32 %v7389, %v7390
        %v7392 = vrot.slane %v7391, 2
        %v7393 = vadd.f32 %v7391, %v7392
        %v7394 = vrot.slane %v7393, 1
        %v7395 = vadd.f32 %v7393, %v7394
        %v7396 = vadd.f32 %v5772, %v5780
        %v7397 = vrot.slane %v7396, 4
        %v7398 = vadd.f32 %v7396, %v7397
        %v7399 = vrot.slane %v7398, 2
        %v7400 = vadd.f32 %v7398, %v7399
        %v7401 = vrot.slane %v7400, 1
        %v7402 = vadd.f32 %v7400, %v7401
        %v7403 = vadd.f32 %v5773, %v5781
        %v7404 = vrot.slane %v7403, 4
        %v7405 = vadd.f32 %v7403, %v7404
        %v7406 = vrot.slane %v7405, 2
        %v7407 = vadd.f32 %v7405, %v7406
        %v7408 = vrot.slane %v7407, 1
        %v7409 = vadd.f32 %v7407, %v7408
        %v7410 = vadd.f32 %v5774, %v5782
        %v7411 = vrot.slane %v7410, 4
        %v7412 = vadd.f32 %v7410, %v7411
        %v7413 = vrot.slane %v7412, 2
        %v7414 = vadd.f32 %v7412, %v7413
        %v7415 = vrot.slane %v7414, 1
        %v7416 = vadd.f32 %v7414, %v7415
        %v7417 = vadd.f32 %v5775, %v5783
        %v7418 = vrot.slane %v7417, 4
        %v7419 = vadd.f32 %v7417, %v7418
        %v7420 = vrot.slane %v7419, 2
        %v7421 = vadd.f32 %v7419, %v7420
        %v7422 = vrot.slane %v7421, 1
        %v7423 = vadd.f32 %v7421, %v7422
        %v7424 = vadd.f32 %v5776, %v5784
        %v7425 = vrot.slane %v7424, 4
        %v7426 = vadd.f32 %v7424, %v7425
        %v7427 = vrot.slane %v7426, 2
        %v7428 = vadd.f32 %v7426, %v7427
        %v7429 = vrot.slane %v7428, 1
        %v7430 = vadd.f32 %v7428, %v7429
        %v7431 = vadd.f32 %v5777, %v5785
        %v7432 = vrot.slane %v7431, 4
        %v7433 = vadd.f32 %v7431, %v7432
        %v7434 = vrot.slane %v7433, 2
        %v7435 = vadd.f32 %v7433, %v7434
        %v7436 = vrot.slane %v7435, 1
        %v7437 = vadd.f32 %v7435, %v7436
        %v7438 = vadd.f32 %v5778, %v5786
        %v7439 = vrot.slane %v7438, 4
        %v7440 = vadd.f32 %v7438, %v7439
        %v7441 = vrot.slane %v7440, 2
        %v7442 = vadd.f32 %v7440, %v7441
        %v7443 = vrot.slane %v7442, 1
        %v7444 = vadd.f32 %v7442, %v7443
        %v7445 = vadd.f32 %v5779, %v5787
        %v7446 = vrot.slane %v7445, 4
        %v7447 = vadd.f32 %v7445, %v7446
        %v7448 = vrot.slane %v7447, 2
        %v7449 = vadd.f32 %v7447, %v7448
        %v7450 = vrot.slane %v7449, 1
        %v7451 = vadd.f32 %v7449, %v7450
        %v7452 = vadd.f32 %v5788, %v5796
        %v7453 = vrot.slane %v7452, 4
        %v7454 = vadd.f32 %v7452, %v7453
        %v7455 = vrot.slane %v7454, 2
        %v7456 = vadd.f32 %v7454, %v7455
        %v7457 = vrot.slane %v7456, 1
        %v7458 = vadd.f32 %v7456, %v7457
        %v7459 = vadd.f32 %v5789, %v5797
        %v7460 = vrot.slane %v7459, 4
        %v7461 = vadd.f32 %v7459, %v7460
        %v7462 = vrot.slane %v7461, 2
        %v7463 = vadd.f32 %v7461, %v7462
        %v7464 = vrot.slane %v7463, 1
        %v7465 = vadd.f32 %v7463, %v7464
        %v7466 = vadd.f32 %v5790, %v5798
        %v7467 = vrot.slane %v7466, 4
        %v7468 = vadd.f32 %v7466, %v7467
        %v7469 = vrot.slane %v7468, 2
        %v7470 = vadd.f32 %v7468, %v7469
        %v7471 = vrot.slane %v7470, 1
        %v7472 = vadd.f32 %v7470, %v7471
        %v7473 = vadd.f32 %v5791, %v5799
        %v7474 = vrot.slane %v7473, 4
        %v7475 = vadd.f32 %v7473, %v7474
        %v7476 = vrot.slane %v7475, 2
        %v7477 = vadd.f32 %v7475, %v7476
        %v7478 = vrot.slane %v7477, 1
        %v7479 = vadd.f32 %v7477, %v7478
        %v7480 = vadd.f32 %v5792, %v5800
        %v7481 = vrot.slane %v7480, 4
        %v7482 = vadd.f32 %v7480, %v7481
        %v7483 = vrot.slane %v7482, 2
        %v7484 = vadd.f32 %v7482, %v7483
        %v7485 = vrot.slane %v7484, 1
        %v7486 = vadd.f32 %v7484, %v7485
        %v7487 = vadd.f32 %v5793, %v5801
        %v7488 = vrot.slane %v7487, 4
        %v7489 = vadd.f32 %v7487, %v7488
        %v7490 = vrot.slane %v7489, 2
        %v7491 = vadd.f32 %v7489, %v7490
        %v7492 = vrot.slane %v7491, 1
        %v7493 = vadd.f32 %v7491, %v7492
        %v7494 = vadd.f32 %v5794, %v5802
        %v7495 = vrot.slane %v7494, 4
        %v7496 = vadd.f32 %v7494, %v7495
        %v7497 = vrot.slane %v7496, 2
        %v7498 = vadd.f32 %v7496, %v7497
        %v7499 = vrot.slane %v7498, 1
        %v7500 = vadd.f32 %v7498, %v7499
        %v7501 = vadd.f32 %v5795, %v5803
        %v7502 = vrot.slane %v7501, 4
        %v7503 = vadd.f32 %v7501, %v7502
        %v7504 = vrot.slane %v7503, 2
        %v7505 = vadd.f32 %v7503, %v7504
        %v7506 = vrot.slane %v7505, 1
        %v7507 = vadd.f32 %v7505, %v7506
        %v7508 = vadd.f32 %v5804, %v5812
        %v7509 = vrot.slane %v7508, 4
        %v7510 = vadd.f32 %v7508, %v7509
        %v7511 = vrot.slane %v7510, 2
        %v7512 = vadd.f32 %v7510, %v7511
        %v7513 = vrot.slane %v7512, 1
        %v7514 = vadd.f32 %v7512, %v7513
        %v7515 = vadd.f32 %v5805, %v5813
        %v7516 = vrot.slane %v7515, 4
        %v7517 = vadd.f32 %v7515, %v7516
        %v7518 = vrot.slane %v7517, 2
        %v7519 = vadd.f32 %v7517, %v7518
        %v7520 = vrot.slane %v7519, 1
        %v7521 = vadd.f32 %v7519, %v7520
        %v7522 = vadd.f32 %v5806, %v5814
        %v7523 = vrot.slane %v7522, 4
        %v7524 = vadd.f32 %v7522, %v7523
        %v7525 = vrot.slane %v7524, 2
        %v7526 = vadd.f32 %v7524, %v7525
        %v7527 = vrot.slane %v7526, 1
        %v7528 = vadd.f32 %v7526, %v7527
        %v7529 = vadd.f32 %v5807, %v5815
        %v7530 = vrot.slane %v7529, 4
        %v7531 = vadd.f32 %v7529, %v7530
        %v7532 = vrot.slane %v7531, 2
        %v7533 = vadd.f32 %v7531, %v7532
        %v7534 = vrot.slane %v7533, 1
        %v7535 = vadd.f32 %v7533, %v7534
        %v7536 = vadd.f32 %v5808, %v5816
        %v7537 = vrot.slane %v7536, 4
        %v7538 = vadd.f32 %v7536, %v7537
        %v7539 = vrot.slane %v7538, 2
        %v7540 = vadd.f32 %v7538, %v7539
        %v7541 = vrot.slane %v7540, 1
        %v7542 = vadd.f32 %v7540, %v7541
        %v7543 = vadd.f32 %v5809, %v5817
        %v7544 = vrot.slane %v7543, 4
        %v7545 = vadd.f32 %v7543, %v7544
        %v7546 = vrot.slane %v7545, 2
        %v7547 = vadd.f32 %v7545, %v7546
        %v7548 = vrot.slane %v7547, 1
        %v7549 = vadd.f32 %v7547, %v7548
        %v7550 = vadd.f32 %v5810, %v5818
        %v7551 = vrot.slane %v7550, 4
        %v7552 = vadd.f32 %v7550, %v7551
        %v7553 = vrot.slane %v7552, 2
        %v7554 = vadd.f32 %v7552, %v7553
        %v7555 = vrot.slane %v7554, 1
        %v7556 = vadd.f32 %v7554, %v7555
        %v7557 = vadd.f32 %v5811, %v5819
        %v7558 = vrot.slane %v7557, 4
        %v7559 = vadd.f32 %v7557, %v7558
        %v7560 = vrot.slane %v7559, 2
        %v7561 = vadd.f32 %v7559, %v7560
        %v7562 = vrot.slane %v7561, 1
        %v7563 = vadd.f32 %v7561, %v7562
        %v7564 = vadd.f32 %v5820, %v5828
        %v7565 = vrot.slane %v7564, 4
        %v7566 = vadd.f32 %v7564, %v7565
        %v7567 = vrot.slane %v7566, 2
        %v7568 = vadd.f32 %v7566, %v7567
        %v7569 = vrot.slane %v7568, 1
        %v7570 = vadd.f32 %v7568, %v7569
        %v7571 = vadd.f32 %v5821, %v5829
        %v7572 = vrot.slane %v7571, 4
        %v7573 = vadd.f32 %v7571, %v7572
        %v7574 = vrot.slane %v7573, 2
        %v7575 = vadd.f32 %v7573, %v7574
        %v7576 = vrot.slane %v7575, 1
        %v7577 = vadd.f32 %v7575, %v7576
        %v7578 = vadd.f32 %v5822, %v5830
        %v7579 = vrot.slane %v7578, 4
        %v7580 = vadd.f32 %v7578, %v7579
        %v7581 = vrot.slane %v7580, 2
        %v7582 = vadd.f32 %v7580, %v7581
        %v7583 = vrot.slane %v7582, 1
        %v7584 = vadd.f32 %v7582, %v7583
        %v7585 = vadd.f32 %v5823, %v5831
        %v7586 = vrot.slane %v7585, 4
        %v7587 = vadd.f32 %v7585, %v7586
        %v7588 = vrot.slane %v7587, 2
        %v7589 = vadd.f32 %v7587, %v7588
        %v7590 = vrot.slane %v7589, 1
        %v7591 = vadd.f32 %v7589, %v7590
        %v7592 = vadd.f32 %v5824, %v5832
        %v7593 = vrot.slane %v7592, 4
        %v7594 = vadd.f32 %v7592, %v7593
        %v7595 = vrot.slane %v7594, 2
        %v7596 = vadd.f32 %v7594, %v7595
        %v7597 = vrot.slane %v7596, 1
        %v7598 = vadd.f32 %v7596, %v7597
        %v7599 = vadd.f32 %v5825, %v5833
        %v7600 = vrot.slane %v7599, 4
        %v7601 = vadd.f32 %v7599, %v7600
        %v7602 = vrot.slane %v7601, 2
        %v7603 = vadd.f32 %v7601, %v7602
        %v7604 = vrot.slane %v7603, 1
        %v7605 = vadd.f32 %v7603, %v7604
        %v7606 = vadd.f32 %v5826, %v5834
        %v7607 = vrot.slane %v7606, 4
        %v7608 = vadd.f32 %v7606, %v7607
        %v7609 = vrot.slane %v7608, 2
        %v7610 = vadd.f32 %v7608, %v7609
        %v7611 = vrot.slane %v7610, 1
        %v7612 = vadd.f32 %v7610, %v7611
        %v7613 = vadd.f32 %v5827, %v5835
        %v7614 = vrot.slane %v7613, 4
        %v7615 = vadd.f32 %v7613, %v7614
        %v7616 = vrot.slane %v7615, 2
        %v7617 = vadd.f32 %v7615, %v7616
        %v7618 = vrot.slane %v7617, 1
        %v7619 = vadd.f32 %v7617, %v7618
        %v7620 = vadd.f32 %v5836, %v5844
        %v7621 = vrot.slane %v7620, 4
        %v7622 = vadd.f32 %v7620, %v7621
        %v7623 = vrot.slane %v7622, 2
        %v7624 = vadd.f32 %v7622, %v7623
        %v7625 = vrot.slane %v7624, 1
        %v7626 = vadd.f32 %v7624, %v7625
        %v7627 = vadd.f32 %v5837, %v5845
        %v7628 = vrot.slane %v7627, 4
        %v7629 = vadd.f32 %v7627, %v7628
        %v7630 = vrot.slane %v7629, 2
        %v7631 = vadd.f32 %v7629, %v7630
        %v7632 = vrot.slane %v7631, 1
        %v7633 = vadd.f32 %v7631, %v7632
        %v7634 = vadd.f32 %v5838, %v5846
        %v7635 = vrot.slane %v7634, 4
        %v7636 = vadd.f32 %v7634, %v7635
        %v7637 = vrot.slane %v7636, 2
        %v7638 = vadd.f32 %v7636, %v7637
        %v7639 = vrot.slane %v7638, 1
        %v7640 = vadd.f32 %v7638, %v7639
        %v7641 = vadd.f32 %v5839, %v5847
        %v7642 = vrot.slane %v7641, 4
        %v7643 = vadd.f32 %v7641, %v7642
        %v7644 = vrot.slane %v7643, 2
        %v7645 = vadd.f32 %v7643, %v7644
        %v7646 = vrot.slane %v7645, 1
        %v7647 = vadd.f32 %v7645, %v7646
        %v7648 = vadd.f32 %v5840, %v5848
        %v7649 = vrot.slane %v7648, 4
        %v7650 = vadd.f32 %v7648, %v7649
        %v7651 = vrot.slane %v7650, 2
        %v7652 = vadd.f32 %v7650, %v7651
        %v7653 = vrot.slane %v7652, 1
        %v7654 = vadd.f32 %v7652, %v7653
        %v7655 = vadd.f32 %v5841, %v5849
        %v7656 = vrot.slane %v7655, 4
        %v7657 = vadd.f32 %v7655, %v7656
        %v7658 = vrot.slane %v7657, 2
        %v7659 = vadd.f32 %v7657, %v7658
        %v7660 = vrot.slane %v7659, 1
        %v7661 = vadd.f32 %v7659, %v7660
        %v7662 = vadd.f32 %v5842, %v5850
        %v7663 = vrot.slane %v7662, 4
        %v7664 = vadd.f32 %v7662, %v7663
        %v7665 = vrot.slane %v7664, 2
        %v7666 = vadd.f32 %v7664, %v7665
        %v7667 = vrot.slane %v7666, 1
        %v7668 = vadd.f32 %v7666, %v7667
        %v7669 = vadd.f32 %v5843, %v5851
        %v7670 = vrot.slane %v7669, 4
        %v7671 = vadd.f32 %v7669, %v7670
        %v7672 = vrot.slane %v7671, 2
        %v7673 = vadd.f32 %v7671, %v7672
        %v7674 = vrot.slane %v7673, 1
        %v7675 = vadd.f32 %v7673, %v7674
        %v7676 = vadd.f32 %v5852, %v5860
        %v7677 = vrot.slane %v7676, 4
        %v7678 = vadd.f32 %v7676, %v7677
        %v7679 = vrot.slane %v7678, 2
        %v7680 = vadd.f32 %v7678, %v7679
        %v7681 = vrot.slane %v7680, 1
        %v7682 = vadd.f32 %v7680, %v7681
        %v7683 = vadd.f32 %v5853, %v5861
        %v7684 = vrot.slane %v7683, 4
        %v7685 = vadd.f32 %v7683, %v7684
        %v7686 = vrot.slane %v7685, 2
        %v7687 = vadd.f32 %v7685, %v7686
        %v7688 = vrot.slane %v7687, 1
        %v7689 = vadd.f32 %v7687, %v7688
        %v7690 = vadd.f32 %v5854, %v5862
        %v7691 = vrot.slane %v7690, 4
        %v7692 = vadd.f32 %v7690, %v7691
        %v7693 = vrot.slane %v7692, 2
        %v7694 = vadd.f32 %v7692, %v7693
        %v7695 = vrot.slane %v7694, 1
        %v7696 = vadd.f32 %v7694, %v7695
        %v7697 = vadd.f32 %v5855, %v5863
        %v7698 = vrot.slane %v7697, 4
        %v7699 = vadd.f32 %v7697, %v7698
        %v7700 = vrot.slane %v7699, 2
        %v7701 = vadd.f32 %v7699, %v7700
        %v7702 = vrot.slane %v7701, 1
        %v7703 = vadd.f32 %v7701, %v7702
        %v7704 = vadd.f32 %v5856, %v5864
        %v7705 = vrot.slane %v7704, 4
        %v7706 = vadd.f32 %v7704, %v7705
        %v7707 = vrot.slane %v7706, 2
        %v7708 = vadd.f32 %v7706, %v7707
        %v7709 = vrot.slane %v7708, 1
        %v7710 = vadd.f32 %v7708, %v7709
        %v7711 = vadd.f32 %v5857, %v5865
        %v7712 = vrot.slane %v7711, 4
        %v7713 = vadd.f32 %v7711, %v7712
        %v7714 = vrot.slane %v7713, 2
        %v7715 = vadd.f32 %v7713, %v7714
        %v7716 = vrot.slane %v7715, 1
        %v7717 = vadd.f32 %v7715, %v7716
        %v7718 = vadd.f32 %v5858, %v5866
        %v7719 = vrot.slane %v7718, 4
        %v7720 = vadd.f32 %v7718, %v7719
        %v7721 = vrot.slane %v7720, 2
        %v7722 = vadd.f32 %v7720, %v7721
        %v7723 = vrot.slane %v7722, 1
        %v7724 = vadd.f32 %v7722, %v7723
        %v7725 = vadd.f32 %v5859, %v5867
        %v7726 = vrot.slane %v7725, 4
        %v7727 = vadd.f32 %v7725, %v7726
        %v7728 = vrot.slane %v7727, 2
        %v7729 = vadd.f32 %v7727, %v7728
        %v7730 = vrot.slane %v7729, 1
        %v7731 = vadd.f32 %v7729, %v7730
        %v7732 = vadd.f32 %v5868, %v5876
        %v7733 = vrot.slane %v7732, 4
        %v7734 = vadd.f32 %v7732, %v7733
        %v7735 = vrot.slane %v7734, 2
        %v7736 = vadd.f32 %v7734, %v7735
        %v7737 = vrot.slane %v7736, 1
        %v7738 = vadd.f32 %v7736, %v7737
        %v7739 = vadd.f32 %v5869, %v5877
        %v7740 = vrot.slane %v7739, 4
        %v7741 = vadd.f32 %v7739, %v7740
        %v7742 = vrot.slane %v7741, 2
        %v7743 = vadd.f32 %v7741, %v7742
        %v7744 = vrot.slane %v7743, 1
        %v7745 = vadd.f32 %v7743, %v7744
        %v7746 = vadd.f32 %v5870, %v5878
        %v7747 = vrot.slane %v7746, 4
        %v7748 = vadd.f32 %v7746, %v7747
        %v7749 = vrot.slane %v7748, 2
        %v7750 = vadd.f32 %v7748, %v7749
        %v7751 = vrot.slane %v7750, 1
        %v7752 = vadd.f32 %v7750, %v7751
        %v7753 = vadd.f32 %v5871, %v5879
        %v7754 = vrot.slane %v7753, 4
        %v7755 = vadd.f32 %v7753, %v7754
        %v7756 = vrot.slane %v7755, 2
        %v7757 = vadd.f32 %v7755, %v7756
        %v7758 = vrot.slane %v7757, 1
        %v7759 = vadd.f32 %v7757, %v7758
        %v7760 = vadd.f32 %v5872, %v5880
        %v7761 = vrot.slane %v7760, 4
        %v7762 = vadd.f32 %v7760, %v7761
        %v7763 = vrot.slane %v7762, 2
        %v7764 = vadd.f32 %v7762, %v7763
        %v7765 = vrot.slane %v7764, 1
        %v7766 = vadd.f32 %v7764, %v7765
        %v7767 = vadd.f32 %v5873, %v5881
        %v7768 = vrot.slane %v7767, 4
        %v7769 = vadd.f32 %v7767, %v7768
        %v7770 = vrot.slane %v7769, 2
        %v7771 = vadd.f32 %v7769, %v7770
        %v7772 = vrot.slane %v7771, 1
        %v7773 = vadd.f32 %v7771, %v7772
        %v7774 = vadd.f32 %v5874, %v5882
        %v7775 = vrot.slane %v7774, 4
        %v7776 = vadd.f32 %v7774, %v7775
        %v7777 = vrot.slane %v7776, 2
        %v7778 = vadd.f32 %v7776, %v7777
        %v7779 = vrot.slane %v7778, 1
        %v7780 = vadd.f32 %v7778, %v7779
        %v7781 = vadd.f32 %v5875, %v5883
        %v7782 = vrot.slane %v7781, 4
        %v7783 = vadd.f32 %v7781, %v7782
        %v7784 = vrot.slane %v7783, 2
        %v7785 = vadd.f32 %v7783, %v7784
        %v7786 = vrot.slane %v7785, 1
        %v7787 = vadd.f32 %v7785, %v7786
        %v7788 = vadd.f32 %v5884, %v5892
        %v7789 = vrot.slane %v7788, 4
        %v7790 = vadd.f32 %v7788, %v7789
        %v7791 = vrot.slane %v7790, 2
        %v7792 = vadd.f32 %v7790, %v7791
        %v7793 = vrot.slane %v7792, 1
        %v7794 = vadd.f32 %v7792, %v7793
        %v7795 = vadd.f32 %v5885, %v5893
        %v7796 = vrot.slane %v7795, 4
        %v7797 = vadd.f32 %v7795, %v7796
        %v7798 = vrot.slane %v7797, 2
        %v7799 = vadd.f32 %v7797, %v7798
        %v7800 = vrot.slane %v7799, 1
        %v7801 = vadd.f32 %v7799, %v7800
        %v7802 = vadd.f32 %v5886, %v5894
        %v7803 = vrot.slane %v7802, 4
        %v7804 = vadd.f32 %v7802, %v7803
        %v7805 = vrot.slane %v7804, 2
        %v7806 = vadd.f32 %v7804, %v7805
        %v7807 = vrot.slane %v7806, 1
        %v7808 = vadd.f32 %v7806, %v7807
        %v7809 = vadd.f32 %v5887, %v5895
        %v7810 = vrot.slane %v7809, 4
        %v7811 = vadd.f32 %v7809, %v7810
        %v7812 = vrot.slane %v7811, 2
        %v7813 = vadd.f32 %v7811, %v7812
        %v7814 = vrot.slane %v7813, 1
        %v7815 = vadd.f32 %v7813, %v7814
        %v7816 = vadd.f32 %v5888, %v5896
        %v7817 = vrot.slane %v7816, 4
        %v7818 = vadd.f32 %v7816, %v7817
        %v7819 = vrot.slane %v7818, 2
        %v7820 = vadd.f32 %v7818, %v7819
        %v7821 = vrot.slane %v7820, 1
        %v7822 = vadd.f32 %v7820, %v7821
        %v7823 = vadd.f32 %v5889, %v5897
        %v7824 = vrot.slane %v7823, 4
        %v7825 = vadd.f32 %v7823, %v7824
        %v7826 = vrot.slane %v7825, 2
        %v7827 = vadd.f32 %v7825, %v7826
        %v7828 = vrot.slane %v7827, 1
        %v7829 = vadd.f32 %v7827, %v7828
        %v7830 = vadd.f32 %v5890, %v5898
        %v7831 = vrot.slane %v7830, 4
        %v7832 = vadd.f32 %v7830, %v7831
        %v7833 = vrot.slane %v7832, 2
        %v7834 = vadd.f32 %v7832, %v7833
        %v7835 = vrot.slane %v7834, 1
        %v7836 = vadd.f32 %v7834, %v7835
        %v7837 = vadd.f32 %v5891, %v5899
        %v7838 = vrot.slane %v7837, 4
        %v7839 = vadd.f32 %v7837, %v7838
        %v7840 = vrot.slane %v7839, 2
        %v7841 = vadd.f32 %v7839, %v7840
        %v7842 = vrot.slane %v7841, 1
        %v7843 = vadd.f32 %v7841, %v7842
        %v7844 = vadd.f32 %v5900, %v5908
        %v7845 = vrot.slane %v7844, 4
        %v7846 = vadd.f32 %v7844, %v7845
        %v7847 = vrot.slane %v7846, 2
        %v7848 = vadd.f32 %v7846, %v7847
        %v7849 = vrot.slane %v7848, 1
        %v7850 = vadd.f32 %v7848, %v7849
        %v7851 = vadd.f32 %v5901, %v5909
        %v7852 = vrot.slane %v7851, 4
        %v7853 = vadd.f32 %v7851, %v7852
        %v7854 = vrot.slane %v7853, 2
        %v7855 = vadd.f32 %v7853, %v7854
        %v7856 = vrot.slane %v7855, 1
        %v7857 = vadd.f32 %v7855, %v7856
        %v7858 = vadd.f32 %v5902, %v5910
        %v7859 = vrot.slane %v7858, 4
        %v7860 = vadd.f32 %v7858, %v7859
        %v7861 = vrot.slane %v7860, 2
        %v7862 = vadd.f32 %v7860, %v7861
        %v7863 = vrot.slane %v7862, 1
        %v7864 = vadd.f32 %v7862, %v7863
        %v7865 = vadd.f32 %v5903, %v5911
        %v7866 = vrot.slane %v7865, 4
        %v7867 = vadd.f32 %v7865, %v7866
        %v7868 = vrot.slane %v7867, 2
        %v7869 = vadd.f32 %v7867, %v7868
        %v7870 = vrot.slane %v7869, 1
        %v7871 = vadd.f32 %v7869, %v7870
        %v7872 = vadd.f32 %v5904, %v5912
        %v7873 = vrot.slane %v7872, 4
        %v7874 = vadd.f32 %v7872, %v7873
        %v7875 = vrot.slane %v7874, 2
        %v7876 = vadd.f32 %v7874, %v7875
        %v7877 = vrot.slane %v7876, 1
        %v7878 = vadd.f32 %v7876, %v7877
        %v7879 = vadd.f32 %v5905, %v5913
        %v7880 = vrot.slane %v7879, 4
        %v7881 = vadd.f32 %v7879, %v7880
        %v7882 = vrot.slane %v7881, 2
        %v7883 = vadd.f32 %v7881, %v7882
        %v7884 = vrot.slane %v7883, 1
        %v7885 = vadd.f32 %v7883, %v7884
        %v7886 = vadd.f32 %v5906, %v5914
        %v7887 = vrot.slane %v7886, 4
        %v7888 = vadd.f32 %v7886, %v7887
        %v7889 = vrot.slane %v7888, 2
        %v7890 = vadd.f32 %v7888, %v7889
        %v7891 = vrot.slane %v7890, 1
        %v7892 = vadd.f32 %v7890, %v7891
        %v7893 = vadd.f32 %v5907, %v5915
        %v7894 = vrot.slane %v7893, 4
        %v7895 = vadd.f32 %v7893, %v7894
        %v7896 = vrot.slane %v7895, 2
        %v7897 = vadd.f32 %v7895, %v7896
        %v7898 = vrot.slane %v7897, 1
        %v7899 = vadd.f32 %v7897, %v7898
        %v7900 = vadd.f32 %v5916, %v5924
        %v7901 = vrot.slane %v7900, 4
        %v7902 = vadd.f32 %v7900, %v7901
        %v7903 = vrot.slane %v7902, 2
        %v7904 = vadd.f32 %v7902, %v7903
        %v7905 = vrot.slane %v7904, 1
        %v7906 = vadd.f32 %v7904, %v7905
        %v7907 = vadd.f32 %v5917, %v5925
        %v7908 = vrot.slane %v7907, 4
        %v7909 = vadd.f32 %v7907, %v7908
        %v7910 = vrot.slane %v7909, 2
        %v7911 = vadd.f32 %v7909, %v7910
        %v7912 = vrot.slane %v7911, 1
        %v7913 = vadd.f32 %v7911, %v7912
        %v7914 = vadd.f32 %v5918, %v5926
        %v7915 = vrot.slane %v7914, 4
        %v7916 = vadd.f32 %v7914, %v7915
        %v7917 = vrot.slane %v7916, 2
        %v7918 = vadd.f32 %v7916, %v7917
        %v7919 = vrot.slane %v7918, 1
        %v7920 = vadd.f32 %v7918, %v7919
        %v7921 = vadd.f32 %v5919, %v5927
        %v7922 = vrot.slane %v7921, 4
        %v7923 = vadd.f32 %v7921, %v7922
        %v7924 = vrot.slane %v7923, 2
        %v7925 = vadd.f32 %v7923, %v7924
        %v7926 = vrot.slane %v7925, 1
        %v7927 = vadd.f32 %v7925, %v7926
        %v7928 = vadd.f32 %v5920, %v5928
        %v7929 = vrot.slane %v7928, 4
        %v7930 = vadd.f32 %v7928, %v7929
        %v7931 = vrot.slane %v7930, 2
        %v7932 = vadd.f32 %v7930, %v7931
        %v7933 = vrot.slane %v7932, 1
        %v7934 = vadd.f32 %v7932, %v7933
        %v7935 = vadd.f32 %v5921, %v5929
        %v7936 = vrot.slane %v7935, 4
        %v7937 = vadd.f32 %v7935, %v7936
        %v7938 = vrot.slane %v7937, 2
        %v7939 = vadd.f32 %v7937, %v7938
        %v7940 = vrot.slane %v7939, 1
        %v7941 = vadd.f32 %v7939, %v7940
        %v7942 = vadd.f32 %v5922, %v5930
        %v7943 = vrot.slane %v7942, 4
        %v7944 = vadd.f32 %v7942, %v7943
        %v7945 = vrot.slane %v7944, 2
        %v7946 = vadd.f32 %v7944, %v7945
        %v7947 = vrot.slane %v7946, 1
        %v7948 = vadd.f32 %v7946, %v7947
        %v7949 = vadd.f32 %v5923, %v5931
        %v7950 = vrot.slane %v7949, 4
        %v7951 = vadd.f32 %v7949, %v7950
        %v7952 = vrot.slane %v7951, 2
        %v7953 = vadd.f32 %v7951, %v7952
        %v7954 = vrot.slane %v7953, 1
        %v7955 = vadd.f32 %v7953, %v7954
        %v7956 = vadd.f32 %v5932, %v5940
        %v7957 = vrot.slane %v7956, 4
        %v7958 = vadd.f32 %v7956, %v7957
        %v7959 = vrot.slane %v7958, 2
        %v7960 = vadd.f32 %v7958, %v7959
        %v7961 = vrot.slane %v7960, 1
        %v7962 = vadd.f32 %v7960, %v7961
        %v7963 = vadd.f32 %v5933, %v5941
        %v7964 = vrot.slane %v7963, 4
        %v7965 = vadd.f32 %v7963, %v7964
        %v7966 = vrot.slane %v7965, 2
        %v7967 = vadd.f32 %v7965, %v7966
        %v7968 = vrot.slane %v7967, 1
        %v7969 = vadd.f32 %v7967, %v7968
        %v7970 = vadd.f32 %v5934, %v5942
        %v7971 = vrot.slane %v7970, 4
        %v7972 = vadd.f32 %v7970, %v7971
        %v7973 = vrot.slane %v7972, 2
        %v7974 = vadd.f32 %v7972, %v7973
        %v7975 = vrot.slane %v7974, 1
        %v7976 = vadd.f32 %v7974, %v7975
        %v7977 = vadd.f32 %v5935, %v5943
        %v7978 = vrot.slane %v7977, 4
        %v7979 = vadd.f32 %v7977, %v7978
        %v7980 = vrot.slane %v7979, 2
        %v7981 = vadd.f32 %v7979, %v7980
        %v7982 = vrot.slane %v7981, 1
        %v7983 = vadd.f32 %v7981, %v7982
        %v7984 = vadd.f32 %v5936, %v5944
        %v7985 = vrot.slane %v7984, 4
        %v7986 = vadd.f32 %v7984, %v7985
        %v7987 = vrot.slane %v7986, 2
        %v7988 = vadd.f32 %v7986, %v7987
        %v7989 = vrot.slane %v7988, 1
        %v7990 = vadd.f32 %v7988, %v7989
        %v7991 = vadd.f32 %v5937, %v5945
        %v7992 = vrot.slane %v7991, 4
        %v7993 = vadd.f32 %v7991, %v7992
        %v7994 = vrot.slane %v7993, 2
        %v7995 = vadd.f32 %v7993, %v7994
        %v7996 = vrot.slane %v7995, 1
        %v7997 = vadd.f32 %v7995, %v7996
        %v7998 = vadd.f32 %v5938, %v5946
        %v7999 = vrot.slane %v7998, 4
        %v8000 = vadd.f32 %v7998, %v7999
        %v8001 = vrot.slane %v8000, 2
        %v8002 = vadd.f32 %v8000, %v8001
        %v8003 = vrot.slane %v8002, 1
        %v8004 = vadd.f32 %v8002, %v8003
        %v8005 = vadd.f32 %v5939, %v5947
        %v8006 = vrot.slane %v8005, 4
        %v8007 = vadd.f32 %v8005, %v8006
        %v8008 = vrot.slane %v8007, 2
        %v8009 = vadd.f32 %v8007, %v8008
        %v8010 = vrot.slane %v8009, 1
        %v8011 = vadd.f32 %v8009, %v8010
        %v8012 = vadd.f32 %v5948, %v5956
        %v8013 = vrot.slane %v8012, 4
        %v8014 = vadd.f32 %v8012, %v8013
        %v8015 = vrot.slane %v8014, 2
        %v8016 = vadd.f32 %v8014, %v8015
        %v8017 = vrot.slane %v8016, 1
        %v8018 = vadd.f32 %v8016, %v8017
        %v8019 = vadd.f32 %v5949, %v5957
        %v8020 = vrot.slane %v8019, 4
        %v8021 = vadd.f32 %v8019, %v8020
        %v8022 = vrot.slane %v8021, 2
        %v8023 = vadd.f32 %v8021, %v8022
        %v8024 = vrot.slane %v8023, 1
        %v8025 = vadd.f32 %v8023, %v8024
        %v8026 = vadd.f32 %v5950, %v5958
        %v8027 = vrot.slane %v8026, 4
        %v8028 = vadd.f32 %v8026, %v8027
        %v8029 = vrot.slane %v8028, 2
        %v8030 = vadd.f32 %v8028, %v8029
        %v8031 = vrot.slane %v8030, 1
        %v8032 = vadd.f32 %v8030, %v8031
        %v8033 = vadd.f32 %v5951, %v5959
        %v8034 = vrot.slane %v8033, 4
        %v8035 = vadd.f32 %v8033, %v8034
        %v8036 = vrot.slane %v8035, 2
        %v8037 = vadd.f32 %v8035, %v8036
        %v8038 = vrot.slane %v8037, 1
        %v8039 = vadd.f32 %v8037, %v8038
        %v8040 = vadd.f32 %v5952, %v5960
        %v8041 = vrot.slane %v8040, 4
        %v8042 = vadd.f32 %v8040, %v8041
        %v8043 = vrot.slane %v8042, 2
        %v8044 = vadd.f32 %v8042, %v8043
        %v8045 = vrot.slane %v8044, 1
        %v8046 = vadd.f32 %v8044, %v8045
        %v8047 = vadd.f32 %v5953, %v5961
        %v8048 = vrot.slane %v8047, 4
        %v8049 = vadd.f32 %v8047, %v8048
        %v8050 = vrot.slane %v8049, 2
        %v8051 = vadd.f32 %v8049, %v8050
        %v8052 = vrot.slane %v8051, 1
        %v8053 = vadd.f32 %v8051, %v8052
        %v8054 = vadd.f32 %v5954, %v5962
        %v8055 = vrot.slane %v8054, 4
        %v8056 = vadd.f32 %v8054, %v8055
        %v8057 = vrot.slane %v8056, 2
        %v8058 = vadd.f32 %v8056, %v8057
        %v8059 = vrot.slane %v8058, 1
        %v8060 = vadd.f32 %v8058, %v8059
        %v8061 = vadd.f32 %v5955, %v5963
        %v8062 = vrot.slane %v8061, 4
        %v8063 = vadd.f32 %v8061, %v8062
        %v8064 = vrot.slane %v8063, 2
        %v8065 = vadd.f32 %v8063, %v8064
        %v8066 = vrot.slane %v8065, 1
        %v8067 = vadd.f32 %v8065, %v8066
        %v8068 = vadd.f32 %v5964, %v5972
        %v8069 = vrot.slane %v8068, 4
        %v8070 = vadd.f32 %v8068, %v8069
        %v8071 = vrot.slane %v8070, 2
        %v8072 = vadd.f32 %v8070, %v8071
        %v8073 = vrot.slane %v8072, 1
        %v8074 = vadd.f32 %v8072, %v8073
        %v8075 = vadd.f32 %v5965, %v5973
        %v8076 = vrot.slane %v8075, 4
        %v8077 = vadd.f32 %v8075, %v8076
        %v8078 = vrot.slane %v8077, 2
        %v8079 = vadd.f32 %v8077, %v8078
        %v8080 = vrot.slane %v8079, 1
        %v8081 = vadd.f32 %v8079, %v8080
        %v8082 = vadd.f32 %v5966, %v5974
        %v8083 = vrot.slane %v8082, 4
        %v8084 = vadd.f32 %v8082, %v8083
        %v8085 = vrot.slane %v8084, 2
        %v8086 = vadd.f32 %v8084, %v8085
        %v8087 = vrot.slane %v8086, 1
        %v8088 = vadd.f32 %v8086, %v8087
        %v8089 = vadd.f32 %v5967, %v5975
        %v8090 = vrot.slane %v8089, 4
        %v8091 = vadd.f32 %v8089, %v8090
        %v8092 = vrot.slane %v8091, 2
        %v8093 = vadd.f32 %v8091, %v8092
        %v8094 = vrot.slane %v8093, 1
        %v8095 = vadd.f32 %v8093, %v8094
        %v8096 = vadd.f32 %v5968, %v5976
        %v8097 = vrot.slane %v8096, 4
        %v8098 = vadd.f32 %v8096, %v8097
        %v8099 = vrot.slane %v8098, 2
        %v8100 = vadd.f32 %v8098, %v8099
        %v8101 = vrot.slane %v8100, 1
        %v8102 = vadd.f32 %v8100, %v8101
        %v8103 = vadd.f32 %v5969, %v5977
        %v8104 = vrot.slane %v8103, 4
        %v8105 = vadd.f32 %v8103, %v8104
        %v8106 = vrot.slane %v8105, 2
        %v8107 = vadd.f32 %v8105, %v8106
        %v8108 = vrot.slane %v8107, 1
        %v8109 = vadd.f32 %v8107, %v8108
        %v8110 = vadd.f32 %v5970, %v5978
        %v8111 = vrot.slane %v8110, 4
        %v8112 = vadd.f32 %v8110, %v8111
        %v8113 = vrot.slane %v8112, 2
        %v8114 = vadd.f32 %v8112, %v8113
        %v8115 = vrot.slane %v8114, 1
        %v8116 = vadd.f32 %v8114, %v8115
        %v8117 = vadd.f32 %v5971, %v5979
        %v8118 = vrot.slane %v8117, 4
        %v8119 = vadd.f32 %v8117, %v8118
        %v8120 = vrot.slane %v8119, 2
        %v8121 = vadd.f32 %v8119, %v8120
        %v8122 = vrot.slane %v8121, 1
        %v8123 = vadd.f32 %v8121, %v8122
        %v8124 = vadd.f32 %v5980, %v5988
        %v8125 = vrot.slane %v8124, 4
        %v8126 = vadd.f32 %v8124, %v8125
        %v8127 = vrot.slane %v8126, 2
        %v8128 = vadd.f32 %v8126, %v8127
        %v8129 = vrot.slane %v8128, 1
        %v8130 = vadd.f32 %v8128, %v8129
        %v8131 = vadd.f32 %v5981, %v5989
        %v8132 = vrot.slane %v8131, 4
        %v8133 = vadd.f32 %v8131, %v8132
        %v8134 = vrot.slane %v8133, 2
        %v8135 = vadd.f32 %v8133, %v8134
        %v8136 = vrot.slane %v8135, 1
        %v8137 = vadd.f32 %v8135, %v8136
        %v8138 = vadd.f32 %v5982, %v5990
        %v8139 = vrot.slane %v8138, 4
        %v8140 = vadd.f32 %v8138, %v8139
        %v8141 = vrot.slane %v8140, 2
        %v8142 = vadd.f32 %v8140, %v8141
        %v8143 = vrot.slane %v8142, 1
        %v8144 = vadd.f32 %v8142, %v8143
        %v8145 = vadd.f32 %v5983, %v5991
        %v8146 = vrot.slane %v8145, 4
        %v8147 = vadd.f32 %v8145, %v8146
        %v8148 = vrot.slane %v8147, 2
        %v8149 = vadd.f32 %v8147, %v8148
        %v8150 = vrot.slane %v8149, 1
        %v8151 = vadd.f32 %v8149, %v8150
        %v8152 = vadd.f32 %v5984, %v5992
        %v8153 = vrot.slane %v8152, 4
        %v8154 = vadd.f32 %v8152, %v8153
        %v8155 = vrot.slane %v8154, 2
        %v8156 = vadd.f32 %v8154, %v8155
        %v8157 = vrot.slane %v8156, 1
        %v8158 = vadd.f32 %v8156, %v8157
        %v8159 = vadd.f32 %v5985, %v5993
        %v8160 = vrot.slane %v8159, 4
        %v8161 = vadd.f32 %v8159, %v8160
        %v8162 = vrot.slane %v8161, 2
        %v8163 = vadd.f32 %v8161, %v8162
        %v8164 = vrot.slane %v8163, 1
        %v8165 = vadd.f32 %v8163, %v8164
        %v8166 = vadd.f32 %v5986, %v5994
        %v8167 = vrot.slane %v8166, 4
        %v8168 = vadd.f32 %v8166, %v8167
        %v8169 = vrot.slane %v8168, 2
        %v8170 = vadd.f32 %v8168, %v8169
        %v8171 = vrot.slane %v8170, 1
        %v8172 = vadd.f32 %v8170, %v8171
        %v8173 = vadd.f32 %v5987, %v5995
        %v8174 = vrot.slane %v8173, 4
        %v8175 = vadd.f32 %v8173, %v8174
        %v8176 = vrot.slane %v8175, 2
        %v8177 = vadd.f32 %v8175, %v8176
        %v8178 = vrot.slane %v8177, 1
        %v8179 = vadd.f32 %v8177, %v8178
        %v8180 = vadd.f32 %v5996, %v6004
        %v8181 = vrot.slane %v8180, 4
        %v8182 = vadd.f32 %v8180, %v8181
        %v8183 = vrot.slane %v8182, 2
        %v8184 = vadd.f32 %v8182, %v8183
        %v8185 = vrot.slane %v8184, 1
        %v8186 = vadd.f32 %v8184, %v8185
        %v8187 = vadd.f32 %v5997, %v6005
        %v8188 = vrot.slane %v8187, 4
        %v8189 = vadd.f32 %v8187, %v8188
        %v8190 = vrot.slane %v8189, 2
        %v8191 = vadd.f32 %v8189, %v8190
        %v8192 = vrot.slane %v8191, 1
        %v8193 = vadd.f32 %v8191, %v8192
        %v8194 = vadd.f32 %v5998, %v6006
        %v8195 = vrot.slane %v8194, 4
        %v8196 = vadd.f32 %v8194, %v8195
        %v8197 = vrot.slane %v8196, 2
        %v8198 = vadd.f32 %v8196, %v8197
        %v8199 = vrot.slane %v8198, 1
        %v8200 = vadd.f32 %v8198, %v8199
        %v8201 = vadd.f32 %v5999, %v6007
        %v8202 = vrot.slane %v8201, 4
        %v8203 = vadd.f32 %v8201, %v8202
        %v8204 = vrot.slane %v8203, 2
        %v8205 = vadd.f32 %v8203, %v8204
        %v8206 = vrot.slane %v8205, 1
        %v8207 = vadd.f32 %v8205, %v8206
        %v8208 = vadd.f32 %v6000, %v6008
        %v8209 = vrot.slane %v8208, 4
        %v8210 = vadd.f32 %v8208, %v8209
        %v8211 = vrot.slane %v8210, 2
        %v8212 = vadd.f32 %v8210, %v8211
        %v8213 = vrot.slane %v8212, 1
        %v8214 = vadd.f32 %v8212, %v8213
        %v8215 = vadd.f32 %v6001, %v6009
        %v8216 = vrot.slane %v8215, 4
        %v8217 = vadd.f32 %v8215, %v8216
        %v8218 = vrot.slane %v8217, 2
        %v8219 = vadd.f32 %v8217, %v8218
        %v8220 = vrot.slane %v8219, 1
        %v8221 = vadd.f32 %v8219, %v8220
        %v8222 = vadd.f32 %v6002, %v6010
        %v8223 = vrot.slane %v8222, 4
        %v8224 = vadd.f32 %v8222, %v8223
        %v8225 = vrot.slane %v8224, 2
        %v8226 = vadd.f32 %v8224, %v8225
        %v8227 = vrot.slane %v8226, 1
        %v8228 = vadd.f32 %v8226, %v8227
        %v8229 = vadd.f32 %v6003, %v6011
        %v8230 = vrot.slane %v8229, 4
        %v8231 = vadd.f32 %v8229, %v8230
        %v8232 = vrot.slane %v8231, 2
        %v8233 = vadd.f32 %v8231, %v8232
        %v8234 = vrot.slane %v8233, 1
        %v8235 = vadd.f32 %v8233, %v8234
        %v8236 = vadd.f32 %v6012, %v6020
        %v8237 = vrot.slane %v8236, 4
        %v8238 = vadd.f32 %v8236, %v8237
        %v8239 = vrot.slane %v8238, 2
        %v8240 = vadd.f32 %v8238, %v8239
        %v8241 = vrot.slane %v8240, 1
        %v8242 = vadd.f32 %v8240, %v8241
        %v8243 = vadd.f32 %v6013, %v6021
        %v8244 = vrot.slane %v8243, 4
        %v8245 = vadd.f32 %v8243, %v8244
        %v8246 = vrot.slane %v8245, 2
        %v8247 = vadd.f32 %v8245, %v8246
        %v8248 = vrot.slane %v8247, 1
        %v8249 = vadd.f32 %v8247, %v8248
        %v8250 = vadd.f32 %v6014, %v6022
        %v8251 = vrot.slane %v8250, 4
        %v8252 = vadd.f32 %v8250, %v8251
        %v8253 = vrot.slane %v8252, 2
        %v8254 = vadd.f32 %v8252, %v8253
        %v8255 = vrot.slane %v8254, 1
        %v8256 = vadd.f32 %v8254, %v8255
        %v8257 = vadd.f32 %v6015, %v6023
        %v8258 = vrot.slane %v8257, 4
        %v8259 = vadd.f32 %v8257, %v8258
        %v8260 = vrot.slane %v8259, 2
        %v8261 = vadd.f32 %v8259, %v8260
        %v8262 = vrot.slane %v8261, 1
        %v8263 = vadd.f32 %v8261, %v8262
        %v8264 = vadd.f32 %v6016, %v6024
        %v8265 = vrot.slane %v8264, 4
        %v8266 = vadd.f32 %v8264, %v8265
        %v8267 = vrot.slane %v8266, 2
        %v8268 = vadd.f32 %v8266, %v8267
        %v8269 = vrot.slane %v8268, 1
        %v8270 = vadd.f32 %v8268, %v8269
        %v8271 = vadd.f32 %v6017, %v6025
        %v8272 = vrot.slane %v8271, 4
        %v8273 = vadd.f32 %v8271, %v8272
        %v8274 = vrot.slane %v8273, 2
        %v8275 = vadd.f32 %v8273, %v8274
        %v8276 = vrot.slane %v8275, 1
        %v8277 = vadd.f32 %v8275, %v8276
        %v8278 = vadd.f32 %v6018, %v6026
        %v8279 = vrot.slane %v8278, 4
        %v8280 = vadd.f32 %v8278, %v8279
        %v8281 = vrot.slane %v8280, 2
        %v8282 = vadd.f32 %v8280, %v8281
        %v8283 = vrot.slane %v8282, 1
        %v8284 = vadd.f32 %v8282, %v8283
        %v8285 = vadd.f32 %v6019, %v6027
        %v8286 = vrot.slane %v8285, 4
        %v8287 = vadd.f32 %v8285, %v8286
        %v8288 = vrot.slane %v8287, 2
        %v8289 = vadd.f32 %v8287, %v8288
        %v8290 = vrot.slane %v8289, 1
        %v8291 = vadd.f32 %v8289, %v8290
        %v8292 = vadd.f32 %v6028, %v6036
        %v8293 = vrot.slane %v8292, 4
        %v8294 = vadd.f32 %v8292, %v8293
        %v8295 = vrot.slane %v8294, 2
        %v8296 = vadd.f32 %v8294, %v8295
        %v8297 = vrot.slane %v8296, 1
        %v8298 = vadd.f32 %v8296, %v8297
        %v8299 = vadd.f32 %v6029, %v6037
        %v8300 = vrot.slane %v8299, 4
        %v8301 = vadd.f32 %v8299, %v8300
        %v8302 = vrot.slane %v8301, 2
        %v8303 = vadd.f32 %v8301, %v8302
        %v8304 = vrot.slane %v8303, 1
        %v8305 = vadd.f32 %v8303, %v8304
        %v8306 = vadd.f32 %v6030, %v6038
        %v8307 = vrot.slane %v8306, 4
        %v8308 = vadd.f32 %v8306, %v8307
        %v8309 = vrot.slane %v8308, 2
        %v8310 = vadd.f32 %v8308, %v8309
        %v8311 = vrot.slane %v8310, 1
        %v8312 = vadd.f32 %v8310, %v8311
        %v8313 = vadd.f32 %v6031, %v6039
        %v8314 = vrot.slane %v8313, 4
        %v8315 = vadd.f32 %v8313, %v8314
        %v8316 = vrot.slane %v8315, 2
        %v8317 = vadd.f32 %v8315, %v8316
        %v8318 = vrot.slane %v8317, 1
        %v8319 = vadd.f32 %v8317, %v8318
        %v8320 = vadd.f32 %v6032, %v6040
        %v8321 = vrot.slane %v8320, 4
        %v8322 = vadd.f32 %v8320, %v8321
        %v8323 = vrot.slane %v8322, 2
        %v8324 = vadd.f32 %v8322, %v8323
        %v8325 = vrot.slane %v8324, 1
        %v8326 = vadd.f32 %v8324, %v8325
        %v8327 = vadd.f32 %v6033, %v6041
        %v8328 = vrot.slane %v8327, 4
        %v8329 = vadd.f32 %v8327, %v8328
        %v8330 = vrot.slane %v8329, 2
        %v8331 = vadd.f32 %v8329, %v8330
        %v8332 = vrot.slane %v8331, 1
        %v8333 = vadd.f32 %v8331, %v8332
        %v8334 = vadd.f32 %v6034, %v6042
        %v8335 = vrot.slane %v8334, 4
        %v8336 = vadd.f32 %v8334, %v8335
        %v8337 = vrot.slane %v8336, 2
        %v8338 = vadd.f32 %v8336, %v8337
        %v8339 = vrot.slane %v8338, 1
        %v8340 = vadd.f32 %v8338, %v8339
        %v8341 = vadd.f32 %v6035, %v6043
        %v8342 = vrot.slane %v8341, 4
        %v8343 = vadd.f32 %v8341, %v8342
        %v8344 = vrot.slane %v8343, 2
        %v8345 = vadd.f32 %v8343, %v8344
        %v8346 = vrot.slane %v8345, 1
        %v8347 = vadd.f32 %v8345, %v8346
        %v8348 = vadd.f32 %v6044, %v6052
        %v8349 = vrot.slane %v8348, 4
        %v8350 = vadd.f32 %v8348, %v8349
        %v8351 = vrot.slane %v8350, 2
        %v8352 = vadd.f32 %v8350, %v8351
        %v8353 = vrot.slane %v8352, 1
        %v8354 = vadd.f32 %v8352, %v8353
        %v8355 = vadd.f32 %v6045, %v6053
        %v8356 = vrot.slane %v8355, 4
        %v8357 = vadd.f32 %v8355, %v8356
        %v8358 = vrot.slane %v8357, 2
        %v8359 = vadd.f32 %v8357, %v8358
        %v8360 = vrot.slane %v8359, 1
        %v8361 = vadd.f32 %v8359, %v8360
        %v8362 = vadd.f32 %v6046, %v6054
        %v8363 = vrot.slane %v8362, 4
        %v8364 = vadd.f32 %v8362, %v8363
        %v8365 = vrot.slane %v8364, 2
        %v8366 = vadd.f32 %v8364, %v8365
        %v8367 = vrot.slane %v8366, 1
        %v8368 = vadd.f32 %v8366, %v8367
        %v8369 = vadd.f32 %v6047, %v6055
        %v8370 = vrot.slane %v8369, 4
        %v8371 = vadd.f32 %v8369, %v8370
        %v8372 = vrot.slane %v8371, 2
        %v8373 = vadd.f32 %v8371, %v8372
        %v8374 = vrot.slane %v8373, 1
        %v8375 = vadd.f32 %v8373, %v8374
        %v8376 = vadd.f32 %v6048, %v6056
        %v8377 = vrot.slane %v8376, 4
        %v8378 = vadd.f32 %v8376, %v8377
        %v8379 = vrot.slane %v8378, 2
        %v8380 = vadd.f32 %v8378, %v8379
        %v8381 = vrot.slane %v8380, 1
        %v8382 = vadd.f32 %v8380, %v8381
        %v8383 = vadd.f32 %v6049, %v6057
        %v8384 = vrot.slane %v8383, 4
        %v8385 = vadd.f32 %v8383, %v8384
        %v8386 = vrot.slane %v8385, 2
        %v8387 = vadd.f32 %v8385, %v8386
        %v8388 = vrot.slane %v8387, 1
        %v8389 = vadd.f32 %v8387, %v8388
        %v8390 = vadd.f32 %v6050, %v6058
        %v8391 = vrot.slane %v8390, 4
        %v8392 = vadd.f32 %v8390, %v8391
        %v8393 = vrot.slane %v8392, 2
        %v8394 = vadd.f32 %v8392, %v8393
        %v8395 = vrot.slane %v8394, 1
        %v8396 = vadd.f32 %v8394, %v8395
        %v8397 = vadd.f32 %v6051, %v6059
        %v8398 = vrot.slane %v8397, 4
        %v8399 = vadd.f32 %v8397, %v8398
        %v8400 = vrot.slane %v8399, 2
        %v8401 = vadd.f32 %v8399, %v8400
        %v8402 = vrot.slane %v8401, 1
        %v8403 = vadd.f32 %v8401, %v8402
        %v8404 = vadd.f32 %v6060, %v6068
        %v8405 = vrot.slane %v8404, 4
        %v8406 = vadd.f32 %v8404, %v8405
        %v8407 = vrot.slane %v8406, 2
        %v8408 = vadd.f32 %v8406, %v8407
        %v8409 = vrot.slane %v8408, 1
        %v8410 = vadd.f32 %v8408, %v8409
        %v8411 = vadd.f32 %v6061, %v6069
        %v8412 = vrot.slane %v8411, 4
        %v8413 = vadd.f32 %v8411, %v8412
        %v8414 = vrot.slane %v8413, 2
        %v8415 = vadd.f32 %v8413, %v8414
        %v8416 = vrot.slane %v8415, 1
        %v8417 = vadd.f32 %v8415, %v8416
        %v8418 = vadd.f32 %v6062, %v6070
        %v8419 = vrot.slane %v8418, 4
        %v8420 = vadd.f32 %v8418, %v8419
        %v8421 = vrot.slane %v8420, 2
        %v8422 = vadd.f32 %v8420, %v8421
        %v8423 = vrot.slane %v8422, 1
        %v8424 = vadd.f32 %v8422, %v8423
        %v8425 = vadd.f32 %v6063, %v6071
        %v8426 = vrot.slane %v8425, 4
        %v8427 = vadd.f32 %v8425, %v8426
        %v8428 = vrot.slane %v8427, 2
        %v8429 = vadd.f32 %v8427, %v8428
        %v8430 = vrot.slane %v8429, 1
        %v8431 = vadd.f32 %v8429, %v8430
        %v8432 = vadd.f32 %v6064, %v6072
        %v8433 = vrot.slane %v8432, 4
        %v8434 = vadd.f32 %v8432, %v8433
        %v8435 = vrot.slane %v8434, 2
        %v8436 = vadd.f32 %v8434, %v8435
        %v8437 = vrot.slane %v8436, 1
        %v8438 = vadd.f32 %v8436, %v8437
        %v8439 = vadd.f32 %v6065, %v6073
        %v8440 = vrot.slane %v8439, 4
        %v8441 = vadd.f32 %v8439, %v8440
        %v8442 = vrot.slane %v8441, 2
        %v8443 = vadd.f32 %v8441, %v8442
        %v8444 = vrot.slane %v8443, 1
        %v8445 = vadd.f32 %v8443, %v8444
        %v8446 = vadd.f32 %v6066, %v6074
        %v8447 = vrot.slane %v8446, 4
        %v8448 = vadd.f32 %v8446, %v8447
        %v8449 = vrot.slane %v8448, 2
        %v8450 = vadd.f32 %v8448, %v8449
        %v8451 = vrot.slane %v8450, 1
        %v8452 = vadd.f32 %v8450, %v8451
        %v8453 = vadd.f32 %v6067, %v6075
        %v8454 = vrot.slane %v8453, 4
        %v8455 = vadd.f32 %v8453, %v8454
        %v8456 = vrot.slane %v8455, 2
        %v8457 = vadd.f32 %v8455, %v8456
        %v8458 = vrot.slane %v8457, 1
        %v8459 = vadd.f32 %v8457, %v8458
        %v8460 = vadd.f32 %v6076, %v6084
        %v8461 = vrot.slane %v8460, 4
        %v8462 = vadd.f32 %v8460, %v8461
        %v8463 = vrot.slane %v8462, 2
        %v8464 = vadd.f32 %v8462, %v8463
        %v8465 = vrot.slane %v8464, 1
        %v8466 = vadd.f32 %v8464, %v8465
        %v8467 = vadd.f32 %v6077, %v6085
        %v8468 = vrot.slane %v8467, 4
        %v8469 = vadd.f32 %v8467, %v8468
        %v8470 = vrot.slane %v8469, 2
        %v8471 = vadd.f32 %v8469, %v8470
        %v8472 = vrot.slane %v8471, 1
        %v8473 = vadd.f32 %v8471, %v8472
        %v8474 = vadd.f32 %v6078, %v6086
        %v8475 = vrot.slane %v8474, 4
        %v8476 = vadd.f32 %v8474, %v8475
        %v8477 = vrot.slane %v8476, 2
        %v8478 = vadd.f32 %v8476, %v8477
        %v8479 = vrot.slane %v8478, 1
        %v8480 = vadd.f32 %v8478, %v8479
        %v8481 = vadd.f32 %v6079, %v6087
        %v8482 = vrot.slane %v8481, 4
        %v8483 = vadd.f32 %v8481, %v8482
        %v8484 = vrot.slane %v8483, 2
        %v8485 = vadd.f32 %v8483, %v8484
        %v8486 = vrot.slane %v8485, 1
        %v8487 = vadd.f32 %v8485, %v8486
        %v8488 = vadd.f32 %v6080, %v6088
        %v8489 = vrot.slane %v8488, 4
        %v8490 = vadd.f32 %v8488, %v8489
        %v8491 = vrot.slane %v8490, 2
        %v8492 = vadd.f32 %v8490, %v8491
        %v8493 = vrot.slane %v8492, 1
        %v8494 = vadd.f32 %v8492, %v8493
        %v8495 = vadd.f32 %v6081, %v6089
        %v8496 = vrot.slane %v8495, 4
        %v8497 = vadd.f32 %v8495, %v8496
        %v8498 = vrot.slane %v8497, 2
        %v8499 = vadd.f32 %v8497, %v8498
        %v8500 = vrot.slane %v8499, 1
        %v8501 = vadd.f32 %v8499, %v8500
        %v8502 = vadd.f32 %v6082, %v6090
        %v8503 = vrot.slane %v8502, 4
        %v8504 = vadd.f32 %v8502, %v8503
        %v8505 = vrot.slane %v8504, 2
        %v8506 = vadd.f32 %v8504, %v8505
        %v8507 = vrot.slane %v8506, 1
        %v8508 = vadd.f32 %v8506, %v8507
        %v8509 = vadd.f32 %v6083, %v6091
        %v8510 = vrot.slane %v8509, 4
        %v8511 = vadd.f32 %v8509, %v8510
        %v8512 = vrot.slane %v8511, 2
        %v8513 = vadd.f32 %v8511, %v8512
        %v8514 = vrot.slane %v8513, 1
        %v8515 = vadd.f32 %v8513, %v8514
        %v8516 = vadd.f32 %v6092, %v6100
        %v8517 = vrot.slane %v8516, 4
        %v8518 = vadd.f32 %v8516, %v8517
        %v8519 = vrot.slane %v8518, 2
        %v8520 = vadd.f32 %v8518, %v8519
        %v8521 = vrot.slane %v8520, 1
        %v8522 = vadd.f32 %v8520, %v8521
        %v8523 = vadd.f32 %v6093, %v6101
        %v8524 = vrot.slane %v8523, 4
        %v8525 = vadd.f32 %v8523, %v8524
        %v8526 = vrot.slane %v8525, 2
        %v8527 = vadd.f32 %v8525, %v8526
        %v8528 = vrot.slane %v8527, 1
        %v8529 = vadd.f32 %v8527, %v8528
        %v8530 = vadd.f32 %v6094, %v6102
        %v8531 = vrot.slane %v8530, 4
        %v8532 = vadd.f32 %v8530, %v8531
        %v8533 = vrot.slane %v8532, 2
        %v8534 = vadd.f32 %v8532, %v8533
        %v8535 = vrot.slane %v8534, 1
        %v8536 = vadd.f32 %v8534, %v8535
        %v8537 = vadd.f32 %v6095, %v6103
        %v8538 = vrot.slane %v8537, 4
        %v8539 = vadd.f32 %v8537, %v8538
        %v8540 = vrot.slane %v8539, 2
        %v8541 = vadd.f32 %v8539, %v8540
        %v8542 = vrot.slane %v8541, 1
        %v8543 = vadd.f32 %v8541, %v8542
        %v8544 = vadd.f32 %v6096, %v6104
        %v8545 = vrot.slane %v8544, 4
        %v8546 = vadd.f32 %v8544, %v8545
        %v8547 = vrot.slane %v8546, 2
        %v8548 = vadd.f32 %v8546, %v8547
        %v8549 = vrot.slane %v8548, 1
        %v8550 = vadd.f32 %v8548, %v8549
        %v8551 = vadd.f32 %v6097, %v6105
        %v8552 = vrot.slane %v8551, 4
        %v8553 = vadd.f32 %v8551, %v8552
        %v8554 = vrot.slane %v8553, 2
        %v8555 = vadd.f32 %v8553, %v8554
        %v8556 = vrot.slane %v8555, 1
        %v8557 = vadd.f32 %v8555, %v8556
        %v8558 = vadd.f32 %v6098, %v6106
        %v8559 = vrot.slane %v8558, 4
        %v8560 = vadd.f32 %v8558, %v8559
        %v8561 = vrot.slane %v8560, 2
        %v8562 = vadd.f32 %v8560, %v8561
        %v8563 = vrot.slane %v8562, 1
        %v8564 = vadd.f32 %v8562, %v8563
        %v8565 = vadd.f32 %v6099, %v6107
        %v8566 = vrot.slane %v8565, 4
        %v8567 = vadd.f32 %v8565, %v8566
        %v8568 = vrot.slane %v8567, 2
        %v8569 = vadd.f32 %v8567, %v8568
        %v8570 = vrot.slane %v8569, 1
        %v8571 = vadd.f32 %v8569, %v8570
        %v8572 = vadd.f32 %v6108, %v6116
        %v8573 = vrot.slane %v8572, 4
        %v8574 = vadd.f32 %v8572, %v8573
        %v8575 = vrot.slane %v8574, 2
        %v8576 = vadd.f32 %v8574, %v8575
        %v8577 = vrot.slane %v8576, 1
        %v8578 = vadd.f32 %v8576, %v8577
        %v8579 = vadd.f32 %v6109, %v6117
        %v8580 = vrot.slane %v8579, 4
        %v8581 = vadd.f32 %v8579, %v8580
        %v8582 = vrot.slane %v8581, 2
        %v8583 = vadd.f32 %v8581, %v8582
        %v8584 = vrot.slane %v8583, 1
        %v8585 = vadd.f32 %v8583, %v8584
        %v8586 = vadd.f32 %v6110, %v6118
        %v8587 = vrot.slane %v8586, 4
        %v8588 = vadd.f32 %v8586, %v8587
        %v8589 = vrot.slane %v8588, 2
        %v8590 = vadd.f32 %v8588, %v8589
        %v8591 = vrot.slane %v8590, 1
        %v8592 = vadd.f32 %v8590, %v8591
        %v8593 = vadd.f32 %v6111, %v6119
        %v8594 = vrot.slane %v8593, 4
        %v8595 = vadd.f32 %v8593, %v8594
        %v8596 = vrot.slane %v8595, 2
        %v8597 = vadd.f32 %v8595, %v8596
        %v8598 = vrot.slane %v8597, 1
        %v8599 = vadd.f32 %v8597, %v8598
        %v8600 = vadd.f32 %v6112, %v6120
        %v8601 = vrot.slane %v8600, 4
        %v8602 = vadd.f32 %v8600, %v8601
        %v8603 = vrot.slane %v8602, 2
        %v8604 = vadd.f32 %v8602, %v8603
        %v8605 = vrot.slane %v8604, 1
        %v8606 = vadd.f32 %v8604, %v8605
        %v8607 = vadd.f32 %v6113, %v6121
        %v8608 = vrot.slane %v8607, 4
        %v8609 = vadd.f32 %v8607, %v8608
        %v8610 = vrot.slane %v8609, 2
        %v8611 = vadd.f32 %v8609, %v8610
        %v8612 = vrot.slane %v8611, 1
        %v8613 = vadd.f32 %v8611, %v8612
        %v8614 = vadd.f32 %v6114, %v6122
        %v8615 = vrot.slane %v8614, 4
        %v8616 = vadd.f32 %v8614, %v8615
        %v8617 = vrot.slane %v8616, 2
        %v8618 = vadd.f32 %v8616, %v8617
        %v8619 = vrot.slane %v8618, 1
        %v8620 = vadd.f32 %v8618, %v8619
        %v8621 = vadd.f32 %v6115, %v6123
        %v8622 = vrot.slane %v8621, 4
        %v8623 = vadd.f32 %v8621, %v8622
        %v8624 = vrot.slane %v8623, 2
        %v8625 = vadd.f32 %v8623, %v8624
        %v8626 = vrot.slane %v8625, 1
        %v8627 = vadd.f32 %v8625, %v8626
        %v8628 = vadd.f32 %v6124, %v6132
        %v8629 = vrot.slane %v8628, 4
        %v8630 = vadd.f32 %v8628, %v8629
        %v8631 = vrot.slane %v8630, 2
        %v8632 = vadd.f32 %v8630, %v8631
        %v8633 = vrot.slane %v8632, 1
        %v8634 = vadd.f32 %v8632, %v8633
        %v8635 = vadd.f32 %v6125, %v6133
        %v8636 = vrot.slane %v8635, 4
        %v8637 = vadd.f32 %v8635, %v8636
        %v8638 = vrot.slane %v8637, 2
        %v8639 = vadd.f32 %v8637, %v8638
        %v8640 = vrot.slane %v8639, 1
        %v8641 = vadd.f32 %v8639, %v8640
        %v8642 = vadd.f32 %v6126, %v6134
        %v8643 = vrot.slane %v8642, 4
        %v8644 = vadd.f32 %v8642, %v8643
        %v8645 = vrot.slane %v8644, 2
        %v8646 = vadd.f32 %v8644, %v8645
        %v8647 = vrot.slane %v8646, 1
        %v8648 = vadd.f32 %v8646, %v8647
        %v8649 = vadd.f32 %v6127, %v6135
        %v8650 = vrot.slane %v8649, 4
        %v8651 = vadd.f32 %v8649, %v8650
        %v8652 = vrot.slane %v8651, 2
        %v8653 = vadd.f32 %v8651, %v8652
        %v8654 = vrot.slane %v8653, 1
        %v8655 = vadd.f32 %v8653, %v8654
        %v8656 = vadd.f32 %v6128, %v6136
        %v8657 = vrot.slane %v8656, 4
        %v8658 = vadd.f32 %v8656, %v8657
        %v8659 = vrot.slane %v8658, 2
        %v8660 = vadd.f32 %v8658, %v8659
        %v8661 = vrot.slane %v8660, 1
        %v8662 = vadd.f32 %v8660, %v8661
        %v8663 = vadd.f32 %v6129, %v6137
        %v8664 = vrot.slane %v8663, 4
        %v8665 = vadd.f32 %v8663, %v8664
        %v8666 = vrot.slane %v8665, 2
        %v8667 = vadd.f32 %v8665, %v8666
        %v8668 = vrot.slane %v8667, 1
        %v8669 = vadd.f32 %v8667, %v8668
        %v8670 = vadd.f32 %v6130, %v6138
        %v8671 = vrot.slane %v8670, 4
        %v8672 = vadd.f32 %v8670, %v8671
        %v8673 = vrot.slane %v8672, 2
        %v8674 = vadd.f32 %v8672, %v8673
        %v8675 = vrot.slane %v8674, 1
        %v8676 = vadd.f32 %v8674, %v8675
        %v8677 = vadd.f32 %v6131, %v6139
        %v8678 = vrot.slane %v8677, 4
        %v8679 = vadd.f32 %v8677, %v8678
        %v8680 = vrot.slane %v8679, 2
        %v8681 = vadd.f32 %v8679, %v8680
        %v8682 = vrot.slane %v8681, 1
        %v8683 = vadd.f32 %v8681, %v8682
        %v8684 = vadd.f32 %v6140, %v6148
        %v8685 = vrot.slane %v8684, 4
        %v8686 = vadd.f32 %v8684, %v8685
        %v8687 = vrot.slane %v8686, 2
        %v8688 = vadd.f32 %v8686, %v8687
        %v8689 = vrot.slane %v8688, 1
        %v8690 = vadd.f32 %v8688, %v8689
        %v8691 = vadd.f32 %v6141, %v6149
        %v8692 = vrot.slane %v8691, 4
        %v8693 = vadd.f32 %v8691, %v8692
        %v8694 = vrot.slane %v8693, 2
        %v8695 = vadd.f32 %v8693, %v8694
        %v8696 = vrot.slane %v8695, 1
        %v8697 = vadd.f32 %v8695, %v8696
        %v8698 = vadd.f32 %v6142, %v6150
        %v8699 = vrot.slane %v8698, 4
        %v8700 = vadd.f32 %v8698, %v8699
        %v8701 = vrot.slane %v8700, 2
        %v8702 = vadd.f32 %v8700, %v8701
        %v8703 = vrot.slane %v8702, 1
        %v8704 = vadd.f32 %v8702, %v8703
        %v8705 = vadd.f32 %v6143, %v6151
        %v8706 = vrot.slane %v8705, 4
        %v8707 = vadd.f32 %v8705, %v8706
        %v8708 = vrot.slane %v8707, 2
        %v8709 = vadd.f32 %v8707, %v8708
        %v8710 = vrot.slane %v8709, 1
        %v8711 = vadd.f32 %v8709, %v8710
        %v8712 = vadd.f32 %v6144, %v6152
        %v8713 = vrot.slane %v8712, 4
        %v8714 = vadd.f32 %v8712, %v8713
        %v8715 = vrot.slane %v8714, 2
        %v8716 = vadd.f32 %v8714, %v8715
        %v8717 = vrot.slane %v8716, 1
        %v8718 = vadd.f32 %v8716, %v8717
        %v8719 = vadd.f32 %v6145, %v6153
        %v8720 = vrot.slane %v8719, 4
        %v8721 = vadd.f32 %v8719, %v8720
        %v8722 = vrot.slane %v8721, 2
        %v8723 = vadd.f32 %v8721, %v8722
        %v8724 = vrot.slane %v8723, 1
        %v8725 = vadd.f32 %v8723, %v8724
        %v8726 = vadd.f32 %v6146, %v6154
        %v8727 = vrot.slane %v8726, 4
        %v8728 = vadd.f32 %v8726, %v8727
        %v8729 = vrot.slane %v8728, 2
        %v8730 = vadd.f32 %v8728, %v8729
        %v8731 = vrot.slane %v8730, 1
        %v8732 = vadd.f32 %v8730, %v8731
        %v8733 = vadd.f32 %v6147, %v6155
        %v8734 = vrot.slane %v8733, 4
        %v8735 = vadd.f32 %v8733, %v8734
        %v8736 = vrot.slane %v8735, 2
        %v8737 = vadd.f32 %v8735, %v8736
        %v8738 = vrot.slane %v8737, 1
        %v8739 = vadd.f32 %v8737, %v8738
        %v8740 = vadd.f32 %v6156, %v6164
        %v8741 = vrot.slane %v8740, 4
        %v8742 = vadd.f32 %v8740, %v8741
        %v8743 = vrot.slane %v8742, 2
        %v8744 = vadd.f32 %v8742, %v8743
        %v8745 = vrot.slane %v8744, 1
        %v8746 = vadd.f32 %v8744, %v8745
        %v8747 = vadd.f32 %v6157, %v6165
        %v8748 = vrot.slane %v8747, 4
        %v8749 = vadd.f32 %v8747, %v8748
        %v8750 = vrot.slane %v8749, 2
        %v8751 = vadd.f32 %v8749, %v8750
        %v8752 = vrot.slane %v8751, 1
        %v8753 = vadd.f32 %v8751, %v8752
        %v8754 = vadd.f32 %v6158, %v6166
        %v8755 = vrot.slane %v8754, 4
        %v8756 = vadd.f32 %v8754, %v8755
        %v8757 = vrot.slane %v8756, 2
        %v8758 = vadd.f32 %v8756, %v8757
        %v8759 = vrot.slane %v8758, 1
        %v8760 = vadd.f32 %v8758, %v8759
        %v8761 = vadd.f32 %v6159, %v6167
        %v8762 = vrot.slane %v8761, 4
        %v8763 = vadd.f32 %v8761, %v8762
        %v8764 = vrot.slane %v8763, 2
        %v8765 = vadd.f32 %v8763, %v8764
        %v8766 = vrot.slane %v8765, 1
        %v8767 = vadd.f32 %v8765, %v8766
        %v8768 = vadd.f32 %v6160, %v6168
        %v8769 = vrot.slane %v8768, 4
        %v8770 = vadd.f32 %v8768, %v8769
        %v8771 = vrot.slane %v8770, 2
        %v8772 = vadd.f32 %v8770, %v8771
        %v8773 = vrot.slane %v8772, 1
        %v8774 = vadd.f32 %v8772, %v8773
        %v8775 = vadd.f32 %v6161, %v6169
        %v8776 = vrot.slane %v8775, 4
        %v8777 = vadd.f32 %v8775, %v8776
        %v8778 = vrot.slane %v8777, 2
        %v8779 = vadd.f32 %v8777, %v8778
        %v8780 = vrot.slane %v8779, 1
        %v8781 = vadd.f32 %v8779, %v8780
        %v8782 = vadd.f32 %v6162, %v6170
        %v8783 = vrot.slane %v8782, 4
        %v8784 = vadd.f32 %v8782, %v8783
        %v8785 = vrot.slane %v8784, 2
        %v8786 = vadd.f32 %v8784, %v8785
        %v8787 = vrot.slane %v8786, 1
        %v8788 = vadd.f32 %v8786, %v8787
        %v8789 = vadd.f32 %v6163, %v6171
        %v8790 = vrot.slane %v8789, 4
        %v8791 = vadd.f32 %v8789, %v8790
        %v8792 = vrot.slane %v8791, 2
        %v8793 = vadd.f32 %v8791, %v8792
        %v8794 = vrot.slane %v8793, 1
        %v8795 = vadd.f32 %v8793, %v8794
        %v8796 = vadd.f32 %v6172, %v6180
        %v8797 = vrot.slane %v8796, 4
        %v8798 = vadd.f32 %v8796, %v8797
        %v8799 = vrot.slane %v8798, 2
        %v8800 = vadd.f32 %v8798, %v8799
        %v8801 = vrot.slane %v8800, 1
        %v8802 = vadd.f32 %v8800, %v8801
        %v8803 = vadd.f32 %v6173, %v6181
        %v8804 = vrot.slane %v8803, 4
        %v8805 = vadd.f32 %v8803, %v8804
        %v8806 = vrot.slane %v8805, 2
        %v8807 = vadd.f32 %v8805, %v8806
        %v8808 = vrot.slane %v8807, 1
        %v8809 = vadd.f32 %v8807, %v8808
        %v8810 = vadd.f32 %v6174, %v6182
        %v8811 = vrot.slane %v8810, 4
        %v8812 = vadd.f32 %v8810, %v8811
        %v8813 = vrot.slane %v8812, 2
        %v8814 = vadd.f32 %v8812, %v8813
        %v8815 = vrot.slane %v8814, 1
        %v8816 = vadd.f32 %v8814, %v8815
        %v8817 = vadd.f32 %v6175, %v6183
        %v8818 = vrot.slane %v8817, 4
        %v8819 = vadd.f32 %v8817, %v8818
        %v8820 = vrot.slane %v8819, 2
        %v8821 = vadd.f32 %v8819, %v8820
        %v8822 = vrot.slane %v8821, 1
        %v8823 = vadd.f32 %v8821, %v8822
        %v8824 = vadd.f32 %v6176, %v6184
        %v8825 = vrot.slane %v8824, 4
        %v8826 = vadd.f32 %v8824, %v8825
        %v8827 = vrot.slane %v8826, 2
        %v8828 = vadd.f32 %v8826, %v8827
        %v8829 = vrot.slane %v8828, 1
        %v8830 = vadd.f32 %v8828, %v8829
        %v8831 = vadd.f32 %v6177, %v6185
        %v8832 = vrot.slane %v8831, 4
        %v8833 = vadd.f32 %v8831, %v8832
        %v8834 = vrot.slane %v8833, 2
        %v8835 = vadd.f32 %v8833, %v8834
        %v8836 = vrot.slane %v8835, 1
        %v8837 = vadd.f32 %v8835, %v8836
        %v8838 = vadd.f32 %v6178, %v6186
        %v8839 = vrot.slane %v8838, 4
        %v8840 = vadd.f32 %v8838, %v8839
        %v8841 = vrot.slane %v8840, 2
        %v8842 = vadd.f32 %v8840, %v8841
        %v8843 = vrot.slane %v8842, 1
        %v8844 = vadd.f32 %v8842, %v8843
        %v8845 = vadd.f32 %v6179, %v6187
        %v8846 = vrot.slane %v8845, 4
        %v8847 = vadd.f32 %v8845, %v8846
        %v8848 = vrot.slane %v8847, 2
        %v8849 = vadd.f32 %v8847, %v8848
        %v8850 = vrot.slane %v8849, 1
        %v8851 = vadd.f32 %v8849, %v8850
        %v8852 = vadd.f32 %v6188, %v6196
        %v8853 = vrot.slane %v8852, 4
        %v8854 = vadd.f32 %v8852, %v8853
        %v8855 = vrot.slane %v8854, 2
        %v8856 = vadd.f32 %v8854, %v8855
        %v8857 = vrot.slane %v8856, 1
        %v8858 = vadd.f32 %v8856, %v8857
        %v8859 = vadd.f32 %v6189, %v6197
        %v8860 = vrot.slane %v8859, 4
        %v8861 = vadd.f32 %v8859, %v8860
        %v8862 = vrot.slane %v8861, 2
        %v8863 = vadd.f32 %v8861, %v8862
        %v8864 = vrot.slane %v8863, 1
        %v8865 = vadd.f32 %v8863, %v8864
        %v8866 = vadd.f32 %v6190, %v6198
        %v8867 = vrot.slane %v8866, 4
        %v8868 = vadd.f32 %v8866, %v8867
        %v8869 = vrot.slane %v8868, 2
        %v8870 = vadd.f32 %v8868, %v8869
        %v8871 = vrot.slane %v8870, 1
        %v8872 = vadd.f32 %v8870, %v8871
        %v8873 = vadd.f32 %v6191, %v6199
        %v8874 = vrot.slane %v8873, 4
        %v8875 = vadd.f32 %v8873, %v8874
        %v8876 = vrot.slane %v8875, 2
        %v8877 = vadd.f32 %v8875, %v8876
        %v8878 = vrot.slane %v8877, 1
        %v8879 = vadd.f32 %v8877, %v8878
        %v8880 = vadd.f32 %v6192, %v6200
        %v8881 = vrot.slane %v8880, 4
        %v8882 = vadd.f32 %v8880, %v8881
        %v8883 = vrot.slane %v8882, 2
        %v8884 = vadd.f32 %v8882, %v8883
        %v8885 = vrot.slane %v8884, 1
        %v8886 = vadd.f32 %v8884, %v8885
        %v8887 = vadd.f32 %v6193, %v6201
        %v8888 = vrot.slane %v8887, 4
        %v8889 = vadd.f32 %v8887, %v8888
        %v8890 = vrot.slane %v8889, 2
        %v8891 = vadd.f32 %v8889, %v8890
        %v8892 = vrot.slane %v8891, 1
        %v8893 = vadd.f32 %v8891, %v8892
        %v8894 = vadd.f32 %v6194, %v6202
        %v8895 = vrot.slane %v8894, 4
        %v8896 = vadd.f32 %v8894, %v8895
        %v8897 = vrot.slane %v8896, 2
        %v8898 = vadd.f32 %v8896, %v8897
        %v8899 = vrot.slane %v8898, 1
        %v8900 = vadd.f32 %v8898, %v8899
        %v8901 = vadd.f32 %v6195, %v6203
        %v8902 = vrot.slane %v8901, 4
        %v8903 = vadd.f32 %v8901, %v8902
        %v8904 = vrot.slane %v8903, 2
        %v8905 = vadd.f32 %v8903, %v8904
        %v8906 = vrot.slane %v8905, 1
        %v8907 = vadd.f32 %v8905, %v8906
        %v8908 = vadd.f32 %v6204, %v6212
        %v8909 = vrot.slane %v8908, 4
        %v8910 = vadd.f32 %v8908, %v8909
        %v8911 = vrot.slane %v8910, 2
        %v8912 = vadd.f32 %v8910, %v8911
        %v8913 = vrot.slane %v8912, 1
        %v8914 = vadd.f32 %v8912, %v8913
        %v8915 = vadd.f32 %v6205, %v6213
        %v8916 = vrot.slane %v8915, 4
        %v8917 = vadd.f32 %v8915, %v8916
        %v8918 = vrot.slane %v8917, 2
        %v8919 = vadd.f32 %v8917, %v8918
        %v8920 = vrot.slane %v8919, 1
        %v8921 = vadd.f32 %v8919, %v8920
        %v8922 = vadd.f32 %v6206, %v6214
        %v8923 = vrot.slane %v8922, 4
        %v8924 = vadd.f32 %v8922, %v8923
        %v8925 = vrot.slane %v8924, 2
        %v8926 = vadd.f32 %v8924, %v8925
        %v8927 = vrot.slane %v8926, 1
        %v8928 = vadd.f32 %v8926, %v8927
        %v8929 = vadd.f32 %v6207, %v6215
        %v8930 = vrot.slane %v8929, 4
        %v8931 = vadd.f32 %v8929, %v8930
        %v8932 = vrot.slane %v8931, 2
        %v8933 = vadd.f32 %v8931, %v8932
        %v8934 = vrot.slane %v8933, 1
        %v8935 = vadd.f32 %v8933, %v8934
        %v8936 = vadd.f32 %v6208, %v6216
        %v8937 = vrot.slane %v8936, 4
        %v8938 = vadd.f32 %v8936, %v8937
        %v8939 = vrot.slane %v8938, 2
        %v8940 = vadd.f32 %v8938, %v8939
        %v8941 = vrot.slane %v8940, 1
        %v8942 = vadd.f32 %v8940, %v8941
        %v8943 = vadd.f32 %v6209, %v6217
        %v8944 = vrot.slane %v8943, 4
        %v8945 = vadd.f32 %v8943, %v8944
        %v8946 = vrot.slane %v8945, 2
        %v8947 = vadd.f32 %v8945, %v8946
        %v8948 = vrot.slane %v8947, 1
        %v8949 = vadd.f32 %v8947, %v8948
        %v8950 = vadd.f32 %v6210, %v6218
        %v8951 = vrot.slane %v8950, 4
        %v8952 = vadd.f32 %v8950, %v8951
        %v8953 = vrot.slane %v8952, 2
        %v8954 = vadd.f32 %v8952, %v8953
        %v8955 = vrot.slane %v8954, 1
        %v8956 = vadd.f32 %v8954, %v8955
        %v8957 = vadd.f32 %v6211, %v6219
        %v8958 = vrot.slane %v8957, 4
        %v8959 = vadd.f32 %v8957, %v8958
        %v8960 = vrot.slane %v8959, 2
        %v8961 = vadd.f32 %v8959, %v8960
        %v8962 = vrot.slane %v8961, 1
        %v8963 = vadd.f32 %v8961, %v8962
        %v8964 = vadd.f32 %v6220, %v6228
        %v8965 = vrot.slane %v8964, 4
        %v8966 = vadd.f32 %v8964, %v8965
        %v8967 = vrot.slane %v8966, 2
        %v8968 = vadd.f32 %v8966, %v8967
        %v8969 = vrot.slane %v8968, 1
        %v8970 = vadd.f32 %v8968, %v8969
        %v8971 = vadd.f32 %v6221, %v6229
        %v8972 = vrot.slane %v8971, 4
        %v8973 = vadd.f32 %v8971, %v8972
        %v8974 = vrot.slane %v8973, 2
        %v8975 = vadd.f32 %v8973, %v8974
        %v8976 = vrot.slane %v8975, 1
        %v8977 = vadd.f32 %v8975, %v8976
        %v8978 = vadd.f32 %v6222, %v6230
        %v8979 = vrot.slane %v8978, 4
        %v8980 = vadd.f32 %v8978, %v8979
        %v8981 = vrot.slane %v8980, 2
        %v8982 = vadd.f32 %v8980, %v8981
        %v8983 = vrot.slane %v8982, 1
        %v8984 = vadd.f32 %v8982, %v8983
        %v8985 = vadd.f32 %v6223, %v6231
        %v8986 = vrot.slane %v8985, 4
        %v8987 = vadd.f32 %v8985, %v8986
        %v8988 = vrot.slane %v8987, 2
        %v8989 = vadd.f32 %v8987, %v8988
        %v8990 = vrot.slane %v8989, 1
        %v8991 = vadd.f32 %v8989, %v8990
        %v8992 = vadd.f32 %v6224, %v6232
        %v8993 = vrot.slane %v8992, 4
        %v8994 = vadd.f32 %v8992, %v8993
        %v8995 = vrot.slane %v8994, 2
        %v8996 = vadd.f32 %v8994, %v8995
        %v8997 = vrot.slane %v8996, 1
        %v8998 = vadd.f32 %v8996, %v8997
        %v8999 = vadd.f32 %v6225, %v6233
        %v9000 = vrot.slane %v8999, 4
        %v9001 = vadd.f32 %v8999, %v9000
        %v9002 = vrot.slane %v9001, 2
        %v9003 = vadd.f32 %v9001, %v9002
        %v9004 = vrot.slane %v9003, 1
        %v9005 = vadd.f32 %v9003, %v9004
        %v9006 = vadd.f32 %v6226, %v6234
        %v9007 = vrot.slane %v9006, 4
        %v9008 = vadd.f32 %v9006, %v9007
        %v9009 = vrot.slane %v9008, 2
        %v9010 = vadd.f32 %v9008, %v9009
        %v9011 = vrot.slane %v9010, 1
        %v9012 = vadd.f32 %v9010, %v9011
        %v9013 = vadd.f32 %v6227, %v6235
        %v9014 = vrot.slane %v9013, 4
        %v9015 = vadd.f32 %v9013, %v9014
        %v9016 = vrot.slane %v9015, 2
        %v9017 = vadd.f32 %v9015, %v9016
        %v9018 = vrot.slane %v9017, 1
        %v9019 = vadd.f32 %v9017, %v9018
        %v9020 = vadd.f32 %v6236, %v6244
        %v9021 = vrot.slane %v9020, 4
        %v9022 = vadd.f32 %v9020, %v9021
        %v9023 = vrot.slane %v9022, 2
        %v9024 = vadd.f32 %v9022, %v9023
        %v9025 = vrot.slane %v9024, 1
        %v9026 = vadd.f32 %v9024, %v9025
        %v9027 = vadd.f32 %v6237, %v6245
        %v9028 = vrot.slane %v9027, 4
        %v9029 = vadd.f32 %v9027, %v9028
        %v9030 = vrot.slane %v9029, 2
        %v9031 = vadd.f32 %v9029, %v9030
        %v9032 = vrot.slane %v9031, 1
        %v9033 = vadd.f32 %v9031, %v9032
        %v9034 = vadd.f32 %v6238, %v6246
        %v9035 = vrot.slane %v9034, 4
        %v9036 = vadd.f32 %v9034, %v9035
        %v9037 = vrot.slane %v9036, 2
        %v9038 = vadd.f32 %v9036, %v9037
        %v9039 = vrot.slane %v9038, 1
        %v9040 = vadd.f32 %v9038, %v9039
        %v9041 = vadd.f32 %v6239, %v6247
        %v9042 = vrot.slane %v9041, 4
        %v9043 = vadd.f32 %v9041, %v9042
        %v9044 = vrot.slane %v9043, 2
        %v9045 = vadd.f32 %v9043, %v9044
        %v9046 = vrot.slane %v9045, 1
        %v9047 = vadd.f32 %v9045, %v9046
        %v9048 = vadd.f32 %v6240, %v6248
        %v9049 = vrot.slane %v9048, 4
        %v9050 = vadd.f32 %v9048, %v9049
        %v9051 = vrot.slane %v9050, 2
        %v9052 = vadd.f32 %v9050, %v9051
        %v9053 = vrot.slane %v9052, 1
        %v9054 = vadd.f32 %v9052, %v9053
        %v9055 = vadd.f32 %v6241, %v6249
        %v9056 = vrot.slane %v9055, 4
        %v9057 = vadd.f32 %v9055, %v9056
        %v9058 = vrot.slane %v9057, 2
        %v9059 = vadd.f32 %v9057, %v9058
        %v9060 = vrot.slane %v9059, 1
        %v9061 = vadd.f32 %v9059, %v9060
        %v9062 = vadd.f32 %v6242, %v6250
        %v9063 = vrot.slane %v9062, 4
        %v9064 = vadd.f32 %v9062, %v9063
        %v9065 = vrot.slane %v9064, 2
        %v9066 = vadd.f32 %v9064, %v9065
        %v9067 = vrot.slane %v9066, 1
        %v9068 = vadd.f32 %v9066, %v9067
        %v9069 = vadd.f32 %v6243, %v6251
        %v9070 = vrot.slane %v9069, 4
        %v9071 = vadd.f32 %v9069, %v9070
        %v9072 = vrot.slane %v9071, 2
        %v9073 = vadd.f32 %v9071, %v9072
        %v9074 = vrot.slane %v9073, 1
        %v9075 = vadd.f32 %v9073, %v9074
        %v9076 = vadd.f32 %v6252, %v6260
        %v9077 = vrot.slane %v9076, 4
        %v9078 = vadd.f32 %v9076, %v9077
        %v9079 = vrot.slane %v9078, 2
        %v9080 = vadd.f32 %v9078, %v9079
        %v9081 = vrot.slane %v9080, 1
        %v9082 = vadd.f32 %v9080, %v9081
        %v9083 = vadd.f32 %v6253, %v6261
        %v9084 = vrot.slane %v9083, 4
        %v9085 = vadd.f32 %v9083, %v9084
        %v9086 = vrot.slane %v9085, 2
        %v9087 = vadd.f32 %v9085, %v9086
        %v9088 = vrot.slane %v9087, 1
        %v9089 = vadd.f32 %v9087, %v9088
        %v9090 = vadd.f32 %v6254, %v6262
        %v9091 = vrot.slane %v9090, 4
        %v9092 = vadd.f32 %v9090, %v9091
        %v9093 = vrot.slane %v9092, 2
        %v9094 = vadd.f32 %v9092, %v9093
        %v9095 = vrot.slane %v9094, 1
        %v9096 = vadd.f32 %v9094, %v9095
        %v9097 = vadd.f32 %v6255, %v6263
        %v9098 = vrot.slane %v9097, 4
        %v9099 = vadd.f32 %v9097, %v9098
        %v9100 = vrot.slane %v9099, 2
        %v9101 = vadd.f32 %v9099, %v9100
        %v9102 = vrot.slane %v9101, 1
        %v9103 = vadd.f32 %v9101, %v9102
        %v9104 = vadd.f32 %v6256, %v6264
        %v9105 = vrot.slane %v9104, 4
        %v9106 = vadd.f32 %v9104, %v9105
        %v9107 = vrot.slane %v9106, 2
        %v9108 = vadd.f32 %v9106, %v9107
        %v9109 = vrot.slane %v9108, 1
        %v9110 = vadd.f32 %v9108, %v9109
        %v9111 = vadd.f32 %v6257, %v6265
        %v9112 = vrot.slane %v9111, 4
        %v9113 = vadd.f32 %v9111, %v9112
        %v9114 = vrot.slane %v9113, 2
        %v9115 = vadd.f32 %v9113, %v9114
        %v9116 = vrot.slane %v9115, 1
        %v9117 = vadd.f32 %v9115, %v9116
        %v9118 = vadd.f32 %v6258, %v6266
        %v9119 = vrot.slane %v9118, 4
        %v9120 = vadd.f32 %v9118, %v9119
        %v9121 = vrot.slane %v9120, 2
        %v9122 = vadd.f32 %v9120, %v9121
        %v9123 = vrot.slane %v9122, 1
        %v9124 = vadd.f32 %v9122, %v9123
        %v9125 = vadd.f32 %v6259, %v6267
        %v9126 = vrot.slane %v9125, 4
        %v9127 = vadd.f32 %v9125, %v9126
        %v9128 = vrot.slane %v9127, 2
        %v9129 = vadd.f32 %v9127, %v9128
        %v9130 = vrot.slane %v9129, 1
        %v9131 = vadd.f32 %v9129, %v9130
        %v9132 = vadd.f32 %v6268, %v6276
        %v9133 = vrot.slane %v9132, 4
        %v9134 = vadd.f32 %v9132, %v9133
        %v9135 = vrot.slane %v9134, 2
        %v9136 = vadd.f32 %v9134, %v9135
        %v9137 = vrot.slane %v9136, 1
        %v9138 = vadd.f32 %v9136, %v9137
        %v9139 = vadd.f32 %v6269, %v6277
        %v9140 = vrot.slane %v9139, 4
        %v9141 = vadd.f32 %v9139, %v9140
        %v9142 = vrot.slane %v9141, 2
        %v9143 = vadd.f32 %v9141, %v9142
        %v9144 = vrot.slane %v9143, 1
        %v9145 = vadd.f32 %v9143, %v9144
        %v9146 = vadd.f32 %v6270, %v6278
        %v9147 = vrot.slane %v9146, 4
        %v9148 = vadd.f32 %v9146, %v9147
        %v9149 = vrot.slane %v9148, 2
        %v9150 = vadd.f32 %v9148, %v9149
        %v9151 = vrot.slane %v9150, 1
        %v9152 = vadd.f32 %v9150, %v9151
        %v9153 = vadd.f32 %v6271, %v6279
        %v9154 = vrot.slane %v9153, 4
        %v9155 = vadd.f32 %v9153, %v9154
        %v9156 = vrot.slane %v9155, 2
        %v9157 = vadd.f32 %v9155, %v9156
        %v9158 = vrot.slane %v9157, 1
        %v9159 = vadd.f32 %v9157, %v9158
        %v9160 = vadd.f32 %v6272, %v6280
        %v9161 = vrot.slane %v9160, 4
        %v9162 = vadd.f32 %v9160, %v9161
        %v9163 = vrot.slane %v9162, 2
        %v9164 = vadd.f32 %v9162, %v9163
        %v9165 = vrot.slane %v9164, 1
        %v9166 = vadd.f32 %v9164, %v9165
        %v9167 = vadd.f32 %v6273, %v6281
        %v9168 = vrot.slane %v9167, 4
        %v9169 = vadd.f32 %v9167, %v9168
        %v9170 = vrot.slane %v9169, 2
        %v9171 = vadd.f32 %v9169, %v9170
        %v9172 = vrot.slane %v9171, 1
        %v9173 = vadd.f32 %v9171, %v9172
        %v9174 = vadd.f32 %v6274, %v6282
        %v9175 = vrot.slane %v9174, 4
        %v9176 = vadd.f32 %v9174, %v9175
        %v9177 = vrot.slane %v9176, 2
        %v9178 = vadd.f32 %v9176, %v9177
        %v9179 = vrot.slane %v9178, 1
        %v9180 = vadd.f32 %v9178, %v9179
        %v9181 = vadd.f32 %v6275, %v6283
        %v9182 = vrot.slane %v9181, 4
        %v9183 = vadd.f32 %v9181, %v9182
        %v9184 = vrot.slane %v9183, 2
        %v9185 = vadd.f32 %v9183, %v9184
        %v9186 = vrot.slane %v9185, 1
        %v9187 = vadd.f32 %v9185, %v9186
        %v9188 = vadd.f32 %v6284, %v6292
        %v9189 = vrot.slane %v9188, 4
        %v9190 = vadd.f32 %v9188, %v9189
        %v9191 = vrot.slane %v9190, 2
        %v9192 = vadd.f32 %v9190, %v9191
        %v9193 = vrot.slane %v9192, 1
        %v9194 = vadd.f32 %v9192, %v9193
        %v9195 = vadd.f32 %v6285, %v6293
        %v9196 = vrot.slane %v9195, 4
        %v9197 = vadd.f32 %v9195, %v9196
        %v9198 = vrot.slane %v9197, 2
        %v9199 = vadd.f32 %v9197, %v9198
        %v9200 = vrot.slane %v9199, 1
        %v9201 = vadd.f32 %v9199, %v9200
        %v9202 = vadd.f32 %v6286, %v6294
        %v9203 = vrot.slane %v9202, 4
        %v9204 = vadd.f32 %v9202, %v9203
        %v9205 = vrot.slane %v9204, 2
        %v9206 = vadd.f32 %v9204, %v9205
        %v9207 = vrot.slane %v9206, 1
        %v9208 = vadd.f32 %v9206, %v9207
        %v9209 = vadd.f32 %v6287, %v6295
        %v9210 = vrot.slane %v9209, 4
        %v9211 = vadd.f32 %v9209, %v9210
        %v9212 = vrot.slane %v9211, 2
        %v9213 = vadd.f32 %v9211, %v9212
        %v9214 = vrot.slane %v9213, 1
        %v9215 = vadd.f32 %v9213, %v9214
        %v9216 = vadd.f32 %v6288, %v6296
        %v9217 = vrot.slane %v9216, 4
        %v9218 = vadd.f32 %v9216, %v9217
        %v9219 = vrot.slane %v9218, 2
        %v9220 = vadd.f32 %v9218, %v9219
        %v9221 = vrot.slane %v9220, 1
        %v9222 = vadd.f32 %v9220, %v9221
        %v9223 = vadd.f32 %v6289, %v6297
        %v9224 = vrot.slane %v9223, 4
        %v9225 = vadd.f32 %v9223, %v9224
        %v9226 = vrot.slane %v9225, 2
        %v9227 = vadd.f32 %v9225, %v9226
        %v9228 = vrot.slane %v9227, 1
        %v9229 = vadd.f32 %v9227, %v9228
        %v9230 = vadd.f32 %v6290, %v6298
        %v9231 = vrot.slane %v9230, 4
        %v9232 = vadd.f32 %v9230, %v9231
        %v9233 = vrot.slane %v9232, 2
        %v9234 = vadd.f32 %v9232, %v9233
        %v9235 = vrot.slane %v9234, 1
        %v9236 = vadd.f32 %v9234, %v9235
        %v9237 = vadd.f32 %v6291, %v6299
        %v9238 = vrot.slane %v9237, 4
        %v9239 = vadd.f32 %v9237, %v9238
        %v9240 = vrot.slane %v9239, 2
        %v9241 = vadd.f32 %v9239, %v9240
        %v9242 = vrot.slane %v9241, 1
        %v9243 = vadd.f32 %v9241, %v9242
        %v9244 = vadd.f32 %v6300, %v6308
        %v9245 = vrot.slane %v9244, 4
        %v9246 = vadd.f32 %v9244, %v9245
        %v9247 = vrot.slane %v9246, 2
        %v9248 = vadd.f32 %v9246, %v9247
        %v9249 = vrot.slane %v9248, 1
        %v9250 = vadd.f32 %v9248, %v9249
        %v9251 = vadd.f32 %v6301, %v6309
        %v9252 = vrot.slane %v9251, 4
        %v9253 = vadd.f32 %v9251, %v9252
        %v9254 = vrot.slane %v9253, 2
        %v9255 = vadd.f32 %v9253, %v9254
        %v9256 = vrot.slane %v9255, 1
        %v9257 = vadd.f32 %v9255, %v9256
        %v9258 = vadd.f32 %v6302, %v6310
        %v9259 = vrot.slane %v9258, 4
        %v9260 = vadd.f32 %v9258, %v9259
        %v9261 = vrot.slane %v9260, 2
        %v9262 = vadd.f32 %v9260, %v9261
        %v9263 = vrot.slane %v9262, 1
        %v9264 = vadd.f32 %v9262, %v9263
        %v9265 = vadd.f32 %v6303, %v6311
        %v9266 = vrot.slane %v9265, 4
        %v9267 = vadd.f32 %v9265, %v9266
        %v9268 = vrot.slane %v9267, 2
        %v9269 = vadd.f32 %v9267, %v9268
        %v9270 = vrot.slane %v9269, 1
        %v9271 = vadd.f32 %v9269, %v9270
        %v9272 = vadd.f32 %v6304, %v6312
        %v9273 = vrot.slane %v9272, 4
        %v9274 = vadd.f32 %v9272, %v9273
        %v9275 = vrot.slane %v9274, 2
        %v9276 = vadd.f32 %v9274, %v9275
        %v9277 = vrot.slane %v9276, 1
        %v9278 = vadd.f32 %v9276, %v9277
        %v9279 = vadd.f32 %v6305, %v6313
        %v9280 = vrot.slane %v9279, 4
        %v9281 = vadd.f32 %v9279, %v9280
        %v9282 = vrot.slane %v9281, 2
        %v9283 = vadd.f32 %v9281, %v9282
        %v9284 = vrot.slane %v9283, 1
        %v9285 = vadd.f32 %v9283, %v9284
        %v9286 = vadd.f32 %v6306, %v6314
        %v9287 = vrot.slane %v9286, 4
        %v9288 = vadd.f32 %v9286, %v9287
        %v9289 = vrot.slane %v9288, 2
        %v9290 = vadd.f32 %v9288, %v9289
        %v9291 = vrot.slane %v9290, 1
        %v9292 = vadd.f32 %v9290, %v9291
        %v9293 = vadd.f32 %v6307, %v6315
        %v9294 = vrot.slane %v9293, 4
        %v9295 = vadd.f32 %v9293, %v9294
        %v9296 = vrot.slane %v9295, 2
        %v9297 = vadd.f32 %v9295, %v9296
        %v9298 = vrot.slane %v9297, 1
        %v9299 = vadd.f32 %v9297, %v9298
        %v9300 = vadd.f32 %v6316, %v6324
        %v9301 = vrot.slane %v9300, 4
        %v9302 = vadd.f32 %v9300, %v9301
        %v9303 = vrot.slane %v9302, 2
        %v9304 = vadd.f32 %v9302, %v9303
        %v9305 = vrot.slane %v9304, 1
        %v9306 = vadd.f32 %v9304, %v9305
        %v9307 = vadd.f32 %v6317, %v6325
        %v9308 = vrot.slane %v9307, 4
        %v9309 = vadd.f32 %v9307, %v9308
        %v9310 = vrot.slane %v9309, 2
        %v9311 = vadd.f32 %v9309, %v9310
        %v9312 = vrot.slane %v9311, 1
        %v9313 = vadd.f32 %v9311, %v9312
        %v9314 = vadd.f32 %v6318, %v6326
        %v9315 = vrot.slane %v9314, 4
        %v9316 = vadd.f32 %v9314, %v9315
        %v9317 = vrot.slane %v9316, 2
        %v9318 = vadd.f32 %v9316, %v9317
        %v9319 = vrot.slane %v9318, 1
        %v9320 = vadd.f32 %v9318, %v9319
        %v9321 = vadd.f32 %v6319, %v6327
        %v9322 = vrot.slane %v9321, 4
        %v9323 = vadd.f32 %v9321, %v9322
        %v9324 = vrot.slane %v9323, 2
        %v9325 = vadd.f32 %v9323, %v9324
        %v9326 = vrot.slane %v9325, 1
        %v9327 = vadd.f32 %v9325, %v9326
        %v9328 = vadd.f32 %v6320, %v6328
        %v9329 = vrot.slane %v9328, 4
        %v9330 = vadd.f32 %v9328, %v9329
        %v9331 = vrot.slane %v9330, 2
        %v9332 = vadd.f32 %v9330, %v9331
        %v9333 = vrot.slane %v9332, 1
        %v9334 = vadd.f32 %v9332, %v9333
        %v9335 = vadd.f32 %v6321, %v6329
        %v9336 = vrot.slane %v9335, 4
        %v9337 = vadd.f32 %v9335, %v9336
        %v9338 = vrot.slane %v9337, 2
        %v9339 = vadd.f32 %v9337, %v9338
        %v9340 = vrot.slane %v9339, 1
        %v9341 = vadd.f32 %v9339, %v9340
        %v9342 = vadd.f32 %v6322, %v6330
        %v9343 = vrot.slane %v9342, 4
        %v9344 = vadd.f32 %v9342, %v9343
        %v9345 = vrot.slane %v9344, 2
        %v9346 = vadd.f32 %v9344, %v9345
        %v9347 = vrot.slane %v9346, 1
        %v9348 = vadd.f32 %v9346, %v9347
        %v9349 = vadd.f32 %v6323, %v6331
        %v9350 = vrot.slane %v9349, 4
        %v9351 = vadd.f32 %v9349, %v9350
        %v9352 = vrot.slane %v9351, 2
        %v9353 = vadd.f32 %v9351, %v9352
        %v9354 = vrot.slane %v9353, 1
        %v9355 = vadd.f32 %v9353, %v9354
        %v9356 = vadd.f32 %v6332, %v6340
        %v9357 = vrot.slane %v9356, 4
        %v9358 = vadd.f32 %v9356, %v9357
        %v9359 = vrot.slane %v9358, 2
        %v9360 = vadd.f32 %v9358, %v9359
        %v9361 = vrot.slane %v9360, 1
        %v9362 = vadd.f32 %v9360, %v9361
        %v9363 = vadd.f32 %v6333, %v6341
        %v9364 = vrot.slane %v9363, 4
        %v9365 = vadd.f32 %v9363, %v9364
        %v9366 = vrot.slane %v9365, 2
        %v9367 = vadd.f32 %v9365, %v9366
        %v9368 = vrot.slane %v9367, 1
        %v9369 = vadd.f32 %v9367, %v9368
        %v9370 = vadd.f32 %v6334, %v6342
        %v9371 = vrot.slane %v9370, 4
        %v9372 = vadd.f32 %v9370, %v9371
        %v9373 = vrot.slane %v9372, 2
        %v9374 = vadd.f32 %v9372, %v9373
        %v9375 = vrot.slane %v9374, 1
        %v9376 = vadd.f32 %v9374, %v9375
        %v9377 = vadd.f32 %v6335, %v6343
        %v9378 = vrot.slane %v9377, 4
        %v9379 = vadd.f32 %v9377, %v9378
        %v9380 = vrot.slane %v9379, 2
        %v9381 = vadd.f32 %v9379, %v9380
        %v9382 = vrot.slane %v9381, 1
        %v9383 = vadd.f32 %v9381, %v9382
        %v9384 = vadd.f32 %v6336, %v6344
        %v9385 = vrot.slane %v9384, 4
        %v9386 = vadd.f32 %v9384, %v9385
        %v9387 = vrot.slane %v9386, 2
        %v9388 = vadd.f32 %v9386, %v9387
        %v9389 = vrot.slane %v9388, 1
        %v9390 = vadd.f32 %v9388, %v9389
        %v9391 = vadd.f32 %v6337, %v6345
        %v9392 = vrot.slane %v9391, 4
        %v9393 = vadd.f32 %v9391, %v9392
        %v9394 = vrot.slane %v9393, 2
        %v9395 = vadd.f32 %v9393, %v9394
        %v9396 = vrot.slane %v9395, 1
        %v9397 = vadd.f32 %v9395, %v9396
        %v9398 = vadd.f32 %v6338, %v6346
        %v9399 = vrot.slane %v9398, 4
        %v9400 = vadd.f32 %v9398, %v9399
        %v9401 = vrot.slane %v9400, 2
        %v9402 = vadd.f32 %v9400, %v9401
        %v9403 = vrot.slane %v9402, 1
        %v9404 = vadd.f32 %v9402, %v9403
        %v9405 = vadd.f32 %v6339, %v6347
        %v9406 = vrot.slane %v9405, 4
        %v9407 = vadd.f32 %v9405, %v9406
        %v9408 = vrot.slane %v9407, 2
        %v9409 = vadd.f32 %v9407, %v9408
        %v9410 = vrot.slane %v9409, 1
        %v9411 = vadd.f32 %v9409, %v9410
        %v9412 = vadd.f32 %v6348, %v6356
        %v9413 = vrot.slane %v9412, 4
        %v9414 = vadd.f32 %v9412, %v9413
        %v9415 = vrot.slane %v9414, 2
        %v9416 = vadd.f32 %v9414, %v9415
        %v9417 = vrot.slane %v9416, 1
        %v9418 = vadd.f32 %v9416, %v9417
        %v9419 = vadd.f32 %v6349, %v6357
        %v9420 = vrot.slane %v9419, 4
        %v9421 = vadd.f32 %v9419, %v9420
        %v9422 = vrot.slane %v9421, 2
        %v9423 = vadd.f32 %v9421, %v9422
        %v9424 = vrot.slane %v9423, 1
        %v9425 = vadd.f32 %v9423, %v9424
        %v9426 = vadd.f32 %v6350, %v6358
        %v9427 = vrot.slane %v9426, 4
        %v9428 = vadd.f32 %v9426, %v9427
        %v9429 = vrot.slane %v9428, 2
        %v9430 = vadd.f32 %v9428, %v9429
        %v9431 = vrot.slane %v9430, 1
        %v9432 = vadd.f32 %v9430, %v9431
        %v9433 = vadd.f32 %v6351, %v6359
        %v9434 = vrot.slane %v9433, 4
        %v9435 = vadd.f32 %v9433, %v9434
        %v9436 = vrot.slane %v9435, 2
        %v9437 = vadd.f32 %v9435, %v9436
        %v9438 = vrot.slane %v9437, 1
        %v9439 = vadd.f32 %v9437, %v9438
        %v9440 = vadd.f32 %v6352, %v6360
        %v9441 = vrot.slane %v9440, 4
        %v9442 = vadd.f32 %v9440, %v9441
        %v9443 = vrot.slane %v9442, 2
        %v9444 = vadd.f32 %v9442, %v9443
        %v9445 = vrot.slane %v9444, 1
        %v9446 = vadd.f32 %v9444, %v9445
        %v9447 = vadd.f32 %v6353, %v6361
        %v9448 = vrot.slane %v9447, 4
        %v9449 = vadd.f32 %v9447, %v9448
        %v9450 = vrot.slane %v9449, 2
        %v9451 = vadd.f32 %v9449, %v9450
        %v9452 = vrot.slane %v9451, 1
        %v9453 = vadd.f32 %v9451, %v9452
        %v9454 = vadd.f32 %v6354, %v6362
        %v9455 = vrot.slane %v9454, 4
        %v9456 = vadd.f32 %v9454, %v9455
        %v9457 = vrot.slane %v9456, 2
        %v9458 = vadd.f32 %v9456, %v9457
        %v9459 = vrot.slane %v9458, 1
        %v9460 = vadd.f32 %v9458, %v9459
        %v9461 = vadd.f32 %v6355, %v6363
        %v9462 = vrot.slane %v9461, 4
        %v9463 = vadd.f32 %v9461, %v9462
        %v9464 = vrot.slane %v9463, 2
        %v9465 = vadd.f32 %v9463, %v9464
        %v9466 = vrot.slane %v9465, 1
        %v9467 = vadd.f32 %v9465, %v9466
        %v9468 = vadd.f32 %v6364, %v6372
        %v9469 = vrot.slane %v9468, 4
        %v9470 = vadd.f32 %v9468, %v9469
        %v9471 = vrot.slane %v9470, 2
        %v9472 = vadd.f32 %v9470, %v9471
        %v9473 = vrot.slane %v9472, 1
        %v9474 = vadd.f32 %v9472, %v9473
        %v9475 = vadd.f32 %v6365, %v6373
        %v9476 = vrot.slane %v9475, 4
        %v9477 = vadd.f32 %v9475, %v9476
        %v9478 = vrot.slane %v9477, 2
        %v9479 = vadd.f32 %v9477, %v9478
        %v9480 = vrot.slane %v9479, 1
        %v9481 = vadd.f32 %v9479, %v9480
        %v9482 = vadd.f32 %v6366, %v6374
        %v9483 = vrot.slane %v9482, 4
        %v9484 = vadd.f32 %v9482, %v9483
        %v9485 = vrot.slane %v9484, 2
        %v9486 = vadd.f32 %v9484, %v9485
        %v9487 = vrot.slane %v9486, 1
        %v9488 = vadd.f32 %v9486, %v9487
        %v9489 = vadd.f32 %v6367, %v6375
        %v9490 = vrot.slane %v9489, 4
        %v9491 = vadd.f32 %v9489, %v9490
        %v9492 = vrot.slane %v9491, 2
        %v9493 = vadd.f32 %v9491, %v9492
        %v9494 = vrot.slane %v9493, 1
        %v9495 = vadd.f32 %v9493, %v9494
        %v9496 = vadd.f32 %v6368, %v6376
        %v9497 = vrot.slane %v9496, 4
        %v9498 = vadd.f32 %v9496, %v9497
        %v9499 = vrot.slane %v9498, 2
        %v9500 = vadd.f32 %v9498, %v9499
        %v9501 = vrot.slane %v9500, 1
        %v9502 = vadd.f32 %v9500, %v9501
        %v9503 = vadd.f32 %v6369, %v6377
        %v9504 = vrot.slane %v9503, 4
        %v9505 = vadd.f32 %v9503, %v9504
        %v9506 = vrot.slane %v9505, 2
        %v9507 = vadd.f32 %v9505, %v9506
        %v9508 = vrot.slane %v9507, 1
        %v9509 = vadd.f32 %v9507, %v9508
        %v9510 = vadd.f32 %v6370, %v6378
        %v9511 = vrot.slane %v9510, 4
        %v9512 = vadd.f32 %v9510, %v9511
        %v9513 = vrot.slane %v9512, 2
        %v9514 = vadd.f32 %v9512, %v9513
        %v9515 = vrot.slane %v9514, 1
        %v9516 = vadd.f32 %v9514, %v9515
        %v9517 = vadd.f32 %v6371, %v6379
        %v9518 = vrot.slane %v9517, 4
        %v9519 = vadd.f32 %v9517, %v9518
        %v9520 = vrot.slane %v9519, 2
        %v9521 = vadd.f32 %v9519, %v9520
        %v9522 = vrot.slane %v9521, 1
        %v9523 = vadd.f32 %v9521, %v9522
        %v9524 = vadd.f32 %v6380, %v6388
        %v9525 = vrot.slane %v9524, 4
        %v9526 = vadd.f32 %v9524, %v9525
        %v9527 = vrot.slane %v9526, 2
        %v9528 = vadd.f32 %v9526, %v9527
        %v9529 = vrot.slane %v9528, 1
        %v9530 = vadd.f32 %v9528, %v9529
        %v9531 = vadd.f32 %v6381, %v6389
        %v9532 = vrot.slane %v9531, 4
        %v9533 = vadd.f32 %v9531, %v9532
        %v9534 = vrot.slane %v9533, 2
        %v9535 = vadd.f32 %v9533, %v9534
        %v9536 = vrot.slane %v9535, 1
        %v9537 = vadd.f32 %v9535, %v9536
        %v9538 = vadd.f32 %v6382, %v6390
        %v9539 = vrot.slane %v9538, 4
        %v9540 = vadd.f32 %v9538, %v9539
        %v9541 = vrot.slane %v9540, 2
        %v9542 = vadd.f32 %v9540, %v9541
        %v9543 = vrot.slane %v9542, 1
        %v9544 = vadd.f32 %v9542, %v9543
        %v9545 = vadd.f32 %v6383, %v6391
        %v9546 = vrot.slane %v9545, 4
        %v9547 = vadd.f32 %v9545, %v9546
        %v9548 = vrot.slane %v9547, 2
        %v9549 = vadd.f32 %v9547, %v9548
        %v9550 = vrot.slane %v9549, 1
        %v9551 = vadd.f32 %v9549, %v9550
        %v9552 = vadd.f32 %v6384, %v6392
        %v9553 = vrot.slane %v9552, 4
        %v9554 = vadd.f32 %v9552, %v9553
        %v9555 = vrot.slane %v9554, 2
        %v9556 = vadd.f32 %v9554, %v9555
        %v9557 = vrot.slane %v9556, 1
        %v9558 = vadd.f32 %v9556, %v9557
        %v9559 = vadd.f32 %v6385, %v6393
        %v9560 = vrot.slane %v9559, 4
        %v9561 = vadd.f32 %v9559, %v9560
        %v9562 = vrot.slane %v9561, 2
        %v9563 = vadd.f32 %v9561, %v9562
        %v9564 = vrot.slane %v9563, 1
        %v9565 = vadd.f32 %v9563, %v9564
        %v9566 = vadd.f32 %v6386, %v6394
        %v9567 = vrot.slane %v9566, 4
        %v9568 = vadd.f32 %v9566, %v9567
        %v9569 = vrot.slane %v9568, 2
        %v9570 = vadd.f32 %v9568, %v9569
        %v9571 = vrot.slane %v9570, 1
        %v9572 = vadd.f32 %v9570, %v9571
        %v9573 = vadd.f32 %v6387, %v6395
        %v9574 = vrot.slane %v9573, 4
        %v9575 = vadd.f32 %v9573, %v9574
        %v9576 = vrot.slane %v9575, 2
        %v9577 = vadd.f32 %v9575, %v9576
        %v9578 = vrot.slane %v9577, 1
        %v9579 = vadd.f32 %v9577, %v9578
        %v9580 = vadd.f32 %v6396, %v6404
        %v9581 = vrot.slane %v9580, 4
        %v9582 = vadd.f32 %v9580, %v9581
        %v9583 = vrot.slane %v9582, 2
        %v9584 = vadd.f32 %v9582, %v9583
        %v9585 = vrot.slane %v9584, 1
        %v9586 = vadd.f32 %v9584, %v9585
        %v9587 = vadd.f32 %v6397, %v6405
        %v9588 = vrot.slane %v9587, 4
        %v9589 = vadd.f32 %v9587, %v9588
        %v9590 = vrot.slane %v9589, 2
        %v9591 = vadd.f32 %v9589, %v9590
        %v9592 = vrot.slane %v9591, 1
        %v9593 = vadd.f32 %v9591, %v9592
        %v9594 = vadd.f32 %v6398, %v6406
        %v9595 = vrot.slane %v9594, 4
        %v9596 = vadd.f32 %v9594, %v9595
        %v9597 = vrot.slane %v9596, 2
        %v9598 = vadd.f32 %v9596, %v9597
        %v9599 = vrot.slane %v9598, 1
        %v9600 = vadd.f32 %v9598, %v9599
        %v9601 = vadd.f32 %v6399, %v6407
        %v9602 = vrot.slane %v9601, 4
        %v9603 = vadd.f32 %v9601, %v9602
        %v9604 = vrot.slane %v9603, 2
        %v9605 = vadd.f32 %v9603, %v9604
        %v9606 = vrot.slane %v9605, 1
        %v9607 = vadd.f32 %v9605, %v9606
        %v9608 = vadd.f32 %v6400, %v6408
        %v9609 = vrot.slane %v9608, 4
        %v9610 = vadd.f32 %v9608, %v9609
        %v9611 = vrot.slane %v9610, 2
        %v9612 = vadd.f32 %v9610, %v9611
        %v9613 = vrot.slane %v9612, 1
        %v9614 = vadd.f32 %v9612, %v9613
        %v9615 = vadd.f32 %v6401, %v6409
        %v9616 = vrot.slane %v9615, 4
        %v9617 = vadd.f32 %v9615, %v9616
        %v9618 = vrot.slane %v9617, 2
        %v9619 = vadd.f32 %v9617, %v9618
        %v9620 = vrot.slane %v9619, 1
        %v9621 = vadd.f32 %v9619, %v9620
        %v9622 = vadd.f32 %v6402, %v6410
        %v9623 = vrot.slane %v9622, 4
        %v9624 = vadd.f32 %v9622, %v9623
        %v9625 = vrot.slane %v9624, 2
        %v9626 = vadd.f32 %v9624, %v9625
        %v9627 = vrot.slane %v9626, 1
        %v9628 = vadd.f32 %v9626, %v9627
        %v9629 = vadd.f32 %v6403, %v6411
        %v9630 = vrot.slane %v9629, 4
        %v9631 = vadd.f32 %v9629, %v9630
        %v9632 = vrot.slane %v9631, 2
        %v9633 = vadd.f32 %v9631, %v9632
        %v9634 = vrot.slane %v9633, 1
        %v9635 = vadd.f32 %v9633, %v9634
        %v9636 = vadd.f32 %v6412, %v6420
        %v9637 = vrot.slane %v9636, 4
        %v9638 = vadd.f32 %v9636, %v9637
        %v9639 = vrot.slane %v9638, 2
        %v9640 = vadd.f32 %v9638, %v9639
        %v9641 = vrot.slane %v9640, 1
        %v9642 = vadd.f32 %v9640, %v9641
        %v9643 = vadd.f32 %v6413, %v6421
        %v9644 = vrot.slane %v9643, 4
        %v9645 = vadd.f32 %v9643, %v9644
        %v9646 = vrot.slane %v9645, 2
        %v9647 = vadd.f32 %v9645, %v9646
        %v9648 = vrot.slane %v9647, 1
        %v9649 = vadd.f32 %v9647, %v9648
        %v9650 = vadd.f32 %v6414, %v6422
        %v9651 = vrot.slane %v9650, 4
        %v9652 = vadd.f32 %v9650, %v9651
        %v9653 = vrot.slane %v9652, 2
        %v9654 = vadd.f32 %v9652, %v9653
        %v9655 = vrot.slane %v9654, 1
        %v9656 = vadd.f32 %v9654, %v9655
        %v9657 = vadd.f32 %v6415, %v6423
        %v9658 = vrot.slane %v9657, 4
        %v9659 = vadd.f32 %v9657, %v9658
        %v9660 = vrot.slane %v9659, 2
        %v9661 = vadd.f32 %v9659, %v9660
        %v9662 = vrot.slane %v9661, 1
        %v9663 = vadd.f32 %v9661, %v9662
        %v9664 = vadd.f32 %v6416, %v6424
        %v9665 = vrot.slane %v9664, 4
        %v9666 = vadd.f32 %v9664, %v9665
        %v9667 = vrot.slane %v9666, 2
        %v9668 = vadd.f32 %v9666, %v9667
        %v9669 = vrot.slane %v9668, 1
        %v9670 = vadd.f32 %v9668, %v9669
        %v9671 = vadd.f32 %v6417, %v6425
        %v9672 = vrot.slane %v9671, 4
        %v9673 = vadd.f32 %v9671, %v9672
        %v9674 = vrot.slane %v9673, 2
        %v9675 = vadd.f32 %v9673, %v9674
        %v9676 = vrot.slane %v9675, 1
        %v9677 = vadd.f32 %v9675, %v9676
        %v9678 = vadd.f32 %v6418, %v6426
        %v9679 = vrot.slane %v9678, 4
        %v9680 = vadd.f32 %v9678, %v9679
        %v9681 = vrot.slane %v9680, 2
        %v9682 = vadd.f32 %v9680, %v9681
        %v9683 = vrot.slane %v9682, 1
        %v9684 = vadd.f32 %v9682, %v9683
        %v9685 = vadd.f32 %v6419, %v6427
        %v9686 = vrot.slane %v9685, 4
        %v9687 = vadd.f32 %v9685, %v9686
        %v9688 = vrot.slane %v9687, 2
        %v9689 = vadd.f32 %v9687, %v9688
        %v9690 = vrot.slane %v9689, 1
        %v9691 = vadd.f32 %v9689, %v9690
        %v9692 = vadd.f32 %v6428, %v6436
        %v9693 = vrot.slane %v9692, 4
        %v9694 = vadd.f32 %v9692, %v9693
        %v9695 = vrot.slane %v9694, 2
        %v9696 = vadd.f32 %v9694, %v9695
        %v9697 = vrot.slane %v9696, 1
        %v9698 = vadd.f32 %v9696, %v9697
        %v9699 = vadd.f32 %v6429, %v6437
        %v9700 = vrot.slane %v9699, 4
        %v9701 = vadd.f32 %v9699, %v9700
        %v9702 = vrot.slane %v9701, 2
        %v9703 = vadd.f32 %v9701, %v9702
        %v9704 = vrot.slane %v9703, 1
        %v9705 = vadd.f32 %v9703, %v9704
        %v9706 = vadd.f32 %v6430, %v6438
        %v9707 = vrot.slane %v9706, 4
        %v9708 = vadd.f32 %v9706, %v9707
        %v9709 = vrot.slane %v9708, 2
        %v9710 = vadd.f32 %v9708, %v9709
        %v9711 = vrot.slane %v9710, 1
        %v9712 = vadd.f32 %v9710, %v9711
        %v9713 = vadd.f32 %v6431, %v6439
        %v9714 = vrot.slane %v9713, 4
        %v9715 = vadd.f32 %v9713, %v9714
        %v9716 = vrot.slane %v9715, 2
        %v9717 = vadd.f32 %v9715, %v9716
        %v9718 = vrot.slane %v9717, 1
        %v9719 = vadd.f32 %v9717, %v9718
        %v9720 = vadd.f32 %v6432, %v6440
        %v9721 = vrot.slane %v9720, 4
        %v9722 = vadd.f32 %v9720, %v9721
        %v9723 = vrot.slane %v9722, 2
        %v9724 = vadd.f32 %v9722, %v9723
        %v9725 = vrot.slane %v9724, 1
        %v9726 = vadd.f32 %v9724, %v9725
        %v9727 = vadd.f32 %v6433, %v6441
        %v9728 = vrot.slane %v9727, 4
        %v9729 = vadd.f32 %v9727, %v9728
        %v9730 = vrot.slane %v9729, 2
        %v9731 = vadd.f32 %v9729, %v9730
        %v9732 = vrot.slane %v9731, 1
        %v9733 = vadd.f32 %v9731, %v9732
        %v9734 = vadd.f32 %v6434, %v6442
        %v9735 = vrot.slane %v9734, 4
        %v9736 = vadd.f32 %v9734, %v9735
        %v9737 = vrot.slane %v9736, 2
        %v9738 = vadd.f32 %v9736, %v9737
        %v9739 = vrot.slane %v9738, 1
        %v9740 = vadd.f32 %v9738, %v9739
        %v9741 = vadd.f32 %v6435, %v6443
        %v9742 = vrot.slane %v9741, 4
        %v9743 = vadd.f32 %v9741, %v9742
        %v9744 = vrot.slane %v9743, 2
        %v9745 = vadd.f32 %v9743, %v9744
        %v9746 = vrot.slane %v9745, 1
        %v9747 = vadd.f32 %v9745, %v9746
        %v9748 = vadd.f32 %v6444, %v6452
        %v9749 = vrot.slane %v9748, 4
        %v9750 = vadd.f32 %v9748, %v9749
        %v9751 = vrot.slane %v9750, 2
        %v9752 = vadd.f32 %v9750, %v9751
        %v9753 = vrot.slane %v9752, 1
        %v9754 = vadd.f32 %v9752, %v9753
        %v9755 = vadd.f32 %v6445, %v6453
        %v9756 = vrot.slane %v9755, 4
        %v9757 = vadd.f32 %v9755, %v9756
        %v9758 = vrot.slane %v9757, 2
        %v9759 = vadd.f32 %v9757, %v9758
        %v9760 = vrot.slane %v9759, 1
        %v9761 = vadd.f32 %v9759, %v9760
        %v9762 = vadd.f32 %v6446, %v6454
        %v9763 = vrot.slane %v9762, 4
        %v9764 = vadd.f32 %v9762, %v9763
        %v9765 = vrot.slane %v9764, 2
        %v9766 = vadd.f32 %v9764, %v9765
        %v9767 = vrot.slane %v9766, 1
        %v9768 = vadd.f32 %v9766, %v9767
        %v9769 = vadd.f32 %v6447, %v6455
        %v9770 = vrot.slane %v9769, 4
        %v9771 = vadd.f32 %v9769, %v9770
        %v9772 = vrot.slane %v9771, 2
        %v9773 = vadd.f32 %v9771, %v9772
        %v9774 = vrot.slane %v9773, 1
        %v9775 = vadd.f32 %v9773, %v9774
        %v9776 = vadd.f32 %v6448, %v6456
        %v9777 = vrot.slane %v9776, 4
        %v9778 = vadd.f32 %v9776, %v9777
        %v9779 = vrot.slane %v9778, 2
        %v9780 = vadd.f32 %v9778, %v9779
        %v9781 = vrot.slane %v9780, 1
        %v9782 = vadd.f32 %v9780, %v9781
        %v9783 = vadd.f32 %v6449, %v6457
        %v9784 = vrot.slane %v9783, 4
        %v9785 = vadd.f32 %v9783, %v9784
        %v9786 = vrot.slane %v9785, 2
        %v9787 = vadd.f32 %v9785, %v9786
        %v9788 = vrot.slane %v9787, 1
        %v9789 = vadd.f32 %v9787, %v9788
        %v9790 = vadd.f32 %v6450, %v6458
        %v9791 = vrot.slane %v9790, 4
        %v9792 = vadd.f32 %v9790, %v9791
        %v9793 = vrot.slane %v9792, 2
        %v9794 = vadd.f32 %v9792, %v9793
        %v9795 = vrot.slane %v9794, 1
        %v9796 = vadd.f32 %v9794, %v9795
        %v9797 = vadd.f32 %v6451, %v6459
        %v9798 = vrot.slane %v9797, 4
        %v9799 = vadd.f32 %v9797, %v9798
        %v9800 = vrot.slane %v9799, 2
        %v9801 = vadd.f32 %v9799, %v9800
        %v9802 = vrot.slane %v9801, 1
        %v9803 = vadd.f32 %v9801, %v9802
        %v9804 = vadd.f32 %v6460, %v6468
        %v9805 = vrot.slane %v9804, 4
        %v9806 = vadd.f32 %v9804, %v9805
        %v9807 = vrot.slane %v9806, 2
        %v9808 = vadd.f32 %v9806, %v9807
        %v9809 = vrot.slane %v9808, 1
        %v9810 = vadd.f32 %v9808, %v9809
        %v9811 = vadd.f32 %v6461, %v6469
        %v9812 = vrot.slane %v9811, 4
        %v9813 = vadd.f32 %v9811, %v9812
        %v9814 = vrot.slane %v9813, 2
        %v9815 = vadd.f32 %v9813, %v9814
        %v9816 = vrot.slane %v9815, 1
        %v9817 = vadd.f32 %v9815, %v9816
        %v9818 = vadd.f32 %v6462, %v6470
        %v9819 = vrot.slane %v9818, 4
        %v9820 = vadd.f32 %v9818, %v9819
        %v9821 = vrot.slane %v9820, 2
        %v9822 = vadd.f32 %v9820, %v9821
        %v9823 = vrot.slane %v9822, 1
        %v9824 = vadd.f32 %v9822, %v9823
        %v9825 = vadd.f32 %v6463, %v6471
        %v9826 = vrot.slane %v9825, 4
        %v9827 = vadd.f32 %v9825, %v9826
        %v9828 = vrot.slane %v9827, 2
        %v9829 = vadd.f32 %v9827, %v9828
        %v9830 = vrot.slane %v9829, 1
        %v9831 = vadd.f32 %v9829, %v9830
        %v9832 = vadd.f32 %v6464, %v6472
        %v9833 = vrot.slane %v9832, 4
        %v9834 = vadd.f32 %v9832, %v9833
        %v9835 = vrot.slane %v9834, 2
        %v9836 = vadd.f32 %v9834, %v9835
        %v9837 = vrot.slane %v9836, 1
        %v9838 = vadd.f32 %v9836, %v9837
        %v9839 = vadd.f32 %v6465, %v6473
        %v9840 = vrot.slane %v9839, 4
        %v9841 = vadd.f32 %v9839, %v9840
        %v9842 = vrot.slane %v9841, 2
        %v9843 = vadd.f32 %v9841, %v9842
        %v9844 = vrot.slane %v9843, 1
        %v9845 = vadd.f32 %v9843, %v9844
        %v9846 = vadd.f32 %v6466, %v6474
        %v9847 = vrot.slane %v9846, 4
        %v9848 = vadd.f32 %v9846, %v9847
        %v9849 = vrot.slane %v9848, 2
        %v9850 = vadd.f32 %v9848, %v9849
        %v9851 = vrot.slane %v9850, 1
        %v9852 = vadd.f32 %v9850, %v9851
        %v9853 = vadd.f32 %v6467, %v6475
        %v9854 = vrot.slane %v9853, 4
        %v9855 = vadd.f32 %v9853, %v9854
        %v9856 = vrot.slane %v9855, 2
        %v9857 = vadd.f32 %v9855, %v9856
        %v9858 = vrot.slane %v9857, 1
        %v9859 = vadd.f32 %v9857, %v9858
        %v9860 = vadd.f32 %v6476, %v6484
        %v9861 = vrot.slane %v9860, 4
        %v9862 = vadd.f32 %v9860, %v9861
        %v9863 = vrot.slane %v9862, 2
        %v9864 = vadd.f32 %v9862, %v9863
        %v9865 = vrot.slane %v9864, 1
        %v9866 = vadd.f32 %v9864, %v9865
        %v9867 = vadd.f32 %v6477, %v6485
        %v9868 = vrot.slane %v9867, 4
        %v9869 = vadd.f32 %v9867, %v9868
        %v9870 = vrot.slane %v9869, 2
        %v9871 = vadd.f32 %v9869, %v9870
        %v9872 = vrot.slane %v9871, 1
        %v9873 = vadd.f32 %v9871, %v9872
        %v9874 = vadd.f32 %v6478, %v6486
        %v9875 = vrot.slane %v9874, 4
        %v9876 = vadd.f32 %v9874, %v9875
        %v9877 = vrot.slane %v9876, 2
        %v9878 = vadd.f32 %v9876, %v9877
        %v9879 = vrot.slane %v9878, 1
        %v9880 = vadd.f32 %v9878, %v9879
        %v9881 = vadd.f32 %v6479, %v6487
        %v9882 = vrot.slane %v9881, 4
        %v9883 = vadd.f32 %v9881, %v9882
        %v9884 = vrot.slane %v9883, 2
        %v9885 = vadd.f32 %v9883, %v9884
        %v9886 = vrot.slane %v9885, 1
        %v9887 = vadd.f32 %v9885, %v9886
        %v9888 = vadd.f32 %v6480, %v6488
        %v9889 = vrot.slane %v9888, 4
        %v9890 = vadd.f32 %v9888, %v9889
        %v9891 = vrot.slane %v9890, 2
        %v9892 = vadd.f32 %v9890, %v9891
        %v9893 = vrot.slane %v9892, 1
        %v9894 = vadd.f32 %v9892, %v9893
        %v9895 = vadd.f32 %v6481, %v6489
        %v9896 = vrot.slane %v9895, 4
        %v9897 = vadd.f32 %v9895, %v9896
        %v9898 = vrot.slane %v9897, 2
        %v9899 = vadd.f32 %v9897, %v9898
        %v9900 = vrot.slane %v9899, 1
        %v9901 = vadd.f32 %v9899, %v9900
        %v9902 = vadd.f32 %v6482, %v6490
        %v9903 = vrot.slane %v9902, 4
        %v9904 = vadd.f32 %v9902, %v9903
        %v9905 = vrot.slane %v9904, 2
        %v9906 = vadd.f32 %v9904, %v9905
        %v9907 = vrot.slane %v9906, 1
        %v9908 = vadd.f32 %v9906, %v9907
        %v9909 = vadd.f32 %v6483, %v6491
        %v9910 = vrot.slane %v9909, 4
        %v9911 = vadd.f32 %v9909, %v9910
        %v9912 = vrot.slane %v9911, 2
        %v9913 = vadd.f32 %v9911, %v9912
        %v9914 = vrot.slane %v9913, 1
        %v9915 = vadd.f32 %v9913, %v9914
        %v9916 = vadd.f32 %v6492, %v6500
        %v9917 = vrot.slane %v9916, 4
        %v9918 = vadd.f32 %v9916, %v9917
        %v9919 = vrot.slane %v9918, 2
        %v9920 = vadd.f32 %v9918, %v9919
        %v9921 = vrot.slane %v9920, 1
        %v9922 = vadd.f32 %v9920, %v9921
        %v9923 = vadd.f32 %v6493, %v6501
        %v9924 = vrot.slane %v9923, 4
        %v9925 = vadd.f32 %v9923, %v9924
        %v9926 = vrot.slane %v9925, 2
        %v9927 = vadd.f32 %v9925, %v9926
        %v9928 = vrot.slane %v9927, 1
        %v9929 = vadd.f32 %v9927, %v9928
        %v9930 = vadd.f32 %v6494, %v6502
        %v9931 = vrot.slane %v9930, 4
        %v9932 = vadd.f32 %v9930, %v9931
        %v9933 = vrot.slane %v9932, 2
        %v9934 = vadd.f32 %v9932, %v9933
        %v9935 = vrot.slane %v9934, 1
        %v9936 = vadd.f32 %v9934, %v9935
        %v9937 = vadd.f32 %v6495, %v6503
        %v9938 = vrot.slane %v9937, 4
        %v9939 = vadd.f32 %v9937, %v9938
        %v9940 = vrot.slane %v9939, 2
        %v9941 = vadd.f32 %v9939, %v9940
        %v9942 = vrot.slane %v9941, 1
        %v9943 = vadd.f32 %v9941, %v9942
        %v9944 = vadd.f32 %v6496, %v6504
        %v9945 = vrot.slane %v9944, 4
        %v9946 = vadd.f32 %v9944, %v9945
        %v9947 = vrot.slane %v9946, 2
        %v9948 = vadd.f32 %v9946, %v9947
        %v9949 = vrot.slane %v9948, 1
        %v9950 = vadd.f32 %v9948, %v9949
        %v9951 = vadd.f32 %v6497, %v6505
        %v9952 = vrot.slane %v9951, 4
        %v9953 = vadd.f32 %v9951, %v9952
        %v9954 = vrot.slane %v9953, 2
        %v9955 = vadd.f32 %v9953, %v9954
        %v9956 = vrot.slane %v9955, 1
        %v9957 = vadd.f32 %v9955, %v9956
        %v9958 = vadd.f32 %v6498, %v6506
        %v9959 = vrot.slane %v9958, 4
        %v9960 = vadd.f32 %v9958, %v9959
        %v9961 = vrot.slane %v9960, 2
        %v9962 = vadd.f32 %v9960, %v9961
        %v9963 = vrot.slane %v9962, 1
        %v9964 = vadd.f32 %v9962, %v9963
        %v9965 = vadd.f32 %v6499, %v6507
        %v9966 = vrot.slane %v9965, 4
        %v9967 = vadd.f32 %v9965, %v9966
        %v9968 = vrot.slane %v9967, 2
        %v9969 = vadd.f32 %v9967, %v9968
        %v9970 = vrot.slane %v9969, 1
        %v9971 = vadd.f32 %v9969, %v9970
        %v9972 = vadd.f32 %v6508, %v6516
        %v9973 = vrot.slane %v9972, 4
        %v9974 = vadd.f32 %v9972, %v9973
        %v9975 = vrot.slane %v9974, 2
        %v9976 = vadd.f32 %v9974, %v9975
        %v9977 = vrot.slane %v9976, 1
        %v9978 = vadd.f32 %v9976, %v9977
        %v9979 = vadd.f32 %v6509, %v6517
        %v9980 = vrot.slane %v9979, 4
        %v9981 = vadd.f32 %v9979, %v9980
        %v9982 = vrot.slane %v9981, 2
        %v9983 = vadd.f32 %v9981, %v9982
        %v9984 = vrot.slane %v9983, 1
        %v9985 = vadd.f32 %v9983, %v9984
        %v9986 = vadd.f32 %v6510, %v6518
        %v9987 = vrot.slane %v9986, 4
        %v9988 = vadd.f32 %v9986, %v9987
        %v9989 = vrot.slane %v9988, 2
        %v9990 = vadd.f32 %v9988, %v9989
        %v9991 = vrot.slane %v9990, 1
        %v9992 = vadd.f32 %v9990, %v9991
        %v9993 = vadd.f32 %v6511, %v6519
        %v9994 = vrot.slane %v9993, 4
        %v9995 = vadd.f32 %v9993, %v9994
        %v9996 = vrot.slane %v9995, 2
        %v9997 = vadd.f32 %v9995, %v9996
        %v9998 = vrot.slane %v9997, 1
        %v9999 = vadd.f32 %v9997, %v9998
        %v10000 = vadd.f32 %v6512, %v6520
        %v10001 = vrot.slane %v10000, 4
        %v10002 = vadd.f32 %v10000, %v10001
        %v10003 = vrot.slane %v10002, 2
        %v10004 = vadd.f32 %v10002, %v10003
        %v10005 = vrot.slane %v10004, 1
        %v10006 = vadd.f32 %v10004, %v10005
        %v10007 = vadd.f32 %v6513, %v6521
        %v10008 = vrot.slane %v10007, 4
        %v10009 = vadd.f32 %v10007, %v10008
        %v10010 = vrot.slane %v10009, 2
        %v10011 = vadd.f32 %v10009, %v10010
        %v10012 = vrot.slane %v10011, 1
        %v10013 = vadd.f32 %v10011, %v10012
        %v10014 = vadd.f32 %v6514, %v6522
        %v10015 = vrot.slane %v10014, 4
        %v10016 = vadd.f32 %v10014, %v10015
        %v10017 = vrot.slane %v10016, 2
        %v10018 = vadd.f32 %v10016, %v10017
        %v10019 = vrot.slane %v10018, 1
        %v10020 = vadd.f32 %v10018, %v10019
        %v10021 = vadd.f32 %v6515, %v6523
        %v10022 = vrot.slane %v10021, 4
        %v10023 = vadd.f32 %v10021, %v10022
        %v10024 = vrot.slane %v10023, 2
        %v10025 = vadd.f32 %v10023, %v10024
        %v10026 = vrot.slane %v10025, 1
        %v10027 = vadd.f32 %v10025, %v10026
        %v10028 = vadd.f32 %v6524, %v6532
        %v10029 = vrot.slane %v10028, 4
        %v10030 = vadd.f32 %v10028, %v10029
        %v10031 = vrot.slane %v10030, 2
        %v10032 = vadd.f32 %v10030, %v10031
        %v10033 = vrot.slane %v10032, 1
        %v10034 = vadd.f32 %v10032, %v10033
        %v10035 = vadd.f32 %v6525, %v6533
        %v10036 = vrot.slane %v10035, 4
        %v10037 = vadd.f32 %v10035, %v10036
        %v10038 = vrot.slane %v10037, 2
        %v10039 = vadd.f32 %v10037, %v10038
        %v10040 = vrot.slane %v10039, 1
        %v10041 = vadd.f32 %v10039, %v10040
        %v10042 = vadd.f32 %v6526, %v6534
        %v10043 = vrot.slane %v10042, 4
        %v10044 = vadd.f32 %v10042, %v10043
        %v10045 = vrot.slane %v10044, 2
        %v10046 = vadd.f32 %v10044, %v10045
        %v10047 = vrot.slane %v10046, 1
        %v10048 = vadd.f32 %v10046, %v10047
        %v10049 = vadd.f32 %v6527, %v6535
        %v10050 = vrot.slane %v10049, 4
        %v10051 = vadd.f32 %v10049, %v10050
        %v10052 = vrot.slane %v10051, 2
        %v10053 = vadd.f32 %v10051, %v10052
        %v10054 = vrot.slane %v10053, 1
        %v10055 = vadd.f32 %v10053, %v10054
        %v10056 = vadd.f32 %v6528, %v6536
        %v10057 = vrot.slane %v10056, 4
        %v10058 = vadd.f32 %v10056, %v10057
        %v10059 = vrot.slane %v10058, 2
        %v10060 = vadd.f32 %v10058, %v10059
        %v10061 = vrot.slane %v10060, 1
        %v10062 = vadd.f32 %v10060, %v10061
        %v10063 = vadd.f32 %v6529, %v6537
        %v10064 = vrot.slane %v10063, 4
        %v10065 = vadd.f32 %v10063, %v10064
        %v10066 = vrot.slane %v10065, 2
        %v10067 = vadd.f32 %v10065, %v10066
        %v10068 = vrot.slane %v10067, 1
        %v10069 = vadd.f32 %v10067, %v10068
        %v10070 = vadd.f32 %v6530, %v6538
        %v10071 = vrot.slane %v10070, 4
        %v10072 = vadd.f32 %v10070, %v10071
        %v10073 = vrot.slane %v10072, 2
        %v10074 = vadd.f32 %v10072, %v10073
        %v10075 = vrot.slane %v10074, 1
        %v10076 = vadd.f32 %v10074, %v10075
        %v10077 = vadd.f32 %v6531, %v6539
        %v10078 = vrot.slane %v10077, 4
        %v10079 = vadd.f32 %v10077, %v10078
        %v10080 = vrot.slane %v10079, 2
        %v10081 = vadd.f32 %v10079, %v10080
        %v10082 = vrot.slane %v10081, 1
        %v10083 = vadd.f32 %v10081, %v10082
        %v10084 = vadd.f32 %v6540, %v6548
        %v10085 = vrot.slane %v10084, 4
        %v10086 = vadd.f32 %v10084, %v10085
        %v10087 = vrot.slane %v10086, 2
        %v10088 = vadd.f32 %v10086, %v10087
        %v10089 = vrot.slane %v10088, 1
        %v10090 = vadd.f32 %v10088, %v10089
        %v10091 = vadd.f32 %v6541, %v6549
        %v10092 = vrot.slane %v10091, 4
        %v10093 = vadd.f32 %v10091, %v10092
        %v10094 = vrot.slane %v10093, 2
        %v10095 = vadd.f32 %v10093, %v10094
        %v10096 = vrot.slane %v10095, 1
        %v10097 = vadd.f32 %v10095, %v10096
        %v10098 = vadd.f32 %v6542, %v6550
        %v10099 = vrot.slane %v10098, 4
        %v10100 = vadd.f32 %v10098, %v10099
        %v10101 = vrot.slane %v10100, 2
        %v10102 = vadd.f32 %v10100, %v10101
        %v10103 = vrot.slane %v10102, 1
        %v10104 = vadd.f32 %v10102, %v10103
        %v10105 = vadd.f32 %v6543, %v6551
        %v10106 = vrot.slane %v10105, 4
        %v10107 = vadd.f32 %v10105, %v10106
        %v10108 = vrot.slane %v10107, 2
        %v10109 = vadd.f32 %v10107, %v10108
        %v10110 = vrot.slane %v10109, 1
        %v10111 = vadd.f32 %v10109, %v10110
        %v10112 = vadd.f32 %v6544, %v6552
        %v10113 = vrot.slane %v10112, 4
        %v10114 = vadd.f32 %v10112, %v10113
        %v10115 = vrot.slane %v10114, 2
        %v10116 = vadd.f32 %v10114, %v10115
        %v10117 = vrot.slane %v10116, 1
        %v10118 = vadd.f32 %v10116, %v10117
        %v10119 = vadd.f32 %v6545, %v6553
        %v10120 = vrot.slane %v10119, 4
        %v10121 = vadd.f32 %v10119, %v10120
        %v10122 = vrot.slane %v10121, 2
        %v10123 = vadd.f32 %v10121, %v10122
        %v10124 = vrot.slane %v10123, 1
        %v10125 = vadd.f32 %v10123, %v10124
        %v10126 = vadd.f32 %v6546, %v6554
        %v10127 = vrot.slane %v10126, 4
        %v10128 = vadd.f32 %v10126, %v10127
        %v10129 = vrot.slane %v10128, 2
        %v10130 = vadd.f32 %v10128, %v10129
        %v10131 = vrot.slane %v10130, 1
        %v10132 = vadd.f32 %v10130, %v10131
        %v10133 = vadd.f32 %v6547, %v6555
        %v10134 = vrot.slane %v10133, 4
        %v10135 = vadd.f32 %v10133, %v10134
        %v10136 = vrot.slane %v10135, 2
        %v10137 = vadd.f32 %v10135, %v10136
        %v10138 = vrot.slane %v10137, 1
        %v10139 = vadd.f32 %v10137, %v10138
        %v10140 = vadd.f32 %v6562, %v6569
        %v10141 = vadd.f32 %v6618, %v6625
        %v10142 = vadd.f32 %v6674, %v6681
        %v10143 = vadd.f32 %v6730, %v6737
        %v10144 = vadd.f32 %v6786, %v6793
        %v10145 = vadd.f32 %v6842, %v6849
        %v10146 = vadd.f32 %v6898, %v6905
        %v10147 = vadd.f32 %v6954, %v6961
        %v10148 = vadd.f32 %v7010, %v7017
        %v10149 = vadd.f32 %v7066, %v7073
        %v10150 = vadd.f32 %v7122, %v7129
        %v10151 = vadd.f32 %v7178, %v7185
        %v10152 = vadd.f32 %v7234, %v7241
        %v10153 = vadd.f32 %v7290, %v7297
        %v10154 = vadd.f32 %v7346, %v7353
        %v10155 = vadd.f32 %v7402, %v7409
        %v10156 = vadd.f32 %v7458, %v7465
        %v10157 = vadd.f32 %v7514, %v7521
        %v10158 = vadd.f32 %v7570, %v7577
        %v10159 = vadd.f32 %v7626, %v7633
        %v10160 = vadd.f32 %v7682, %v7689
        %v10161 = vadd.f32 %v7738, %v7745
        %v10162 = vadd.f32 %v7794, %v7801
        %v10163 = vadd.f32 %v7850, %v7857
        %v10164 = vadd.f32 %v7906, %v7913
        %v10165 = vadd.f32 %v7962, %v7969
        %v10166 = vadd.f32 %v8018, %v8025
        %v10167 = vadd.f32 %v8074, %v8081
        %v10168 = vadd.f32 %v8130, %v8137
        %v10169 = vadd.f32 %v8186, %v8193
        %v10170 = vadd.f32 %v8242, %v8249
        %v10171 = vadd.f32 %v8298, %v8305
        %v10172 = vadd.f32 %v8354, %v8361
        %v10173 = vadd.f32 %v8410, %v8417
        %v10174 = vadd.f32 %v8466, %v8473
        %v10175 = vadd.f32 %v8522, %v8529
        %v10176 = vadd.f32 %v8578, %v8585
        %v10177 = vadd.f32 %v8634, %v8641
        %v10178 = vadd.f32 %v8690, %v8697
        %v10179 = vadd.f32 %v8746, %v8753
        %v10180 = vadd.f32 %v8802, %v8809
        %v10181 = vadd.f32 %v8858, %v8865
        %v10182 = vadd.f32 %v8914, %v8921
        %v10183 = vadd.f32 %v8970, %v8977
        %v10184 = vadd.f32 %v9026, %v9033
        %v10185 = vadd.f32 %v9082, %v9089
        %v10186 = vadd.f32 %v9138, %v9145
        %v10187 = vadd.f32 %v9194, %v9201
        %v10188 = vadd.f32 %v9250, %v9257
        %v10189 = vadd.f32 %v9306, %v9313
        %v10190 = vadd.f32 %v9362, %v9369
        %v10191 = vadd.f32 %v9418, %v9425
        %v10192 = vadd.f32 %v9474, %v9481
        %v10193 = vadd.f32 %v9530, %v9537
        %v10194 = vadd.f32 %v9586, %v9593
        %v10195 = vadd.f32 %v9642, %v9649
        %v10196 = vadd.f32 %v9698, %v9705
        %v10197 = vadd.f32 %v9754, %v9761
        %v10198 = vadd.f32 %v9810, %v9817
        %v10199 = vadd.f32 %v9866, %v9873
        %v10200 = vadd.f32 %v9922, %v9929
        %v10201 = vadd.f32 %v9978, %v9985
        %v10202 = vadd.f32 %v10034, %v10041
        %v10203 = vadd.f32 %v10090, %v10097
        %v10204 = vadd.f32 %v10140, %v6576
        %v10205 = vadd.f32 %v10141, %v6632
        %v10206 = vadd.f32 %v10142, %v6688
        %v10207 = vadd.f32 %v10143, %v6744
        %v10208 = vadd.f32 %v10144, %v6800
        %v10209 = vadd.f32 %v10145, %v6856
        %v10210 = vadd.f32 %v10146, %v6912
        %v10211 = vadd.f32 %v10147, %v6968
        %v10212 = vadd.f32 %v10148, %v7024
        %v10213 = vadd.f32 %v10149, %v7080
        %v10214 = vadd.f32 %v10150, %v7136
        %v10215 = vadd.f32 %v10151, %v7192
        %v10216 = vadd.f32 %v10152, %v7248
        %v10217 = vadd.f32 %v10153, %v7304
        %v10218 = vadd.f32 %v10154, %v7360
        %v10219 = vadd.f32 %v10155, %v7416
        %v10220 = vadd.f32 %v10156, %v7472
        %v10221 = vadd.f32 %v10157, %v7528
        %v10222 = vadd.f32 %v10158, %v7584
        %v10223 = vadd.f32 %v10159, %v7640
        %v10224 = vadd.f32 %v10160, %v7696
        %v10225 = vadd.f32 %v10161, %v7752
        %v10226 = vadd.f32 %v10162, %v7808
        %v10227 = vadd.f32 %v10163, %v7864
        %v10228 = vadd.f32 %v10164, %v7920
        %v10229 = vadd.f32 %v10165, %v7976
        %v10230 = vadd.f32 %v10166, %v8032
        %v10231 = vadd.f32 %v10167, %v8088
        %v10232 = vadd.f32 %v10168, %v8144
        %v10233 = vadd.f32 %v10169, %v8200
        %v10234 = vadd.f32 %v10170, %v8256
        %v10235 = vadd.f32 %v10171, %v8312
        %v10236 = vadd.f32 %v10172, %v8368
        %v10237 = vadd.f32 %v10173, %v8424
        %v10238 = vadd.f32 %v10174, %v8480
        %v10239 = vadd.f32 %v10175, %v8536
        %v10240 = vadd.f32 %v10176, %v8592
        %v10241 = vadd.f32 %v10177, %v8648
        %v10242 = vadd.f32 %v10178, %v8704
        %v10243 = vadd.f32 %v10179, %v8760
        %v10244 = vadd.f32 %v10180, %v8816
        %v10245 = vadd.f32 %v10181, %v8872
        %v10246 = vadd.f32 %v10182, %v8928
        %v10247 = vadd.f32 %v10183, %v8984
        %v10248 = vadd.f32 %v10184, %v9040
        %v10249 = vadd.f32 %v10185, %v9096
        %v10250 = vadd.f32 %v10186, %v9152
        %v10251 = vadd.f32 %v10187, %v9208
        %v10252 = vadd.f32 %v10188, %v9264
        %v10253 = vadd.f32 %v10189, %v9320
        %v10254 = vadd.f32 %v10190, %v9376
        %v10255 = vadd.f32 %v10191, %v9432
        %v10256 = vadd.f32 %v10192, %v9488
        %v10257 = vadd.f32 %v10193, %v9544
        %v10258 = vadd.f32 %v10194, %v9600
        %v10259 = vadd.f32 %v10195, %v9656
        %v10260 = vadd.f32 %v10196, %v9712
        %v10261 = vadd.f32 %v10197, %v9768
        %v10262 = vadd.f32 %v10198, %v9824
        %v10263 = vadd.f32 %v10199, %v9880
        %v10264 = vadd.f32 %v10200, %v9936
        %v10265 = vadd.f32 %v10201, %v9992
        %v10266 = vadd.f32 %v10202, %v10048
        %v10267 = vadd.f32 %v10203, %v10104
        %v10268 = vadd.f32 %v10204, %v6583
        %v10269 = vadd.f32 %v10205, %v6639
        %v10270 = vadd.f32 %v10206, %v6695
        %v10271 = vadd.f32 %v10207, %v6751
        %v10272 = vadd.f32 %v10208, %v6807
        %v10273 = vadd.f32 %v10209, %v6863
        %v10274 = vadd.f32 %v10210, %v6919
        %v10275 = vadd.f32 %v10211, %v6975
        %v10276 = vadd.f32 %v10212, %v7031
        %v10277 = vadd.f32 %v10213, %v7087
        %v10278 = vadd.f32 %v10214, %v7143
        %v10279 = vadd.f32 %v10215, %v7199
        %v10280 = vadd.f32 %v10216, %v7255
        %v10281 = vadd.f32 %v10217, %v7311
        %v10282 = vadd.f32 %v10218, %v7367
        %v10283 = vadd.f32 %v10219, %v7423
        %v10284 = vadd.f32 %v10220, %v7479
        %v10285 = vadd.f32 %v10221, %v7535
        %v10286 = vadd.f32 %v10222, %v7591
        %v10287 = vadd.f32 %v10223, %v7647
        %v10288 = vadd.f32 %v10224, %v7703
        %v10289 = vadd.f32 %v10225, %v7759
        %v10290 = vadd.f32 %v10226, %v7815
        %v10291 = vadd.f32 %v10227, %v7871
        %v10292 = vadd.f32 %v10228, %v7927
        %v10293 = vadd.f32 %v10229, %v7983
        %v10294 = vadd.f32 %v10230, %v8039
        %v10295 = vadd.f32 %v10231, %v8095
        %v10296 = vadd.f32 %v10232, %v8151
        %v10297 = vadd.f32 %v10233, %v8207
        %v10298 = vadd.f32 %v10234, %v8263
        %v10299 = vadd.f32 %v10235, %v8319
        %v10300 = vadd.f32 %v10236, %v8375
        %v10301 = vadd.f32 %v10237, %v8431
        %v10302 = vadd.f32 %v10238, %v8487
        %v10303 = vadd.f32 %v10239, %v8543
        %v10304 = vadd.f32 %v10240, %v8599
        %v10305 = vadd.f32 %v10241, %v8655
        %v10306 = vadd.f32 %v10242, %v8711
        %v10307 = vadd.f32 %v10243, %v8767
        %v10308 = vadd.f32 %v10244, %v8823
        %v10309 = vadd.f32 %v10245, %v8879
        %v10310 = vadd.f32 %v10246, %v8935
        %v10311 = vadd.f32 %v10247, %v8991
        %v10312 = vadd.f32 %v10248, %v9047
        %v10313 = vadd.f32 %v10249, %v9103
        %v10314 = vadd.f32 %v10250, %v9159
        %v10315 = vadd.f32 %v10251, %v9215
        %v10316 = vadd.f32 %v10252, %v9271
        %v10317 = vadd.f32 %v10253, %v9327
        %v10318 = vadd.f32 %v10254, %v9383
        %v10319 = vadd.f32 %v10255, %v9439
        %v10320 = vadd.f32 %v10256, %v9495
        %v10321 = vadd.f32 %v10257, %v9551
        %v10322 = vadd.f32 %v10258, %v9607
        %v10323 = vadd.f32 %v10259, %v9663
        %v10324 = vadd.f32 %v10260, %v9719
        %v10325 = vadd.f32 %v10261, %v9775
        %v10326 = vadd.f32 %v10262, %v9831
        %v10327 = vadd.f32 %v10263, %v9887
        %v10328 = vadd.f32 %v10264, %v9943
        %v10329 = vadd.f32 %v10265, %v9999
        %v10330 = vadd.f32 %v10266, %v10055
        %v10331 = vadd.f32 %v10267, %v10111
        %v10332 = vadd.f32 %v10268, %v6590
        %v10333 = vadd.f32 %v10269, %v6646
        %v10334 = vadd.f32 %v10270, %v6702
        %v10335 = vadd.f32 %v10271, %v6758
        %v10336 = vadd.f32 %v10272, %v6814
        %v10337 = vadd.f32 %v10273, %v6870
        %v10338 = vadd.f32 %v10274, %v6926
        %v10339 = vadd.f32 %v10275, %v6982
        %v10340 = vadd.f32 %v10276, %v7038
        %v10341 = vadd.f32 %v10277, %v7094
        %v10342 = vadd.f32 %v10278, %v7150
        %v10343 = vadd.f32 %v10279, %v7206
        %v10344 = vadd.f32 %v10280, %v7262
        %v10345 = vadd.f32 %v10281, %v7318
        %v10346 = vadd.f32 %v10282, %v7374
        %v10347 = vadd.f32 %v10283, %v7430
        %v10348 = vadd.f32 %v10284, %v7486
        %v10349 = vadd.f32 %v10285, %v7542
        %v10350 = vadd.f32 %v10286, %v7598
        %v10351 = vadd.f32 %v10287, %v7654
        %v10352 = vadd.f32 %v10288, %v7710
        %v10353 = vadd.f32 %v10289, %v7766
        %v10354 = vadd.f32 %v10290, %v7822
        %v10355 = vadd.f32 %v10291, %v7878
        %v10356 = vadd.f32 %v10292, %v7934
        %v10357 = vadd.f32 %v10293, %v7990
        %v10358 = vadd.f32 %v10294, %v8046
        %v10359 = vadd.f32 %v10295, %v8102
        %v10360 = vadd.f32 %v10296, %v8158
        %v10361 = vadd.f32 %v10297, %v8214
        %v10362 = vadd.f32 %v10298, %v8270
        %v10363 = vadd.f32 %v10299, %v8326
        %v10364 = vadd.f32 %v10300, %v8382
        %v10365 = vadd.f32 %v10301, %v8438
        %v10366 = vadd.f32 %v10302, %v8494
        %v10367 = vadd.f32 %v10303, %v8550
        %v10368 = vadd.f32 %v10304, %v8606
        %v10369 = vadd.f32 %v10305, %v8662
        %v10370 = vadd.f32 %v10306, %v8718
        %v10371 = vadd.f32 %v10307, %v8774
        %v10372 = vadd.f32 %v10308, %v8830
        %v10373 = vadd.f32 %v10309, %v8886
        %v10374 = vadd.f32 %v10310, %v8942
        %v10375 = vadd.f32 %v10311, %v8998
        %v10376 = vadd.f32 %v10312, %v9054
        %v10377 = vadd.f32 %v10313, %v9110
        %v10378 = vadd.f32 %v10314, %v9166
        %v10379 = vadd.f32 %v10315, %v9222
        %v10380 = vadd.f32 %v10316, %v9278
        %v10381 = vadd.f32 %v10317, %v9334
        %v10382 = vadd.f32 %v10318, %v9390
        %v10383 = vadd.f32 %v10319, %v9446
        %v10384 = vadd.f32 %v10320, %v9502
        %v10385 = vadd.f32 %v10321, %v9558
        %v10386 = vadd.f32 %v10322, %v9614
        %v10387 = vadd.f32 %v10323, %v9670
        %v10388 = vadd.f32 %v10324, %v9726
        %v10389 = vadd.f32 %v10325, %v9782
        %v10390 = vadd.f32 %v10326, %v9838
        %v10391 = vadd.f32 %v10327, %v9894
        %v10392 = vadd.f32 %v10328, %v9950
        %v10393 = vadd.f32 %v10329, %v10006
        %v10394 = vadd.f32 %v10330, %v10062
        %v10395 = vadd.f32 %v10331, %v10118
        %v10396 = vadd.f32 %v10332, %v6597
        %v10397 = vadd.f32 %v10333, %v6653
        %v10398 = vadd.f32 %v10334, %v6709
        %v10399 = vadd.f32 %v10335, %v6765
        %v10400 = vadd.f32 %v10336, %v6821
        %v10401 = vadd.f32 %v10337, %v6877
        %v10402 = vadd.f32 %v10338, %v6933
        %v10403 = vadd.f32 %v10339, %v6989
        %v10404 = vadd.f32 %v10340, %v7045
        %v10405 = vadd.f32 %v10341, %v7101
        %v10406 = vadd.f32 %v10342, %v7157
        %v10407 = vadd.f32 %v10343, %v7213
        %v10408 = vadd.f32 %v10344, %v7269
        %v10409 = vadd.f32 %v10345, %v7325
        %v10410 = vadd.f32 %v10346, %v7381
        %v10411 = vadd.f32 %v10347, %v7437
        %v10412 = vadd.f32 %v10348, %v7493
        %v10413 = vadd.f32 %v10349, %v7549
        %v10414 = vadd.f32 %v10350, %v7605
        %v10415 = vadd.f32 %v10351, %v7661
        %v10416 = vadd.f32 %v10352, %v7717
        %v10417 = vadd.f32 %v10353, %v7773
        %v10418 = vadd.f32 %v10354, %v7829
        %v10419 = vadd.f32 %v10355, %v7885
        %v10420 = vadd.f32 %v10356, %v7941
        %v10421 = vadd.f32 %v10357, %v7997
        %v10422 = vadd.f32 %v10358, %v8053
        %v10423 = vadd.f32 %v10359, %v8109
        %v10424 = vadd.f32 %v10360, %v8165
        %v10425 = vadd.f32 %v10361, %v8221
        %v10426 = vadd.f32 %v10362, %v8277
        %v10427 = vadd.f32 %v10363, %v8333
        %v10428 = vadd.f32 %v10364, %v8389
        %v10429 = vadd.f32 %v10365, %v8445
        %v10430 = vadd.f32 %v10366, %v8501
        %v10431 = vadd.f32 %v10367, %v8557
        %v10432 = vadd.f32 %v10368, %v8613
        %v10433 = vadd.f32 %v10369, %v8669
        %v10434 = vadd.f32 %v10370, %v8725
        %v10435 = vadd.f32 %v10371, %v8781
        %v10436 = vadd.f32 %v10372, %v8837
        %v10437 = vadd.f32 %v10373, %v8893
        %v10438 = vadd.f32 %v10374, %v8949
        %v10439 = vadd.f32 %v10375, %v9005
        %v10440 = vadd.f32 %v10376, %v9061
        %v10441 = vadd.f32 %v10377, %v9117
        %v10442 = vadd.f32 %v10378, %v9173
        %v10443 = vadd.f32 %v10379, %v9229
        %v10444 = vadd.f32 %v10380, %v9285
        %v10445 = vadd.f32 %v10381, %v9341
        %v10446 = vadd.f32 %v10382, %v9397
        %v10447 = vadd.f32 %v10383, %v9453
        %v10448 = vadd.f32 %v10384, %v9509
        %v10449 = vadd.f32 %v10385, %v9565
        %v10450 = vadd.f32 %v10386, %v9621
        %v10451 = vadd.f32 %v10387, %v9677
        %v10452 = vadd.f32 %v10388, %v9733
        %v10453 = vadd.f32 %v10389, %v9789
        %v10454 = vadd.f32 %v10390, %v9845
        %v10455 = vadd.f32 %v10391, %v9901
        %v10456 = vadd.f32 %v10392, %v9957
        %v10457 = vadd.f32 %v10393, %v10013
        %v10458 = vadd.f32 %v10394, %v10069
        %v10459 = vadd.f32 %v10395, %v10125
        %v10460 = vadd.f32 %v10396, %v6604
        %v10461 = vadd.f32 %v10397, %v6660
        %v10462 = vadd.f32 %v10398, %v6716
        %v10463 = vadd.f32 %v10399, %v6772
        %v10464 = vadd.f32 %v10400, %v6828
        %v10465 = vadd.f32 %v10401, %v6884
        %v10466 = vadd.f32 %v10402, %v6940
        %v10467 = vadd.f32 %v10403, %v6996
        %v10468 = vadd.f32 %v10404, %v7052
        %v10469 = vadd.f32 %v10405, %v7108
        %v10470 = vadd.f32 %v10406, %v7164
        %v10471 = vadd.f32 %v10407, %v7220
        %v10472 = vadd.f32 %v10408, %v7276
        %v10473 = vadd.f32 %v10409, %v7332
        %v10474 = vadd.f32 %v10410, %v7388
        %v10475 = vadd.f32 %v10411, %v7444
        %v10476 = vadd.f32 %v10412, %v7500
        %v10477 = vadd.f32 %v10413, %v7556
        %v10478 = vadd.f32 %v10414, %v7612
        %v10479 = vadd.f32 %v10415, %v7668
        %v10480 = vadd.f32 %v10416, %v7724
        %v10481 = vadd.f32 %v10417, %v7780
        %v10482 = vadd.f32 %v10418, %v7836
        %v10483 = vadd.f32 %v10419, %v7892
        %v10484 = vadd.f32 %v10420, %v7948
        %v10485 = vadd.f32 %v10421, %v8004
        %v10486 = vadd.f32 %v10422, %v8060
        %v10487 = vadd.f32 %v10423, %v8116
        %v10488 = vadd.f32 %v10424, %v8172
        %v10489 = vadd.f32 %v10425, %v8228
        %v10490 = vadd.f32 %v10426, %v8284
        %v10491 = vadd.f32 %v10427, %v8340
        %v10492 = vadd.f32 %v10428, %v8396
        %v10493 = vadd.f32 %v10429, %v8452
        %v10494 = vadd.f32 %v10430, %v8508
        %v10495 = vadd.f32 %v10431, %v8564
        %v10496 = vadd.f32 %v10432, %v8620
        %v10497 = vadd.f32 %v10433, %v8676
        %v10498 = vadd.f32 %v10434, %v8732
        %v10499 = vadd.f32 %v10435, %v8788
        %v10500 = vadd.f32 %v10436, %v8844
        %v10501 = vadd.f32 %v10437, %v8900
        %v10502 = vadd.f32 %v10438, %v8956
        %v10503 = vadd.f32 %v10439, %v9012
        %v10504 = vadd.f32 %v10440, %v9068
        %v10505 = vadd.f32 %v10441, %v9124
        %v10506 = vadd.f32 %v10442, %v9180
        %v10507 = vadd.f32 %v10443, %v9236
        %v10508 = vadd.f32 %v10444, %v9292
        %v10509 = vadd.f32 %v10445, %v9348
        %v10510 = vadd.f32 %v10446, %v9404
        %v10511 = vadd.f32 %v10447, %v9460
        %v10512 = vadd.f32 %v10448, %v9516
        %v10513 = vadd.f32 %v10449, %v9572
        %v10514 = vadd.f32 %v10450, %v9628
        %v10515 = vadd.f32 %v10451, %v9684
        %v10516 = vadd.f32 %v10452, %v9740
        %v10517 = vadd.f32 %v10453, %v9796
        %v10518 = vadd.f32 %v10454, %v9852
        %v10519 = vadd.f32 %v10455, %v9908
        %v10520 = vadd.f32 %v10456, %v9964
        %v10521 = vadd.f32 %v10457, %v10020
        %v10522 = vadd.f32 %v10458, %v10076
        %v10523 = vadd.f32 %v10459, %v10132
        %v10524 = vadd.f32 %v10460, %v6611
        %v10525 = vadd.f32 %v10461, %v6667
        %v10526 = vadd.f32 %v10462, %v6723
        %v10527 = vadd.f32 %v10463, %v6779
        %v10528 = vadd.f32 %v10464, %v6835
        %v10529 = vadd.f32 %v10465, %v6891
        %v10530 = vadd.f32 %v10466, %v6947
        %v10531 = vadd.f32 %v10467, %v7003
        %v10532 = vadd.f32 %v10468, %v7059
        %v10533 = vadd.f32 %v10469, %v7115
        %v10534 = vadd.f32 %v10470, %v7171
        %v10535 = vadd.f32 %v10471, %v7227
        %v10536 = vadd.f32 %v10472, %v7283
        %v10537 = vadd.f32 %v10473, %v7339
        %v10538 = vadd.f32 %v10474, %v7395
        %v10539 = vadd.f32 %v10475, %v7451
        %v10540 = vadd.f32 %v10476, %v7507
        %v10541 = vadd.f32 %v10477, %v7563
        %v10542 = vadd.f32 %v10478, %v7619
        %v10543 = vadd.f32 %v10479, %v7675
        %v10544 = vadd.f32 %v10480, %v7731
        %v10545 = vadd.f32 %v10481, %v7787
        %v10546 = vadd.f32 %v10482, %v7843
        %v10547 = vadd.f32 %v10483, %v7899
        %v10548 = vadd.f32 %v10484, %v7955
        %v10549 = vadd.f32 %v10485, %v8011
        %v10550 = vadd.f32 %v10486, %v8067
        %v10551 = vadd.f32 %v10487, %v8123
        %v10552 = vadd.f32 %v10488, %v8179
        %v10553 = vadd.f32 %v10489, %v8235
        %v10554 = vadd.f32 %v10490, %v8291
        %v10555 = vadd.f32 %v10491, %v8347
        %v10556 = vadd.f32 %v10492, %v8403
        %v10557 = vadd.f32 %v10493, %v8459
        %v10558 = vadd.f32 %v10494, %v8515
        %v10559 = vadd.f32 %v10495, %v8571
        %v10560 = vadd.f32 %v10496, %v8627
        %v10561 = vadd.f32 %v10497, %v8683
        %v10562 = vadd.f32 %v10498, %v8739
        %v10563 = vadd.f32 %v10499, %v8795
        %v10564 = vadd.f32 %v10500, %v8851
        %v10565 = vadd.f32 %v10501, %v8907
        %v10566 = vadd.f32 %v10502, %v8963
        %v10567 = vadd.f32 %v10503, %v9019
        %v10568 = vadd.f32 %v10504, %v9075
        %v10569 = vadd.f32 %v10505, %v9131
        %v10570 = vadd.f32 %v10506, %v9187
        %v10571 = vadd.f32 %v10507, %v9243
        %v10572 = vadd.f32 %v10508, %v9299
        %v10573 = vadd.f32 %v10509, %v9355
        %v10574 = vadd.f32 %v10510, %v9411
        %v10575 = vadd.f32 %v10511, %v9467
        %v10576 = vadd.f32 %v10512, %v9523
        %v10577 = vadd.f32 %v10513, %v9579
        %v10578 = vadd.f32 %v10514, %v9635
        %v10579 = vadd.f32 %v10515, %v9691
        %v10580 = vadd.f32 %v10516, %v9747
        %v10581 = vadd.f32 %v10517, %v9803
        %v10582 = vadd.f32 %v10518, %v9859
        %v10583 = vadd.f32 %v10519, %v9915
        %v10584 = vadd.f32 %v10520, %v9971
        %v10585 = vadd.f32 %v10521, %v10027
        %v10586 = vadd.f32 %v10522, %v10083
        %v10587 = vadd.f32 %v10523, %v10139
        %v10588 = vld [vmem:[#allocation2] sm:$0xff]
        %v10589 = vld [vmem:[#allocation2 + $0x8] sm:$0xff]
        %v10590 = vld [vmem:[#allocation2 + $0x10] sm:$0xff]
        %v10591 = vld [vmem:[#allocation2 + $0x18] sm:$0xff]
        %v10592 = vld [vmem:[#allocation2 + $0x20] sm:$0xff]
        %v10593 = vld [vmem:[#allocation2 + $0x28] sm:$0xff]
        %v10594 = vld [vmem:[#allocation2 + $0x30] sm:$0xff]
        %v10595 = vld [vmem:[#allocation2 + $0x38] sm:$0xff]
        %vm10660 = vcmask 1041409
        %v10661 = vsel %vm10660, %v10525, %v10524
        %vm10662 = vcmask 1042434
        %v10663 = vsel %vm10662, %v10526, %v10661
        %vm10664 = vcmask 1043459
        %v10665 = vsel %vm10664, %v10527, %v10663
        %vm10666 = vcmask 1044484
        %v10667 = vsel %vm10666, %v10528, %v10665
        %vm10668 = vcmask 1045509
        %v10669 = vsel %vm10668, %v10529, %v10667
        %vm10670 = vcmask 1046534
        %v10671 = vsel %vm10670, %v10530, %v10669
        %vm10672 = vcmask 1047559
        %v10673 = vsel %vm10672, %v10531, %v10671
        %v10674 = vsel %vm10660, %v10533, %v10532
        %v10675 = vsel %vm10662, %v10534, %v10674
        %v10676 = vsel %vm10664, %v10535, %v10675
        %v10677 = vsel %vm10666, %v10536, %v10676
        %v10678 = vsel %vm10668, %v10537, %v10677
        %v10679 = vsel %vm10670, %v10538, %v10678
        %v10680 = vsel %vm10672, %v10539, %v10679
        %v10681 = vsel %vm10660, %v10541, %v10540
        %v10682 = vsel %vm10662, %v10542, %v10681
        %v10683 = vsel %vm10664, %v10543, %v10682
        %v10684 = vsel %vm10666, %v10544, %v10683
        %v10685 = vsel %vm10668, %v10545, %v10684
        %v10686 = vsel %vm10670, %v10546, %v10685
        %v10687 = vsel %vm10672, %v10547, %v10686
        %v10688 = vsel %vm10660, %v10549, %v10548
        %v10689 = vsel %vm10662, %v10550, %v10688
        %v10690 = vsel %vm10664, %v10551, %v10689
        %v10691 = vsel %vm10666, %v10552, %v10690
        %v10692 = vsel %vm10668, %v10553, %v10691
        %v10693 = vsel %vm10670, %v10554, %v10692
        %v10694 = vsel %vm10672, %v10555, %v10693
        %v10695 = vsel %vm10660, %v10557, %v10556
        %v10696 = vsel %vm10662, %v10558, %v10695
        %v10697 = vsel %vm10664, %v10559, %v10696
        %v10698 = vsel %vm10666, %v10560, %v10697
        %v10699 = vsel %vm10668, %v10561, %v10698
        %v10700 = vsel %vm10670, %v10562, %v10699
        %v10701 = vsel %vm10672, %v10563, %v10700
        %v10702 = vsel %vm10660, %v10565, %v10564
        %v10703 = vsel %vm10662, %v10566, %v10702
        %v10704 = vsel %vm10664, %v10567, %v10703
        %v10705 = vsel %vm10666, %v10568, %v10704
        %v10706 = vsel %vm10668, %v10569, %v10705
        %v10707 = vsel %vm10670, %v10570, %v10706
        %v10708 = vsel %vm10672, %v10571, %v10707
        %v10709 = vsel %vm10660, %v10573, %v10572
        %v10710 = vsel %vm10662, %v10574, %v10709
        %v10711 = vsel %vm10664, %v10575, %v10710
        %v10712 = vsel %vm10666, %v10576, %v10711
        %v10713 = vsel %vm10668, %v10577, %v10712
        %v10714 = vsel %vm10670, %v10578, %v10713
        %v10715 = vsel %vm10672, %v10579, %v10714
        %v10716 = vsel %vm10660, %v10581, %v10580
        %v10717 = vsel %vm10662, %v10582, %v10716
        %v10718 = vsel %vm10664, %v10583, %v10717
        %v10719 = vsel %vm10666, %v10584, %v10718
        %v10720 = vsel %vm10668, %v10585, %v10719
        %v10721 = vsel %vm10670, %v10586, %v10720
        %v10722 = vsel %vm10672, %v10587, %v10721
        %v10731 = vadd.f32 %v10588, %v10673
        %v10732 = vadd.f32 %v10589, %v10680
        %v10733 = vadd.f32 %v10590, %v10687
        %v10734 = vadd.f32 %v10591, %v10694
        %v10735 = vadd.f32 %v10592, %v10701
        %v10736 = vadd.f32 %v10593, %v10708
        %v10737 = vadd.f32 %v10594, %v10715
        %v10738 = vadd.f32 %v10595, %v10722
        %10739 = vst [vmem:[#allocation2] sm:$0xff] %v10731
        %10740 = vst [vmem:[#allocation2 + $0x8] sm:$0xff] %v10732
        %10741 = vst [vmem:[#allocation2 + $0x10] sm:$0xff] %v10733
        %10742 = vst [vmem:[#allocation2 + $0x18] sm:$0xff] %v10734
        %10743 = vst [vmem:[#allocation2 + $0x20] sm:$0xff] %v10735
        %10744 = vst [vmem:[#allocation2 + $0x28] sm:$0xff] %v10736
        %10745 = vst [vmem:[#allocation2 + $0x30] sm:$0xff] %v10737
        %10746 = vst [vmem:[#allocation2 + $0x38] sm:$0xff] %v10738
        %p10747 = scmp.eq.s32.totalorder %s25, 1
        // Predicated region
        $region90: #{gnn_layer.1} parent=80 // pred_check
          %p10748 = pneg %p10747
        $region91: #{gnn_layer.1} parent=80 // pred_check_branch
          %10750 = sbr.rel (%p10748) target = $region93
        $region92: #{gnn_layer.1} parent=80 // pred_region
          %v10751 = vld [vmem:[#allocation2] sm:$0xff]
          %v10752 = vld [vmem:[#allocation2 + $0x8] sm:$0xff]
          %v10753 = vld [vmem:[#allocation2 + $0x10] sm:$0xff]
          %v10754 = vld [vmem:[#allocation2 + $0x18] sm:$0xff]
          %v10755 = vld [vmem:[#allocation2 + $0x20] sm:$0xff]
          %v10756 = vld [vmem:[#allocation2 + $0x28] sm:$0xff]
          %v10757 = vld [vmem:[#allocation2 + $0x30] sm:$0xff]
          %v10758 = vld [vmem:[#allocation2 + $0x38] sm:$0xff]
          %v10759 = vld [vmem:[%s882] sm:$0xff]
          %v10760 = vld [vmem:[%s882 + $0x8] sm:$0xff]
          %v10761 = vld [vmem:[%s882 + $0x10] sm:$0xff]
          %v10762 = vld [vmem:[%s882 + $0x18] sm:$0xff]
          %v10763 = vld [vmem:[%s882 + $0x20] sm:$0xff]
          %v10764 = vld [vmem:[%s882 + $0x28] sm:$0xff]
          %v10765 = vld [vmem:[%s882 + $0x30] sm:$0xff]
          %v10766 = vld [vmem:[%s882 + $0x38] sm:$0xff]
          %v10767 = vadd.f32 %v10751, %v10759
          %v10768 = vadd.f32 %v10752, %v10760
          %v10769 = vadd.f32 %v10753, %v10761
          %v10770 = vadd.f32 %v10754, %v10762
          %v10771 = vadd.f32 %v10755, %v10763
          %v10772 = vadd.f32 %v10756, %v10764
          %v10773 = vadd.f32 %v10757, %v10765
          %v10774 = vadd.f32 %v10758, %v10766
          %v10775 = vld [vmem:[%s888] sm:$0xff]
          %v10776 = vld [vmem:[%s888 + $0x8] sm:$0xff]
          %v10777 = vld [vmem:[%s888 + $0x10] sm:$0xff]
          %v10778 = vld [vmem:[%s888 + $0x18] sm:$0xff]
          %v10779 = vld [vmem:[%s888 + $0x20] sm:$0xff]
          %v10780 = vld [vmem:[%s888 + $0x28] sm:$0xff]
          %v10781 = vld [vmem:[%s888 + $0x30] sm:$0xff]
          %v10782 = vld [vmem:[%s888 + $0x38] sm:$0xff]
          %v10783 = vld [vmem:[%s5] sm:$0xff]
          %v10784 = vld [vmem:[%s5 + $0x8] sm:$0xff]
          %v10785 = vld [vmem:[%s5 + $0x10] sm:$0xff]
          %v10786 = vld [vmem:[%s5 + $0x18] sm:$0xff]
          %v10787 = vld [vmem:[%s5 + $0x20] sm:$0xff]
          %v10788 = vld [vmem:[%s5 + $0x28] sm:$0xff]
          %v10789 = vld [vmem:[%s5 + $0x30] sm:$0xff]
          %v10790 = vld [vmem:[%s5 + $0x38] sm:$0xff]
          %v10791 = vld [vmem:[%s5 + $0x40] sm:$0xff]
          %v10792 = vld [vmem:[%s5 + $0x48] sm:$0xff]
          %v10793 = vld [vmem:[%s5 + $0x50] sm:$0xff]
          %v10794 = vld [vmem:[%s5 + $0x58] sm:$0xff]
          %v10795 = vld [vmem:[%s5 + $0x60] sm:$0xff]
          %v10796 = vld [vmem:[%s5 + $0x68] sm:$0xff]
          %v10797 = vld [vmem:[%s5 + $0x70] sm:$0xff]
          %v10798 = vld [vmem:[%s5 + $0x78] sm:$0xff]
          %10799 = vmatprep.subr.mxu0 0.0
          %10800 = vmatpush1.msra.mxu0 %v10798
          %10801 = vmatprep.subr.mxu0 0.0
          %10802 = vmatpush1.msra.mxu0 %v10797
          %10803 = vmatprep.subr.mxu0 0.0
          %10804 = vmatpush1.msra.mxu0 %v10796
          %10805 = vmatprep.subr.mxu0 0.0
          %10806 = vmatpush1.msra.mxu0 %v10795
          %10807 = vmatprep.subr.mxu0 0.0
          %10808 = vmatpush1.msra.mxu0 %v10794
          %10809 = vmatprep.subr.mxu0 0.0
          %10810 = vmatpush1.msra.mxu0 %v10793
          %10811 = vmatprep.subr.mxu0 0.0
          %10812 = vmatpush1.msra.mxu0 %v10792
          %10813 = vmatprep.subr.mxu0 0.0
          %10814 = vmatpush1.msra.mxu0 %v10791
          %10815 = vmatprep.subr.mxu0 0.0
          %10816 = vmatpush1.msra.mxu0 %v10790
          %10817 = vmatprep.subr.mxu0 0.0
          %10818 = vmatpush1.msra.mxu0 %v10789
          %10819 = vmatprep.subr.mxu0 0.0
          %10820 = vmatpush1.msra.mxu0 %v10788
          %10821 = vmatprep.subr.mxu0 0.0
          %10822 = vmatpush1.msra.mxu0 %v10787
          %10823 = vmatprep.subr.mxu0 0.0
          %10824 = vmatpush1.msra.mxu0 %v10786
          %10825 = vmatprep.subr.mxu0 0.0
          %10826 = vmatpush1.msra.mxu0 %v10785
          %10827 = vmatprep.subr.mxu0 0.0
          %10828 = vmatpush1.msra.mxu0 %v10784
          %10829 = vmatprep.subr.mxu0 0.0
          %10830 = vmatpush1.msra.mxu0 %v10783
          %10831 = vmatprep.subr.mxu0 0.0
          %10832 = vmatpush2.msra.mxu0 0.0
          %10833 = vmatprep.subr.mxu0 0.0
          %10834 = vmatpush2.msra.mxu0 0.0
          %10835 = vmatprep.subr.mxu0 0.0
          %10836 = vmatpush2.msra.mxu0 0.0
          %10837 = vmatprep.subr.mxu0 0.0
          %10838 = vmatpush2.msra.mxu0 0.0
          %10839 = vmatprep.subr.mxu0 0.0
          %10840 = vmatpush2.msra.mxu0 0.0
          %10841 = vmatprep.subr.mxu0 0.0
          %10842 = vmatpush2.msra.mxu0 0.0
          %10843 = vmatprep.subr.mxu0 0.0
          %10844 = vmatpush2.msra.mxu0 0.0
          %10845 = vmatprep.subr.mxu0 0.0
          %10846 = vmatpush2.msra.mxu0 0.0
          %10847 = vmatprep.subr.mxu0 0.0
          %10848 = vmatpush2.msra.mxu0 0.0
          %10849 = vmatprep.subr.mxu0 0.0
          %10850 = vmatpush2.msra.mxu0 0.0
          %10851 = vmatprep.subr.mxu0 0.0
          %10852 = vmatpush2.msra.mxu0 0.0
          %10853 = vmatprep.subr.mxu0 0.0
          %10854 = vmatpush2.msra.mxu0 0.0
          %10855 = vmatprep.subr.mxu0 0.0
          %10856 = vmatpush2.msra.mxu0 0.0
          %10857 = vmatprep.subr.mxu0 0.0
          %10858 = vmatpush2.msra.mxu0 0.0
          %10859 = vmatprep.subr.mxu0 0.0
          %10860 = vmatpush2.msra.mxu0 0.0
          %10861 = vmatprep.subr.mxu0 0.0
          %10862 = vmatpush2.msra.mxu0 0.0
          %10863 = vmatprep.mubr.f32.mxu0 0.0
          %10864 = vmatmul.mubr.f32.gmra.mxu0 %v10767
          %v10865 = vpop.f32.mrf.mxu0
          %v10866 = vadd.f32 0.0, %v10865
          %v10867 = vpop.f32.mrf.mxu0
          %10868 = vmatprep.mubr.f32.mxu0 0.0
          %10869 = vmatmul.mubr.f32.gmra.mxu0 %v10768
          %v10870 = vpop.f32.mrf.mxu0
          %v10871 = vadd.f32 0.0, %v10870
          %v10872 = vpop.f32.mrf.mxu0
          %10873 = vmatprep.mubr.f32.mxu0 0.0
          %10874 = vmatmul.mubr.f32.gmra.mxu0 %v10769
          %v10875 = vpop.f32.mrf.mxu0
          %v10876 = vadd.f32 0.0, %v10875
          %v10877 = vpop.f32.mrf.mxu0
          %10878 = vmatprep.mubr.f32.mxu0 0.0
          %10879 = vmatmul.mubr.f32.gmra.mxu0 %v10770
          %v10880 = vpop.f32.mrf.mxu0
          %v10881 = vadd.f32 0.0, %v10880
          %v10882 = vpop.f32.mrf.mxu0
          %10883 = vmatprep.mubr.f32.mxu0 0.0
          %10884 = vmatmul.mubr.f32.gmra.mxu0 %v10771
          %v10885 = vpop.f32.mrf.mxu0
          %v10886 = vadd.f32 0.0, %v10885
          %v10887 = vpop.f32.mrf.mxu0
          %10888 = vmatprep.mubr.f32.mxu0 0.0
          %10889 = vmatmul.mubr.f32.gmra.mxu0 %v10772
          %v10890 = vpop.f32.mrf.mxu0
          %v10891 = vadd.f32 0.0, %v10890
          %v10892 = vpop.f32.mrf.mxu0
          %10893 = vmatprep.mubr.f32.mxu0 0.0
          %10894 = vmatmul.mubr.f32.gmra.mxu0 %v10773
          %v10895 = vpop.f32.mrf.mxu0
          %v10896 = vadd.f32 0.0, %v10895
          %v10897 = vpop.f32.mrf.mxu0
          %10898 = vmatprep.mubr.f32.mxu0 0.0
          %10899 = vmatmul.mubr.f32.gmra.mxu0 %v10774
          %v10900 = vpop.f32.mrf.mxu0
          %v10901 = vadd.f32 0.0, %v10900
          %v10902 = vpop.f32.mrf.mxu0
          %10903 = vdwg.mxu0
          %v10904 = vadd.f32 %v10775, %v10866
          %v10905 = vadd.f32 %v10776, %v10871
          %v10906 = vadd.f32 %v10777, %v10876
          %v10907 = vadd.f32 %v10778, %v10881
          %v10908 = vadd.f32 %v10779, %v10886
          %v10909 = vadd.f32 %v10780, %v10891
          %v10910 = vadd.f32 %v10781, %v10896
          %v10911 = vadd.f32 %v10782, %v10901
          %v10912 = vmax.f32 %v10904, 0.0
          %v10913 = vmax.f32 %v10905, 0.0
          %v10914 = vmax.f32 %v10906, 0.0
          %v10915 = vmax.f32 %v10907, 0.0
          %v10916 = vmax.f32 %v10908, 0.0
          %v10917 = vmax.f32 %v10909, 0.0
          %v10918 = vmax.f32 %v10910, 0.0
          %v10919 = vmax.f32 %v10911, 0.0
          %10920 = vst [vmem:[%s868] sm:$0xff] %v10912
          %10921 = vst [vmem:[%s868 + $0x8] sm:$0xff] %v10913
          %10922 = vst [vmem:[%s868 + $0x10] sm:$0xff] %v10914
          %10923 = vst [vmem:[%s868 + $0x18] sm:$0xff] %v10915
          %10924 = vst [vmem:[%s868 + $0x20] sm:$0xff] %v10916
          %10925 = vst [vmem:[%s868 + $0x28] sm:$0xff] %v10917
          %10926 = vst [vmem:[%s868 + $0x30] sm:$0xff] %v10918
          %10927 = vst [vmem:[%s868 + $0x38] sm:$0xff] %v10919
        $region93: #{gnn_layer.1} parent=80 // pred_fallthru
          _
        %s10928 = sand.u32 %s188, 1
        %s10929 = scalar_lea.sflag [#allocation5], %s10928
        %s10930 = sand.u32 %s188, 1
        %s10931 = smul.addr %s10930, 64
        %s10932 = scalar_lea.vmem [#allocation4], %s10931
        // Predicated region
        $region94: #{gnn_layer.1} parent=80 // pred_check
          %p10933 = pneg %p198
        $region95: #{gnn_layer.1} parent=80 // pred_check_branch
          %10935 = sbr.rel (%p10933) target = $region97
        $region96: #{gnn_layer.1} parent=80 // pred_region
          %s10936 = smul.u32 8, %s24
          %s10938 = ssub.s32 1024, 1024
          %10939 = vsyncadd %s10929, %s10938
          %s10940 = smul.addr %s10936, 128
          %s10941 = scalar_lea.hbm %s6, %s10940
          %s10942 = sshll.u32 %s10932, 4
          %s10943 = int_to_ptr.vmem [resolvable:$true] %s10942
          %10948 = dma.vmem_to_hbm [thread:$0]  %s10943, 1024, %s10941, %s10929, 128, 128, 8
        $region97: #{gnn_layer.1} parent=80 // pred_fallthru
          _
      $region81: #{gnn_layer.1} parent=5 // pred_fallthru
        _
      %p10949 = scmp.le.s32.totalorder 2, %s15
      // Predicated region
      $region98: #{gnn_layer.1} parent=5 // pred_check
        %p10950 = pneg %p10949
      $region99: #{gnn_layer.1} parent=5 // pred_check_branch
        %10952 = sbr.rel (%p10950) target = $region101
      $region100: #{gnn_layer.1} parent=5 // pred_region
        %s10953 = ssub.s32 %s15, 2
        // Predicated region
        $region102: #{gnn_layer.1} parent=100 // pred_check
          %p10954 = pneg %p204
        $region103: #{gnn_layer.1} parent=100 // pred_check_branch
          %10956 = sbr.rel (%p10954) target = $region105
        $region104: #{gnn_layer.1} parent=100 // pred_region
          %s10957 = sand.u32 %s189, 1
          %s10958 = scalar_lea.sflag [#allocation5], %s10957
          %s10959 = sand.u32 %s189, 1
          %s10960 = smul.addr %s10959, 64
          %s10961 = scalar_lea.vmem [#allocation4], %s10960
          %10962 = dma.done %s10958, 1024
        $region105: #{gnn_layer.1} parent=100 // pred_fallthru
          _
      $region101: #{gnn_layer.1} parent=5 // pred_fallthru
        _
    $region6: #{gnn_layer.1} parent=1 // loop_footer
      %s19 = sadd.s32 1, %s15
    $region7: #{gnn_layer.1} parent=1 // loop_footer_branch
      %14 = sbr.rel target = $region3
    $region8: #{gnn_layer.1} parent=1 // loop_exit
      _
    %10963 = vsyncpa [#allocation5], 1
    %s10964 = scalar_lea.sflag [#allocation5], 1
    %10965 = vsyncpa %s10964, 1

</llo_original>
